<compile_context>
chip_gen: v5e
topology: v5e:2x2
jax: 0.10.0
libtpu: 0.0.40
codegen_flags: <defaults>
</compile_context>

<pallas_src>
import jax
import jax.numpy as jnp
import numpy as np
from jax.experimental import pallas as pl
from jax.experimental.pallas import tpu as pltpu

N, H, W, C = 2, 8, 8, 256        # conv3x3(256, 256) fixes C; small N, H, W
M = N * H * W                    # rows per branch (=128)
EPS = 1e-5

# The in-kernel roll/mask tap construction assumes H and W are powers of two
# (true here: 8x8) so the row -> (h, w) decode is pure bitwise ops.
assert (H & (H - 1)) == 0 and (W & (W - 1)) == 0


def _fuse_add_kernel(xy_ref, w3_ref, w1_ref, bias_ref, o_ref):
    """All refs live in VMEM.

    xy_ref  : (2M, C)    -- x stacked over y, NHWC rows flattened (b,n,h,w)-major
    w3_ref  : (9, C, C)  -- 3x3 conv weight, [tap = dy*3+dx, Cin, Cout]
    w1_ref  : (C, C)     -- 1x1 conv weight with BN gamma folded in (Cin, Cout)
    bias_ref: (1, C)     -- (2*beta) @ w1  (BN beta contribution)
    o_ref   : (M, C)     -- flattened NHWC output
    """
    x = xy_ref[...]                                            # (2M, C) f32

    # Row -> (h, w) decode for the tap validity masks (implements the conv's
    # zero padding and blocks cross-image / cross-branch wrap of the rolls).
    r = jax.lax.broadcasted_iota(jnp.int32, (2 * M, 1), 0)
    rw = jnp.bitwise_and(r, W - 1)                             # w
    rhw = jnp.bitwise_and(r, H * W - 1)                        # h*W + w
    h_ok = {0: rhw >= W, 1: None, 2: rhw < (H - 1) * W}
    w_ok = {0: rw >= 1, 1: None, 2: rw < W - 1}

    # conv3x3 for both branches as 9 accumulating matmuls.  Tap (dy, dx) reads
    # row r + (dy-1)*W + (dx-1): derive it with an XLU sublane roll and zero
    # the rows whose source falls outside the image.
    acc = None
    for dy in range(3):
        for dx in range(3):
            shift_src = (dy - 1) * W + (dx - 1)                # source row offset
            if shift_src == 0:
                tap = x
            else:
                tap = pltpu.roll(x, (-shift_src) % (2 * M), axis=0)
            mask = h_ok[dy]
            if w_ok[dx] is not None:
                mask = w_ok[dx] if mask is None else jnp.logical_and(mask, w_ok[dx])
            if mask is not None:
                tap = jnp.where(mask, tap, 0.0)
            part = jnp.dot(tap, w3_ref[dy * 3 + dx],
                           preferred_element_type=jnp.float32)
            acc = part if acc is None else acc + part          # (2M, C)

    # Training-mode BatchNorm per branch (two-pass variance for stability).
    # gamma/beta are folded into w1/bias outside the kernel.
    def normalize(zb):
        mean = jnp.mean(zb, axis=0, keepdims=True)             # (1, C)
        d = zb - mean
        var = jnp.mean(d * d, axis=0, keepdims=True)           # (1, C)
        return d * jax.lax.rsqrt(var + EPS)

    t = normalize(acc[:M]) + normalize(acc[M:])                # (M, C)

    out = jnp.dot(t, w1_ref[...], preferred_element_type=jnp.float32) + bias_ref[...]
    o_ref[...] = jnp.maximum(out, 0.0)


# Advisory cost estimate (lets XLA overlap the surrounding transposes).
_FLOPS = 2 * (2 * M) * (9 * C) * C + 2 * M * C * C             # ~3.2e8
_BYTES = 4 * (2 * M * C + 9 * C * C + C * C + C + M * C)       # ~3.0e6


@jax.jit
def fuse_add_1(x_nchw, y_nchw, w3_oihw, w1_oihw, gamma, beta):
    """x, y: (N, C, H, W) float32.  Returns (N, C, H, W)."""
    # TODO(synk): if the surrounding graph can stay NHWC, drop these
    # NCHW<->NHWC transposes (~40% of this op's total HBM bytes).
    xy = jnp.transpose(jnp.concatenate([x_nchw, y_nchw], axis=0), (0, 2, 3, 1))
    xy_flat = xy.reshape(2 * M, C)

    # PyTorch weight layouts -> kernel layouts (+ BN affine folding); tiny
    # constant-shaped work done once by XLA.
    w3 = jnp.transpose(w3_oihw, (2, 3, 1, 0)).reshape(9, C, C)    # [tap, Cin, Cout]
    w1 = jnp.transpose(w1_oihw[:, :, 0, 0], (1, 0))               # (Cin, Cout)
    w1s = gamma.reshape(C, 1) * w1                                # fold gamma
    bias = (2.0 * beta).reshape(1, C) @ w1                        # fold beta

    vmem = pl.BlockSpec(memory_space=pltpu.MemorySpace.VMEM)
    out_flat = pl.pallas_call(
        _fuse_add_kernel,
        out_shape=jax.ShapeDtypeStruct((M, C), jnp.float32),
        in_specs=[vmem] * 4,
        out_specs=vmem,
        cost_estimate=pl.CostEstimate(flops=_FLOPS, transcendentals=2 * C,
                                      bytes_accessed=_BYTES),
    )(xy_flat, w3, w1s, bias)

    out = out_flat.reshape(N, H, W, C)
    return jnp.transpose(out, (0, 3, 1, 2))                       # back to NCHW


def _reference(x, y, w3_oihw, w1_oihw, gamma, beta):
    """Pure-JAX reference mirroring the PyTorch module (training-mode BN)."""
    def conv3(inp):
        return jax.lax.conv_general_dilated(
            inp, w3_oihw, (1, 1), ((1, 1), (1, 1)),
            dimension_numbers=("NCHW", "OIHW", "NCHW"))

    def bn(z):
        mean = z.mean(axis=(0, 2, 3), keepdims=True)
        var = ((z - mean) ** 2).mean(axis=(0, 2, 3), keepdims=True)
        return ((z - mean) / jnp.sqrt(var + EPS)
                * gamma.reshape(1, C, 1, 1) + beta.reshape(1, C, 1, 1))

    s = bn(conv3(x)) + bn(conv3(y))
    out = jax.lax.conv_general_dilated(
        s, w1_oihw, (1, 1), ((0, 0), (0, 0)),
        dimension_numbers=("NCHW", "OIHW", "NCHW"))
    return jnp.maximum(out, 0.0)


if __name__ == "__main__":
    key = jax.random.PRNGKey(0)
    kx, ky, kw3, kw1, kg, kb = jax.random.split(key, 6)

    x = jax.random.normal(kx, (N, C, H, W), dtype=jnp.float32)
    y = jax.random.normal(ky, (N, C, H, W), dtype=jnp.float32)

    # Deterministic synthetic parameters (shapes match nn.Conv2d / nn.BatchNorm2d).
    w3 = jax.random.normal(kw3, (C, C, 3, 3), dtype=jnp.float32) * 0.02   # conv3x3, bias=False
    w1 = jax.random.normal(kw1, (C, C, 1, 1), dtype=jnp.float32) * 0.02   # conv1x1, bias=False
    gamma = 1.0 + 0.1 * jax.random.normal(kg, (C,), dtype=jnp.float32)    # bn1 weight
    beta = 0.1 * jax.random.normal(kb, (C,), dtype=jnp.float32)           # bn1 bias

    out = jax.block_until_ready(fuse_add_1(x, y, w3, w1, gamma, beta))
    ref = jax.block_until_ready(_reference(x, y, w3, w1, gamma, beta))

    np.testing.assert_allclose(np.asarray(out), np.asarray(ref), rtol=2e-3, atol=2e-3)
    print("KERNEL_OK")
</pallas_src>

<mosaic_0001>
module attributes {stable_mosaic.version = 11 : i64} {
  func.func @_fuse_add_kernel(%arg0: memref<256x256xf32, #tpu.memory_space<vmem>>, %arg1: memref<9x256x256xf32, #tpu.memory_space<vmem>>, %arg2: memref<256x256xf32, #tpu.memory_space<vmem>>, %arg3: memref<1x256xf32, #tpu.memory_space<vmem>>, %arg4: memref<128x256xf32, #tpu.memory_space<vmem>>) attributes {dimension_semantics = [], scalar_prefetch = 0 : i64, scratch_operands = 0 : i64, tpu.core_type = #tpu.core_type<tc>} {
    %c0 = arith.constant 0 : index
    %c0_0 = arith.constant 0 : index
    %0 = vector.load %arg0[%c0, %c0_0] : memref<256x256xf32, #tpu.memory_space<vmem>>, vector<256x256xf32>
    %1 = tpu.iota {dimensions = array<i32: 0>} : vector<256x1xi32>
    %c7_i32 = arith.constant 7 : i32
    %2 = vector.broadcast %c7_i32 : i32 to vector<256x1xi32>
    %3 = arith.andi %1, %2 : vector<256x1xi32>
    %c63_i32 = arith.constant 63 : i32
    %4 = vector.broadcast %c63_i32 : i32 to vector<256x1xi32>
    %5 = arith.andi %1, %4 : vector<256x1xi32>
    %c8_i32 = arith.constant 8 : i32
    %6 = vector.broadcast %c8_i32 : i32 to vector<256x1xi32>
    %7 = arith.cmpi sge, %5, %6 : vector<256x1xi32>
    %c56_i32 = arith.constant 56 : i32
    %8 = vector.broadcast %c56_i32 : i32 to vector<256x1xi32>
    %9 = arith.cmpi slt, %5, %8 : vector<256x1xi32>
    %c1_i32 = arith.constant 1 : i32
    %10 = vector.broadcast %c1_i32 : i32 to vector<256x1xi32>
    %11 = arith.cmpi sge, %3, %10 : vector<256x1xi32>
    %c7_i32_1 = arith.constant 7 : i32
    %12 = vector.broadcast %c7_i32_1 : i32 to vector<256x1xi32>
    %13 = arith.cmpi slt, %3, %12 : vector<256x1xi32>
    %c9_i32 = arith.constant 9 : i32
    %14 = tpu.dynamic_rotate %0 by %c9_i32 dim 0 : vector<256x256xf32>, i32 -> vector<256x256xf32>
    %15 = arith.andi %7, %11 : vector<256x1xi1>
    %cst = arith.constant 0.000000e+00 : f32
    %16 = vector.shape_cast %15 : vector<256x1xi1> to vector<256x1xi1>
    %17 = vector.broadcast %16 : vector<256x1xi1> to vector<256x256xi1>
    %18 = vector.broadcast %cst : f32 to vector<256x256xf32>
    %19 = arith.select %17, %14, %18 : vector<256x256xi1>, vector<256x256xf32>
    %c0_2 = arith.constant 0 : index
    %c0_3 = arith.constant 0 : index
    %c0_4 = arith.constant 0 : index
    %20 = vector.load %arg1[%c0_2, %c0_3, %c0_4] : memref<9x256x256xf32, #tpu.memory_space<vmem>>, vector<1x256x256xf32>
    %21 = vector.shape_cast %20 : vector<1x256x256xf32> to vector<256x256xf32>
    %cst_5 = arith.constant dense<0.000000e+00> : vector<256x256xf32>
    %22 = tpu.matmul %19, %21, %cst_5 {dimension_numbers = #tpu.dot_dimension_numbers<[1], [0], [0], [1], [0, 0, 1, 1], [], []>} : vector<256x256xf32>, vector<256x256xf32>, vector<256x256xf32> -> vector<256x256xf32>
    %c8_i32_6 = arith.constant 8 : i32
    %23 = tpu.dynamic_rotate %0 by %c8_i32_6 dim 0 : vector<256x256xf32>, i32 -> vector<256x256xf32>
    %cst_7 = arith.constant 0.000000e+00 : f32
    %24 = vector.shape_cast %7 : vector<256x1xi1> to vector<256x1xi1>
    %25 = vector.broadcast %24 : vector<256x1xi1> to vector<256x256xi1>
    %26 = vector.broadcast %cst_7 : f32 to vector<256x256xf32>
    %27 = arith.select %25, %23, %26 : vector<256x256xi1>, vector<256x256xf32>
    %c1 = arith.constant 1 : index
    %c0_8 = arith.constant 0 : index
    %c0_9 = arith.constant 0 : index
    %28 = vector.load %arg1[%c1, %c0_8, %c0_9] : memref<9x256x256xf32, #tpu.memory_space<vmem>>, vector<1x256x256xf32>
    %29 = vector.shape_cast %28 : vector<1x256x256xf32> to vector<256x256xf32>
    %cst_10 = arith.constant dense<0.000000e+00> : vector<256x256xf32>
    %30 = tpu.matmul %27, %29, %cst_10 {dimension_numbers = #tpu.dot_dimension_numbers<[1], [0], [0], [1], [0, 0, 1, 1], [], []>} : vector<256x256xf32>, vector<256x256xf32>, vector<256x256xf32> -> vector<256x256xf32>
    %31 = arith.addf %22, %30 : vector<256x256xf32>
    %c7_i32_11 = arith.constant 7 : i32
    %32 = tpu.dynamic_rotate %0 by %c7_i32_11 dim 0 : vector<256x256xf32>, i32 -> vector<256x256xf32>
    %33 = arith.andi %7, %13 : vector<256x1xi1>
    %cst_12 = arith.constant 0.000000e+00 : f32
    %34 = vector.shape_cast %33 : vector<256x1xi1> to vector<256x1xi1>
    %35 = vector.broadcast %34 : vector<256x1xi1> to vector<256x256xi1>
    %36 = vector.broadcast %cst_12 : f32 to vector<256x256xf32>
    %37 = arith.select %35, %32, %36 : vector<256x256xi1>, vector<256x256xf32>
    %c2 = arith.constant 2 : index
    %c0_13 = arith.constant 0 : index
    %c0_14 = arith.constant 0 : index
    %38 = vector.load %arg1[%c2, %c0_13, %c0_14] : memref<9x256x256xf32, #tpu.memory_space<vmem>>, vector<1x256x256xf32>
    %39 = vector.shape_cast %38 : vector<1x256x256xf32> to vector<256x256xf32>
    %cst_15 = arith.constant dense<0.000000e+00> : vector<256x256xf32>
    %40 = tpu.matmul %37, %39, %cst_15 {dimension_numbers = #tpu.dot_dimension_numbers<[1], [0], [0], [1], [0, 0, 1, 1], [], []>} : vector<256x256xf32>, vector<256x256xf32>, vector<256x256xf32> -> vector<256x256xf32>
    %41 = arith.addf %31, %40 : vector<256x256xf32>
    %c1_i32_16 = arith.constant 1 : i32
    %42 = tpu.dynamic_rotate %0 by %c1_i32_16 dim 0 : vector<256x256xf32>, i32 -> vector<256x256xf32>
    %cst_17 = arith.constant 0.000000e+00 : f32
    %43 = vector.shape_cast %11 : vector<256x1xi1> to vector<256x1xi1>
    %44 = vector.broadcast %43 : vector<256x1xi1> to vector<256x256xi1>
    %45 = vector.broadcast %cst_17 : f32 to vector<256x256xf32>
    %46 = arith.select %44, %42, %45 : vector<256x256xi1>, vector<256x256xf32>
    %c3 = arith.constant 3 : index
    %c0_18 = arith.constant 0 : index
    %c0_19 = arith.constant 0 : index
    %47 = vector.load %arg1[%c3, %c0_18, %c0_19] : memref<9x256x256xf32, #tpu.memory_space<vmem>>, vector<1x256x256xf32>
    %48 = vector.shape_cast %47 : vector<1x256x256xf32> to vector<256x256xf32>
    %cst_20 = arith.constant dense<0.000000e+00> : vector<256x256xf32>
    %49 = tpu.matmul %46, %48, %cst_20 {dimension_numbers = #tpu.dot_dimension_numbers<[1], [0], [0], [1], [0, 0, 1, 1], [], []>} : vector<256x256xf32>, vector<256x256xf32>, vector<256x256xf32> -> vector<256x256xf32>
    %50 = arith.addf %41, %49 : vector<256x256xf32>
    %c4 = arith.constant 4 : index
    %c0_21 = arith.constant 0 : index
    %c0_22 = arith.constant 0 : index
    %51 = vector.load %arg1[%c4, %c0_21, %c0_22] : memref<9x256x256xf32, #tpu.memory_space<vmem>>, vector<1x256x256xf32>
    %52 = vector.shape_cast %51 : vector<1x256x256xf32> to vector<256x256xf32>
    %cst_23 = arith.constant dense<0.000000e+00> : vector<256x256xf32>
    %53 = tpu.matmul %0, %52, %cst_23 {dimension_numbers = #tpu.dot_dimension_numbers<[1], [0], [0], [1], [0, 0, 1, 1], [], []>} : vector<256x256xf32>, vector<256x256xf32>, vector<256x256xf32> -> vector<256x256xf32>
    %54 = arith.addf %50, %53 : vector<256x256xf32>
    %c255_i32 = arith.constant 255 : i32
    %55 = tpu.dynamic_rotate %0 by %c255_i32 dim 0 : vector<256x256xf32>, i32 -> vector<256x256xf32>
    %cst_24 = arith.constant 0.000000e+00 : f32
    %56 = vector.shape_cast %13 : vector<256x1xi1> to vector<256x1xi1>
    %57 = vector.broadcast %56 : vector<256x1xi1> to vector<256x256xi1>
    %58 = vector.broadcast %cst_24 : f32 to vector<256x256xf32>
    %59 = arith.select %57, %55, %58 : vector<256x256xi1>, vector<256x256xf32>
    %c5 = arith.constant 5 : index
    %c0_25 = arith.constant 0 : index
    %c0_26 = arith.constant 0 : index
    %60 = vector.load %arg1[%c5, %c0_25, %c0_26] : memref<9x256x256xf32, #tpu.memory_space<vmem>>, vector<1x256x256xf32>
    %61 = vector.shape_cast %60 : vector<1x256x256xf32> to vector<256x256xf32>
    %cst_27 = arith.constant dense<0.000000e+00> : vector<256x256xf32>
    %62 = tpu.matmul %59, %61, %cst_27 {dimension_numbers = #tpu.dot_dimension_numbers<[1], [0], [0], [1], [0, 0, 1, 1], [], []>} : vector<256x256xf32>, vector<256x256xf32>, vector<256x256xf32> -> vector<256x256xf32>
    %63 = arith.addf %54, %62 : vector<256x256xf32>
    %c249_i32 = arith.constant 249 : i32
    %64 = tpu.dynamic_rotate %0 by %c249_i32 dim 0 : vector<256x256xf32>, i32 -> vector<256x256xf32>
    %65 = arith.andi %9, %11 : vector<256x1xi1>
    %cst_28 = arith.constant 0.000000e+00 : f32
    %66 = vector.shape_cast %65 : vector<256x1xi1> to vector<256x1xi1>
    %67 = vector.broadcast %66 : vector<256x1xi1> to vector<256x256xi1>
    %68 = vector.broadcast %cst_28 : f32 to vector<256x256xf32>
    %69 = arith.select %67, %64, %68 : vector<256x256xi1>, vector<256x256xf32>
    %c6 = arith.constant 6 : index
    %c0_29 = arith.constant 0 : index
    %c0_30 = arith.constant 0 : index
    %70 = vector.load %arg1[%c6, %c0_29, %c0_30] : memref<9x256x256xf32, #tpu.memory_space<vmem>>, vector<1x256x256xf32>
    %71 = vector.shape_cast %70 : vector<1x256x256xf32> to vector<256x256xf32>
    %cst_31 = arith.constant dense<0.000000e+00> : vector<256x256xf32>
    %72 = tpu.matmul %69, %71, %cst_31 {dimension_numbers = #tpu.dot_dimension_numbers<[1], [0], [0], [1], [0, 0, 1, 1], [], []>} : vector<256x256xf32>, vector<256x256xf32>, vector<256x256xf32> -> vector<256x256xf32>
    %73 = arith.addf %63, %72 : vector<256x256xf32>
    %c248_i32 = arith.constant 248 : i32
    %74 = tpu.dynamic_rotate %0 by %c248_i32 dim 0 : vector<256x256xf32>, i32 -> vector<256x256xf32>
    %cst_32 = arith.constant 0.000000e+00 : f32
    %75 = vector.shape_cast %9 : vector<256x1xi1> to vector<256x1xi1>
    %76 = vector.broadcast %75 : vector<256x1xi1> to vector<256x256xi1>
    %77 = vector.broadcast %cst_32 : f32 to vector<256x256xf32>
    %78 = arith.select %76, %74, %77 : vector<256x256xi1>, vector<256x256xf32>
    %c7 = arith.constant 7 : index
    %c0_33 = arith.constant 0 : index
    %c0_34 = arith.constant 0 : index
    %79 = vector.load %arg1[%c7, %c0_33, %c0_34] : memref<9x256x256xf32, #tpu.memory_space<vmem>>, vector<1x256x256xf32>
    %80 = vector.shape_cast %79 : vector<1x256x256xf32> to vector<256x256xf32>
    %cst_35 = arith.constant dense<0.000000e+00> : vector<256x256xf32>
    %81 = tpu.matmul %78, %80, %cst_35 {dimension_numbers = #tpu.dot_dimension_numbers<[1], [0], [0], [1], [0, 0, 1, 1], [], []>} : vector<256x256xf32>, vector<256x256xf32>, vector<256x256xf32> -> vector<256x256xf32>
    %82 = arith.addf %73, %81 : vector<256x256xf32>
    %c247_i32 = arith.constant 247 : i32
    %83 = tpu.dynamic_rotate %0 by %c247_i32 dim 0 : vector<256x256xf32>, i32 -> vector<256x256xf32>
    %84 = arith.andi %9, %13 : vector<256x1xi1>
    %cst_36 = arith.constant 0.000000e+00 : f32
    %85 = vector.shape_cast %84 : vector<256x1xi1> to vector<256x1xi1>
    %86 = vector.broadcast %85 : vector<256x1xi1> to vector<256x256xi1>
    %87 = vector.broadcast %cst_36 : f32 to vector<256x256xf32>
    %88 = arith.select %86, %83, %87 : vector<256x256xi1>, vector<256x256xf32>
    %c8 = arith.constant 8 : index
    %c0_37 = arith.constant 0 : index
    %c0_38 = arith.constant 0 : index
    %89 = vector.load %arg1[%c8, %c0_37, %c0_38] : memref<9x256x256xf32, #tpu.memory_space<vmem>>, vector<1x256x256xf32>
    %90 = vector.shape_cast %89 : vector<1x256x256xf32> to vector<256x256xf32>
    %cst_39 = arith.constant dense<0.000000e+00> : vector<256x256xf32>
    %91 = tpu.matmul %88, %90, %cst_39 {dimension_numbers = #tpu.dot_dimension_numbers<[1], [0], [0], [1], [0, 0, 1, 1], [], []>} : vector<256x256xf32>, vector<256x256xf32>, vector<256x256xf32> -> vector<256x256xf32>
    %92 = arith.addf %82, %91 : vector<256x256xf32>
    %93 = vector.extract_strided_slice %92 {offsets = [0, 0], sizes = [128, 256], strides = [1, 1]} : vector<256x256xf32> to vector<128x256xf32>
    %cst_40 = arith.constant dense<0.000000e+00> : vector<256xf32>
    %94 = vector.multi_reduction <add>, %93, %cst_40 [0] : vector<128x256xf32> to vector<256xf32>
    %95 = vector.shape_cast %94 : vector<256xf32> to vector<1x256xf32>
    %cst_41 = arith.constant 1.280000e+02 : f32
    %96 = vector.broadcast %cst_41 : f32 to vector<1x256xf32>
    %97 = arith.divf %95, %96 : vector<1x256xf32>
    %98 = vector.broadcast %97 : vector<1x256xf32> to vector<128x256xf32>
    %99 = arith.subf %93, %98 : vector<128x256xf32>
    %100 = arith.mulf %99, %99 : vector<128x256xf32>
    %cst_42 = arith.constant dense<0.000000e+00> : vector<256xf32>
    %101 = vector.multi_reduction <add>, %100, %cst_42 [0] : vector<128x256xf32> to vector<256xf32>
    %102 = vector.shape_cast %101 : vector<256xf32> to vector<1x256xf32>
    %cst_43 = arith.constant 1.280000e+02 : f32
    %103 = vector.broadcast %cst_43 : f32 to vector<1x256xf32>
    %104 = arith.divf %102, %103 : vector<1x256xf32>
    %cst_44 = arith.constant 9.99999974E-6 : f32
    %105 = vector.broadcast %cst_44 : f32 to vector<1x256xf32>
    %106 = arith.addf %104, %105 : vector<1x256xf32>
    %107 = math.rsqrt %106 : vector<1x256xf32>
    %108 = vector.broadcast %107 : vector<1x256xf32> to vector<128x256xf32>
    %109 = arith.mulf %99, %108 : vector<128x256xf32>
    %110 = vector.extract_strided_slice %92 {offsets = [128, 0], sizes = [128, 256], strides = [1, 1]} : vector<256x256xf32> to vector<128x256xf32>
    %cst_45 = arith.constant dense<0.000000e+00> : vector<256xf32>
    %111 = vector.multi_reduction <add>, %110, %cst_45 [0] : vector<128x256xf32> to vector<256xf32>
    %112 = vector.shape_cast %111 : vector<256xf32> to vector<1x256xf32>
    %cst_46 = arith.constant 1.280000e+02 : f32
    %113 = vector.broadcast %cst_46 : f32 to vector<1x256xf32>
    %114 = arith.divf %112, %113 : vector<1x256xf32>
    %115 = vector.broadcast %114 : vector<1x256xf32> to vector<128x256xf32>
    %116 = arith.subf %110, %115 : vector<128x256xf32>
    %117 = arith.mulf %116, %116 : vector<128x256xf32>
    %cst_47 = arith.constant dense<0.000000e+00> : vector<256xf32>
    %118 = vector.multi_reduction <add>, %117, %cst_47 [0] : vector<128x256xf32> to vector<256xf32>
    %119 = vector.shape_cast %118 : vector<256xf32> to vector<1x256xf32>
    %cst_48 = arith.constant 1.280000e+02 : f32
    %120 = vector.broadcast %cst_48 : f32 to vector<1x256xf32>
    %121 = arith.divf %119, %120 : vector<1x256xf32>
    %cst_49 = arith.constant 9.99999974E-6 : f32
    %122 = vector.broadcast %cst_49 : f32 to vector<1x256xf32>
    %123 = arith.addf %121, %122 : vector<1x256xf32>
    %124 = math.rsqrt %123 : vector<1x256xf32>
    %125 = vector.broadcast %124 : vector<1x256xf32> to vector<128x256xf32>
    %126 = arith.mulf %116, %125 : vector<128x256xf32>
    %127 = arith.addf %109, %126 : vector<128x256xf32>
    %c0_50 = arith.constant 0 : index
    %c0_51 = arith.constant 0 : index
    %128 = vector.load %arg2[%c0_50, %c0_51] : memref<256x256xf32, #tpu.memory_space<vmem>>, vector<256x256xf32>
    %cst_52 = arith.constant dense<0.000000e+00> : vector<128x256xf32>
    %129 = tpu.matmul %127, %128, %cst_52 {dimension_numbers = #tpu.dot_dimension_numbers<[1], [0], [0], [1], [0, 0, 1, 1], [], []>} : vector<128x256xf32>, vector<256x256xf32>, vector<128x256xf32> -> vector<128x256xf32>
    %c0_53 = arith.constant 0 : index
    %c0_54 = arith.constant 0 : index
    %130 = vector.load %arg3[%c0_53, %c0_54] : memref<1x256xf32, #tpu.memory_space<vmem>>, vector<1x256xf32>
    %131 = vector.broadcast %130 : vector<1x256xf32> to vector<128x256xf32>
    %132 = arith.addf %129, %131 : vector<128x256xf32>
    %cst_55 = arith.constant 0.000000e+00 : f32
    %133 = vector.broadcast %cst_55 : f32 to vector<128x256xf32>
    %134 = arith.maximumf %132, %133 : vector<128x256xf32>
    %c0_56 = arith.constant 0 : index
    %c0_57 = arith.constant 0 : index
    %135 = vector.load %arg4[%c0_56, %c0_57] : memref<128x256xf32, #tpu.memory_space<vmem>>, vector<128x256xf32>
    tpu.vector_store %arg4[%c0_56, %c0_57], %134 {strides = array<i32>} : memref<128x256xf32, #tpu.memory_space<vmem>>, vector<128x256xf32>,
    return
  }
}

</mosaic_0001>

<llo_original>
// kernel: fuse_add_1.1
$region0: #{fuse_add_1.1}
  #allocation0 [shape = 'u32[]', space=smem, size = 0x4, offset = 0x4, fixed_abs, tag = 'smem constant byte address 0x4 - core index']
  #allocation1 [shape = 'u32[72,128]{1,0:T(1,128)}', space=vmem, size = 0x9000, scoped, tag = 'internal scratch']
  %s0 = inlined_call_operand.vmem [shape: f32[256,256], index: 0, kind: input, shape index: {}]
  %s1 = inlined_call_operand.vmem [shape: f32[9,256,256], index: 1, kind: input, shape index: {}]
  %s2 = inlined_call_operand.vmem [shape: f32[256,256], index: 2, kind: input, shape index: {}]
  %s3 = inlined_call_operand.vmem [shape: f32[1,256], index: 3, kind: input, shape index: {}]
  %s4 = inlined_call_operand.hbm [shape: f32[128,256], index: 4, kind: output, shape index: {}]
  %s5 = sld [smem:[#allocation0]]
  $region26: #{fuse_add_1.1} parent=0
    _
  %s7 = ssub.s32 1, %s5
  %s8 = scalar_select 0, %s7, %s5
  $region1: #{fuse_add_1.1} parent=0
    #allocation2 [shape = 'u8[131072]{0}', space=vmem, size = 0x20000, scoped, tag = 'output window, operand 0, single buffered']
    #allocation3 [shape = 's32[1]{0}', space=sflag, size = 0x4, scoped, tag = 'scoped memory for fuse_add_1.1']
    %9 = vsyncpa [#allocation3], 0
    // Predicated region
    $region2: #{fuse_add_1.1} parent=1 // pred_check
      _
    $region3: #{fuse_add_1.1} parent=1 // pred_check_branch
      %11 = sbr.rel (0) target = $region5
    $region4: #{fuse_add_1.1} parent=1 // pred_region
      _
    $region5: #{fuse_add_1.1} parent=1 // pred_fallthru
      _
    // Predicated region
    $region6: #{fuse_add_1.1} parent=1 // pred_check
      _
    $region7: #{fuse_add_1.1} parent=1 // pred_check_branch
      %13 = sbr.rel (0) target = $region9
    $region8: #{fuse_add_1.1} parent=1 // pred_region
      _
    $region9: #{fuse_add_1.1} parent=1 // pred_fallthru
      _
    // Predicated region
    $region10: #{fuse_add_1.1} parent=1 // pred_check
      _
    $region11: #{fuse_add_1.1} parent=1 // pred_check_branch
      %15 = sbr.rel (0) target = $region13
    $region12: #{fuse_add_1.1} parent=1 // pred_region
      _
    $region13: #{fuse_add_1.1} parent=1 // pred_fallthru
      _
    // Predicated region
    $region14: #{fuse_add_1.1} parent=1 // pred_check
      _
    $region15: #{fuse_add_1.1} parent=1 // pred_check_branch
      %17 = sbr.rel (0) target = $region17
    $region16: #{fuse_add_1.1} parent=1 // pred_region
      _
    $region17: #{fuse_add_1.1} parent=1 // pred_fallthru
      _
    %v18 = vld [vmem:[%s0] sm:$0xff]
    %v19 = vld [vmem:[%s0 + $0x8] sm:$0xff]
    %v20 = vld [vmem:[%s0 + $0x10] sm:$0xff]
    %v21 = vld [vmem:[%s0 + $0x18] sm:$0xff]
    %v22 = vld [vmem:[%s0 + $0x20] sm:$0xff]
    %v23 = vld [vmem:[%s0 + $0x28] sm:$0xff]
    %v24 = vld [vmem:[%s0 + $0x30] sm:$0xff]
    %v25 = vld [vmem:[%s0 + $0x38] sm:$0xff]
    %v26 = vld [vmem:[%s0 + $0x40] sm:$0xff]
    %v27 = vld [vmem:[%s0 + $0x48] sm:$0xff]
    %v28 = vld [vmem:[%s0 + $0x50] sm:$0xff]
    %v29 = vld [vmem:[%s0 + $0x58] sm:$0xff]
    %v30 = vld [vmem:[%s0 + $0x60] sm:$0xff]
    %v31 = vld [vmem:[%s0 + $0x68] sm:$0xff]
    %v32 = vld [vmem:[%s0 + $0x70] sm:$0xff]
    %v33 = vld [vmem:[%s0 + $0x78] sm:$0xff]
    %v34 = vld [vmem:[%s0 + $0x80] sm:$0xff]
    %v35 = vld [vmem:[%s0 + $0x88] sm:$0xff]
    %v36 = vld [vmem:[%s0 + $0x90] sm:$0xff]
    %v37 = vld [vmem:[%s0 + $0x98] sm:$0xff]
    %v38 = vld [vmem:[%s0 + $0xa0] sm:$0xff]
    %v39 = vld [vmem:[%s0 + $0xa8] sm:$0xff]
    %v40 = vld [vmem:[%s0 + $0xb0] sm:$0xff]
    %v41 = vld [vmem:[%s0 + $0xb8] sm:$0xff]
    %v42 = vld [vmem:[%s0 + $0xc0] sm:$0xff]
    %v43 = vld [vmem:[%s0 + $0xc8] sm:$0xff]
    %v44 = vld [vmem:[%s0 + $0xd0] sm:$0xff]
    %v45 = vld [vmem:[%s0 + $0xd8] sm:$0xff]
    %v46 = vld [vmem:[%s0 + $0xe0] sm:$0xff]
    %v47 = vld [vmem:[%s0 + $0xe8] sm:$0xff]
    %v48 = vld [vmem:[%s0 + $0xf0] sm:$0xff]
    %v49 = vld [vmem:[%s0 + $0xf8] sm:$0xff]
    %v50 = vld [vmem:[%s0 + $0x100] sm:$0xff]
    %v51 = vld [vmem:[%s0 + $0x108] sm:$0xff]
    %v52 = vld [vmem:[%s0 + $0x110] sm:$0xff]
    %v53 = vld [vmem:[%s0 + $0x118] sm:$0xff]
    %v54 = vld [vmem:[%s0 + $0x120] sm:$0xff]
    %v55 = vld [vmem:[%s0 + $0x128] sm:$0xff]
    %v56 = vld [vmem:[%s0 + $0x130] sm:$0xff]
    %v57 = vld [vmem:[%s0 + $0x138] sm:$0xff]
    %v58 = vld [vmem:[%s0 + $0x140] sm:$0xff]
    %v59 = vld [vmem:[%s0 + $0x148] sm:$0xff]
    %v60 = vld [vmem:[%s0 + $0x150] sm:$0xff]
    %v61 = vld [vmem:[%s0 + $0x158] sm:$0xff]
    %v62 = vld [vmem:[%s0 + $0x160] sm:$0xff]
    %v63 = vld [vmem:[%s0 + $0x168] sm:$0xff]
    %v64 = vld [vmem:[%s0 + $0x170] sm:$0xff]
    %v65 = vld [vmem:[%s0 + $0x178] sm:$0xff]
    %v66 = vld [vmem:[%s0 + $0x180] sm:$0xff]
    %v67 = vld [vmem:[%s0 + $0x188] sm:$0xff]
    %v68 = vld [vmem:[%s0 + $0x190] sm:$0xff]
    %v69 = vld [vmem:[%s0 + $0x198] sm:$0xff]
    %v70 = vld [vmem:[%s0 + $0x1a0] sm:$0xff]
    %v71 = vld [vmem:[%s0 + $0x1a8] sm:$0xff]
    %v72 = vld [vmem:[%s0 + $0x1b0] sm:$0xff]
    %v73 = vld [vmem:[%s0 + $0x1b8] sm:$0xff]
    %v74 = vld [vmem:[%s0 + $0x1c0] sm:$0xff]
    %v75 = vld [vmem:[%s0 + $0x1c8] sm:$0xff]
    %v76 = vld [vmem:[%s0 + $0x1d0] sm:$0xff]
    %v77 = vld [vmem:[%s0 + $0x1d8] sm:$0xff]
    %v78 = vld [vmem:[%s0 + $0x1e0] sm:$0xff]
    %v79 = vld [vmem:[%s0 + $0x1e8] sm:$0xff]
    %v80 = vld [vmem:[%s0 + $0x1f0] sm:$0xff]
    %v81 = vld [vmem:[%s0 + $0x1f8] sm:$0xff]
    %v82 = vlaneseq
    %v83 = vshrl.u32 %v82, 7
    %v84 = vadd.s32 %v83, 8
    %v85 = vadd.s32 %v83, 16
    %v86 = vadd.s32 %v83, 24
    %v87 = vadd.s32 %v83, 32
    %v88 = vadd.s32 %v83, 40
    %v89 = vadd.s32 %v83, 48
    %v90 = vadd.s32 %v83, 56
    %v91 = vadd.s32 %v83, 64
    %v92 = vadd.s32 %v83, 72
    %v93 = vadd.s32 %v83, 80
    %v94 = vadd.s32 %v83, 88
    %v95 = vadd.s32 %v83, 96
    %v96 = vadd.s32 %v83, 104
    %v97 = vadd.s32 %v83, 112
    %v98 = vadd.s32 %v83, 120
    %v99 = vadd.s32 %v83, 128
    %v100 = vadd.s32 %v83, 136
    %v101 = vadd.s32 %v83, 144
    %v102 = vadd.s32 %v83, 152
    %v103 = vadd.s32 %v83, 160
    %v104 = vadd.s32 %v83, 168
    %v105 = vadd.s32 %v83, 176
    %v106 = vadd.s32 %v83, 184
    %v107 = vadd.s32 %v83, 192
    %v108 = vadd.s32 %v83, 200
    %v109 = vadd.s32 %v83, 208
    %v110 = vadd.s32 %v83, 216
    %v111 = vadd.s32 %v83, 224
    %v112 = vadd.s32 %v83, 232
    %v113 = vadd.s32 %v83, 240
    %v114 = vadd.s32 %v83, 248
    %v115 = vand.u32 %v83, 7
    %v116 = vand.u32 %v84, 7
    %v117 = vand.u32 %v85, 7
    %v118 = vand.u32 %v86, 7
    %v119 = vand.u32 %v87, 7
    %v120 = vand.u32 %v88, 7
    %v121 = vand.u32 %v89, 7
    %v122 = vand.u32 %v90, 7
    %v123 = vand.u32 %v91, 7
    %v124 = vand.u32 %v92, 7
    %v125 = vand.u32 %v93, 7
    %v126 = vand.u32 %v94, 7
    %v127 = vand.u32 %v95, 7
    %v128 = vand.u32 %v96, 7
    %v129 = vand.u32 %v97, 7
    %v130 = vand.u32 %v98, 7
    %v131 = vand.u32 %v99, 7
    %v132 = vand.u32 %v100, 7
    %v133 = vand.u32 %v101, 7
    %v134 = vand.u32 %v102, 7
    %v135 = vand.u32 %v103, 7
    %v136 = vand.u32 %v104, 7
    %v137 = vand.u32 %v105, 7
    %v138 = vand.u32 %v106, 7
    %v139 = vand.u32 %v107, 7
    %v140 = vand.u32 %v108, 7
    %v141 = vand.u32 %v109, 7
    %v142 = vand.u32 %v110, 7
    %v143 = vand.u32 %v111, 7
    %v144 = vand.u32 %v112, 7
    %v145 = vand.u32 %v113, 7
    %v146 = vand.u32 %v114, 7
    %v147 = vand.u32 %v83, 63
    %v148 = vand.u32 %v84, 63
    %v149 = vand.u32 %v85, 63
    %v150 = vand.u32 %v86, 63
    %v151 = vand.u32 %v87, 63
    %v152 = vand.u32 %v88, 63
    %v153 = vand.u32 %v89, 63
    %v154 = vand.u32 %v90, 63
    %v155 = vand.u32 %v91, 63
    %v156 = vand.u32 %v92, 63
    %v157 = vand.u32 %v93, 63
    %v158 = vand.u32 %v94, 63
    %v159 = vand.u32 %v95, 63
    %v160 = vand.u32 %v96, 63
    %v161 = vand.u32 %v97, 63
    %v162 = vand.u32 %v98, 63
    %v163 = vand.u32 %v99, 63
    %v164 = vand.u32 %v100, 63
    %v165 = vand.u32 %v101, 63
    %v166 = vand.u32 %v102, 63
    %v167 = vand.u32 %v103, 63
    %v168 = vand.u32 %v104, 63
    %v169 = vand.u32 %v105, 63
    %v170 = vand.u32 %v106, 63
    %v171 = vand.u32 %v107, 63
    %v172 = vand.u32 %v108, 63
    %v173 = vand.u32 %v109, 63
    %v174 = vand.u32 %v110, 63
    %v175 = vand.u32 %v111, 63
    %v176 = vand.u32 %v112, 63
    %v177 = vand.u32 %v113, 63
    %v178 = vand.u32 %v114, 63
    %vm179 = vcmp.ge.s32.totalorder %v147, 8
    %vm180 = vcmp.ge.s32.totalorder %v148, 8
    %vm181 = vcmp.ge.s32.totalorder %v149, 8
    %vm182 = vcmp.ge.s32.totalorder %v150, 8
    %vm183 = vcmp.ge.s32.totalorder %v151, 8
    %vm184 = vcmp.ge.s32.totalorder %v152, 8
    %vm185 = vcmp.ge.s32.totalorder %v153, 8
    %vm186 = vcmp.ge.s32.totalorder %v154, 8
    %vm187 = vcmp.ge.s32.totalorder %v155, 8
    %vm188 = vcmp.ge.s32.totalorder %v156, 8
    %vm189 = vcmp.ge.s32.totalorder %v157, 8
    %vm190 = vcmp.ge.s32.totalorder %v158, 8
    %vm191 = vcmp.ge.s32.totalorder %v159, 8
    %vm192 = vcmp.ge.s32.totalorder %v160, 8
    %vm193 = vcmp.ge.s32.totalorder %v161, 8
    %vm194 = vcmp.ge.s32.totalorder %v162, 8
    %vm195 = vcmp.ge.s32.totalorder %v163, 8
    %vm196 = vcmp.ge.s32.totalorder %v164, 8
    %vm197 = vcmp.ge.s32.totalorder %v165, 8
    %vm198 = vcmp.ge.s32.totalorder %v166, 8
    %vm199 = vcmp.ge.s32.totalorder %v167, 8
    %vm200 = vcmp.ge.s32.totalorder %v168, 8
    %vm201 = vcmp.ge.s32.totalorder %v169, 8
    %vm202 = vcmp.ge.s32.totalorder %v170, 8
    %vm203 = vcmp.ge.s32.totalorder %v171, 8
    %vm204 = vcmp.ge.s32.totalorder %v172, 8
    %vm205 = vcmp.ge.s32.totalorder %v173, 8
    %vm206 = vcmp.ge.s32.totalorder %v174, 8
    %vm207 = vcmp.ge.s32.totalorder %v175, 8
    %vm208 = vcmp.ge.s32.totalorder %v176, 8
    %vm209 = vcmp.ge.s32.totalorder %v177, 8
    %vm210 = vcmp.ge.s32.totalorder %v178, 8
    %vm211 = vcmp.lt.s32.totalorder %v147, 56
    %vm212 = vcmp.lt.s32.totalorder %v148, 56
    %vm213 = vcmp.lt.s32.totalorder %v149, 56
    %vm214 = vcmp.lt.s32.totalorder %v150, 56
    %vm215 = vcmp.lt.s32.totalorder %v151, 56
    %vm216 = vcmp.lt.s32.totalorder %v152, 56
    %vm217 = vcmp.lt.s32.totalorder %v153, 56
    %vm218 = vcmp.lt.s32.totalorder %v154, 56
    %vm219 = vcmp.lt.s32.totalorder %v155, 56
    %vm220 = vcmp.lt.s32.totalorder %v156, 56
    %vm221 = vcmp.lt.s32.totalorder %v157, 56
    %vm222 = vcmp.lt.s32.totalorder %v158, 56
    %vm223 = vcmp.lt.s32.totalorder %v159, 56
    %vm224 = vcmp.lt.s32.totalorder %v160, 56
    %vm225 = vcmp.lt.s32.totalorder %v161, 56
    %vm226 = vcmp.lt.s32.totalorder %v162, 56
    %vm227 = vcmp.lt.s32.totalorder %v163, 56
    %vm228 = vcmp.lt.s32.totalorder %v164, 56
    %vm229 = vcmp.lt.s32.totalorder %v165, 56
    %vm230 = vcmp.lt.s32.totalorder %v166, 56
    %vm231 = vcmp.lt.s32.totalorder %v167, 56
    %vm232 = vcmp.lt.s32.totalorder %v168, 56
    %vm233 = vcmp.lt.s32.totalorder %v169, 56
    %vm234 = vcmp.lt.s32.totalorder %v170, 56
    %vm235 = vcmp.lt.s32.totalorder %v171, 56
    %vm236 = vcmp.lt.s32.totalorder %v172, 56
    %vm237 = vcmp.lt.s32.totalorder %v173, 56
    %vm238 = vcmp.lt.s32.totalorder %v174, 56
    %vm239 = vcmp.lt.s32.totalorder %v175, 56
    %vm240 = vcmp.lt.s32.totalorder %v176, 56
    %vm241 = vcmp.lt.s32.totalorder %v177, 56
    %vm242 = vcmp.lt.s32.totalorder %v178, 56
    %vm243 = vcmp.ge.s32.totalorder %v115, 1
    %vm244 = vcmp.ge.s32.totalorder %v116, 1
    %vm245 = vcmp.ge.s32.totalorder %v117, 1
    %vm246 = vcmp.ge.s32.totalorder %v118, 1
    %vm247 = vcmp.ge.s32.totalorder %v119, 1
    %vm248 = vcmp.ge.s32.totalorder %v120, 1
    %vm249 = vcmp.ge.s32.totalorder %v121, 1
    %vm250 = vcmp.ge.s32.totalorder %v122, 1
    %vm251 = vcmp.ge.s32.totalorder %v123, 1
    %vm252 = vcmp.ge.s32.totalorder %v124, 1
    %vm253 = vcmp.ge.s32.totalorder %v125, 1
    %vm254 = vcmp.ge.s32.totalorder %v126, 1
    %vm255 = vcmp.ge.s32.totalorder %v127, 1
    %vm256 = vcmp.ge.s32.totalorder %v128, 1
    %vm257 = vcmp.ge.s32.totalorder %v129, 1
    %vm258 = vcmp.ge.s32.totalorder %v130, 1
    %vm259 = vcmp.ge.s32.totalorder %v131, 1
    %vm260 = vcmp.ge.s32.totalorder %v132, 1
    %vm261 = vcmp.ge.s32.totalorder %v133, 1
    %vm262 = vcmp.ge.s32.totalorder %v134, 1
    %vm263 = vcmp.ge.s32.totalorder %v135, 1
    %vm264 = vcmp.ge.s32.totalorder %v136, 1
    %vm265 = vcmp.ge.s32.totalorder %v137, 1
    %vm266 = vcmp.ge.s32.totalorder %v138, 1
    %vm267 = vcmp.ge.s32.totalorder %v139, 1
    %vm268 = vcmp.ge.s32.totalorder %v140, 1
    %vm269 = vcmp.ge.s32.totalorder %v141, 1
    %vm270 = vcmp.ge.s32.totalorder %v142, 1
    %vm271 = vcmp.ge.s32.totalorder %v143, 1
    %vm272 = vcmp.ge.s32.totalorder %v144, 1
    %vm273 = vcmp.ge.s32.totalorder %v145, 1
    %vm274 = vcmp.ge.s32.totalorder %v146, 1
    %vm275 = vcmp.lt.s32.totalorder %v115, 7
    %vm276 = vcmp.lt.s32.totalorder %v116, 7
    %vm277 = vcmp.lt.s32.totalorder %v117, 7
    %vm278 = vcmp.lt.s32.totalorder %v118, 7
    %vm279 = vcmp.lt.s32.totalorder %v119, 7
    %vm280 = vcmp.lt.s32.totalorder %v120, 7
    %vm281 = vcmp.lt.s32.totalorder %v121, 7
    %vm282 = vcmp.lt.s32.totalorder %v122, 7
    %vm283 = vcmp.lt.s32.totalorder %v123, 7
    %vm284 = vcmp.lt.s32.totalorder %v124, 7
    %vm285 = vcmp.lt.s32.totalorder %v125, 7
    %vm286 = vcmp.lt.s32.totalorder %v126, 7
    %vm287 = vcmp.lt.s32.totalorder %v127, 7
    %vm288 = vcmp.lt.s32.totalorder %v128, 7
    %vm289 = vcmp.lt.s32.totalorder %v129, 7
    %vm290 = vcmp.lt.s32.totalorder %v130, 7
    %vm291 = vcmp.lt.s32.totalorder %v131, 7
    %vm292 = vcmp.lt.s32.totalorder %v132, 7
    %vm293 = vcmp.lt.s32.totalorder %v133, 7
    %vm294 = vcmp.lt.s32.totalorder %v134, 7
    %vm295 = vcmp.lt.s32.totalorder %v135, 7
    %vm296 = vcmp.lt.s32.totalorder %v136, 7
    %vm297 = vcmp.lt.s32.totalorder %v137, 7
    %vm298 = vcmp.lt.s32.totalorder %v138, 7
    %vm299 = vcmp.lt.s32.totalorder %v139, 7
    %vm300 = vcmp.lt.s32.totalorder %v140, 7
    %vm301 = vcmp.lt.s32.totalorder %v141, 7
    %vm302 = vcmp.lt.s32.totalorder %v142, 7
    %vm303 = vcmp.lt.s32.totalorder %v143, 7
    %vm304 = vcmp.lt.s32.totalorder %v144, 7
    %vm305 = vcmp.lt.s32.totalorder %v145, 7
    %vm306 = vcmp.lt.s32.totalorder %v146, 7
    %v307 = vrot.slane %v18, 7
    %v308 = vrot.slane %v19, 7
    %v309 = vrot.slane %v20, 7
    %v310 = vrot.slane %v21, 7
    %v311 = vrot.slane %v22, 7
    %v312 = vrot.slane %v23, 7
    %v313 = vrot.slane %v24, 7
    %v314 = vrot.slane %v25, 7
    %v315 = vrot.slane %v26, 7
    %v316 = vrot.slane %v27, 7
    %v317 = vrot.slane %v28, 7
    %v318 = vrot.slane %v29, 7
    %v319 = vrot.slane %v30, 7
    %v320 = vrot.slane %v31, 7
    %v321 = vrot.slane %v32, 7
    %v322 = vrot.slane %v33, 7
    %v323 = vrot.slane %v34, 7
    %v324 = vrot.slane %v35, 7
    %v325 = vrot.slane %v36, 7
    %v326 = vrot.slane %v37, 7
    %v327 = vrot.slane %v38, 7
    %v328 = vrot.slane %v39, 7
    %v329 = vrot.slane %v40, 7
    %v330 = vrot.slane %v41, 7
    %v331 = vrot.slane %v42, 7
    %v332 = vrot.slane %v43, 7
    %v333 = vrot.slane %v44, 7
    %v334 = vrot.slane %v45, 7
    %v335 = vrot.slane %v46, 7
    %v336 = vrot.slane %v47, 7
    %v337 = vrot.slane %v48, 7
    %v338 = vrot.slane %v49, 7
    %v339 = vrot.slane %v50, 7
    %v340 = vrot.slane %v51, 7
    %v341 = vrot.slane %v52, 7
    %v342 = vrot.slane %v53, 7
    %v343 = vrot.slane %v54, 7
    %v344 = vrot.slane %v55, 7
    %v345 = vrot.slane %v56, 7
    %v346 = vrot.slane %v57, 7
    %v347 = vrot.slane %v58, 7
    %v348 = vrot.slane %v59, 7
    %v349 = vrot.slane %v60, 7
    %v350 = vrot.slane %v61, 7
    %v351 = vrot.slane %v62, 7
    %v352 = vrot.slane %v63, 7
    %v353 = vrot.slane %v64, 7
    %v354 = vrot.slane %v65, 7
    %v355 = vrot.slane %v66, 7
    %v356 = vrot.slane %v67, 7
    %v357 = vrot.slane %v68, 7
    %v358 = vrot.slane %v69, 7
    %v359 = vrot.slane %v70, 7
    %v360 = vrot.slane %v71, 7
    %v361 = vrot.slane %v72, 7
    %v362 = vrot.slane %v73, 7
    %v363 = vrot.slane %v74, 7
    %v364 = vrot.slane %v75, 7
    %v365 = vrot.slane %v76, 7
    %v366 = vrot.slane %v77, 7
    %v367 = vrot.slane %v78, 7
    %v368 = vrot.slane %v79, 7
    %v369 = vrot.slane %v80, 7
    %v370 = vrot.slane %v81, 7
    %vm371 = vcmp.lt.s32.totalorder %v83, 1
    %v372 = vsel %vm371, %v367, %v369
    %v373 = vsel %vm371, %v368, %v370
    %v374 = vsel %vm371, %v365, %v367
    %v375 = vsel %vm371, %v366, %v368
    %v376 = vsel %vm371, %v363, %v365
    %v377 = vsel %vm371, %v364, %v366
    %v378 = vsel %vm371, %v361, %v363
    %v379 = vsel %vm371, %v362, %v364
    %v380 = vsel %vm371, %v359, %v361
    %v381 = vsel %vm371, %v360, %v362
    %v382 = vsel %vm371, %v357, %v359
    %v383 = vsel %vm371, %v358, %v360
    %v384 = vsel %vm371, %v355, %v357
    %v385 = vsel %vm371, %v356, %v358
    %v386 = vsel %vm371, %v353, %v355
    %v387 = vsel %vm371, %v354, %v356
    %v388 = vsel %vm371, %v351, %v353
    %v389 = vsel %vm371, %v352, %v354
    %v390 = vsel %vm371, %v349, %v351
    %v391 = vsel %vm371, %v350, %v352
    %v392 = vsel %vm371, %v347, %v349
    %v393 = vsel %vm371, %v348, %v350
    %v394 = vsel %vm371, %v345, %v347
    %v395 = vsel %vm371, %v346, %v348
    %v396 = vsel %vm371, %v343, %v345
    %v397 = vsel %vm371, %v344, %v346
    %v398 = vsel %vm371, %v341, %v343
    %v399 = vsel %vm371, %v342, %v344
    %v400 = vsel %vm371, %v339, %v341
    %v401 = vsel %vm371, %v340, %v342
    %v402 = vsel %vm371, %v337, %v339
    %v403 = vsel %vm371, %v338, %v340
    %v404 = vsel %vm371, %v335, %v337
    %v405 = vsel %vm371, %v336, %v338
    %v406 = vsel %vm371, %v333, %v335
    %v407 = vsel %vm371, %v334, %v336
    %v408 = vsel %vm371, %v331, %v333
    %v409 = vsel %vm371, %v332, %v334
    %v410 = vsel %vm371, %v329, %v331
    %v411 = vsel %vm371, %v330, %v332
    %v412 = vsel %vm371, %v327, %v329
    %v413 = vsel %vm371, %v328, %v330
    %v414 = vsel %vm371, %v325, %v327
    %v415 = vsel %vm371, %v326, %v328
    %v416 = vsel %vm371, %v323, %v325
    %v417 = vsel %vm371, %v324, %v326
    %v418 = vsel %vm371, %v321, %v323
    %v419 = vsel %vm371, %v322, %v324
    %v420 = vsel %vm371, %v319, %v321
    %v421 = vsel %vm371, %v320, %v322
    %v422 = vsel %vm371, %v317, %v319
    %v423 = vsel %vm371, %v318, %v320
    %v424 = vsel %vm371, %v315, %v317
    %v425 = vsel %vm371, %v316, %v318
    %v426 = vsel %vm371, %v313, %v315
    %v427 = vsel %vm371, %v314, %v316
    %v428 = vsel %vm371, %v311, %v313
    %v429 = vsel %vm371, %v312, %v314
    %v430 = vsel %vm371, %v309, %v311
    %v431 = vsel %vm371, %v310, %v312
    %v432 = vsel %vm371, %v307, %v309
    %v433 = vsel %vm371, %v308, %v310
    %v434 = vsel %vm371, %v369, %v307
    %v435 = vsel %vm371, %v370, %v308
    %vm436 = vmand %vm179, %vm243
    %vm437 = vmand %vm180, %vm244
    %vm438 = vmand %vm181, %vm245
    %vm439 = vmand %vm182, %vm246
    %vm440 = vmand %vm183, %vm247
    %vm441 = vmand %vm184, %vm248
    %vm442 = vmand %vm185, %vm249
    %vm443 = vmand %vm186, %vm250
    %vm444 = vmand %vm187, %vm251
    %vm445 = vmand %vm188, %vm252
    %vm446 = vmand %vm189, %vm253
    %vm447 = vmand %vm190, %vm254
    %vm448 = vmand %vm191, %vm255
    %vm449 = vmand %vm192, %vm256
    %vm450 = vmand %vm193, %vm257
    %vm451 = vmand %vm194, %vm258
    %vm452 = vmand %vm195, %vm259
    %vm453 = vmand %vm196, %vm260
    %vm454 = vmand %vm197, %vm261
    %vm455 = vmand %vm198, %vm262
    %vm456 = vmand %vm199, %vm263
    %vm457 = vmand %vm200, %vm264
    %vm458 = vmand %vm201, %vm265
    %vm459 = vmand %vm202, %vm266
    %vm460 = vmand %vm203, %vm267
    %vm461 = vmand %vm204, %vm268
    %vm462 = vmand %vm205, %vm269
    %vm463 = vmand %vm206, %vm270
    %vm464 = vmand %vm207, %vm271
    %vm465 = vmand %vm208, %vm272
    %vm466 = vmand %vm209, %vm273
    %vm467 = vmand %vm210, %vm274
    %v468 = vsel %vm436, 1, 0
    %v469 = vsel %vm437, 1, 0
    %v470 = vsel %vm438, 1, 0
    %v471 = vsel %vm439, 1, 0
    %v472 = vsel %vm440, 1, 0
    %v473 = vsel %vm441, 1, 0
    %v474 = vsel %vm442, 1, 0
    %v475 = vsel %vm443, 1, 0
    %v476 = vsel %vm444, 1, 0
    %v477 = vsel %vm445, 1, 0
    %v478 = vsel %vm446, 1, 0
    %v479 = vsel %vm447, 1, 0
    %v480 = vsel %vm448, 1, 0
    %v481 = vsel %vm449, 1, 0
    %v482 = vsel %vm450, 1, 0
    %v483 = vsel %vm451, 1, 0
    %v484 = vsel %vm452, 1, 0
    %v485 = vsel %vm453, 1, 0
    %v486 = vsel %vm454, 1, 0
    %v487 = vsel %vm455, 1, 0
    %v488 = vsel %vm456, 1, 0
    %v489 = vsel %vm457, 1, 0
    %v490 = vsel %vm458, 1, 0
    %v491 = vsel %vm459, 1, 0
    %v492 = vsel %vm460, 1, 0
    %v493 = vsel %vm461, 1, 0
    %v494 = vsel %vm462, 1, 0
    %v495 = vsel %vm463, 1, 0
    %v496 = vsel %vm464, 1, 0
    %v497 = vsel %vm465, 1, 0
    %v498 = vsel %vm466, 1, 0
    %v499 = vsel %vm467, 1, 0
    %vm500 = vcmp.eq.s32.totalorder %v468, 1
    %vm501 = vcmp.eq.s32.totalorder %v469, 1
    %vm502 = vcmp.eq.s32.totalorder %v470, 1
    %vm503 = vcmp.eq.s32.totalorder %v471, 1
    %vm504 = vcmp.eq.s32.totalorder %v472, 1
    %vm505 = vcmp.eq.s32.totalorder %v473, 1
    %vm506 = vcmp.eq.s32.totalorder %v474, 1
    %vm507 = vcmp.eq.s32.totalorder %v475, 1
    %vm508 = vcmp.eq.s32.totalorder %v476, 1
    %vm509 = vcmp.eq.s32.totalorder %v477, 1
    %vm510 = vcmp.eq.s32.totalorder %v478, 1
    %vm511 = vcmp.eq.s32.totalorder %v479, 1
    %vm512 = vcmp.eq.s32.totalorder %v480, 1
    %vm513 = vcmp.eq.s32.totalorder %v481, 1
    %vm514 = vcmp.eq.s32.totalorder %v482, 1
    %vm515 = vcmp.eq.s32.totalorder %v483, 1
    %vm516 = vcmp.eq.s32.totalorder %v484, 1
    %vm517 = vcmp.eq.s32.totalorder %v485, 1
    %vm518 = vcmp.eq.s32.totalorder %v486, 1
    %vm519 = vcmp.eq.s32.totalorder %v487, 1
    %vm520 = vcmp.eq.s32.totalorder %v488, 1
    %vm521 = vcmp.eq.s32.totalorder %v489, 1
    %vm522 = vcmp.eq.s32.totalorder %v490, 1
    %vm523 = vcmp.eq.s32.totalorder %v491, 1
    %vm524 = vcmp.eq.s32.totalorder %v492, 1
    %vm525 = vcmp.eq.s32.totalorder %v493, 1
    %vm526 = vcmp.eq.s32.totalorder %v494, 1
    %vm527 = vcmp.eq.s32.totalorder %v495, 1
    %vm528 = vcmp.eq.s32.totalorder %v496, 1
    %vm529 = vcmp.eq.s32.totalorder %v497, 1
    %vm530 = vcmp.eq.s32.totalorder %v498, 1
    %vm531 = vcmp.eq.s32.totalorder %v499, 1
    %v532 = vsel %vm500, %v372, 0.0
    %v533 = vsel %vm500, %v373, 0.0
    %v534 = vsel %vm501, %v434, 0.0
    %v535 = vsel %vm501, %v435, 0.0
    %v536 = vsel %vm502, %v432, 0.0
    %v537 = vsel %vm502, %v433, 0.0
    %v538 = vsel %vm503, %v430, 0.0
    %v539 = vsel %vm503, %v431, 0.0
    %v540 = vsel %vm504, %v428, 0.0
    %v541 = vsel %vm504, %v429, 0.0
    %v542 = vsel %vm505, %v426, 0.0
    %v543 = vsel %vm505, %v427, 0.0
    %v544 = vsel %vm506, %v424, 0.0
    %v545 = vsel %vm506, %v425, 0.0
    %v546 = vsel %vm507, %v422, 0.0
    %v547 = vsel %vm507, %v423, 0.0
    %v548 = vsel %vm508, %v420, 0.0
    %v549 = vsel %vm508, %v421, 0.0
    %v550 = vsel %vm509, %v418, 0.0
    %v551 = vsel %vm509, %v419, 0.0
    %v552 = vsel %vm510, %v416, 0.0
    %v553 = vsel %vm510, %v417, 0.0
    %v554 = vsel %vm511, %v414, 0.0
    %v555 = vsel %vm511, %v415, 0.0
    %v556 = vsel %vm512, %v412, 0.0
    %v557 = vsel %vm512, %v413, 0.0
    %v558 = vsel %vm513, %v410, 0.0
    %v559 = vsel %vm513, %v411, 0.0
    %v560 = vsel %vm514, %v408, 0.0
    %v561 = vsel %vm514, %v409, 0.0
    %v562 = vsel %vm515, %v406, 0.0
    %v563 = vsel %vm515, %v407, 0.0
    %v564 = vsel %vm516, %v404, 0.0
    %v565 = vsel %vm516, %v405, 0.0
    %v566 = vsel %vm517, %v402, 0.0
    %v567 = vsel %vm517, %v403, 0.0
    %v568 = vsel %vm518, %v400, 0.0
    %v569 = vsel %vm518, %v401, 0.0
    %v570 = vsel %vm519, %v398, 0.0
    %v571 = vsel %vm519, %v399, 0.0
    %v572 = vsel %vm520, %v396, 0.0
    %v573 = vsel %vm520, %v397, 0.0
    %v574 = vsel %vm521, %v394, 0.0
    %v575 = vsel %vm521, %v395, 0.0
    %v576 = vsel %vm522, %v392, 0.0
    %v577 = vsel %vm522, %v393, 0.0
    %v578 = vsel %vm523, %v390, 0.0
    %v579 = vsel %vm523, %v391, 0.0
    %v580 = vsel %vm524, %v388, 0.0
    %v581 = vsel %vm524, %v389, 0.0
    %v582 = vsel %vm525, %v386, 0.0
    %v583 = vsel %vm525, %v387, 0.0
    %v584 = vsel %vm526, %v384, 0.0
    %v585 = vsel %vm526, %v385, 0.0
    %v586 = vsel %vm527, %v382, 0.0
    %v587 = vsel %vm527, %v383, 0.0
    %v588 = vsel %vm528, %v380, 0.0
    %v589 = vsel %vm528, %v381, 0.0
    %v590 = vsel %vm529, %v378, 0.0
    %v591 = vsel %vm529, %v379, 0.0
    %v592 = vsel %vm530, %v376, 0.0
    %v593 = vsel %vm530, %v377, 0.0
    %v594 = vsel %vm531, %v374, 0.0
    %v595 = vsel %vm531, %v375, 0.0
    %v596 = vld [vmem:[%s1] sm:$0xff]
    %v597 = vld [vmem:[%s1 + $0x8] sm:$0xff]
    %v598 = vld [vmem:[%s1 + $0x10] sm:$0xff]
    %v599 = vld [vmem:[%s1 + $0x18] sm:$0xff]
    %v600 = vld [vmem:[%s1 + $0x20] sm:$0xff]
    %v601 = vld [vmem:[%s1 + $0x28] sm:$0xff]
    %v602 = vld [vmem:[%s1 + $0x30] sm:$0xff]
    %v603 = vld [vmem:[%s1 + $0x38] sm:$0xff]
    %v604 = vld [vmem:[%s1 + $0x40] sm:$0xff]
    %v605 = vld [vmem:[%s1 + $0x48] sm:$0xff]
    %v606 = vld [vmem:[%s1 + $0x50] sm:$0xff]
    %v607 = vld [vmem:[%s1 + $0x58] sm:$0xff]
    %v608 = vld [vmem:[%s1 + $0x60] sm:$0xff]
    %v609 = vld [vmem:[%s1 + $0x68] sm:$0xff]
    %v610 = vld [vmem:[%s1 + $0x70] sm:$0xff]
    %v611 = vld [vmem:[%s1 + $0x78] sm:$0xff]
    %v612 = vld [vmem:[%s1 + $0x80] sm:$0xff]
    %v613 = vld [vmem:[%s1 + $0x88] sm:$0xff]
    %v614 = vld [vmem:[%s1 + $0x90] sm:$0xff]
    %v615 = vld [vmem:[%s1 + $0x98] sm:$0xff]
    %v616 = vld [vmem:[%s1 + $0xa0] sm:$0xff]
    %v617 = vld [vmem:[%s1 + $0xa8] sm:$0xff]
    %v618 = vld [vmem:[%s1 + $0xb0] sm:$0xff]
    %v619 = vld [vmem:[%s1 + $0xb8] sm:$0xff]
    %v620 = vld [vmem:[%s1 + $0xc0] sm:$0xff]
    %v621 = vld [vmem:[%s1 + $0xc8] sm:$0xff]
    %v622 = vld [vmem:[%s1 + $0xd0] sm:$0xff]
    %v623 = vld [vmem:[%s1 + $0xd8] sm:$0xff]
    %v624 = vld [vmem:[%s1 + $0xe0] sm:$0xff]
    %v625 = vld [vmem:[%s1 + $0xe8] sm:$0xff]
    %v626 = vld [vmem:[%s1 + $0xf0] sm:$0xff]
    %v627 = vld [vmem:[%s1 + $0xf8] sm:$0xff]
    %v628 = vld [vmem:[%s1 + $0x100] sm:$0xff]
    %v629 = vld [vmem:[%s1 + $0x108] sm:$0xff]
    %v630 = vld [vmem:[%s1 + $0x110] sm:$0xff]
    %v631 = vld [vmem:[%s1 + $0x118] sm:$0xff]
    %v632 = vld [vmem:[%s1 + $0x120] sm:$0xff]
    %v633 = vld [vmem:[%s1 + $0x128] sm:$0xff]
    %v634 = vld [vmem:[%s1 + $0x130] sm:$0xff]
    %v635 = vld [vmem:[%s1 + $0x138] sm:$0xff]
    %v636 = vld [vmem:[%s1 + $0x140] sm:$0xff]
    %v637 = vld [vmem:[%s1 + $0x148] sm:$0xff]
    %v638 = vld [vmem:[%s1 + $0x150] sm:$0xff]
    %v639 = vld [vmem:[%s1 + $0x158] sm:$0xff]
    %v640 = vld [vmem:[%s1 + $0x160] sm:$0xff]
    %v641 = vld [vmem:[%s1 + $0x168] sm:$0xff]
    %v642 = vld [vmem:[%s1 + $0x170] sm:$0xff]
    %v643 = vld [vmem:[%s1 + $0x178] sm:$0xff]
    %v644 = vld [vmem:[%s1 + $0x180] sm:$0xff]
    %v645 = vld [vmem:[%s1 + $0x188] sm:$0xff]
    %v646 = vld [vmem:[%s1 + $0x190] sm:$0xff]
    %v647 = vld [vmem:[%s1 + $0x198] sm:$0xff]
    %v648 = vld [vmem:[%s1 + $0x1a0] sm:$0xff]
    %v649 = vld [vmem:[%s1 + $0x1a8] sm:$0xff]
    %v650 = vld [vmem:[%s1 + $0x1b0] sm:$0xff]
    %v651 = vld [vmem:[%s1 + $0x1b8] sm:$0xff]
    %v652 = vld [vmem:[%s1 + $0x1c0] sm:$0xff]
    %v653 = vld [vmem:[%s1 + $0x1c8] sm:$0xff]
    %v654 = vld [vmem:[%s1 + $0x1d0] sm:$0xff]
    %v655 = vld [vmem:[%s1 + $0x1d8] sm:$0xff]
    %v656 = vld [vmem:[%s1 + $0x1e0] sm:$0xff]
    %v657 = vld [vmem:[%s1 + $0x1e8] sm:$0xff]
    %v658 = vld [vmem:[%s1 + $0x1f0] sm:$0xff]
    %v659 = vld [vmem:[%s1 + $0x1f8] sm:$0xff]
    %v660 = vsel %vm179, 1, 0
    %v661 = vsel %vm180, 1, 0
    %v662 = vsel %vm181, 1, 0
    %v663 = vsel %vm182, 1, 0
    %v664 = vsel %vm183, 1, 0
    %v665 = vsel %vm184, 1, 0
    %v666 = vsel %vm185, 1, 0
    %v667 = vsel %vm186, 1, 0
    %v668 = vsel %vm187, 1, 0
    %v669 = vsel %vm188, 1, 0
    %v670 = vsel %vm189, 1, 0
    %v671 = vsel %vm190, 1, 0
    %v672 = vsel %vm191, 1, 0
    %v673 = vsel %vm192, 1, 0
    %v674 = vsel %vm193, 1, 0
    %v675 = vsel %vm194, 1, 0
    %v676 = vsel %vm195, 1, 0
    %v677 = vsel %vm196, 1, 0
    %v678 = vsel %vm197, 1, 0
    %v679 = vsel %vm198, 1, 0
    %v680 = vsel %vm199, 1, 0
    %v681 = vsel %vm200, 1, 0
    %v682 = vsel %vm201, 1, 0
    %v683 = vsel %vm202, 1, 0
    %v684 = vsel %vm203, 1, 0
    %v685 = vsel %vm204, 1, 0
    %v686 = vsel %vm205, 1, 0
    %v687 = vsel %vm206, 1, 0
    %v688 = vsel %vm207, 1, 0
    %v689 = vsel %vm208, 1, 0
    %v690 = vsel %vm209, 1, 0
    %v691 = vsel %vm210, 1, 0
    %vm692 = vcmp.eq.s32.totalorder %v660, 1
    %vm693 = vcmp.eq.s32.totalorder %v661, 1
    %vm694 = vcmp.eq.s32.totalorder %v662, 1
    %vm695 = vcmp.eq.s32.totalorder %v663, 1
    %vm696 = vcmp.eq.s32.totalorder %v664, 1
    %vm697 = vcmp.eq.s32.totalorder %v665, 1
    %vm698 = vcmp.eq.s32.totalorder %v666, 1
    %vm699 = vcmp.eq.s32.totalorder %v667, 1
    %vm700 = vcmp.eq.s32.totalorder %v668, 1
    %vm701 = vcmp.eq.s32.totalorder %v669, 1
    %vm702 = vcmp.eq.s32.totalorder %v670, 1
    %vm703 = vcmp.eq.s32.totalorder %v671, 1
    %vm704 = vcmp.eq.s32.totalorder %v672, 1
    %vm705 = vcmp.eq.s32.totalorder %v673, 1
    %vm706 = vcmp.eq.s32.totalorder %v674, 1
    %vm707 = vcmp.eq.s32.totalorder %v675, 1
    %vm708 = vcmp.eq.s32.totalorder %v676, 1
    %vm709 = vcmp.eq.s32.totalorder %v677, 1
    %vm710 = vcmp.eq.s32.totalorder %v678, 1
    %vm711 = vcmp.eq.s32.totalorder %v679, 1
    %vm712 = vcmp.eq.s32.totalorder %v680, 1
    %vm713 = vcmp.eq.s32.totalorder %v681, 1
    %vm714 = vcmp.eq.s32.totalorder %v682, 1
    %vm715 = vcmp.eq.s32.totalorder %v683, 1
    %vm716 = vcmp.eq.s32.totalorder %v684, 1
    %vm717 = vcmp.eq.s32.totalorder %v685, 1
    %vm718 = vcmp.eq.s32.totalorder %v686, 1
    %vm719 = vcmp.eq.s32.totalorder %v687, 1
    %vm720 = vcmp.eq.s32.totalorder %v688, 1
    %vm721 = vcmp.eq.s32.totalorder %v689, 1
    %vm722 = vcmp.eq.s32.totalorder %v690, 1
    %vm723 = vcmp.eq.s32.totalorder %v691, 1
    %v724 = vsel %vm692, %v80, 0.0
    %v725 = vsel %vm692, %v81, 0.0
    %v726 = vsel %vm693, %v18, 0.0
    %v727 = vsel %vm693, %v19, 0.0
    %v728 = vsel %vm694, %v20, 0.0
    %v729 = vsel %vm694, %v21, 0.0
    %v730 = vsel %vm695, %v22, 0.0
    %v731 = vsel %vm695, %v23, 0.0
    %v732 = vsel %vm696, %v24, 0.0
    %v733 = vsel %vm696, %v25, 0.0
    %v734 = vsel %vm697, %v26, 0.0
    %v735 = vsel %vm697, %v27, 0.0
    %v736 = vsel %vm698, %v28, 0.0
    %v737 = vsel %vm698, %v29, 0.0
    %v738 = vsel %vm699, %v30, 0.0
    %v739 = vsel %vm699, %v31, 0.0
    %v740 = vsel %vm700, %v32, 0.0
    %v741 = vsel %vm700, %v33, 0.0
    %v742 = vsel %vm701, %v34, 0.0
    %v743 = vsel %vm701, %v35, 0.0
    %v744 = vsel %vm702, %v36, 0.0
    %v745 = vsel %vm702, %v37, 0.0
    %v746 = vsel %vm703, %v38, 0.0
    %v747 = vsel %vm703, %v39, 0.0
    %v748 = vsel %vm704, %v40, 0.0
    %v749 = vsel %vm704, %v41, 0.0
    %v750 = vsel %vm705, %v42, 0.0
    %v751 = vsel %vm705, %v43, 0.0
    %v752 = vsel %vm706, %v44, 0.0
    %v753 = vsel %vm706, %v45, 0.0
    %v754 = vsel %vm707, %v46, 0.0
    %v755 = vsel %vm707, %v47, 0.0
    %v756 = vsel %vm708, %v48, 0.0
    %v757 = vsel %vm708, %v49, 0.0
    %v758 = vsel %vm709, %v50, 0.0
    %v759 = vsel %vm709, %v51, 0.0
    %v760 = vsel %vm710, %v52, 0.0
    %v761 = vsel %vm710, %v53, 0.0
    %v762 = vsel %vm711, %v54, 0.0
    %v763 = vsel %vm711, %v55, 0.0
    %v764 = vsel %vm712, %v56, 0.0
    %v765 = vsel %vm712, %v57, 0.0
    %v766 = vsel %vm713, %v58, 0.0
    %v767 = vsel %vm713, %v59, 0.0
    %v768 = vsel %vm714, %v60, 0.0
    %v769 = vsel %vm714, %v61, 0.0
    %v770 = vsel %vm715, %v62, 0.0
    %v771 = vsel %vm715, %v63, 0.0
    %v772 = vsel %vm716, %v64, 0.0
    %v773 = vsel %vm716, %v65, 0.0
    %v774 = vsel %vm717, %v66, 0.0
    %v775 = vsel %vm717, %v67, 0.0
    %v776 = vsel %vm718, %v68, 0.0
    %v777 = vsel %vm718, %v69, 0.0
    %v778 = vsel %vm719, %v70, 0.0
    %v779 = vsel %vm719, %v71, 0.0
    %v780 = vsel %vm720, %v72, 0.0
    %v781 = vsel %vm720, %v73, 0.0
    %v782 = vsel %vm721, %v74, 0.0
    %v783 = vsel %vm721, %v75, 0.0
    %v784 = vsel %vm722, %v76, 0.0
    %v785 = vsel %vm722, %v77, 0.0
    %v786 = vsel %vm723, %v78, 0.0
    %v787 = vsel %vm723, %v79, 0.0
    %s788 = scalar_lea.vmem %s1, 512
    %v789 = vld [vmem:[%s788] sm:$0xff]
    %v790 = vld [vmem:[%s788 + $0x8] sm:$0xff]
    %v791 = vld [vmem:[%s788 + $0x10] sm:$0xff]
    %v792 = vld [vmem:[%s788 + $0x18] sm:$0xff]
    %v793 = vld [vmem:[%s788 + $0x20] sm:$0xff]
    %v794 = vld [vmem:[%s788 + $0x28] sm:$0xff]
    %v795 = vld [vmem:[%s788 + $0x30] sm:$0xff]
    %v796 = vld [vmem:[%s788 + $0x38] sm:$0xff]
    %v797 = vld [vmem:[%s788 + $0x40] sm:$0xff]
    %v798 = vld [vmem:[%s788 + $0x48] sm:$0xff]
    %v799 = vld [vmem:[%s788 + $0x50] sm:$0xff]
    %v800 = vld [vmem:[%s788 + $0x58] sm:$0xff]
    %v801 = vld [vmem:[%s788 + $0x60] sm:$0xff]
    %v802 = vld [vmem:[%s788 + $0x68] sm:$0xff]
    %v803 = vld [vmem:[%s788 + $0x70] sm:$0xff]
    %v804 = vld [vmem:[%s788 + $0x78] sm:$0xff]
    %v805 = vld [vmem:[%s788 + $0x80] sm:$0xff]
    %v806 = vld [vmem:[%s788 + $0x88] sm:$0xff]
    %v807 = vld [vmem:[%s788 + $0x90] sm:$0xff]
    %v808 = vld [vmem:[%s788 + $0x98] sm:$0xff]
    %v809 = vld [vmem:[%s788 + $0xa0] sm:$0xff]
    %v810 = vld [vmem:[%s788 + $0xa8] sm:$0xff]
    %v811 = vld [vmem:[%s788 + $0xb0] sm:$0xff]
    %v812 = vld [vmem:[%s788 + $0xb8] sm:$0xff]
    %v813 = vld [vmem:[%s788 + $0xc0] sm:$0xff]
    %v814 = vld [vmem:[%s788 + $0xc8] sm:$0xff]
    %v815 = vld [vmem:[%s788 + $0xd0] sm:$0xff]
    %v816 = vld [vmem:[%s788 + $0xd8] sm:$0xff]
    %v817 = vld [vmem:[%s788 + $0xe0] sm:$0xff]
    %v818 = vld [vmem:[%s788 + $0xe8] sm:$0xff]
    %v819 = vld [vmem:[%s788 + $0xf0] sm:$0xff]
    %v820 = vld [vmem:[%s788 + $0xf8] sm:$0xff]
    %v821 = vld [vmem:[%s788 + $0x100] sm:$0xff]
    %v822 = vld [vmem:[%s788 + $0x108] sm:$0xff]
    %v823 = vld [vmem:[%s788 + $0x110] sm:$0xff]
    %v824 = vld [vmem:[%s788 + $0x118] sm:$0xff]
    %v825 = vld [vmem:[%s788 + $0x120] sm:$0xff]
    %v826 = vld [vmem:[%s788 + $0x128] sm:$0xff]
    %v827 = vld [vmem:[%s788 + $0x130] sm:$0xff]
    %v828 = vld [vmem:[%s788 + $0x138] sm:$0xff]
    %v829 = vld [vmem:[%s788 + $0x140] sm:$0xff]
    %v830 = vld [vmem:[%s788 + $0x148] sm:$0xff]
    %v831 = vld [vmem:[%s788 + $0x150] sm:$0xff]
    %v832 = vld [vmem:[%s788 + $0x158] sm:$0xff]
    %v833 = vld [vmem:[%s788 + $0x160] sm:$0xff]
    %v834 = vld [vmem:[%s788 + $0x168] sm:$0xff]
    %v835 = vld [vmem:[%s788 + $0x170] sm:$0xff]
    %v836 = vld [vmem:[%s788 + $0x178] sm:$0xff]
    %v837 = vld [vmem:[%s788 + $0x180] sm:$0xff]
    %v838 = vld [vmem:[%s788 + $0x188] sm:$0xff]
    %v839 = vld [vmem:[%s788 + $0x190] sm:$0xff]
    %v840 = vld [vmem:[%s788 + $0x198] sm:$0xff]
    %v841 = vld [vmem:[%s788 + $0x1a0] sm:$0xff]
    %v842 = vld [vmem:[%s788 + $0x1a8] sm:$0xff]
    %v843 = vld [vmem:[%s788 + $0x1b0] sm:$0xff]
    %v844 = vld [vmem:[%s788 + $0x1b8] sm:$0xff]
    %v845 = vld [vmem:[%s788 + $0x1c0] sm:$0xff]
    %v846 = vld [vmem:[%s788 + $0x1c8] sm:$0xff]
    %v847 = vld [vmem:[%s788 + $0x1d0] sm:$0xff]
    %v848 = vld [vmem:[%s788 + $0x1d8] sm:$0xff]
    %v849 = vld [vmem:[%s788 + $0x1e0] sm:$0xff]
    %v850 = vld [vmem:[%s788 + $0x1e8] sm:$0xff]
    %v851 = vld [vmem:[%s788 + $0x1f0] sm:$0xff]
    %v852 = vld [vmem:[%s788 + $0x1f8] sm:$0xff]
    %853 = vmatpush.msra.mxu0 %v819
    %854 = vmatpush.msra.mxu0 %v817
    %855 = vmatpush.msra.mxu0 %v815
    %856 = vmatpush.msra.mxu0 %v813
    %857 = vmatpush.msra.mxu0 %v811
    %858 = vmatpush.msra.mxu0 %v809
    %859 = vmatpush.msra.mxu0 %v807
    %860 = vmatpush.msra.mxu0 %v805
    %861 = vmatpush.msra.mxu0 %v803
    %862 = vmatpush.msra.mxu0 %v801
    %863 = vmatpush.msra.mxu0 %v799
    %864 = vmatpush.msra.mxu0 %v797
    %865 = vmatpush.msra.mxu0 %v795
    %866 = vmatpush.msra.mxu0 %v793
    %867 = vmatpush.msra.mxu0 %v791
    %868 = vmatpush.msra.mxu0 %v789
    %869 = vmatmul.f32.gmra.mxu0 %v724
    %v870 = vpop.f32.mrf.mxu0
    %v871 = vadd.f32 0.0, %v870
    %872 = vmatmul.f32.gmra.mxu0 %v726
    %v873 = vpop.f32.mrf.mxu0
    %v874 = vadd.f32 0.0, %v873
    %875 = vmatmul.f32.gmra.mxu0 %v728
    %v876 = vpop.f32.mrf.mxu0
    %v877 = vadd.f32 0.0, %v876
    %878 = vmatmul.f32.gmra.mxu0 %v730
    %v879 = vpop.f32.mrf.mxu0
    %v880 = vadd.f32 0.0, %v879
    %881 = vmatmul.f32.gmra.mxu0 %v732
    %v882 = vpop.f32.mrf.mxu0
    %v883 = vadd.f32 0.0, %v882
    %884 = vmatmul.f32.gmra.mxu0 %v734
    %v885 = vpop.f32.mrf.mxu0
    %v886 = vadd.f32 0.0, %v885
    %887 = vmatmul.f32.gmra.mxu0 %v736
    %v888 = vpop.f32.mrf.mxu0
    %v889 = vadd.f32 0.0, %v888
    %890 = vmatmul.f32.gmra.mxu0 %v738
    %v891 = vpop.f32.mrf.mxu0
    %v892 = vadd.f32 0.0, %v891
    %893 = vmatmul.f32.gmra.mxu0 %v740
    %v894 = vpop.f32.mrf.mxu0
    %v895 = vadd.f32 0.0, %v894
    %896 = vmatmul.f32.gmra.mxu0 %v742
    %v897 = vpop.f32.mrf.mxu0
    %v898 = vadd.f32 0.0, %v897
    %899 = vmatmul.f32.gmra.mxu0 %v744
    %v900 = vpop.f32.mrf.mxu0
    %v901 = vadd.f32 0.0, %v900
    %902 = vmatmul.f32.gmra.mxu0 %v746
    %v903 = vpop.f32.mrf.mxu0
    %v904 = vadd.f32 0.0, %v903
    %905 = vmatmul.f32.gmra.mxu0 %v748
    %v906 = vpop.f32.mrf.mxu0
    %v907 = vadd.f32 0.0, %v906
    %908 = vmatmul.f32.gmra.mxu0 %v750
    %v909 = vpop.f32.mrf.mxu0
    %v910 = vadd.f32 0.0, %v909
    %911 = vmatmul.f32.gmra.mxu0 %v752
    %v912 = vpop.f32.mrf.mxu0
    %v913 = vadd.f32 0.0, %v912
    %914 = vmatmul.f32.gmra.mxu0 %v754
    %v915 = vpop.f32.mrf.mxu0
    %v916 = vadd.f32 0.0, %v915
    %917 = vmatmul.f32.gmra.mxu0 %v756
    %v918 = vpop.f32.mrf.mxu0
    %v919 = vadd.f32 0.0, %v918
    %920 = vmatmul.f32.gmra.mxu0 %v758
    %v921 = vpop.f32.mrf.mxu0
    %v922 = vadd.f32 0.0, %v921
    %923 = vmatmul.f32.gmra.mxu0 %v760
    %v924 = vpop.f32.mrf.mxu0
    %v925 = vadd.f32 0.0, %v924
    %926 = vmatmul.f32.gmra.mxu0 %v762
    %v927 = vpop.f32.mrf.mxu0
    %v928 = vadd.f32 0.0, %v927
    %929 = vmatmul.f32.gmra.mxu0 %v764
    %v930 = vpop.f32.mrf.mxu0
    %v931 = vadd.f32 0.0, %v930
    %932 = vmatmul.f32.gmra.mxu0 %v766
    %v933 = vpop.f32.mrf.mxu0
    %v934 = vadd.f32 0.0, %v933
    %935 = vmatmul.f32.gmra.mxu0 %v768
    %v936 = vpop.f32.mrf.mxu0
    %v937 = vadd.f32 0.0, %v936
    %938 = vmatmul.f32.gmra.mxu0 %v770
    %v939 = vpop.f32.mrf.mxu0
    %v940 = vadd.f32 0.0, %v939
    %941 = vmatmul.f32.gmra.mxu0 %v772
    %v942 = vpop.f32.mrf.mxu0
    %v943 = vadd.f32 0.0, %v942
    %944 = vmatmul.f32.gmra.mxu0 %v774
    %v945 = vpop.f32.mrf.mxu0
    %v946 = vadd.f32 0.0, %v945
    %947 = vmatmul.f32.gmra.mxu0 %v776
    %v948 = vpop.f32.mrf.mxu0
    %v949 = vadd.f32 0.0, %v948
    %950 = vmatmul.f32.gmra.mxu0 %v778
    %v951 = vpop.f32.mrf.mxu0
    %v952 = vadd.f32 0.0, %v951
    %953 = vmatmul.f32.gmra.mxu0 %v780
    %v954 = vpop.f32.mrf.mxu0
    %v955 = vadd.f32 0.0, %v954
    %956 = vmatmul.f32.gmra.mxu0 %v782
    %v957 = vpop.f32.mrf.mxu0
    %v958 = vadd.f32 0.0, %v957
    %959 = vmatmul.f32.gmra.mxu0 %v784
    %v960 = vpop.f32.mrf.mxu0
    %v961 = vadd.f32 0.0, %v960
    %962 = vmatmul.f32.gmra.mxu0 %v786
    %v963 = vpop.f32.mrf.mxu0
    %v964 = vadd.f32 0.0, %v963
    %965 = vdwg.mxu0
    %966 = vmatpush.msra.mxu0 %v851
    %967 = vmatpush.msra.mxu0 %v849
    %968 = vmatpush.msra.mxu0 %v847
    %969 = vmatpush.msra.mxu0 %v845
    %970 = vmatpush.msra.mxu0 %v843
    %971 = vmatpush.msra.mxu0 %v841
    %972 = vmatpush.msra.mxu0 %v839
    %973 = vmatpush.msra.mxu0 %v837
    %974 = vmatpush.msra.mxu0 %v835
    %975 = vmatpush.msra.mxu0 %v833
    %976 = vmatpush.msra.mxu0 %v831
    %977 = vmatpush.msra.mxu0 %v829
    %978 = vmatpush.msra.mxu0 %v827
    %979 = vmatpush.msra.mxu0 %v825
    %980 = vmatpush.msra.mxu0 %v823
    %981 = vmatpush.msra.mxu0 %v821
    %982 = vmatmul.f32.gmra.mxu0 %v725
    %v983 = vpop.f32.mrf.mxu0
    %v984 = vadd.f32 %v871, %v983
    %985 = vmatmul.f32.gmra.mxu0 %v727
    %v986 = vpop.f32.mrf.mxu0
    %v987 = vadd.f32 %v874, %v986
    %988 = vmatmul.f32.gmra.mxu0 %v729
    %v989 = vpop.f32.mrf.mxu0
    %v990 = vadd.f32 %v877, %v989
    %991 = vmatmul.f32.gmra.mxu0 %v731
    %v992 = vpop.f32.mrf.mxu0
    %v993 = vadd.f32 %v880, %v992
    %994 = vmatmul.f32.gmra.mxu0 %v733
    %v995 = vpop.f32.mrf.mxu0
    %v996 = vadd.f32 %v883, %v995
    %997 = vmatmul.f32.gmra.mxu0 %v735
    %v998 = vpop.f32.mrf.mxu0
    %v999 = vadd.f32 %v886, %v998
    %1000 = vmatmul.f32.gmra.mxu0 %v737
    %v1001 = vpop.f32.mrf.mxu0
    %v1002 = vadd.f32 %v889, %v1001
    %1003 = vmatmul.f32.gmra.mxu0 %v739
    %v1004 = vpop.f32.mrf.mxu0
    %v1005 = vadd.f32 %v892, %v1004
    %1006 = vmatmul.f32.gmra.mxu0 %v741
    %v1007 = vpop.f32.mrf.mxu0
    %v1008 = vadd.f32 %v895, %v1007
    %1009 = vmatmul.f32.gmra.mxu0 %v743
    %v1010 = vpop.f32.mrf.mxu0
    %v1011 = vadd.f32 %v898, %v1010
    %1012 = vmatmul.f32.gmra.mxu0 %v745
    %v1013 = vpop.f32.mrf.mxu0
    %v1014 = vadd.f32 %v901, %v1013
    %1015 = vmatmul.f32.gmra.mxu0 %v747
    %v1016 = vpop.f32.mrf.mxu0
    %v1017 = vadd.f32 %v904, %v1016
    %1018 = vmatmul.f32.gmra.mxu0 %v749
    %v1019 = vpop.f32.mrf.mxu0
    %v1020 = vadd.f32 %v907, %v1019
    %1021 = vmatmul.f32.gmra.mxu0 %v751
    %v1022 = vpop.f32.mrf.mxu0
    %v1023 = vadd.f32 %v910, %v1022
    %1024 = vmatmul.f32.gmra.mxu0 %v753
    %v1025 = vpop.f32.mrf.mxu0
    %v1026 = vadd.f32 %v913, %v1025
    %1027 = vmatmul.f32.gmra.mxu0 %v755
    %v1028 = vpop.f32.mrf.mxu0
    %v1029 = vadd.f32 %v916, %v1028
    %1030 = vmatmul.f32.gmra.mxu0 %v757
    %v1031 = vpop.f32.mrf.mxu0
    %v1032 = vadd.f32 %v919, %v1031
    %1033 = vmatmul.f32.gmra.mxu0 %v759
    %v1034 = vpop.f32.mrf.mxu0
    %v1035 = vadd.f32 %v922, %v1034
    %1036 = vmatmul.f32.gmra.mxu0 %v761
    %v1037 = vpop.f32.mrf.mxu0
    %v1038 = vadd.f32 %v925, %v1037
    %1039 = vmatmul.f32.gmra.mxu0 %v763
    %v1040 = vpop.f32.mrf.mxu0
    %v1041 = vadd.f32 %v928, %v1040
    %1042 = vmatmul.f32.gmra.mxu0 %v765
    %v1043 = vpop.f32.mrf.mxu0
    %v1044 = vadd.f32 %v931, %v1043
    %1045 = vmatmul.f32.gmra.mxu0 %v767
    %v1046 = vpop.f32.mrf.mxu0
    %v1047 = vadd.f32 %v934, %v1046
    %1048 = vmatmul.f32.gmra.mxu0 %v769
    %v1049 = vpop.f32.mrf.mxu0
    %v1050 = vadd.f32 %v937, %v1049
    %1051 = vmatmul.f32.gmra.mxu0 %v771
    %v1052 = vpop.f32.mrf.mxu0
    %v1053 = vadd.f32 %v940, %v1052
    %1054 = vmatmul.f32.gmra.mxu0 %v773
    %v1055 = vpop.f32.mrf.mxu0
    %v1056 = vadd.f32 %v943, %v1055
    %1057 = vmatmul.f32.gmra.mxu0 %v775
    %v1058 = vpop.f32.mrf.mxu0
    %v1059 = vadd.f32 %v946, %v1058
    %1060 = vmatmul.f32.gmra.mxu0 %v777
    %v1061 = vpop.f32.mrf.mxu0
    %v1062 = vadd.f32 %v949, %v1061
    %1063 = vmatmul.f32.gmra.mxu0 %v779
    %v1064 = vpop.f32.mrf.mxu0
    %v1065 = vadd.f32 %v952, %v1064
    %1066 = vmatmul.f32.gmra.mxu0 %v781
    %v1067 = vpop.f32.mrf.mxu0
    %v1068 = vadd.f32 %v955, %v1067
    %1069 = vmatmul.f32.gmra.mxu0 %v783
    %v1070 = vpop.f32.mrf.mxu0
    %v1071 = vadd.f32 %v958, %v1070
    %1072 = vmatmul.f32.gmra.mxu0 %v785
    %v1073 = vpop.f32.mrf.mxu0
    %v1074 = vadd.f32 %v961, %v1073
    %1075 = vmatmul.f32.gmra.mxu0 %v787
    %v1076 = vpop.f32.mrf.mxu0
    %v1077 = vadd.f32 %v964, %v1076
    %1078 = vdwg.mxu0
    %1079 = vmatpush.msra.mxu0 %v820
    %1080 = vmatpush.msra.mxu0 %v818
    %1081 = vmatpush.msra.mxu0 %v816
    %1082 = vmatpush.msra.mxu0 %v814
    %1083 = vmatpush.msra.mxu0 %v812
    %1084 = vmatpush.msra.mxu0 %v810
    %1085 = vmatpush.msra.mxu0 %v808
    %1086 = vmatpush.msra.mxu0 %v806
    %1087 = vmatpush.msra.mxu0 %v804
    %1088 = vmatpush.msra.mxu0 %v802
    %1089 = vmatpush.msra.mxu0 %v800
    %1090 = vmatpush.msra.mxu0 %v798
    %1091 = vmatpush.msra.mxu0 %v796
    %1092 = vmatpush.msra.mxu0 %v794
    %1093 = vmatpush.msra.mxu0 %v792
    %1094 = vmatpush.msra.mxu0 %v790
    %1095 = vmatmul.f32.gmra.mxu0 %v724
    %v1096 = vpop.f32.mrf.mxu0
    %v1097 = vadd.f32 0.0, %v1096
    %1098 = vmatmul.f32.gmra.mxu0 %v726
    %v1099 = vpop.f32.mrf.mxu0
    %v1100 = vadd.f32 0.0, %v1099
    %1101 = vmatmul.f32.gmra.mxu0 %v728
    %v1102 = vpop.f32.mrf.mxu0
    %v1103 = vadd.f32 0.0, %v1102
    %1104 = vmatmul.f32.gmra.mxu0 %v730
    %v1105 = vpop.f32.mrf.mxu0
    %v1106 = vadd.f32 0.0, %v1105
    %1107 = vmatmul.f32.gmra.mxu0 %v732
    %v1108 = vpop.f32.mrf.mxu0
    %v1109 = vadd.f32 0.0, %v1108
    %1110 = vmatmul.f32.gmra.mxu0 %v734
    %v1111 = vpop.f32.mrf.mxu0
    %v1112 = vadd.f32 0.0, %v1111
    %1113 = vmatmul.f32.gmra.mxu0 %v736
    %v1114 = vpop.f32.mrf.mxu0
    %v1115 = vadd.f32 0.0, %v1114
    %1116 = vmatmul.f32.gmra.mxu0 %v738
    %v1117 = vpop.f32.mrf.mxu0
    %v1118 = vadd.f32 0.0, %v1117
    %1119 = vmatmul.f32.gmra.mxu0 %v740
    %v1120 = vpop.f32.mrf.mxu0
    %v1121 = vadd.f32 0.0, %v1120
    %1122 = vmatmul.f32.gmra.mxu0 %v742
    %v1123 = vpop.f32.mrf.mxu0
    %v1124 = vadd.f32 0.0, %v1123
    %1125 = vmatmul.f32.gmra.mxu0 %v744
    %v1126 = vpop.f32.mrf.mxu0
    %v1127 = vadd.f32 0.0, %v1126
    %1128 = vmatmul.f32.gmra.mxu0 %v746
    %v1129 = vpop.f32.mrf.mxu0
    %v1130 = vadd.f32 0.0, %v1129
    %1131 = vmatmul.f32.gmra.mxu0 %v748
    %v1132 = vpop.f32.mrf.mxu0
    %v1133 = vadd.f32 0.0, %v1132
    %1134 = vmatmul.f32.gmra.mxu0 %v750
    %v1135 = vpop.f32.mrf.mxu0
    %v1136 = vadd.f32 0.0, %v1135
    %1137 = vmatmul.f32.gmra.mxu0 %v752
    %v1138 = vpop.f32.mrf.mxu0
    %v1139 = vadd.f32 0.0, %v1138
    %1140 = vmatmul.f32.gmra.mxu0 %v754
    %v1141 = vpop.f32.mrf.mxu0
    %v1142 = vadd.f32 0.0, %v1141
    %1143 = vmatmul.f32.gmra.mxu0 %v756
    %v1144 = vpop.f32.mrf.mxu0
    %v1145 = vadd.f32 0.0, %v1144
    %1146 = vmatmul.f32.gmra.mxu0 %v758
    %v1147 = vpop.f32.mrf.mxu0
    %v1148 = vadd.f32 0.0, %v1147
    %1149 = vmatmul.f32.gmra.mxu0 %v760
    %v1150 = vpop.f32.mrf.mxu0
    %v1151 = vadd.f32 0.0, %v1150
    %1152 = vmatmul.f32.gmra.mxu0 %v762
    %v1153 = vpop.f32.mrf.mxu0
    %v1154 = vadd.f32 0.0, %v1153
    %1155 = vmatmul.f32.gmra.mxu0 %v764
    %v1156 = vpop.f32.mrf.mxu0
    %v1157 = vadd.f32 0.0, %v1156
    %1158 = vmatmul.f32.gmra.mxu0 %v766
    %v1159 = vpop.f32.mrf.mxu0
    %v1160 = vadd.f32 0.0, %v1159
    %1161 = vmatmul.f32.gmra.mxu0 %v768
    %v1162 = vpop.f32.mrf.mxu0
    %v1163 = vadd.f32 0.0, %v1162
    %1164 = vmatmul.f32.gmra.mxu0 %v770
    %v1165 = vpop.f32.mrf.mxu0
    %v1166 = vadd.f32 0.0, %v1165
    %1167 = vmatmul.f32.gmra.mxu0 %v772
    %v1168 = vpop.f32.mrf.mxu0
    %v1169 = vadd.f32 0.0, %v1168
    %1170 = vmatmul.f32.gmra.mxu0 %v774
    %v1171 = vpop.f32.mrf.mxu0
    %v1172 = vadd.f32 0.0, %v1171
    %1173 = vmatmul.f32.gmra.mxu0 %v776
    %v1174 = vpop.f32.mrf.mxu0
    %v1175 = vadd.f32 0.0, %v1174
    %1176 = vmatmul.f32.gmra.mxu0 %v778
    %v1177 = vpop.f32.mrf.mxu0
    %v1178 = vadd.f32 0.0, %v1177
    %1179 = vmatmul.f32.gmra.mxu0 %v780
    %v1180 = vpop.f32.mrf.mxu0
    %v1181 = vadd.f32 0.0, %v1180
    %1182 = vmatmul.f32.gmra.mxu0 %v782
    %v1183 = vpop.f32.mrf.mxu0
    %v1184 = vadd.f32 0.0, %v1183
    %1185 = vmatmul.f32.gmra.mxu0 %v784
    %v1186 = vpop.f32.mrf.mxu0
    %v1187 = vadd.f32 0.0, %v1186
    %1188 = vmatmul.f32.gmra.mxu0 %v786
    %v1189 = vpop.f32.mrf.mxu0
    %v1190 = vadd.f32 0.0, %v1189
    %1191 = vdwg.mxu0
    %1192 = vmatpush.msra.mxu0 %v852
    %1193 = vmatpush.msra.mxu0 %v850
    %1194 = vmatpush.msra.mxu0 %v848
    %1195 = vmatpush.msra.mxu0 %v846
    %1196 = vmatpush.msra.mxu0 %v844
    %1197 = vmatpush.msra.mxu0 %v842
    %1198 = vmatpush.msra.mxu0 %v840
    %1199 = vmatpush.msra.mxu0 %v838
    %1200 = vmatpush.msra.mxu0 %v836
    %1201 = vmatpush.msra.mxu0 %v834
    %1202 = vmatpush.msra.mxu0 %v832
    %1203 = vmatpush.msra.mxu0 %v830
    %1204 = vmatpush.msra.mxu0 %v828
    %1205 = vmatpush.msra.mxu0 %v826
    %1206 = vmatpush.msra.mxu0 %v824
    %1207 = vmatpush.msra.mxu0 %v822
    %1208 = vmatmul.f32.gmra.mxu0 %v725
    %v1209 = vpop.f32.mrf.mxu0
    %v1210 = vadd.f32 %v1097, %v1209
    %1211 = vmatmul.f32.gmra.mxu0 %v727
    %v1212 = vpop.f32.mrf.mxu0
    %v1213 = vadd.f32 %v1100, %v1212
    %1214 = vmatmul.f32.gmra.mxu0 %v729
    %v1215 = vpop.f32.mrf.mxu0
    %v1216 = vadd.f32 %v1103, %v1215
    %1217 = vmatmul.f32.gmra.mxu0 %v731
    %v1218 = vpop.f32.mrf.mxu0
    %v1219 = vadd.f32 %v1106, %v1218
    %1220 = vmatmul.f32.gmra.mxu0 %v733
    %v1221 = vpop.f32.mrf.mxu0
    %v1222 = vadd.f32 %v1109, %v1221
    %1223 = vmatmul.f32.gmra.mxu0 %v735
    %v1224 = vpop.f32.mrf.mxu0
    %v1225 = vadd.f32 %v1112, %v1224
    %1226 = vmatmul.f32.gmra.mxu0 %v737
    %v1227 = vpop.f32.mrf.mxu0
    %v1228 = vadd.f32 %v1115, %v1227
    %1229 = vmatmul.f32.gmra.mxu0 %v739
    %v1230 = vpop.f32.mrf.mxu0
    %v1231 = vadd.f32 %v1118, %v1230
    %1232 = vmatmul.f32.gmra.mxu0 %v741
    %v1233 = vpop.f32.mrf.mxu0
    %v1234 = vadd.f32 %v1121, %v1233
    %1235 = vmatmul.f32.gmra.mxu0 %v743
    %v1236 = vpop.f32.mrf.mxu0
    %v1237 = vadd.f32 %v1124, %v1236
    %1238 = vmatmul.f32.gmra.mxu0 %v745
    %v1239 = vpop.f32.mrf.mxu0
    %v1240 = vadd.f32 %v1127, %v1239
    %1241 = vmatmul.f32.gmra.mxu0 %v747
    %v1242 = vpop.f32.mrf.mxu0
    %v1243 = vadd.f32 %v1130, %v1242
    %1244 = vmatmul.f32.gmra.mxu0 %v749
    %v1245 = vpop.f32.mrf.mxu0
    %v1246 = vadd.f32 %v1133, %v1245
    %1247 = vmatmul.f32.gmra.mxu0 %v751
    %v1248 = vpop.f32.mrf.mxu0
    %v1249 = vadd.f32 %v1136, %v1248
    %1250 = vmatmul.f32.gmra.mxu0 %v753
    %v1251 = vpop.f32.mrf.mxu0
    %v1252 = vadd.f32 %v1139, %v1251
    %1253 = vmatmul.f32.gmra.mxu0 %v755
    %v1254 = vpop.f32.mrf.mxu0
    %v1255 = vadd.f32 %v1142, %v1254
    %1256 = vmatmul.f32.gmra.mxu0 %v757
    %v1257 = vpop.f32.mrf.mxu0
    %v1258 = vadd.f32 %v1145, %v1257
    %1259 = vmatmul.f32.gmra.mxu0 %v759
    %v1260 = vpop.f32.mrf.mxu0
    %v1261 = vadd.f32 %v1148, %v1260
    %1262 = vmatmul.f32.gmra.mxu0 %v761
    %v1263 = vpop.f32.mrf.mxu0
    %v1264 = vadd.f32 %v1151, %v1263
    %1265 = vmatmul.f32.gmra.mxu0 %v763
    %v1266 = vpop.f32.mrf.mxu0
    %v1267 = vadd.f32 %v1154, %v1266
    %1268 = vmatmul.f32.gmra.mxu0 %v765
    %v1269 = vpop.f32.mrf.mxu0
    %v1270 = vadd.f32 %v1157, %v1269
    %1271 = vmatmul.f32.gmra.mxu0 %v767
    %v1272 = vpop.f32.mrf.mxu0
    %v1273 = vadd.f32 %v1160, %v1272
    %1274 = vmatmul.f32.gmra.mxu0 %v769
    %v1275 = vpop.f32.mrf.mxu0
    %v1276 = vadd.f32 %v1163, %v1275
    %1277 = vmatmul.f32.gmra.mxu0 %v771
    %v1278 = vpop.f32.mrf.mxu0
    %v1279 = vadd.f32 %v1166, %v1278
    %1280 = vmatmul.f32.gmra.mxu0 %v773
    %v1281 = vpop.f32.mrf.mxu0
    %v1282 = vadd.f32 %v1169, %v1281
    %1283 = vmatmul.f32.gmra.mxu0 %v775
    %v1284 = vpop.f32.mrf.mxu0
    %v1285 = vadd.f32 %v1172, %v1284
    %1286 = vmatmul.f32.gmra.mxu0 %v777
    %v1287 = vpop.f32.mrf.mxu0
    %v1288 = vadd.f32 %v1175, %v1287
    %1289 = vmatmul.f32.gmra.mxu0 %v779
    %v1290 = vpop.f32.mrf.mxu0
    %v1291 = vadd.f32 %v1178, %v1290
    %1292 = vmatmul.f32.gmra.mxu0 %v781
    %v1293 = vpop.f32.mrf.mxu0
    %v1294 = vadd.f32 %v1181, %v1293
    %1295 = vmatmul.f32.gmra.mxu0 %v783
    %v1296 = vpop.f32.mrf.mxu0
    %v1297 = vadd.f32 %v1184, %v1296
    %1298 = vmatmul.f32.gmra.mxu0 %v785
    %v1299 = vpop.f32.mrf.mxu0
    %v1300 = vadd.f32 %v1187, %v1299
    %1301 = vmatmul.f32.gmra.mxu0 %v787
    %v1302 = vpop.f32.mrf.mxu0
    %v1303 = vadd.f32 %v1190, %v1302
    %1304 = vdwg.mxu0
    %1305 = vmatpush.msra.mxu0 %v626
    %1306 = vmatpush.msra.mxu0 %v624
    %1307 = vmatpush.msra.mxu0 %v622
    %1308 = vmatpush.msra.mxu0 %v620
    %1309 = vmatpush.msra.mxu0 %v618
    %1310 = vmatpush.msra.mxu0 %v616
    %1311 = vmatpush.msra.mxu0 %v614
    %1312 = vmatpush.msra.mxu0 %v612
    %1313 = vmatpush.msra.mxu0 %v610
    %1314 = vmatpush.msra.mxu0 %v608
    %1315 = vmatpush.msra.mxu0 %v606
    %1316 = vmatpush.msra.mxu0 %v604
    %1317 = vmatpush.msra.mxu0 %v602
    %1318 = vmatpush.msra.mxu0 %v600
    %1319 = vmatpush.msra.mxu0 %v598
    %1320 = vmatpush.msra.mxu0 %v596
    %1321 = vmatmul.f32.gmra.mxu0 %v532
    %v1322 = vpop.f32.mrf.mxu0
    %v1323 = vadd.f32 %v984, %v1322
    %1324 = vmatmul.f32.gmra.mxu0 %v534
    %v1325 = vpop.f32.mrf.mxu0
    %v1326 = vadd.f32 %v987, %v1325
    %1327 = vmatmul.f32.gmra.mxu0 %v536
    %v1328 = vpop.f32.mrf.mxu0
    %v1329 = vadd.f32 %v990, %v1328
    %1330 = vmatmul.f32.gmra.mxu0 %v538
    %v1331 = vpop.f32.mrf.mxu0
    %v1332 = vadd.f32 %v993, %v1331
    %1333 = vmatmul.f32.gmra.mxu0 %v540
    %v1334 = vpop.f32.mrf.mxu0
    %v1335 = vadd.f32 %v996, %v1334
    %1336 = vmatmul.f32.gmra.mxu0 %v542
    %v1337 = vpop.f32.mrf.mxu0
    %v1338 = vadd.f32 %v999, %v1337
    %1339 = vmatmul.f32.gmra.mxu0 %v544
    %v1340 = vpop.f32.mrf.mxu0
    %v1341 = vadd.f32 %v1002, %v1340
    %1342 = vmatmul.f32.gmra.mxu0 %v546
    %v1343 = vpop.f32.mrf.mxu0
    %v1344 = vadd.f32 %v1005, %v1343
    %1345 = vmatmul.f32.gmra.mxu0 %v548
    %v1346 = vpop.f32.mrf.mxu0
    %v1347 = vadd.f32 %v1008, %v1346
    %1348 = vmatmul.f32.gmra.mxu0 %v550
    %v1349 = vpop.f32.mrf.mxu0
    %v1350 = vadd.f32 %v1011, %v1349
    %1351 = vmatmul.f32.gmra.mxu0 %v552
    %v1352 = vpop.f32.mrf.mxu0
    %v1353 = vadd.f32 %v1014, %v1352
    %1354 = vmatmul.f32.gmra.mxu0 %v554
    %v1355 = vpop.f32.mrf.mxu0
    %v1356 = vadd.f32 %v1017, %v1355
    %1357 = vmatmul.f32.gmra.mxu0 %v556
    %v1358 = vpop.f32.mrf.mxu0
    %v1359 = vadd.f32 %v1020, %v1358
    %1360 = vmatmul.f32.gmra.mxu0 %v558
    %v1361 = vpop.f32.mrf.mxu0
    %v1362 = vadd.f32 %v1023, %v1361
    %1363 = vmatmul.f32.gmra.mxu0 %v560
    %v1364 = vpop.f32.mrf.mxu0
    %v1365 = vadd.f32 %v1026, %v1364
    %1366 = vmatmul.f32.gmra.mxu0 %v562
    %v1367 = vpop.f32.mrf.mxu0
    %v1368 = vadd.f32 %v1029, %v1367
    %1369 = vmatmul.f32.gmra.mxu0 %v564
    %v1370 = vpop.f32.mrf.mxu0
    %v1371 = vadd.f32 %v1032, %v1370
    %1372 = vmatmul.f32.gmra.mxu0 %v566
    %v1373 = vpop.f32.mrf.mxu0
    %v1374 = vadd.f32 %v1035, %v1373
    %1375 = vmatmul.f32.gmra.mxu0 %v568
    %v1376 = vpop.f32.mrf.mxu0
    %v1377 = vadd.f32 %v1038, %v1376
    %1378 = vmatmul.f32.gmra.mxu0 %v570
    %v1379 = vpop.f32.mrf.mxu0
    %v1380 = vadd.f32 %v1041, %v1379
    %1381 = vmatmul.f32.gmra.mxu0 %v572
    %v1382 = vpop.f32.mrf.mxu0
    %v1383 = vadd.f32 %v1044, %v1382
    %1384 = vmatmul.f32.gmra.mxu0 %v574
    %v1385 = vpop.f32.mrf.mxu0
    %v1386 = vadd.f32 %v1047, %v1385
    %1387 = vmatmul.f32.gmra.mxu0 %v576
    %v1388 = vpop.f32.mrf.mxu0
    %v1389 = vadd.f32 %v1050, %v1388
    %1390 = vmatmul.f32.gmra.mxu0 %v578
    %v1391 = vpop.f32.mrf.mxu0
    %v1392 = vadd.f32 %v1053, %v1391
    %1393 = vmatmul.f32.gmra.mxu0 %v580
    %v1394 = vpop.f32.mrf.mxu0
    %v1395 = vadd.f32 %v1056, %v1394
    %1396 = vmatmul.f32.gmra.mxu0 %v582
    %v1397 = vpop.f32.mrf.mxu0
    %v1398 = vadd.f32 %v1059, %v1397
    %1399 = vmatmul.f32.gmra.mxu0 %v584
    %v1400 = vpop.f32.mrf.mxu0
    %v1401 = vadd.f32 %v1062, %v1400
    %1402 = vmatmul.f32.gmra.mxu0 %v586
    %v1403 = vpop.f32.mrf.mxu0
    %v1404 = vadd.f32 %v1065, %v1403
    %1405 = vmatmul.f32.gmra.mxu0 %v588
    %v1406 = vpop.f32.mrf.mxu0
    %v1407 = vadd.f32 %v1068, %v1406
    %1408 = vmatmul.f32.gmra.mxu0 %v590
    %v1409 = vpop.f32.mrf.mxu0
    %v1410 = vadd.f32 %v1071, %v1409
    %1411 = vmatmul.f32.gmra.mxu0 %v592
    %v1412 = vpop.f32.mrf.mxu0
    %v1413 = vadd.f32 %v1074, %v1412
    %1414 = vmatmul.f32.gmra.mxu0 %v594
    %v1415 = vpop.f32.mrf.mxu0
    %v1416 = vadd.f32 %v1077, %v1415
    %1417 = vdwg.mxu0
    %1418 = vmatpush.msra.mxu0 %v658
    %1419 = vmatpush.msra.mxu0 %v656
    %1420 = vmatpush.msra.mxu0 %v654
    %1421 = vmatpush.msra.mxu0 %v652
    %1422 = vmatpush.msra.mxu0 %v650
    %1423 = vmatpush.msra.mxu0 %v648
    %1424 = vmatpush.msra.mxu0 %v646
    %1425 = vmatpush.msra.mxu0 %v644
    %1426 = vmatpush.msra.mxu0 %v642
    %1427 = vmatpush.msra.mxu0 %v640
    %1428 = vmatpush.msra.mxu0 %v638
    %1429 = vmatpush.msra.mxu0 %v636
    %1430 = vmatpush.msra.mxu0 %v634
    %1431 = vmatpush.msra.mxu0 %v632
    %1432 = vmatpush.msra.mxu0 %v630
    %1433 = vmatpush.msra.mxu0 %v628
    %1434 = vmatmul.f32.gmra.mxu0 %v533
    %v1435 = vpop.f32.mrf.mxu0
    %v1436 = vadd.f32 %v1323, %v1435
    %1437 = vmatmul.f32.gmra.mxu0 %v535
    %v1438 = vpop.f32.mrf.mxu0
    %v1439 = vadd.f32 %v1326, %v1438
    %1440 = vmatmul.f32.gmra.mxu0 %v537
    %v1441 = vpop.f32.mrf.mxu0
    %v1442 = vadd.f32 %v1329, %v1441
    %1443 = vmatmul.f32.gmra.mxu0 %v539
    %v1444 = vpop.f32.mrf.mxu0
    %v1445 = vadd.f32 %v1332, %v1444
    %1446 = vmatmul.f32.gmra.mxu0 %v541
    %v1447 = vpop.f32.mrf.mxu0
    %v1448 = vadd.f32 %v1335, %v1447
    %1449 = vmatmul.f32.gmra.mxu0 %v543
    %v1450 = vpop.f32.mrf.mxu0
    %v1451 = vadd.f32 %v1338, %v1450
    %1452 = vmatmul.f32.gmra.mxu0 %v545
    %v1453 = vpop.f32.mrf.mxu0
    %v1454 = vadd.f32 %v1341, %v1453
    %1455 = vmatmul.f32.gmra.mxu0 %v547
    %v1456 = vpop.f32.mrf.mxu0
    %v1457 = vadd.f32 %v1344, %v1456
    %1458 = vmatmul.f32.gmra.mxu0 %v549
    %v1459 = vpop.f32.mrf.mxu0
    %v1460 = vadd.f32 %v1347, %v1459
    %1461 = vmatmul.f32.gmra.mxu0 %v551
    %v1462 = vpop.f32.mrf.mxu0
    %v1463 = vadd.f32 %v1350, %v1462
    %1464 = vmatmul.f32.gmra.mxu0 %v553
    %v1465 = vpop.f32.mrf.mxu0
    %v1466 = vadd.f32 %v1353, %v1465
    %1467 = vmatmul.f32.gmra.mxu0 %v555
    %v1468 = vpop.f32.mrf.mxu0
    %v1469 = vadd.f32 %v1356, %v1468
    %1470 = vmatmul.f32.gmra.mxu0 %v557
    %v1471 = vpop.f32.mrf.mxu0
    %v1472 = vadd.f32 %v1359, %v1471
    %1473 = vmatmul.f32.gmra.mxu0 %v559
    %v1474 = vpop.f32.mrf.mxu0
    %v1475 = vadd.f32 %v1362, %v1474
    %1476 = vmatmul.f32.gmra.mxu0 %v561
    %v1477 = vpop.f32.mrf.mxu0
    %v1478 = vadd.f32 %v1365, %v1477
    %1479 = vmatmul.f32.gmra.mxu0 %v563
    %v1480 = vpop.f32.mrf.mxu0
    %v1481 = vadd.f32 %v1368, %v1480
    %1482 = vmatmul.f32.gmra.mxu0 %v565
    %v1483 = vpop.f32.mrf.mxu0
    %v1484 = vadd.f32 %v1371, %v1483
    %1485 = vmatmul.f32.gmra.mxu0 %v567
    %v1486 = vpop.f32.mrf.mxu0
    %v1487 = vadd.f32 %v1374, %v1486
    %1488 = vmatmul.f32.gmra.mxu0 %v569
    %v1489 = vpop.f32.mrf.mxu0
    %v1490 = vadd.f32 %v1377, %v1489
    %1491 = vmatmul.f32.gmra.mxu0 %v571
    %v1492 = vpop.f32.mrf.mxu0
    %v1493 = vadd.f32 %v1380, %v1492
    %1494 = vmatmul.f32.gmra.mxu0 %v573
    %v1495 = vpop.f32.mrf.mxu0
    %v1496 = vadd.f32 %v1383, %v1495
    %1497 = vmatmul.f32.gmra.mxu0 %v575
    %v1498 = vpop.f32.mrf.mxu0
    %v1499 = vadd.f32 %v1386, %v1498
    %1500 = vmatmul.f32.gmra.mxu0 %v577
    %v1501 = vpop.f32.mrf.mxu0
    %v1502 = vadd.f32 %v1389, %v1501
    %1503 = vmatmul.f32.gmra.mxu0 %v579
    %v1504 = vpop.f32.mrf.mxu0
    %v1505 = vadd.f32 %v1392, %v1504
    %1506 = vmatmul.f32.gmra.mxu0 %v581
    %v1507 = vpop.f32.mrf.mxu0
    %v1508 = vadd.f32 %v1395, %v1507
    %1509 = vmatmul.f32.gmra.mxu0 %v583
    %v1510 = vpop.f32.mrf.mxu0
    %v1511 = vadd.f32 %v1398, %v1510
    %1512 = vmatmul.f32.gmra.mxu0 %v585
    %v1513 = vpop.f32.mrf.mxu0
    %v1514 = vadd.f32 %v1401, %v1513
    %1515 = vmatmul.f32.gmra.mxu0 %v587
    %v1516 = vpop.f32.mrf.mxu0
    %v1517 = vadd.f32 %v1404, %v1516
    %1518 = vmatmul.f32.gmra.mxu0 %v589
    %v1519 = vpop.f32.mrf.mxu0
    %v1520 = vadd.f32 %v1407, %v1519
    %1521 = vmatmul.f32.gmra.mxu0 %v591
    %v1522 = vpop.f32.mrf.mxu0
    %v1523 = vadd.f32 %v1410, %v1522
    %1524 = vmatmul.f32.gmra.mxu0 %v593
    %v1525 = vpop.f32.mrf.mxu0
    %v1526 = vadd.f32 %v1413, %v1525
    %1527 = vmatmul.f32.gmra.mxu0 %v595
    %v1528 = vpop.f32.mrf.mxu0
    %v1529 = vadd.f32 %v1416, %v1528
    %1530 = vdwg.mxu0
    %1531 = vmatpush.msra.mxu0 %v627
    %1532 = vmatpush.msra.mxu0 %v625
    %1533 = vmatpush.msra.mxu0 %v623
    %1534 = vmatpush.msra.mxu0 %v621
    %1535 = vmatpush.msra.mxu0 %v619
    %1536 = vmatpush.msra.mxu0 %v617
    %1537 = vmatpush.msra.mxu0 %v615
    %1538 = vmatpush.msra.mxu0 %v613
    %1539 = vmatpush.msra.mxu0 %v611
    %1540 = vmatpush.msra.mxu0 %v609
    %1541 = vmatpush.msra.mxu0 %v607
    %1542 = vmatpush.msra.mxu0 %v605
    %1543 = vmatpush.msra.mxu0 %v603
    %1544 = vmatpush.msra.mxu0 %v601
    %1545 = vmatpush.msra.mxu0 %v599
    %1546 = vmatpush.msra.mxu0 %v597
    %1547 = vmatmul.f32.gmra.mxu0 %v532
    %v1548 = vpop.f32.mrf.mxu0
    %v1549 = vadd.f32 %v1210, %v1548
    %1550 = vmatmul.f32.gmra.mxu0 %v534
    %v1551 = vpop.f32.mrf.mxu0
    %v1552 = vadd.f32 %v1213, %v1551
    %1553 = vmatmul.f32.gmra.mxu0 %v536
    %v1554 = vpop.f32.mrf.mxu0
    %v1555 = vadd.f32 %v1216, %v1554
    %1556 = vmatmul.f32.gmra.mxu0 %v538
    %v1557 = vpop.f32.mrf.mxu0
    %v1558 = vadd.f32 %v1219, %v1557
    %1559 = vmatmul.f32.gmra.mxu0 %v540
    %v1560 = vpop.f32.mrf.mxu0
    %v1561 = vadd.f32 %v1222, %v1560
    %1562 = vmatmul.f32.gmra.mxu0 %v542
    %v1563 = vpop.f32.mrf.mxu0
    %v1564 = vadd.f32 %v1225, %v1563
    %1565 = vmatmul.f32.gmra.mxu0 %v544
    %v1566 = vpop.f32.mrf.mxu0
    %v1567 = vadd.f32 %v1228, %v1566
    %1568 = vmatmul.f32.gmra.mxu0 %v546
    %v1569 = vpop.f32.mrf.mxu0
    %v1570 = vadd.f32 %v1231, %v1569
    %1571 = vmatmul.f32.gmra.mxu0 %v548
    %v1572 = vpop.f32.mrf.mxu0
    %v1573 = vadd.f32 %v1234, %v1572
    %1574 = vmatmul.f32.gmra.mxu0 %v550
    %v1575 = vpop.f32.mrf.mxu0
    %v1576 = vadd.f32 %v1237, %v1575
    %1577 = vmatmul.f32.gmra.mxu0 %v552
    %v1578 = vpop.f32.mrf.mxu0
    %v1579 = vadd.f32 %v1240, %v1578
    %1580 = vmatmul.f32.gmra.mxu0 %v554
    %v1581 = vpop.f32.mrf.mxu0
    %v1582 = vadd.f32 %v1243, %v1581
    %1583 = vmatmul.f32.gmra.mxu0 %v556
    %v1584 = vpop.f32.mrf.mxu0
    %v1585 = vadd.f32 %v1246, %v1584
    %1586 = vmatmul.f32.gmra.mxu0 %v558
    %v1587 = vpop.f32.mrf.mxu0
    %v1588 = vadd.f32 %v1249, %v1587
    %1589 = vmatmul.f32.gmra.mxu0 %v560
    %v1590 = vpop.f32.mrf.mxu0
    %v1591 = vadd.f32 %v1252, %v1590
    %1592 = vmatmul.f32.gmra.mxu0 %v562
    %v1593 = vpop.f32.mrf.mxu0
    %v1594 = vadd.f32 %v1255, %v1593
    %1595 = vmatmul.f32.gmra.mxu0 %v564
    %v1596 = vpop.f32.mrf.mxu0
    %v1597 = vadd.f32 %v1258, %v1596
    %1598 = vmatmul.f32.gmra.mxu0 %v566
    %v1599 = vpop.f32.mrf.mxu0
    %v1600 = vadd.f32 %v1261, %v1599
    %1601 = vmatmul.f32.gmra.mxu0 %v568
    %v1602 = vpop.f32.mrf.mxu0
    %v1603 = vadd.f32 %v1264, %v1602
    %1604 = vmatmul.f32.gmra.mxu0 %v570
    %v1605 = vpop.f32.mrf.mxu0
    %v1606 = vadd.f32 %v1267, %v1605
    %1607 = vmatmul.f32.gmra.mxu0 %v572
    %v1608 = vpop.f32.mrf.mxu0
    %v1609 = vadd.f32 %v1270, %v1608
    %1610 = vmatmul.f32.gmra.mxu0 %v574
    %v1611 = vpop.f32.mrf.mxu0
    %v1612 = vadd.f32 %v1273, %v1611
    %1613 = vmatmul.f32.gmra.mxu0 %v576
    %v1614 = vpop.f32.mrf.mxu0
    %v1615 = vadd.f32 %v1276, %v1614
    %1616 = vmatmul.f32.gmra.mxu0 %v578
    %v1617 = vpop.f32.mrf.mxu0
    %v1618 = vadd.f32 %v1279, %v1617
    %1619 = vmatmul.f32.gmra.mxu0 %v580
    %v1620 = vpop.f32.mrf.mxu0
    %v1621 = vadd.f32 %v1282, %v1620
    %1622 = vmatmul.f32.gmra.mxu0 %v582
    %v1623 = vpop.f32.mrf.mxu0
    %v1624 = vadd.f32 %v1285, %v1623
    %1625 = vmatmul.f32.gmra.mxu0 %v584
    %v1626 = vpop.f32.mrf.mxu0
    %v1627 = vadd.f32 %v1288, %v1626
    %1628 = vmatmul.f32.gmra.mxu0 %v586
    %v1629 = vpop.f32.mrf.mxu0
    %v1630 = vadd.f32 %v1291, %v1629
    %1631 = vmatmul.f32.gmra.mxu0 %v588
    %v1632 = vpop.f32.mrf.mxu0
    %v1633 = vadd.f32 %v1294, %v1632
    %1634 = vmatmul.f32.gmra.mxu0 %v590
    %v1635 = vpop.f32.mrf.mxu0
    %v1636 = vadd.f32 %v1297, %v1635
    %1637 = vmatmul.f32.gmra.mxu0 %v592
    %v1638 = vpop.f32.mrf.mxu0
    %v1639 = vadd.f32 %v1300, %v1638
    %1640 = vmatmul.f32.gmra.mxu0 %v594
    %v1641 = vpop.f32.mrf.mxu0
    %v1642 = vadd.f32 %v1303, %v1641
    %1643 = vdwg.mxu0
    %1644 = vmatpush.msra.mxu0 %v659
    %1645 = vmatpush.msra.mxu0 %v657
    %1646 = vmatpush.msra.mxu0 %v655
    %1647 = vmatpush.msra.mxu0 %v653
    %1648 = vmatpush.msra.mxu0 %v651
    %1649 = vmatpush.msra.mxu0 %v649
    %1650 = vmatpush.msra.mxu0 %v647
    %1651 = vmatpush.msra.mxu0 %v645
    %1652 = vmatpush.msra.mxu0 %v643
    %1653 = vmatpush.msra.mxu0 %v641
    %1654 = vmatpush.msra.mxu0 %v639
    %1655 = vmatpush.msra.mxu0 %v637
    %1656 = vmatpush.msra.mxu0 %v635
    %1657 = vmatpush.msra.mxu0 %v633
    %1658 = vmatpush.msra.mxu0 %v631
    %1659 = vmatpush.msra.mxu0 %v629
    %1660 = vmatmul.f32.gmra.mxu0 %v533
    %v1661 = vpop.f32.mrf.mxu0
    %v1662 = vadd.f32 %v1549, %v1661
    %1663 = vmatmul.f32.gmra.mxu0 %v535
    %v1664 = vpop.f32.mrf.mxu0
    %v1665 = vadd.f32 %v1552, %v1664
    %1666 = vmatmul.f32.gmra.mxu0 %v537
    %v1667 = vpop.f32.mrf.mxu0
    %v1668 = vadd.f32 %v1555, %v1667
    %1669 = vmatmul.f32.gmra.mxu0 %v539
    %v1670 = vpop.f32.mrf.mxu0
    %v1671 = vadd.f32 %v1558, %v1670
    %1672 = vmatmul.f32.gmra.mxu0 %v541
    %v1673 = vpop.f32.mrf.mxu0
    %v1674 = vadd.f32 %v1561, %v1673
    %1675 = vmatmul.f32.gmra.mxu0 %v543
    %v1676 = vpop.f32.mrf.mxu0
    %v1677 = vadd.f32 %v1564, %v1676
    %1678 = vmatmul.f32.gmra.mxu0 %v545
    %v1679 = vpop.f32.mrf.mxu0
    %v1680 = vadd.f32 %v1567, %v1679
    %1681 = vmatmul.f32.gmra.mxu0 %v547
    %v1682 = vpop.f32.mrf.mxu0
    %v1683 = vadd.f32 %v1570, %v1682
    %1684 = vmatmul.f32.gmra.mxu0 %v549
    %v1685 = vpop.f32.mrf.mxu0
    %v1686 = vadd.f32 %v1573, %v1685
    %1687 = vmatmul.f32.gmra.mxu0 %v551
    %v1688 = vpop.f32.mrf.mxu0
    %v1689 = vadd.f32 %v1576, %v1688
    %1690 = vmatmul.f32.gmra.mxu0 %v553
    %v1691 = vpop.f32.mrf.mxu0
    %v1692 = vadd.f32 %v1579, %v1691
    %1693 = vmatmul.f32.gmra.mxu0 %v555
    %v1694 = vpop.f32.mrf.mxu0
    %v1695 = vadd.f32 %v1582, %v1694
    %1696 = vmatmul.f32.gmra.mxu0 %v557
    %v1697 = vpop.f32.mrf.mxu0
    %v1698 = vadd.f32 %v1585, %v1697
    %1699 = vmatmul.f32.gmra.mxu0 %v559
    %v1700 = vpop.f32.mrf.mxu0
    %v1701 = vadd.f32 %v1588, %v1700
    %1702 = vmatmul.f32.gmra.mxu0 %v561
    %v1703 = vpop.f32.mrf.mxu0
    %v1704 = vadd.f32 %v1591, %v1703
    %1705 = vmatmul.f32.gmra.mxu0 %v563
    %v1706 = vpop.f32.mrf.mxu0
    %v1707 = vadd.f32 %v1594, %v1706
    %1708 = vmatmul.f32.gmra.mxu0 %v565
    %v1709 = vpop.f32.mrf.mxu0
    %v1710 = vadd.f32 %v1597, %v1709
    %1711 = vmatmul.f32.gmra.mxu0 %v567
    %v1712 = vpop.f32.mrf.mxu0
    %v1713 = vadd.f32 %v1600, %v1712
    %1714 = vmatmul.f32.gmra.mxu0 %v569
    %v1715 = vpop.f32.mrf.mxu0
    %v1716 = vadd.f32 %v1603, %v1715
    %1717 = vmatmul.f32.gmra.mxu0 %v571
    %v1718 = vpop.f32.mrf.mxu0
    %v1719 = vadd.f32 %v1606, %v1718
    %1720 = vmatmul.f32.gmra.mxu0 %v573
    %v1721 = vpop.f32.mrf.mxu0
    %v1722 = vadd.f32 %v1609, %v1721
    %1723 = vmatmul.f32.gmra.mxu0 %v575
    %v1724 = vpop.f32.mrf.mxu0
    %v1725 = vadd.f32 %v1612, %v1724
    %1726 = vmatmul.f32.gmra.mxu0 %v577
    %v1727 = vpop.f32.mrf.mxu0
    %v1728 = vadd.f32 %v1615, %v1727
    %1729 = vmatmul.f32.gmra.mxu0 %v579
    %v1730 = vpop.f32.mrf.mxu0
    %v1731 = vadd.f32 %v1618, %v1730
    %1732 = vmatmul.f32.gmra.mxu0 %v581
    %v1733 = vpop.f32.mrf.mxu0
    %v1734 = vadd.f32 %v1621, %v1733
    %1735 = vmatmul.f32.gmra.mxu0 %v583
    %v1736 = vpop.f32.mrf.mxu0
    %v1737 = vadd.f32 %v1624, %v1736
    %1738 = vmatmul.f32.gmra.mxu0 %v585
    %v1739 = vpop.f32.mrf.mxu0
    %v1740 = vadd.f32 %v1627, %v1739
    %1741 = vmatmul.f32.gmra.mxu0 %v587
    %v1742 = vpop.f32.mrf.mxu0
    %v1743 = vadd.f32 %v1630, %v1742
    %1744 = vmatmul.f32.gmra.mxu0 %v589
    %v1745 = vpop.f32.mrf.mxu0
    %v1746 = vadd.f32 %v1633, %v1745
    %1747 = vmatmul.f32.gmra.mxu0 %v591
    %v1748 = vpop.f32.mrf.mxu0
    %v1749 = vadd.f32 %v1636, %v1748
    %1750 = vmatmul.f32.gmra.mxu0 %v593
    %v1751 = vpop.f32.mrf.mxu0
    %v1752 = vadd.f32 %v1639, %v1751
    %1753 = vmatmul.f32.gmra.mxu0 %v595
    %v1754 = vpop.f32.mrf.mxu0
    %v1755 = vadd.f32 %v1642, %v1754
    %1756 = vdwg.mxu0
    %v1757 = vrot.slane %v18, 1
    %v1758 = vrot.slane %v19, 1
    %v1759 = vrot.slane %v20, 1
    %v1760 = vrot.slane %v21, 1
    %v1761 = vrot.slane %v22, 1
    %v1762 = vrot.slane %v23, 1
    %v1763 = vrot.slane %v24, 1
    %v1764 = vrot.slane %v25, 1
    %v1765 = vrot.slane %v26, 1
    %v1766 = vrot.slane %v27, 1
    %v1767 = vrot.slane %v28, 1
    %v1768 = vrot.slane %v29, 1
    %v1769 = vrot.slane %v30, 1
    %v1770 = vrot.slane %v31, 1
    %v1771 = vrot.slane %v32, 1
    %v1772 = vrot.slane %v33, 1
    %v1773 = vrot.slane %v34, 1
    %v1774 = vrot.slane %v35, 1
    %v1775 = vrot.slane %v36, 1
    %v1776 = vrot.slane %v37, 1
    %v1777 = vrot.slane %v38, 1
    %v1778 = vrot.slane %v39, 1
    %v1779 = vrot.slane %v40, 1
    %v1780 = vrot.slane %v41, 1
    %v1781 = vrot.slane %v42, 1
    %v1782 = vrot.slane %v43, 1
    %v1783 = vrot.slane %v44, 1
    %v1784 = vrot.slane %v45, 1
    %v1785 = vrot.slane %v46, 1
    %v1786 = vrot.slane %v47, 1
    %v1787 = vrot.slane %v48, 1
    %v1788 = vrot.slane %v49, 1
    %v1789 = vrot.slane %v50, 1
    %v1790 = vrot.slane %v51, 1
    %v1791 = vrot.slane %v52, 1
    %v1792 = vrot.slane %v53, 1
    %v1793 = vrot.slane %v54, 1
    %v1794 = vrot.slane %v55, 1
    %v1795 = vrot.slane %v56, 1
    %v1796 = vrot.slane %v57, 1
    %v1797 = vrot.slane %v58, 1
    %v1798 = vrot.slane %v59, 1
    %v1799 = vrot.slane %v60, 1
    %v1800 = vrot.slane %v61, 1
    %v1801 = vrot.slane %v62, 1
    %v1802 = vrot.slane %v63, 1
    %v1803 = vrot.slane %v64, 1
    %v1804 = vrot.slane %v65, 1
    %v1805 = vrot.slane %v66, 1
    %v1806 = vrot.slane %v67, 1
    %v1807 = vrot.slane %v68, 1
    %v1808 = vrot.slane %v69, 1
    %v1809 = vrot.slane %v70, 1
    %v1810 = vrot.slane %v71, 1
    %v1811 = vrot.slane %v72, 1
    %v1812 = vrot.slane %v73, 1
    %v1813 = vrot.slane %v74, 1
    %v1814 = vrot.slane %v75, 1
    %v1815 = vrot.slane %v76, 1
    %v1816 = vrot.slane %v77, 1
    %v1817 = vrot.slane %v78, 1
    %v1818 = vrot.slane %v79, 1
    %v1819 = vrot.slane %v80, 1
    %v1820 = vrot.slane %v81, 1
    %vm1821 = vcmp.lt.s32.totalorder %v83, 7
    %v1822 = vsel %vm1821, %v1817, %v1819
    %v1823 = vsel %vm1821, %v1818, %v1820
    %v1824 = vsel %vm1821, %v1815, %v1817
    %v1825 = vsel %vm1821, %v1816, %v1818
    %v1826 = vsel %vm1821, %v1813, %v1815
    %v1827 = vsel %vm1821, %v1814, %v1816
    %v1828 = vsel %vm1821, %v1811, %v1813
    %v1829 = vsel %vm1821, %v1812, %v1814
    %v1830 = vsel %vm1821, %v1809, %v1811
    %v1831 = vsel %vm1821, %v1810, %v1812
    %v1832 = vsel %vm1821, %v1807, %v1809
    %v1833 = vsel %vm1821, %v1808, %v1810
    %v1834 = vsel %vm1821, %v1805, %v1807
    %v1835 = vsel %vm1821, %v1806, %v1808
    %v1836 = vsel %vm1821, %v1803, %v1805
    %v1837 = vsel %vm1821, %v1804, %v1806
    %v1838 = vsel %vm1821, %v1801, %v1803
    %v1839 = vsel %vm1821, %v1802, %v1804
    %v1840 = vsel %vm1821, %v1799, %v1801
    %v1841 = vsel %vm1821, %v1800, %v1802
    %v1842 = vsel %vm1821, %v1797, %v1799
    %v1843 = vsel %vm1821, %v1798, %v1800
    %v1844 = vsel %vm1821, %v1795, %v1797
    %v1845 = vsel %vm1821, %v1796, %v1798
    %v1846 = vsel %vm1821, %v1793, %v1795
    %v1847 = vsel %vm1821, %v1794, %v1796
    %v1848 = vsel %vm1821, %v1791, %v1793
    %v1849 = vsel %vm1821, %v1792, %v1794
    %v1850 = vsel %vm1821, %v1789, %v1791
    %v1851 = vsel %vm1821, %v1790, %v1792
    %v1852 = vsel %vm1821, %v1787, %v1789
    %v1853 = vsel %vm1821, %v1788, %v1790
    %v1854 = vsel %vm1821, %v1785, %v1787
    %v1855 = vsel %vm1821, %v1786, %v1788
    %v1856 = vsel %vm1821, %v1783, %v1785
    %v1857 = vsel %vm1821, %v1784, %v1786
    %v1858 = vsel %vm1821, %v1781, %v1783
    %v1859 = vsel %vm1821, %v1782, %v1784
    %v1860 = vsel %vm1821, %v1779, %v1781
    %v1861 = vsel %vm1821, %v1780, %v1782
    %v1862 = vsel %vm1821, %v1777, %v1779
    %v1863 = vsel %vm1821, %v1778, %v1780
    %v1864 = vsel %vm1821, %v1775, %v1777
    %v1865 = vsel %vm1821, %v1776, %v1778
    %v1866 = vsel %vm1821, %v1773, %v1775
    %v1867 = vsel %vm1821, %v1774, %v1776
    %v1868 = vsel %vm1821, %v1771, %v1773
    %v1869 = vsel %vm1821, %v1772, %v1774
    %v1870 = vsel %vm1821, %v1769, %v1771
    %v1871 = vsel %vm1821, %v1770, %v1772
    %v1872 = vsel %vm1821, %v1767, %v1769
    %v1873 = vsel %vm1821, %v1768, %v1770
    %v1874 = vsel %vm1821, %v1765, %v1767
    %v1875 = vsel %vm1821, %v1766, %v1768
    %v1876 = vsel %vm1821, %v1763, %v1765
    %v1877 = vsel %vm1821, %v1764, %v1766
    %v1878 = vsel %vm1821, %v1761, %v1763
    %v1879 = vsel %vm1821, %v1762, %v1764
    %v1880 = vsel %vm1821, %v1759, %v1761
    %v1881 = vsel %vm1821, %v1760, %v1762
    %v1882 = vsel %vm1821, %v1757, %v1759
    %v1883 = vsel %vm1821, %v1758, %v1760
    %v1884 = vsel %vm1821, %v1819, %v1757
    %v1885 = vsel %vm1821, %v1820, %v1758
    %vm1886 = vmand %vm179, %vm275
    %vm1887 = vmand %vm180, %vm276
    %vm1888 = vmand %vm181, %vm277
    %vm1889 = vmand %vm182, %vm278
    %vm1890 = vmand %vm183, %vm279
    %vm1891 = vmand %vm184, %vm280
    %vm1892 = vmand %vm185, %vm281
    %vm1893 = vmand %vm186, %vm282
    %vm1894 = vmand %vm187, %vm283
    %vm1895 = vmand %vm188, %vm284
    %vm1896 = vmand %vm189, %vm285
    %vm1897 = vmand %vm190, %vm286
    %vm1898 = vmand %vm191, %vm287
    %vm1899 = vmand %vm192, %vm288
    %vm1900 = vmand %vm193, %vm289
    %vm1901 = vmand %vm194, %vm290
    %vm1902 = vmand %vm195, %vm291
    %vm1903 = vmand %vm196, %vm292
    %vm1904 = vmand %vm197, %vm293
    %vm1905 = vmand %vm198, %vm294
    %vm1906 = vmand %vm199, %vm295
    %vm1907 = vmand %vm200, %vm296
    %vm1908 = vmand %vm201, %vm297
    %vm1909 = vmand %vm202, %vm298
    %vm1910 = vmand %vm203, %vm299
    %vm1911 = vmand %vm204, %vm300
    %vm1912 = vmand %vm205, %vm301
    %vm1913 = vmand %vm206, %vm302
    %vm1914 = vmand %vm207, %vm303
    %vm1915 = vmand %vm208, %vm304
    %vm1916 = vmand %vm209, %vm305
    %vm1917 = vmand %vm210, %vm306
    %v1918 = vsel %vm1886, 1, 0
    %v1919 = vsel %vm1887, 1, 0
    %v1920 = vsel %vm1888, 1, 0
    %v1921 = vsel %vm1889, 1, 0
    %v1922 = vsel %vm1890, 1, 0
    %v1923 = vsel %vm1891, 1, 0
    %v1924 = vsel %vm1892, 1, 0
    %v1925 = vsel %vm1893, 1, 0
    %v1926 = vsel %vm1894, 1, 0
    %v1927 = vsel %vm1895, 1, 0
    %v1928 = vsel %vm1896, 1, 0
    %v1929 = vsel %vm1897, 1, 0
    %v1930 = vsel %vm1898, 1, 0
    %v1931 = vsel %vm1899, 1, 0
    %v1932 = vsel %vm1900, 1, 0
    %v1933 = vsel %vm1901, 1, 0
    %v1934 = vsel %vm1902, 1, 0
    %v1935 = vsel %vm1903, 1, 0
    %v1936 = vsel %vm1904, 1, 0
    %v1937 = vsel %vm1905, 1, 0
    %v1938 = vsel %vm1906, 1, 0
    %v1939 = vsel %vm1907, 1, 0
    %v1940 = vsel %vm1908, 1, 0
    %v1941 = vsel %vm1909, 1, 0
    %v1942 = vsel %vm1910, 1, 0
    %v1943 = vsel %vm1911, 1, 0
    %v1944 = vsel %vm1912, 1, 0
    %v1945 = vsel %vm1913, 1, 0
    %v1946 = vsel %vm1914, 1, 0
    %v1947 = vsel %vm1915, 1, 0
    %v1948 = vsel %vm1916, 1, 0
    %v1949 = vsel %vm1917, 1, 0
    %vm1950 = vcmp.eq.s32.totalorder %v1918, 1
    %vm1951 = vcmp.eq.s32.totalorder %v1919, 1
    %vm1952 = vcmp.eq.s32.totalorder %v1920, 1
    %vm1953 = vcmp.eq.s32.totalorder %v1921, 1
    %vm1954 = vcmp.eq.s32.totalorder %v1922, 1
    %vm1955 = vcmp.eq.s32.totalorder %v1923, 1
    %vm1956 = vcmp.eq.s32.totalorder %v1924, 1
    %vm1957 = vcmp.eq.s32.totalorder %v1925, 1
    %vm1958 = vcmp.eq.s32.totalorder %v1926, 1
    %vm1959 = vcmp.eq.s32.totalorder %v1927, 1
    %vm1960 = vcmp.eq.s32.totalorder %v1928, 1
    %vm1961 = vcmp.eq.s32.totalorder %v1929, 1
    %vm1962 = vcmp.eq.s32.totalorder %v1930, 1
    %vm1963 = vcmp.eq.s32.totalorder %v1931, 1
    %vm1964 = vcmp.eq.s32.totalorder %v1932, 1
    %vm1965 = vcmp.eq.s32.totalorder %v1933, 1
    %vm1966 = vcmp.eq.s32.totalorder %v1934, 1
    %vm1967 = vcmp.eq.s32.totalorder %v1935, 1
    %vm1968 = vcmp.eq.s32.totalorder %v1936, 1
    %vm1969 = vcmp.eq.s32.totalorder %v1937, 1
    %vm1970 = vcmp.eq.s32.totalorder %v1938, 1
    %vm1971 = vcmp.eq.s32.totalorder %v1939, 1
    %vm1972 = vcmp.eq.s32.totalorder %v1940, 1
    %vm1973 = vcmp.eq.s32.totalorder %v1941, 1
    %vm1974 = vcmp.eq.s32.totalorder %v1942, 1
    %vm1975 = vcmp.eq.s32.totalorder %v1943, 1
    %vm1976 = vcmp.eq.s32.totalorder %v1944, 1
    %vm1977 = vcmp.eq.s32.totalorder %v1945, 1
    %vm1978 = vcmp.eq.s32.totalorder %v1946, 1
    %vm1979 = vcmp.eq.s32.totalorder %v1947, 1
    %vm1980 = vcmp.eq.s32.totalorder %v1948, 1
    %vm1981 = vcmp.eq.s32.totalorder %v1949, 1
    %v1982 = vsel %vm1950, %v1884, 0.0
    %v1983 = vsel %vm1950, %v1885, 0.0
    %v1984 = vsel %vm1951, %v1882, 0.0
    %v1985 = vsel %vm1951, %v1883, 0.0
    %v1986 = vsel %vm1952, %v1880, 0.0
    %v1987 = vsel %vm1952, %v1881, 0.0
    %v1988 = vsel %vm1953, %v1878, 0.0
    %v1989 = vsel %vm1953, %v1879, 0.0
    %v1990 = vsel %vm1954, %v1876, 0.0
    %v1991 = vsel %vm1954, %v1877, 0.0
    %v1992 = vsel %vm1955, %v1874, 0.0
    %v1993 = vsel %vm1955, %v1875, 0.0
    %v1994 = vsel %vm1956, %v1872, 0.0
    %v1995 = vsel %vm1956, %v1873, 0.0
    %v1996 = vsel %vm1957, %v1870, 0.0
    %v1997 = vsel %vm1957, %v1871, 0.0
    %v1998 = vsel %vm1958, %v1868, 0.0
    %v1999 = vsel %vm1958, %v1869, 0.0
    %v2000 = vsel %vm1959, %v1866, 0.0
    %v2001 = vsel %vm1959, %v1867, 0.0
    %v2002 = vsel %vm1960, %v1864, 0.0
    %v2003 = vsel %vm1960, %v1865, 0.0
    %v2004 = vsel %vm1961, %v1862, 0.0
    %v2005 = vsel %vm1961, %v1863, 0.0
    %v2006 = vsel %vm1962, %v1860, 0.0
    %v2007 = vsel %vm1962, %v1861, 0.0
    %v2008 = vsel %vm1963, %v1858, 0.0
    %v2009 = vsel %vm1963, %v1859, 0.0
    %v2010 = vsel %vm1964, %v1856, 0.0
    %v2011 = vsel %vm1964, %v1857, 0.0
    %v2012 = vsel %vm1965, %v1854, 0.0
    %v2013 = vsel %vm1965, %v1855, 0.0
    %v2014 = vsel %vm1966, %v1852, 0.0
    %v2015 = vsel %vm1966, %v1853, 0.0
    %v2016 = vsel %vm1967, %v1850, 0.0
    %v2017 = vsel %vm1967, %v1851, 0.0
    %v2018 = vsel %vm1968, %v1848, 0.0
    %v2019 = vsel %vm1968, %v1849, 0.0
    %v2020 = vsel %vm1969, %v1846, 0.0
    %v2021 = vsel %vm1969, %v1847, 0.0
    %v2022 = vsel %vm1970, %v1844, 0.0
    %v2023 = vsel %vm1970, %v1845, 0.0
    %v2024 = vsel %vm1971, %v1842, 0.0
    %v2025 = vsel %vm1971, %v1843, 0.0
    %v2026 = vsel %vm1972, %v1840, 0.0
    %v2027 = vsel %vm1972, %v1841, 0.0
    %v2028 = vsel %vm1973, %v1838, 0.0
    %v2029 = vsel %vm1973, %v1839, 0.0
    %v2030 = vsel %vm1974, %v1836, 0.0
    %v2031 = vsel %vm1974, %v1837, 0.0
    %v2032 = vsel %vm1975, %v1834, 0.0
    %v2033 = vsel %vm1975, %v1835, 0.0
    %v2034 = vsel %vm1976, %v1832, 0.0
    %v2035 = vsel %vm1976, %v1833, 0.0
    %v2036 = vsel %vm1977, %v1830, 0.0
    %v2037 = vsel %vm1977, %v1831, 0.0
    %v2038 = vsel %vm1978, %v1828, 0.0
    %v2039 = vsel %vm1978, %v1829, 0.0
    %v2040 = vsel %vm1979, %v1826, 0.0
    %v2041 = vsel %vm1979, %v1827, 0.0
    %v2042 = vsel %vm1980, %v1824, 0.0
    %v2043 = vsel %vm1980, %v1825, 0.0
    %v2044 = vsel %vm1981, %v1822, 0.0
    %v2045 = vsel %vm1981, %v1823, 0.0
    %s2046 = scalar_lea.vmem %s1, 1024
    %v2047 = vld [vmem:[%s2046] sm:$0xff]
    %v2048 = vld [vmem:[%s2046 + $0x8] sm:$0xff]
    %v2049 = vld [vmem:[%s2046 + $0x10] sm:$0xff]
    %v2050 = vld [vmem:[%s2046 + $0x18] sm:$0xff]
    %v2051 = vld [vmem:[%s2046 + $0x20] sm:$0xff]
    %v2052 = vld [vmem:[%s2046 + $0x28] sm:$0xff]
    %v2053 = vld [vmem:[%s2046 + $0x30] sm:$0xff]
    %v2054 = vld [vmem:[%s2046 + $0x38] sm:$0xff]
    %v2055 = vld [vmem:[%s2046 + $0x40] sm:$0xff]
    %v2056 = vld [vmem:[%s2046 + $0x48] sm:$0xff]
    %v2057 = vld [vmem:[%s2046 + $0x50] sm:$0xff]
    %v2058 = vld [vmem:[%s2046 + $0x58] sm:$0xff]
    %v2059 = vld [vmem:[%s2046 + $0x60] sm:$0xff]
    %v2060 = vld [vmem:[%s2046 + $0x68] sm:$0xff]
    %v2061 = vld [vmem:[%s2046 + $0x70] sm:$0xff]
    %v2062 = vld [vmem:[%s2046 + $0x78] sm:$0xff]
    %v2063 = vld [vmem:[%s2046 + $0x80] sm:$0xff]
    %v2064 = vld [vmem:[%s2046 + $0x88] sm:$0xff]
    %v2065 = vld [vmem:[%s2046 + $0x90] sm:$0xff]
    %v2066 = vld [vmem:[%s2046 + $0x98] sm:$0xff]
    %v2067 = vld [vmem:[%s2046 + $0xa0] sm:$0xff]
    %v2068 = vld [vmem:[%s2046 + $0xa8] sm:$0xff]
    %v2069 = vld [vmem:[%s2046 + $0xb0] sm:$0xff]
    %v2070 = vld [vmem:[%s2046 + $0xb8] sm:$0xff]
    %v2071 = vld [vmem:[%s2046 + $0xc0] sm:$0xff]
    %v2072 = vld [vmem:[%s2046 + $0xc8] sm:$0xff]
    %v2073 = vld [vmem:[%s2046 + $0xd0] sm:$0xff]
    %v2074 = vld [vmem:[%s2046 + $0xd8] sm:$0xff]
    %v2075 = vld [vmem:[%s2046 + $0xe0] sm:$0xff]
    %v2076 = vld [vmem:[%s2046 + $0xe8] sm:$0xff]
    %v2077 = vld [vmem:[%s2046 + $0xf0] sm:$0xff]
    %v2078 = vld [vmem:[%s2046 + $0xf8] sm:$0xff]
    %v2079 = vld [vmem:[%s2046 + $0x100] sm:$0xff]
    %v2080 = vld [vmem:[%s2046 + $0x108] sm:$0xff]
    %v2081 = vld [vmem:[%s2046 + $0x110] sm:$0xff]
    %v2082 = vld [vmem:[%s2046 + $0x118] sm:$0xff]
    %v2083 = vld [vmem:[%s2046 + $0x120] sm:$0xff]
    %v2084 = vld [vmem:[%s2046 + $0x128] sm:$0xff]
    %v2085 = vld [vmem:[%s2046 + $0x130] sm:$0xff]
    %v2086 = vld [vmem:[%s2046 + $0x138] sm:$0xff]
    %v2087 = vld [vmem:[%s2046 + $0x140] sm:$0xff]
    %v2088 = vld [vmem:[%s2046 + $0x148] sm:$0xff]
    %v2089 = vld [vmem:[%s2046 + $0x150] sm:$0xff]
    %v2090 = vld [vmem:[%s2046 + $0x158] sm:$0xff]
    %v2091 = vld [vmem:[%s2046 + $0x160] sm:$0xff]
    %v2092 = vld [vmem:[%s2046 + $0x168] sm:$0xff]
    %v2093 = vld [vmem:[%s2046 + $0x170] sm:$0xff]
    %v2094 = vld [vmem:[%s2046 + $0x178] sm:$0xff]
    %v2095 = vld [vmem:[%s2046 + $0x180] sm:$0xff]
    %v2096 = vld [vmem:[%s2046 + $0x188] sm:$0xff]
    %v2097 = vld [vmem:[%s2046 + $0x190] sm:$0xff]
    %v2098 = vld [vmem:[%s2046 + $0x198] sm:$0xff]
    %v2099 = vld [vmem:[%s2046 + $0x1a0] sm:$0xff]
    %v2100 = vld [vmem:[%s2046 + $0x1a8] sm:$0xff]
    %v2101 = vld [vmem:[%s2046 + $0x1b0] sm:$0xff]
    %v2102 = vld [vmem:[%s2046 + $0x1b8] sm:$0xff]
    %v2103 = vld [vmem:[%s2046 + $0x1c0] sm:$0xff]
    %v2104 = vld [vmem:[%s2046 + $0x1c8] sm:$0xff]
    %v2105 = vld [vmem:[%s2046 + $0x1d0] sm:$0xff]
    %v2106 = vld [vmem:[%s2046 + $0x1d8] sm:$0xff]
    %v2107 = vld [vmem:[%s2046 + $0x1e0] sm:$0xff]
    %v2108 = vld [vmem:[%s2046 + $0x1e8] sm:$0xff]
    %v2109 = vld [vmem:[%s2046 + $0x1f0] sm:$0xff]
    %v2110 = vld [vmem:[%s2046 + $0x1f8] sm:$0xff]
    %2111 = vmatpush.msra.mxu0 %v2077
    %2112 = vmatpush.msra.mxu0 %v2075
    %2113 = vmatpush.msra.mxu0 %v2073
    %2114 = vmatpush.msra.mxu0 %v2071
    %2115 = vmatpush.msra.mxu0 %v2069
    %2116 = vmatpush.msra.mxu0 %v2067
    %2117 = vmatpush.msra.mxu0 %v2065
    %2118 = vmatpush.msra.mxu0 %v2063
    %2119 = vmatpush.msra.mxu0 %v2061
    %2120 = vmatpush.msra.mxu0 %v2059
    %2121 = vmatpush.msra.mxu0 %v2057
    %2122 = vmatpush.msra.mxu0 %v2055
    %2123 = vmatpush.msra.mxu0 %v2053
    %2124 = vmatpush.msra.mxu0 %v2051
    %2125 = vmatpush.msra.mxu0 %v2049
    %2126 = vmatpush.msra.mxu0 %v2047
    %2127 = vmatmul.f32.gmra.mxu0 %v1982
    %v2128 = vpop.f32.mrf.mxu0
    %v2129 = vadd.f32 0.0, %v2128
    %2130 = vmatmul.f32.gmra.mxu0 %v1984
    %v2131 = vpop.f32.mrf.mxu0
    %v2132 = vadd.f32 0.0, %v2131
    %2133 = vmatmul.f32.gmra.mxu0 %v1986
    %v2134 = vpop.f32.mrf.mxu0
    %v2135 = vadd.f32 0.0, %v2134
    %2136 = vmatmul.f32.gmra.mxu0 %v1988
    %v2137 = vpop.f32.mrf.mxu0
    %v2138 = vadd.f32 0.0, %v2137
    %2139 = vmatmul.f32.gmra.mxu0 %v1990
    %v2140 = vpop.f32.mrf.mxu0
    %v2141 = vadd.f32 0.0, %v2140
    %2142 = vmatmul.f32.gmra.mxu0 %v1992
    %v2143 = vpop.f32.mrf.mxu0
    %v2144 = vadd.f32 0.0, %v2143
    %2145 = vmatmul.f32.gmra.mxu0 %v1994
    %v2146 = vpop.f32.mrf.mxu0
    %v2147 = vadd.f32 0.0, %v2146
    %2148 = vmatmul.f32.gmra.mxu0 %v1996
    %v2149 = vpop.f32.mrf.mxu0
    %v2150 = vadd.f32 0.0, %v2149
    %2151 = vmatmul.f32.gmra.mxu0 %v1998
    %v2152 = vpop.f32.mrf.mxu0
    %v2153 = vadd.f32 0.0, %v2152
    %2154 = vmatmul.f32.gmra.mxu0 %v2000
    %v2155 = vpop.f32.mrf.mxu0
    %v2156 = vadd.f32 0.0, %v2155
    %2157 = vmatmul.f32.gmra.mxu0 %v2002
    %v2158 = vpop.f32.mrf.mxu0
    %v2159 = vadd.f32 0.0, %v2158
    %2160 = vmatmul.f32.gmra.mxu0 %v2004
    %v2161 = vpop.f32.mrf.mxu0
    %v2162 = vadd.f32 0.0, %v2161
    %2163 = vmatmul.f32.gmra.mxu0 %v2006
    %v2164 = vpop.f32.mrf.mxu0
    %v2165 = vadd.f32 0.0, %v2164
    %2166 = vmatmul.f32.gmra.mxu0 %v2008
    %v2167 = vpop.f32.mrf.mxu0
    %v2168 = vadd.f32 0.0, %v2167
    %2169 = vmatmul.f32.gmra.mxu0 %v2010
    %v2170 = vpop.f32.mrf.mxu0
    %v2171 = vadd.f32 0.0, %v2170
    %2172 = vmatmul.f32.gmra.mxu0 %v2012
    %v2173 = vpop.f32.mrf.mxu0
    %v2174 = vadd.f32 0.0, %v2173
    %2175 = vmatmul.f32.gmra.mxu0 %v2014
    %v2176 = vpop.f32.mrf.mxu0
    %v2177 = vadd.f32 0.0, %v2176
    %2178 = vmatmul.f32.gmra.mxu0 %v2016
    %v2179 = vpop.f32.mrf.mxu0
    %v2180 = vadd.f32 0.0, %v2179
    %2181 = vmatmul.f32.gmra.mxu0 %v2018
    %v2182 = vpop.f32.mrf.mxu0
    %v2183 = vadd.f32 0.0, %v2182
    %2184 = vmatmul.f32.gmra.mxu0 %v2020
    %v2185 = vpop.f32.mrf.mxu0
    %v2186 = vadd.f32 0.0, %v2185
    %2187 = vmatmul.f32.gmra.mxu0 %v2022
    %v2188 = vpop.f32.mrf.mxu0
    %v2189 = vadd.f32 0.0, %v2188
    %2190 = vmatmul.f32.gmra.mxu0 %v2024
    %v2191 = vpop.f32.mrf.mxu0
    %v2192 = vadd.f32 0.0, %v2191
    %2193 = vmatmul.f32.gmra.mxu0 %v2026
    %v2194 = vpop.f32.mrf.mxu0
    %v2195 = vadd.f32 0.0, %v2194
    %2196 = vmatmul.f32.gmra.mxu0 %v2028
    %v2197 = vpop.f32.mrf.mxu0
    %v2198 = vadd.f32 0.0, %v2197
    %2199 = vmatmul.f32.gmra.mxu0 %v2030
    %v2200 = vpop.f32.mrf.mxu0
    %v2201 = vadd.f32 0.0, %v2200
    %2202 = vmatmul.f32.gmra.mxu0 %v2032
    %v2203 = vpop.f32.mrf.mxu0
    %v2204 = vadd.f32 0.0, %v2203
    %2205 = vmatmul.f32.gmra.mxu0 %v2034
    %v2206 = vpop.f32.mrf.mxu0
    %v2207 = vadd.f32 0.0, %v2206
    %2208 = vmatmul.f32.gmra.mxu0 %v2036
    %v2209 = vpop.f32.mrf.mxu0
    %v2210 = vadd.f32 0.0, %v2209
    %2211 = vmatmul.f32.gmra.mxu0 %v2038
    %v2212 = vpop.f32.mrf.mxu0
    %v2213 = vadd.f32 0.0, %v2212
    %2214 = vmatmul.f32.gmra.mxu0 %v2040
    %v2215 = vpop.f32.mrf.mxu0
    %v2216 = vadd.f32 0.0, %v2215
    %2217 = vmatmul.f32.gmra.mxu0 %v2042
    %v2218 = vpop.f32.mrf.mxu0
    %v2219 = vadd.f32 0.0, %v2218
    %2220 = vmatmul.f32.gmra.mxu0 %v2044
    %v2221 = vpop.f32.mrf.mxu0
    %v2222 = vadd.f32 0.0, %v2221
    %2223 = vdwg.mxu0
    %2224 = vmatpush.msra.mxu0 %v2109
    %2225 = vmatpush.msra.mxu0 %v2107
    %2226 = vmatpush.msra.mxu0 %v2105
    %2227 = vmatpush.msra.mxu0 %v2103
    %2228 = vmatpush.msra.mxu0 %v2101
    %2229 = vmatpush.msra.mxu0 %v2099
    %2230 = vmatpush.msra.mxu0 %v2097
    %2231 = vmatpush.msra.mxu0 %v2095
    %2232 = vmatpush.msra.mxu0 %v2093
    %2233 = vmatpush.msra.mxu0 %v2091
    %2234 = vmatpush.msra.mxu0 %v2089
    %2235 = vmatpush.msra.mxu0 %v2087
    %2236 = vmatpush.msra.mxu0 %v2085
    %2237 = vmatpush.msra.mxu0 %v2083
    %2238 = vmatpush.msra.mxu0 %v2081
    %2239 = vmatpush.msra.mxu0 %v2079
    %2240 = vmatmul.f32.gmra.mxu0 %v1983
    %v2241 = vpop.f32.mrf.mxu0
    %v2242 = vadd.f32 %v2129, %v2241
    %2243 = vmatmul.f32.gmra.mxu0 %v1985
    %v2244 = vpop.f32.mrf.mxu0
    %v2245 = vadd.f32 %v2132, %v2244
    %2246 = vmatmul.f32.gmra.mxu0 %v1987
    %v2247 = vpop.f32.mrf.mxu0
    %v2248 = vadd.f32 %v2135, %v2247
    %2249 = vmatmul.f32.gmra.mxu0 %v1989
    %v2250 = vpop.f32.mrf.mxu0
    %v2251 = vadd.f32 %v2138, %v2250
    %2252 = vmatmul.f32.gmra.mxu0 %v1991
    %v2253 = vpop.f32.mrf.mxu0
    %v2254 = vadd.f32 %v2141, %v2253
    %2255 = vmatmul.f32.gmra.mxu0 %v1993
    %v2256 = vpop.f32.mrf.mxu0
    %v2257 = vadd.f32 %v2144, %v2256
    %2258 = vmatmul.f32.gmra.mxu0 %v1995
    %v2259 = vpop.f32.mrf.mxu0
    %v2260 = vadd.f32 %v2147, %v2259
    %2261 = vmatmul.f32.gmra.mxu0 %v1997
    %v2262 = vpop.f32.mrf.mxu0
    %v2263 = vadd.f32 %v2150, %v2262
    %2264 = vmatmul.f32.gmra.mxu0 %v1999
    %v2265 = vpop.f32.mrf.mxu0
    %v2266 = vadd.f32 %v2153, %v2265
    %2267 = vmatmul.f32.gmra.mxu0 %v2001
    %v2268 = vpop.f32.mrf.mxu0
    %v2269 = vadd.f32 %v2156, %v2268
    %2270 = vmatmul.f32.gmra.mxu0 %v2003
    %v2271 = vpop.f32.mrf.mxu0
    %v2272 = vadd.f32 %v2159, %v2271
    %2273 = vmatmul.f32.gmra.mxu0 %v2005
    %v2274 = vpop.f32.mrf.mxu0
    %v2275 = vadd.f32 %v2162, %v2274
    %2276 = vmatmul.f32.gmra.mxu0 %v2007
    %v2277 = vpop.f32.mrf.mxu0
    %v2278 = vadd.f32 %v2165, %v2277
    %2279 = vmatmul.f32.gmra.mxu0 %v2009
    %v2280 = vpop.f32.mrf.mxu0
    %v2281 = vadd.f32 %v2168, %v2280
    %2282 = vmatmul.f32.gmra.mxu0 %v2011
    %v2283 = vpop.f32.mrf.mxu0
    %v2284 = vadd.f32 %v2171, %v2283
    %2285 = vmatmul.f32.gmra.mxu0 %v2013
    %v2286 = vpop.f32.mrf.mxu0
    %v2287 = vadd.f32 %v2174, %v2286
    %2288 = vmatmul.f32.gmra.mxu0 %v2015
    %v2289 = vpop.f32.mrf.mxu0
    %v2290 = vadd.f32 %v2177, %v2289
    %2291 = vmatmul.f32.gmra.mxu0 %v2017
    %v2292 = vpop.f32.mrf.mxu0
    %v2293 = vadd.f32 %v2180, %v2292
    %2294 = vmatmul.f32.gmra.mxu0 %v2019
    %v2295 = vpop.f32.mrf.mxu0
    %v2296 = vadd.f32 %v2183, %v2295
    %2297 = vmatmul.f32.gmra.mxu0 %v2021
    %v2298 = vpop.f32.mrf.mxu0
    %v2299 = vadd.f32 %v2186, %v2298
    %2300 = vmatmul.f32.gmra.mxu0 %v2023
    %v2301 = vpop.f32.mrf.mxu0
    %v2302 = vadd.f32 %v2189, %v2301
    %2303 = vmatmul.f32.gmra.mxu0 %v2025
    %v2304 = vpop.f32.mrf.mxu0
    %v2305 = vadd.f32 %v2192, %v2304
    %2306 = vmatmul.f32.gmra.mxu0 %v2027
    %v2307 = vpop.f32.mrf.mxu0
    %v2308 = vadd.f32 %v2195, %v2307
    %2309 = vmatmul.f32.gmra.mxu0 %v2029
    %v2310 = vpop.f32.mrf.mxu0
    %v2311 = vadd.f32 %v2198, %v2310
    %2312 = vmatmul.f32.gmra.mxu0 %v2031
    %v2313 = vpop.f32.mrf.mxu0
    %v2314 = vadd.f32 %v2201, %v2313
    %2315 = vmatmul.f32.gmra.mxu0 %v2033
    %v2316 = vpop.f32.mrf.mxu0
    %v2317 = vadd.f32 %v2204, %v2316
    %2318 = vmatmul.f32.gmra.mxu0 %v2035
    %v2319 = vpop.f32.mrf.mxu0
    %v2320 = vadd.f32 %v2207, %v2319
    %2321 = vmatmul.f32.gmra.mxu0 %v2037
    %v2322 = vpop.f32.mrf.mxu0
    %v2323 = vadd.f32 %v2210, %v2322
    %2324 = vmatmul.f32.gmra.mxu0 %v2039
    %v2325 = vpop.f32.mrf.mxu0
    %v2326 = vadd.f32 %v2213, %v2325
    %2327 = vmatmul.f32.gmra.mxu0 %v2041
    %v2328 = vpop.f32.mrf.mxu0
    %v2329 = vadd.f32 %v2216, %v2328
    %2330 = vmatmul.f32.gmra.mxu0 %v2043
    %v2331 = vpop.f32.mrf.mxu0
    %v2332 = vadd.f32 %v2219, %v2331
    %2333 = vmatmul.f32.gmra.mxu0 %v2045
    %v2334 = vpop.f32.mrf.mxu0
    %v2335 = vadd.f32 %v2222, %v2334
    %2336 = vdwg.mxu0
    %2337 = vmatpush.msra.mxu0 %v2078
    %2338 = vmatpush.msra.mxu0 %v2076
    %2339 = vmatpush.msra.mxu0 %v2074
    %2340 = vmatpush.msra.mxu0 %v2072
    %2341 = vmatpush.msra.mxu0 %v2070
    %2342 = vmatpush.msra.mxu0 %v2068
    %2343 = vmatpush.msra.mxu0 %v2066
    %2344 = vmatpush.msra.mxu0 %v2064
    %2345 = vmatpush.msra.mxu0 %v2062
    %2346 = vmatpush.msra.mxu0 %v2060
    %2347 = vmatpush.msra.mxu0 %v2058
    %2348 = vmatpush.msra.mxu0 %v2056
    %2349 = vmatpush.msra.mxu0 %v2054
    %2350 = vmatpush.msra.mxu0 %v2052
    %2351 = vmatpush.msra.mxu0 %v2050
    %2352 = vmatpush.msra.mxu0 %v2048
    %2353 = vmatmul.f32.gmra.mxu0 %v1982
    %v2354 = vpop.f32.mrf.mxu0
    %v2355 = vadd.f32 0.0, %v2354
    %2356 = vmatmul.f32.gmra.mxu0 %v1984
    %v2357 = vpop.f32.mrf.mxu0
    %v2358 = vadd.f32 0.0, %v2357
    %2359 = vmatmul.f32.gmra.mxu0 %v1986
    %v2360 = vpop.f32.mrf.mxu0
    %v2361 = vadd.f32 0.0, %v2360
    %2362 = vmatmul.f32.gmra.mxu0 %v1988
    %v2363 = vpop.f32.mrf.mxu0
    %v2364 = vadd.f32 0.0, %v2363
    %2365 = vmatmul.f32.gmra.mxu0 %v1990
    %v2366 = vpop.f32.mrf.mxu0
    %v2367 = vadd.f32 0.0, %v2366
    %2368 = vmatmul.f32.gmra.mxu0 %v1992
    %v2369 = vpop.f32.mrf.mxu0
    %v2370 = vadd.f32 0.0, %v2369
    %2371 = vmatmul.f32.gmra.mxu0 %v1994
    %v2372 = vpop.f32.mrf.mxu0
    %v2373 = vadd.f32 0.0, %v2372
    %2374 = vmatmul.f32.gmra.mxu0 %v1996
    %v2375 = vpop.f32.mrf.mxu0
    %v2376 = vadd.f32 0.0, %v2375
    %2377 = vmatmul.f32.gmra.mxu0 %v1998
    %v2378 = vpop.f32.mrf.mxu0
    %v2379 = vadd.f32 0.0, %v2378
    %2380 = vmatmul.f32.gmra.mxu0 %v2000
    %v2381 = vpop.f32.mrf.mxu0
    %v2382 = vadd.f32 0.0, %v2381
    %2383 = vmatmul.f32.gmra.mxu0 %v2002
    %v2384 = vpop.f32.mrf.mxu0
    %v2385 = vadd.f32 0.0, %v2384
    %2386 = vmatmul.f32.gmra.mxu0 %v2004
    %v2387 = vpop.f32.mrf.mxu0
    %v2388 = vadd.f32 0.0, %v2387
    %2389 = vmatmul.f32.gmra.mxu0 %v2006
    %v2390 = vpop.f32.mrf.mxu0
    %v2391 = vadd.f32 0.0, %v2390
    %2392 = vmatmul.f32.gmra.mxu0 %v2008
    %v2393 = vpop.f32.mrf.mxu0
    %v2394 = vadd.f32 0.0, %v2393
    %2395 = vmatmul.f32.gmra.mxu0 %v2010
    %v2396 = vpop.f32.mrf.mxu0
    %v2397 = vadd.f32 0.0, %v2396
    %2398 = vmatmul.f32.gmra.mxu0 %v2012
    %v2399 = vpop.f32.mrf.mxu0
    %v2400 = vadd.f32 0.0, %v2399
    %2401 = vmatmul.f32.gmra.mxu0 %v2014
    %v2402 = vpop.f32.mrf.mxu0
    %v2403 = vadd.f32 0.0, %v2402
    %2404 = vmatmul.f32.gmra.mxu0 %v2016
    %v2405 = vpop.f32.mrf.mxu0
    %v2406 = vadd.f32 0.0, %v2405
    %2407 = vmatmul.f32.gmra.mxu0 %v2018
    %v2408 = vpop.f32.mrf.mxu0
    %v2409 = vadd.f32 0.0, %v2408
    %2410 = vmatmul.f32.gmra.mxu0 %v2020
    %v2411 = vpop.f32.mrf.mxu0
    %v2412 = vadd.f32 0.0, %v2411
    %2413 = vmatmul.f32.gmra.mxu0 %v2022
    %v2414 = vpop.f32.mrf.mxu0
    %v2415 = vadd.f32 0.0, %v2414
    %2416 = vmatmul.f32.gmra.mxu0 %v2024
    %v2417 = vpop.f32.mrf.mxu0
    %v2418 = vadd.f32 0.0, %v2417
    %2419 = vmatmul.f32.gmra.mxu0 %v2026
    %v2420 = vpop.f32.mrf.mxu0
    %v2421 = vadd.f32 0.0, %v2420
    %2422 = vmatmul.f32.gmra.mxu0 %v2028
    %v2423 = vpop.f32.mrf.mxu0
    %v2424 = vadd.f32 0.0, %v2423
    %2425 = vmatmul.f32.gmra.mxu0 %v2030
    %v2426 = vpop.f32.mrf.mxu0
    %v2427 = vadd.f32 0.0, %v2426
    %2428 = vmatmul.f32.gmra.mxu0 %v2032
    %v2429 = vpop.f32.mrf.mxu0
    %v2430 = vadd.f32 0.0, %v2429
    %2431 = vmatmul.f32.gmra.mxu0 %v2034
    %v2432 = vpop.f32.mrf.mxu0
    %v2433 = vadd.f32 0.0, %v2432
    %2434 = vmatmul.f32.gmra.mxu0 %v2036
    %v2435 = vpop.f32.mrf.mxu0
    %v2436 = vadd.f32 0.0, %v2435
    %2437 = vmatmul.f32.gmra.mxu0 %v2038
    %v2438 = vpop.f32.mrf.mxu0
    %v2439 = vadd.f32 0.0, %v2438
    %2440 = vmatmul.f32.gmra.mxu0 %v2040
    %v2441 = vpop.f32.mrf.mxu0
    %v2442 = vadd.f32 0.0, %v2441
    %2443 = vmatmul.f32.gmra.mxu0 %v2042
    %v2444 = vpop.f32.mrf.mxu0
    %v2445 = vadd.f32 0.0, %v2444
    %2446 = vmatmul.f32.gmra.mxu0 %v2044
    %v2447 = vpop.f32.mrf.mxu0
    %v2448 = vadd.f32 0.0, %v2447
    %2449 = vdwg.mxu0
    %2450 = vmatpush.msra.mxu0 %v2110
    %2451 = vmatpush.msra.mxu0 %v2108
    %2452 = vmatpush.msra.mxu0 %v2106
    %2453 = vmatpush.msra.mxu0 %v2104
    %2454 = vmatpush.msra.mxu0 %v2102
    %2455 = vmatpush.msra.mxu0 %v2100
    %2456 = vmatpush.msra.mxu0 %v2098
    %2457 = vmatpush.msra.mxu0 %v2096
    %2458 = vmatpush.msra.mxu0 %v2094
    %2459 = vmatpush.msra.mxu0 %v2092
    %2460 = vmatpush.msra.mxu0 %v2090
    %2461 = vmatpush.msra.mxu0 %v2088
    %2462 = vmatpush.msra.mxu0 %v2086
    %2463 = vmatpush.msra.mxu0 %v2084
    %2464 = vmatpush.msra.mxu0 %v2082
    %2465 = vmatpush.msra.mxu0 %v2080
    %2466 = vmatmul.f32.gmra.mxu0 %v1983
    %v2467 = vpop.f32.mrf.mxu0
    %v2468 = vadd.f32 %v2355, %v2467
    %2469 = vmatmul.f32.gmra.mxu0 %v1985
    %v2470 = vpop.f32.mrf.mxu0
    %v2471 = vadd.f32 %v2358, %v2470
    %2472 = vmatmul.f32.gmra.mxu0 %v1987
    %v2473 = vpop.f32.mrf.mxu0
    %v2474 = vadd.f32 %v2361, %v2473
    %2475 = vmatmul.f32.gmra.mxu0 %v1989
    %v2476 = vpop.f32.mrf.mxu0
    %v2477 = vadd.f32 %v2364, %v2476
    %2478 = vmatmul.f32.gmra.mxu0 %v1991
    %v2479 = vpop.f32.mrf.mxu0
    %v2480 = vadd.f32 %v2367, %v2479
    %2481 = vmatmul.f32.gmra.mxu0 %v1993
    %v2482 = vpop.f32.mrf.mxu0
    %v2483 = vadd.f32 %v2370, %v2482
    %2484 = vmatmul.f32.gmra.mxu0 %v1995
    %v2485 = vpop.f32.mrf.mxu0
    %v2486 = vadd.f32 %v2373, %v2485
    %2487 = vmatmul.f32.gmra.mxu0 %v1997
    %v2488 = vpop.f32.mrf.mxu0
    %v2489 = vadd.f32 %v2376, %v2488
    %2490 = vmatmul.f32.gmra.mxu0 %v1999
    %v2491 = vpop.f32.mrf.mxu0
    %v2492 = vadd.f32 %v2379, %v2491
    %2493 = vmatmul.f32.gmra.mxu0 %v2001
    %v2494 = vpop.f32.mrf.mxu0
    %v2495 = vadd.f32 %v2382, %v2494
    %2496 = vmatmul.f32.gmra.mxu0 %v2003
    %v2497 = vpop.f32.mrf.mxu0
    %v2498 = vadd.f32 %v2385, %v2497
    %2499 = vmatmul.f32.gmra.mxu0 %v2005
    %v2500 = vpop.f32.mrf.mxu0
    %v2501 = vadd.f32 %v2388, %v2500
    %2502 = vmatmul.f32.gmra.mxu0 %v2007
    %v2503 = vpop.f32.mrf.mxu0
    %v2504 = vadd.f32 %v2391, %v2503
    %2505 = vmatmul.f32.gmra.mxu0 %v2009
    %v2506 = vpop.f32.mrf.mxu0
    %v2507 = vadd.f32 %v2394, %v2506
    %2508 = vmatmul.f32.gmra.mxu0 %v2011
    %v2509 = vpop.f32.mrf.mxu0
    %v2510 = vadd.f32 %v2397, %v2509
    %2511 = vmatmul.f32.gmra.mxu0 %v2013
    %v2512 = vpop.f32.mrf.mxu0
    %v2513 = vadd.f32 %v2400, %v2512
    %2514 = vmatmul.f32.gmra.mxu0 %v2015
    %v2515 = vpop.f32.mrf.mxu0
    %v2516 = vadd.f32 %v2403, %v2515
    %2517 = vmatmul.f32.gmra.mxu0 %v2017
    %v2518 = vpop.f32.mrf.mxu0
    %v2519 = vadd.f32 %v2406, %v2518
    %2520 = vmatmul.f32.gmra.mxu0 %v2019
    %v2521 = vpop.f32.mrf.mxu0
    %v2522 = vadd.f32 %v2409, %v2521
    %2523 = vmatmul.f32.gmra.mxu0 %v2021
    %v2524 = vpop.f32.mrf.mxu0
    %v2525 = vadd.f32 %v2412, %v2524
    %2526 = vmatmul.f32.gmra.mxu0 %v2023
    %v2527 = vpop.f32.mrf.mxu0
    %v2528 = vadd.f32 %v2415, %v2527
    %2529 = vmatmul.f32.gmra.mxu0 %v2025
    %v2530 = vpop.f32.mrf.mxu0
    %v2531 = vadd.f32 %v2418, %v2530
    %2532 = vmatmul.f32.gmra.mxu0 %v2027
    %v2533 = vpop.f32.mrf.mxu0
    %v2534 = vadd.f32 %v2421, %v2533
    %2535 = vmatmul.f32.gmra.mxu0 %v2029
    %v2536 = vpop.f32.mrf.mxu0
    %v2537 = vadd.f32 %v2424, %v2536
    %2538 = vmatmul.f32.gmra.mxu0 %v2031
    %v2539 = vpop.f32.mrf.mxu0
    %v2540 = vadd.f32 %v2427, %v2539
    %2541 = vmatmul.f32.gmra.mxu0 %v2033
    %v2542 = vpop.f32.mrf.mxu0
    %v2543 = vadd.f32 %v2430, %v2542
    %2544 = vmatmul.f32.gmra.mxu0 %v2035
    %v2545 = vpop.f32.mrf.mxu0
    %v2546 = vadd.f32 %v2433, %v2545
    %2547 = vmatmul.f32.gmra.mxu0 %v2037
    %v2548 = vpop.f32.mrf.mxu0
    %v2549 = vadd.f32 %v2436, %v2548
    %2550 = vmatmul.f32.gmra.mxu0 %v2039
    %v2551 = vpop.f32.mrf.mxu0
    %v2552 = vadd.f32 %v2439, %v2551
    %2553 = vmatmul.f32.gmra.mxu0 %v2041
    %v2554 = vpop.f32.mrf.mxu0
    %v2555 = vadd.f32 %v2442, %v2554
    %2556 = vmatmul.f32.gmra.mxu0 %v2043
    %v2557 = vpop.f32.mrf.mxu0
    %v2558 = vadd.f32 %v2445, %v2557
    %2559 = vmatmul.f32.gmra.mxu0 %v2045
    %v2560 = vpop.f32.mrf.mxu0
    %v2561 = vadd.f32 %v2448, %v2560
    %2562 = vdwg.mxu0
    %v2563 = vadd.f32 %v1436, %v2242
    %v2564 = vadd.f32 %v1662, %v2468
    %v2565 = vadd.f32 %v1439, %v2245
    %v2566 = vadd.f32 %v1665, %v2471
    %v2567 = vadd.f32 %v1442, %v2248
    %v2568 = vadd.f32 %v1668, %v2474
    %v2569 = vadd.f32 %v1445, %v2251
    %v2570 = vadd.f32 %v1671, %v2477
    %v2571 = vadd.f32 %v1448, %v2254
    %v2572 = vadd.f32 %v1674, %v2480
    %v2573 = vadd.f32 %v1451, %v2257
    %v2574 = vadd.f32 %v1677, %v2483
    %v2575 = vadd.f32 %v1454, %v2260
    %v2576 = vadd.f32 %v1680, %v2486
    %v2577 = vadd.f32 %v1457, %v2263
    %v2578 = vadd.f32 %v1683, %v2489
    %v2579 = vadd.f32 %v1460, %v2266
    %v2580 = vadd.f32 %v1686, %v2492
    %v2581 = vadd.f32 %v1463, %v2269
    %v2582 = vadd.f32 %v1689, %v2495
    %v2583 = vadd.f32 %v1466, %v2272
    %v2584 = vadd.f32 %v1692, %v2498
    %v2585 = vadd.f32 %v1469, %v2275
    %v2586 = vadd.f32 %v1695, %v2501
    %v2587 = vadd.f32 %v1472, %v2278
    %v2588 = vadd.f32 %v1698, %v2504
    %v2589 = vadd.f32 %v1475, %v2281
    %v2590 = vadd.f32 %v1701, %v2507
    %v2591 = vadd.f32 %v1478, %v2284
    %v2592 = vadd.f32 %v1704, %v2510
    %v2593 = vadd.f32 %v1481, %v2287
    %v2594 = vadd.f32 %v1707, %v2513
    %v2595 = vadd.f32 %v1484, %v2290
    %v2596 = vadd.f32 %v1710, %v2516
    %v2597 = vadd.f32 %v1487, %v2293
    %v2598 = vadd.f32 %v1713, %v2519
    %v2599 = vadd.f32 %v1490, %v2296
    %v2600 = vadd.f32 %v1716, %v2522
    %v2601 = vadd.f32 %v1493, %v2299
    %v2602 = vadd.f32 %v1719, %v2525
    %v2603 = vadd.f32 %v1496, %v2302
    %v2604 = vadd.f32 %v1722, %v2528
    %v2605 = vadd.f32 %v1499, %v2305
    %v2606 = vadd.f32 %v1725, %v2531
    %v2607 = vadd.f32 %v1502, %v2308
    %v2608 = vadd.f32 %v1728, %v2534
    %v2609 = vadd.f32 %v1505, %v2311
    %v2610 = vadd.f32 %v1731, %v2537
    %v2611 = vadd.f32 %v1508, %v2314
    %v2612 = vadd.f32 %v1734, %v2540
    %v2613 = vadd.f32 %v1511, %v2317
    %v2614 = vadd.f32 %v1737, %v2543
    %v2615 = vadd.f32 %v1514, %v2320
    %v2616 = vadd.f32 %v1740, %v2546
    %v2617 = vadd.f32 %v1517, %v2323
    %v2618 = vadd.f32 %v1743, %v2549
    %v2619 = vadd.f32 %v1520, %v2326
    %v2620 = vadd.f32 %v1746, %v2552
    %v2621 = vadd.f32 %v1523, %v2329
    %v2622 = vadd.f32 %v1749, %v2555
    %v2623 = vadd.f32 %v1526, %v2332
    %v2624 = vadd.f32 %v1752, %v2558
    %v2625 = vadd.f32 %v1529, %v2335
    %v2626 = vadd.f32 %v1755, %v2561
    %v2627 = vsel %vm243, 1, 0
    %v2628 = vsel %vm244, 1, 0
    %v2629 = vsel %vm245, 1, 0
    %v2630 = vsel %vm246, 1, 0
    %v2631 = vsel %vm247, 1, 0
    %v2632 = vsel %vm248, 1, 0
    %v2633 = vsel %vm249, 1, 0
    %v2634 = vsel %vm250, 1, 0
    %v2635 = vsel %vm251, 1, 0
    %v2636 = vsel %vm252, 1, 0
    %v2637 = vsel %vm253, 1, 0
    %v2638 = vsel %vm254, 1, 0
    %v2639 = vsel %vm255, 1, 0
    %v2640 = vsel %vm256, 1, 0
    %v2641 = vsel %vm257, 1, 0
    %v2642 = vsel %vm258, 1, 0
    %v2643 = vsel %vm259, 1, 0
    %v2644 = vsel %vm260, 1, 0
    %v2645 = vsel %vm261, 1, 0
    %v2646 = vsel %vm262, 1, 0
    %v2647 = vsel %vm263, 1, 0
    %v2648 = vsel %vm264, 1, 0
    %v2649 = vsel %vm265, 1, 0
    %v2650 = vsel %vm266, 1, 0
    %v2651 = vsel %vm267, 1, 0
    %v2652 = vsel %vm268, 1, 0
    %v2653 = vsel %vm269, 1, 0
    %v2654 = vsel %vm270, 1, 0
    %v2655 = vsel %vm271, 1, 0
    %v2656 = vsel %vm272, 1, 0
    %v2657 = vsel %vm273, 1, 0
    %v2658 = vsel %vm274, 1, 0
    %vm2659 = vcmp.eq.s32.totalorder %v2627, 1
    %vm2660 = vcmp.eq.s32.totalorder %v2628, 1
    %vm2661 = vcmp.eq.s32.totalorder %v2629, 1
    %vm2662 = vcmp.eq.s32.totalorder %v2630, 1
    %vm2663 = vcmp.eq.s32.totalorder %v2631, 1
    %vm2664 = vcmp.eq.s32.totalorder %v2632, 1
    %vm2665 = vcmp.eq.s32.totalorder %v2633, 1
    %vm2666 = vcmp.eq.s32.totalorder %v2634, 1
    %vm2667 = vcmp.eq.s32.totalorder %v2635, 1
    %vm2668 = vcmp.eq.s32.totalorder %v2636, 1
    %vm2669 = vcmp.eq.s32.totalorder %v2637, 1
    %vm2670 = vcmp.eq.s32.totalorder %v2638, 1
    %vm2671 = vcmp.eq.s32.totalorder %v2639, 1
    %vm2672 = vcmp.eq.s32.totalorder %v2640, 1
    %vm2673 = vcmp.eq.s32.totalorder %v2641, 1
    %vm2674 = vcmp.eq.s32.totalorder %v2642, 1
    %vm2675 = vcmp.eq.s32.totalorder %v2643, 1
    %vm2676 = vcmp.eq.s32.totalorder %v2644, 1
    %vm2677 = vcmp.eq.s32.totalorder %v2645, 1
    %vm2678 = vcmp.eq.s32.totalorder %v2646, 1
    %vm2679 = vcmp.eq.s32.totalorder %v2647, 1
    %vm2680 = vcmp.eq.s32.totalorder %v2648, 1
    %vm2681 = vcmp.eq.s32.totalorder %v2649, 1
    %vm2682 = vcmp.eq.s32.totalorder %v2650, 1
    %vm2683 = vcmp.eq.s32.totalorder %v2651, 1
    %vm2684 = vcmp.eq.s32.totalorder %v2652, 1
    %vm2685 = vcmp.eq.s32.totalorder %v2653, 1
    %vm2686 = vcmp.eq.s32.totalorder %v2654, 1
    %vm2687 = vcmp.eq.s32.totalorder %v2655, 1
    %vm2688 = vcmp.eq.s32.totalorder %v2656, 1
    %vm2689 = vcmp.eq.s32.totalorder %v2657, 1
    %vm2690 = vcmp.eq.s32.totalorder %v2658, 1
    %v2691 = vsel %vm2659, %v434, 0.0
    %v2692 = vsel %vm2659, %v435, 0.0
    %v2693 = vsel %vm2660, %v432, 0.0
    %v2694 = vsel %vm2660, %v433, 0.0
    %v2695 = vsel %vm2661, %v430, 0.0
    %v2696 = vsel %vm2661, %v431, 0.0
    %v2697 = vsel %vm2662, %v428, 0.0
    %v2698 = vsel %vm2662, %v429, 0.0
    %v2699 = vsel %vm2663, %v426, 0.0
    %v2700 = vsel %vm2663, %v427, 0.0
    %v2701 = vsel %vm2664, %v424, 0.0
    %v2702 = vsel %vm2664, %v425, 0.0
    %v2703 = vsel %vm2665, %v422, 0.0
    %v2704 = vsel %vm2665, %v423, 0.0
    %v2705 = vsel %vm2666, %v420, 0.0
    %v2706 = vsel %vm2666, %v421, 0.0
    %v2707 = vsel %vm2667, %v418, 0.0
    %v2708 = vsel %vm2667, %v419, 0.0
    %v2709 = vsel %vm2668, %v416, 0.0
    %v2710 = vsel %vm2668, %v417, 0.0
    %v2711 = vsel %vm2669, %v414, 0.0
    %v2712 = vsel %vm2669, %v415, 0.0
    %v2713 = vsel %vm2670, %v412, 0.0
    %v2714 = vsel %vm2670, %v413, 0.0
    %v2715 = vsel %vm2671, %v410, 0.0
    %v2716 = vsel %vm2671, %v411, 0.0
    %v2717 = vsel %vm2672, %v408, 0.0
    %v2718 = vsel %vm2672, %v409, 0.0
    %v2719 = vsel %vm2673, %v406, 0.0
    %v2720 = vsel %vm2673, %v407, 0.0
    %v2721 = vsel %vm2674, %v404, 0.0
    %v2722 = vsel %vm2674, %v405, 0.0
    %v2723 = vsel %vm2675, %v402, 0.0
    %v2724 = vsel %vm2675, %v403, 0.0
    %v2725 = vsel %vm2676, %v400, 0.0
    %v2726 = vsel %vm2676, %v401, 0.0
    %v2727 = vsel %vm2677, %v398, 0.0
    %v2728 = vsel %vm2677, %v399, 0.0
    %v2729 = vsel %vm2678, %v396, 0.0
    %v2730 = vsel %vm2678, %v397, 0.0
    %v2731 = vsel %vm2679, %v394, 0.0
    %v2732 = vsel %vm2679, %v395, 0.0
    %v2733 = vsel %vm2680, %v392, 0.0
    %v2734 = vsel %vm2680, %v393, 0.0
    %v2735 = vsel %vm2681, %v390, 0.0
    %v2736 = vsel %vm2681, %v391, 0.0
    %v2737 = vsel %vm2682, %v388, 0.0
    %v2738 = vsel %vm2682, %v389, 0.0
    %v2739 = vsel %vm2683, %v386, 0.0
    %v2740 = vsel %vm2683, %v387, 0.0
    %v2741 = vsel %vm2684, %v384, 0.0
    %v2742 = vsel %vm2684, %v385, 0.0
    %v2743 = vsel %vm2685, %v382, 0.0
    %v2744 = vsel %vm2685, %v383, 0.0
    %v2745 = vsel %vm2686, %v380, 0.0
    %v2746 = vsel %vm2686, %v381, 0.0
    %v2747 = vsel %vm2687, %v378, 0.0
    %v2748 = vsel %vm2687, %v379, 0.0
    %v2749 = vsel %vm2688, %v376, 0.0
    %v2750 = vsel %vm2688, %v377, 0.0
    %v2751 = vsel %vm2689, %v374, 0.0
    %v2752 = vsel %vm2689, %v375, 0.0
    %v2753 = vsel %vm2690, %v372, 0.0
    %v2754 = vsel %vm2690, %v373, 0.0
    %s2755 = scalar_lea.vmem %s1, 1536
    %v2756 = vld [vmem:[%s2755] sm:$0xff]
    %v2757 = vld [vmem:[%s2755 + $0x8] sm:$0xff]
    %v2758 = vld [vmem:[%s2755 + $0x10] sm:$0xff]
    %v2759 = vld [vmem:[%s2755 + $0x18] sm:$0xff]
    %v2760 = vld [vmem:[%s2755 + $0x20] sm:$0xff]
    %v2761 = vld [vmem:[%s2755 + $0x28] sm:$0xff]
    %v2762 = vld [vmem:[%s2755 + $0x30] sm:$0xff]
    %v2763 = vld [vmem:[%s2755 + $0x38] sm:$0xff]
    %v2764 = vld [vmem:[%s2755 + $0x40] sm:$0xff]
    %v2765 = vld [vmem:[%s2755 + $0x48] sm:$0xff]
    %v2766 = vld [vmem:[%s2755 + $0x50] sm:$0xff]
    %v2767 = vld [vmem:[%s2755 + $0x58] sm:$0xff]
    %v2768 = vld [vmem:[%s2755 + $0x60] sm:$0xff]
    %v2769 = vld [vmem:[%s2755 + $0x68] sm:$0xff]
    %v2770 = vld [vmem:[%s2755 + $0x70] sm:$0xff]
    %v2771 = vld [vmem:[%s2755 + $0x78] sm:$0xff]
    %v2772 = vld [vmem:[%s2755 + $0x80] sm:$0xff]
    %v2773 = vld [vmem:[%s2755 + $0x88] sm:$0xff]
    %v2774 = vld [vmem:[%s2755 + $0x90] sm:$0xff]
    %v2775 = vld [vmem:[%s2755 + $0x98] sm:$0xff]
    %v2776 = vld [vmem:[%s2755 + $0xa0] sm:$0xff]
    %v2777 = vld [vmem:[%s2755 + $0xa8] sm:$0xff]
    %v2778 = vld [vmem:[%s2755 + $0xb0] sm:$0xff]
    %v2779 = vld [vmem:[%s2755 + $0xb8] sm:$0xff]
    %v2780 = vld [vmem:[%s2755 + $0xc0] sm:$0xff]
    %v2781 = vld [vmem:[%s2755 + $0xc8] sm:$0xff]
    %v2782 = vld [vmem:[%s2755 + $0xd0] sm:$0xff]
    %v2783 = vld [vmem:[%s2755 + $0xd8] sm:$0xff]
    %v2784 = vld [vmem:[%s2755 + $0xe0] sm:$0xff]
    %v2785 = vld [vmem:[%s2755 + $0xe8] sm:$0xff]
    %v2786 = vld [vmem:[%s2755 + $0xf0] sm:$0xff]
    %v2787 = vld [vmem:[%s2755 + $0xf8] sm:$0xff]
    %v2788 = vld [vmem:[%s2755 + $0x100] sm:$0xff]
    %v2789 = vld [vmem:[%s2755 + $0x108] sm:$0xff]
    %v2790 = vld [vmem:[%s2755 + $0x110] sm:$0xff]
    %v2791 = vld [vmem:[%s2755 + $0x118] sm:$0xff]
    %v2792 = vld [vmem:[%s2755 + $0x120] sm:$0xff]
    %v2793 = vld [vmem:[%s2755 + $0x128] sm:$0xff]
    %v2794 = vld [vmem:[%s2755 + $0x130] sm:$0xff]
    %v2795 = vld [vmem:[%s2755 + $0x138] sm:$0xff]
    %v2796 = vld [vmem:[%s2755 + $0x140] sm:$0xff]
    %v2797 = vld [vmem:[%s2755 + $0x148] sm:$0xff]
    %v2798 = vld [vmem:[%s2755 + $0x150] sm:$0xff]
    %v2799 = vld [vmem:[%s2755 + $0x158] sm:$0xff]
    %v2800 = vld [vmem:[%s2755 + $0x160] sm:$0xff]
    %v2801 = vld [vmem:[%s2755 + $0x168] sm:$0xff]
    %v2802 = vld [vmem:[%s2755 + $0x170] sm:$0xff]
    %v2803 = vld [vmem:[%s2755 + $0x178] sm:$0xff]
    %v2804 = vld [vmem:[%s2755 + $0x180] sm:$0xff]
    %v2805 = vld [vmem:[%s2755 + $0x188] sm:$0xff]
    %v2806 = vld [vmem:[%s2755 + $0x190] sm:$0xff]
    %v2807 = vld [vmem:[%s2755 + $0x198] sm:$0xff]
    %v2808 = vld [vmem:[%s2755 + $0x1a0] sm:$0xff]
    %v2809 = vld [vmem:[%s2755 + $0x1a8] sm:$0xff]
    %v2810 = vld [vmem:[%s2755 + $0x1b0] sm:$0xff]
    %v2811 = vld [vmem:[%s2755 + $0x1b8] sm:$0xff]
    %v2812 = vld [vmem:[%s2755 + $0x1c0] sm:$0xff]
    %v2813 = vld [vmem:[%s2755 + $0x1c8] sm:$0xff]
    %v2814 = vld [vmem:[%s2755 + $0x1d0] sm:$0xff]
    %v2815 = vld [vmem:[%s2755 + $0x1d8] sm:$0xff]
    %v2816 = vld [vmem:[%s2755 + $0x1e0] sm:$0xff]
    %v2817 = vld [vmem:[%s2755 + $0x1e8] sm:$0xff]
    %v2818 = vld [vmem:[%s2755 + $0x1f0] sm:$0xff]
    %v2819 = vld [vmem:[%s2755 + $0x1f8] sm:$0xff]
    %2820 = vmatpush.msra.mxu0 %v2786
    %2821 = vmatpush.msra.mxu0 %v2784
    %2822 = vmatpush.msra.mxu0 %v2782
    %2823 = vmatpush.msra.mxu0 %v2780
    %2824 = vmatpush.msra.mxu0 %v2778
    %2825 = vmatpush.msra.mxu0 %v2776
    %2826 = vmatpush.msra.mxu0 %v2774
    %2827 = vmatpush.msra.mxu0 %v2772
    %2828 = vmatpush.msra.mxu0 %v2770
    %2829 = vmatpush.msra.mxu0 %v2768
    %2830 = vmatpush.msra.mxu0 %v2766
    %2831 = vmatpush.msra.mxu0 %v2764
    %2832 = vmatpush.msra.mxu0 %v2762
    %2833 = vmatpush.msra.mxu0 %v2760
    %2834 = vmatpush.msra.mxu0 %v2758
    %2835 = vmatpush.msra.mxu0 %v2756
    %2836 = vmatmul.f32.gmra.mxu0 %v2691
    %v2837 = vpop.f32.mrf.mxu0
    %v2838 = vadd.f32 0.0, %v2837
    %2839 = vmatmul.f32.gmra.mxu0 %v2693
    %v2840 = vpop.f32.mrf.mxu0
    %v2841 = vadd.f32 0.0, %v2840
    %2842 = vmatmul.f32.gmra.mxu0 %v2695
    %v2843 = vpop.f32.mrf.mxu0
    %v2844 = vadd.f32 0.0, %v2843
    %2845 = vmatmul.f32.gmra.mxu0 %v2697
    %v2846 = vpop.f32.mrf.mxu0
    %v2847 = vadd.f32 0.0, %v2846
    %2848 = vmatmul.f32.gmra.mxu0 %v2699
    %v2849 = vpop.f32.mrf.mxu0
    %v2850 = vadd.f32 0.0, %v2849
    %2851 = vmatmul.f32.gmra.mxu0 %v2701
    %v2852 = vpop.f32.mrf.mxu0
    %v2853 = vadd.f32 0.0, %v2852
    %2854 = vmatmul.f32.gmra.mxu0 %v2703
    %v2855 = vpop.f32.mrf.mxu0
    %v2856 = vadd.f32 0.0, %v2855
    %2857 = vmatmul.f32.gmra.mxu0 %v2705
    %v2858 = vpop.f32.mrf.mxu0
    %v2859 = vadd.f32 0.0, %v2858
    %2860 = vmatmul.f32.gmra.mxu0 %v2707
    %v2861 = vpop.f32.mrf.mxu0
    %v2862 = vadd.f32 0.0, %v2861
    %2863 = vmatmul.f32.gmra.mxu0 %v2709
    %v2864 = vpop.f32.mrf.mxu0
    %v2865 = vadd.f32 0.0, %v2864
    %2866 = vmatmul.f32.gmra.mxu0 %v2711
    %v2867 = vpop.f32.mrf.mxu0
    %v2868 = vadd.f32 0.0, %v2867
    %2869 = vmatmul.f32.gmra.mxu0 %v2713
    %v2870 = vpop.f32.mrf.mxu0
    %v2871 = vadd.f32 0.0, %v2870
    %2872 = vmatmul.f32.gmra.mxu0 %v2715
    %v2873 = vpop.f32.mrf.mxu0
    %v2874 = vadd.f32 0.0, %v2873
    %2875 = vmatmul.f32.gmra.mxu0 %v2717
    %v2876 = vpop.f32.mrf.mxu0
    %v2877 = vadd.f32 0.0, %v2876
    %2878 = vmatmul.f32.gmra.mxu0 %v2719
    %v2879 = vpop.f32.mrf.mxu0
    %v2880 = vadd.f32 0.0, %v2879
    %2881 = vmatmul.f32.gmra.mxu0 %v2721
    %v2882 = vpop.f32.mrf.mxu0
    %v2883 = vadd.f32 0.0, %v2882
    %2884 = vmatmul.f32.gmra.mxu0 %v2723
    %v2885 = vpop.f32.mrf.mxu0
    %v2886 = vadd.f32 0.0, %v2885
    %2887 = vmatmul.f32.gmra.mxu0 %v2725
    %v2888 = vpop.f32.mrf.mxu0
    %v2889 = vadd.f32 0.0, %v2888
    %2890 = vmatmul.f32.gmra.mxu0 %v2727
    %v2891 = vpop.f32.mrf.mxu0
    %v2892 = vadd.f32 0.0, %v2891
    %2893 = vmatmul.f32.gmra.mxu0 %v2729
    %v2894 = vpop.f32.mrf.mxu0
    %v2895 = vadd.f32 0.0, %v2894
    %2896 = vmatmul.f32.gmra.mxu0 %v2731
    %v2897 = vpop.f32.mrf.mxu0
    %v2898 = vadd.f32 0.0, %v2897
    %2899 = vmatmul.f32.gmra.mxu0 %v2733
    %v2900 = vpop.f32.mrf.mxu0
    %v2901 = vadd.f32 0.0, %v2900
    %2902 = vmatmul.f32.gmra.mxu0 %v2735
    %v2903 = vpop.f32.mrf.mxu0
    %v2904 = vadd.f32 0.0, %v2903
    %2905 = vmatmul.f32.gmra.mxu0 %v2737
    %v2906 = vpop.f32.mrf.mxu0
    %v2907 = vadd.f32 0.0, %v2906
    %2908 = vmatmul.f32.gmra.mxu0 %v2739
    %v2909 = vpop.f32.mrf.mxu0
    %v2910 = vadd.f32 0.0, %v2909
    %2911 = vmatmul.f32.gmra.mxu0 %v2741
    %v2912 = vpop.f32.mrf.mxu0
    %v2913 = vadd.f32 0.0, %v2912
    %2914 = vmatmul.f32.gmra.mxu0 %v2743
    %v2915 = vpop.f32.mrf.mxu0
    %v2916 = vadd.f32 0.0, %v2915
    %2917 = vmatmul.f32.gmra.mxu0 %v2745
    %v2918 = vpop.f32.mrf.mxu0
    %v2919 = vadd.f32 0.0, %v2918
    %2920 = vmatmul.f32.gmra.mxu0 %v2747
    %v2921 = vpop.f32.mrf.mxu0
    %v2922 = vadd.f32 0.0, %v2921
    %2923 = vmatmul.f32.gmra.mxu0 %v2749
    %v2924 = vpop.f32.mrf.mxu0
    %v2925 = vadd.f32 0.0, %v2924
    %2926 = vmatmul.f32.gmra.mxu0 %v2751
    %v2927 = vpop.f32.mrf.mxu0
    %v2928 = vadd.f32 0.0, %v2927
    %2929 = vmatmul.f32.gmra.mxu0 %v2753
    %v2930 = vpop.f32.mrf.mxu0
    %v2931 = vadd.f32 0.0, %v2930
    %2932 = vdwg.mxu0
    %2933 = vmatpush.msra.mxu0 %v2818
    %2934 = vmatpush.msra.mxu0 %v2816
    %2935 = vmatpush.msra.mxu0 %v2814
    %2936 = vmatpush.msra.mxu0 %v2812
    %2937 = vmatpush.msra.mxu0 %v2810
    %2938 = vmatpush.msra.mxu0 %v2808
    %2939 = vmatpush.msra.mxu0 %v2806
    %2940 = vmatpush.msra.mxu0 %v2804
    %2941 = vmatpush.msra.mxu0 %v2802
    %2942 = vmatpush.msra.mxu0 %v2800
    %2943 = vmatpush.msra.mxu0 %v2798
    %2944 = vmatpush.msra.mxu0 %v2796
    %2945 = vmatpush.msra.mxu0 %v2794
    %2946 = vmatpush.msra.mxu0 %v2792
    %2947 = vmatpush.msra.mxu0 %v2790
    %2948 = vmatpush.msra.mxu0 %v2788
    %2949 = vmatmul.f32.gmra.mxu0 %v2692
    %v2950 = vpop.f32.mrf.mxu0
    %v2951 = vadd.f32 %v2838, %v2950
    %2952 = vmatmul.f32.gmra.mxu0 %v2694
    %v2953 = vpop.f32.mrf.mxu0
    %v2954 = vadd.f32 %v2841, %v2953
    %2955 = vmatmul.f32.gmra.mxu0 %v2696
    %v2956 = vpop.f32.mrf.mxu0
    %v2957 = vadd.f32 %v2844, %v2956
    %2958 = vmatmul.f32.gmra.mxu0 %v2698
    %v2959 = vpop.f32.mrf.mxu0
    %v2960 = vadd.f32 %v2847, %v2959
    %2961 = vmatmul.f32.gmra.mxu0 %v2700
    %v2962 = vpop.f32.mrf.mxu0
    %v2963 = vadd.f32 %v2850, %v2962
    %2964 = vmatmul.f32.gmra.mxu0 %v2702
    %v2965 = vpop.f32.mrf.mxu0
    %v2966 = vadd.f32 %v2853, %v2965
    %2967 = vmatmul.f32.gmra.mxu0 %v2704
    %v2968 = vpop.f32.mrf.mxu0
    %v2969 = vadd.f32 %v2856, %v2968
    %2970 = vmatmul.f32.gmra.mxu0 %v2706
    %v2971 = vpop.f32.mrf.mxu0
    %v2972 = vadd.f32 %v2859, %v2971
    %2973 = vmatmul.f32.gmra.mxu0 %v2708
    %v2974 = vpop.f32.mrf.mxu0
    %v2975 = vadd.f32 %v2862, %v2974
    %2976 = vmatmul.f32.gmra.mxu0 %v2710
    %v2977 = vpop.f32.mrf.mxu0
    %v2978 = vadd.f32 %v2865, %v2977
    %2979 = vmatmul.f32.gmra.mxu0 %v2712
    %v2980 = vpop.f32.mrf.mxu0
    %v2981 = vadd.f32 %v2868, %v2980
    %2982 = vmatmul.f32.gmra.mxu0 %v2714
    %v2983 = vpop.f32.mrf.mxu0
    %v2984 = vadd.f32 %v2871, %v2983
    %2985 = vmatmul.f32.gmra.mxu0 %v2716
    %v2986 = vpop.f32.mrf.mxu0
    %v2987 = vadd.f32 %v2874, %v2986
    %2988 = vmatmul.f32.gmra.mxu0 %v2718
    %v2989 = vpop.f32.mrf.mxu0
    %v2990 = vadd.f32 %v2877, %v2989
    %2991 = vmatmul.f32.gmra.mxu0 %v2720
    %v2992 = vpop.f32.mrf.mxu0
    %v2993 = vadd.f32 %v2880, %v2992
    %2994 = vmatmul.f32.gmra.mxu0 %v2722
    %v2995 = vpop.f32.mrf.mxu0
    %v2996 = vadd.f32 %v2883, %v2995
    %2997 = vmatmul.f32.gmra.mxu0 %v2724
    %v2998 = vpop.f32.mrf.mxu0
    %v2999 = vadd.f32 %v2886, %v2998
    %3000 = vmatmul.f32.gmra.mxu0 %v2726
    %v3001 = vpop.f32.mrf.mxu0
    %v3002 = vadd.f32 %v2889, %v3001
    %3003 = vmatmul.f32.gmra.mxu0 %v2728
    %v3004 = vpop.f32.mrf.mxu0
    %v3005 = vadd.f32 %v2892, %v3004
    %3006 = vmatmul.f32.gmra.mxu0 %v2730
    %v3007 = vpop.f32.mrf.mxu0
    %v3008 = vadd.f32 %v2895, %v3007
    %3009 = vmatmul.f32.gmra.mxu0 %v2732
    %v3010 = vpop.f32.mrf.mxu0
    %v3011 = vadd.f32 %v2898, %v3010
    %3012 = vmatmul.f32.gmra.mxu0 %v2734
    %v3013 = vpop.f32.mrf.mxu0
    %v3014 = vadd.f32 %v2901, %v3013
    %3015 = vmatmul.f32.gmra.mxu0 %v2736
    %v3016 = vpop.f32.mrf.mxu0
    %v3017 = vadd.f32 %v2904, %v3016
    %3018 = vmatmul.f32.gmra.mxu0 %v2738
    %v3019 = vpop.f32.mrf.mxu0
    %v3020 = vadd.f32 %v2907, %v3019
    %3021 = vmatmul.f32.gmra.mxu0 %v2740
    %v3022 = vpop.f32.mrf.mxu0
    %v3023 = vadd.f32 %v2910, %v3022
    %3024 = vmatmul.f32.gmra.mxu0 %v2742
    %v3025 = vpop.f32.mrf.mxu0
    %v3026 = vadd.f32 %v2913, %v3025
    %3027 = vmatmul.f32.gmra.mxu0 %v2744
    %v3028 = vpop.f32.mrf.mxu0
    %v3029 = vadd.f32 %v2916, %v3028
    %3030 = vmatmul.f32.gmra.mxu0 %v2746
    %v3031 = vpop.f32.mrf.mxu0
    %v3032 = vadd.f32 %v2919, %v3031
    %3033 = vmatmul.f32.gmra.mxu0 %v2748
    %v3034 = vpop.f32.mrf.mxu0
    %v3035 = vadd.f32 %v2922, %v3034
    %3036 = vmatmul.f32.gmra.mxu0 %v2750
    %v3037 = vpop.f32.mrf.mxu0
    %v3038 = vadd.f32 %v2925, %v3037
    %3039 = vmatmul.f32.gmra.mxu0 %v2752
    %v3040 = vpop.f32.mrf.mxu0
    %v3041 = vadd.f32 %v2928, %v3040
    %3042 = vmatmul.f32.gmra.mxu0 %v2754
    %v3043 = vpop.f32.mrf.mxu0
    %v3044 = vadd.f32 %v2931, %v3043
    %3045 = vdwg.mxu0
    %3046 = vmatpush.msra.mxu0 %v2787
    %3047 = vmatpush.msra.mxu0 %v2785
    %3048 = vmatpush.msra.mxu0 %v2783
    %3049 = vmatpush.msra.mxu0 %v2781
    %3050 = vmatpush.msra.mxu0 %v2779
    %3051 = vmatpush.msra.mxu0 %v2777
    %3052 = vmatpush.msra.mxu0 %v2775
    %3053 = vmatpush.msra.mxu0 %v2773
    %3054 = vmatpush.msra.mxu0 %v2771
    %3055 = vmatpush.msra.mxu0 %v2769
    %3056 = vmatpush.msra.mxu0 %v2767
    %3057 = vmatpush.msra.mxu0 %v2765
    %3058 = vmatpush.msra.mxu0 %v2763
    %3059 = vmatpush.msra.mxu0 %v2761
    %3060 = vmatpush.msra.mxu0 %v2759
    %3061 = vmatpush.msra.mxu0 %v2757
    %3062 = vmatmul.f32.gmra.mxu0 %v2691
    %v3063 = vpop.f32.mrf.mxu0
    %v3064 = vadd.f32 0.0, %v3063
    %3065 = vmatmul.f32.gmra.mxu0 %v2693
    %v3066 = vpop.f32.mrf.mxu0
    %v3067 = vadd.f32 0.0, %v3066
    %3068 = vmatmul.f32.gmra.mxu0 %v2695
    %v3069 = vpop.f32.mrf.mxu0
    %v3070 = vadd.f32 0.0, %v3069
    %3071 = vmatmul.f32.gmra.mxu0 %v2697
    %v3072 = vpop.f32.mrf.mxu0
    %v3073 = vadd.f32 0.0, %v3072
    %3074 = vmatmul.f32.gmra.mxu0 %v2699
    %v3075 = vpop.f32.mrf.mxu0
    %v3076 = vadd.f32 0.0, %v3075
    %3077 = vmatmul.f32.gmra.mxu0 %v2701
    %v3078 = vpop.f32.mrf.mxu0
    %v3079 = vadd.f32 0.0, %v3078
    %3080 = vmatmul.f32.gmra.mxu0 %v2703
    %v3081 = vpop.f32.mrf.mxu0
    %v3082 = vadd.f32 0.0, %v3081
    %3083 = vmatmul.f32.gmra.mxu0 %v2705
    %v3084 = vpop.f32.mrf.mxu0
    %v3085 = vadd.f32 0.0, %v3084
    %3086 = vmatmul.f32.gmra.mxu0 %v2707
    %v3087 = vpop.f32.mrf.mxu0
    %v3088 = vadd.f32 0.0, %v3087
    %3089 = vmatmul.f32.gmra.mxu0 %v2709
    %v3090 = vpop.f32.mrf.mxu0
    %v3091 = vadd.f32 0.0, %v3090
    %3092 = vmatmul.f32.gmra.mxu0 %v2711
    %v3093 = vpop.f32.mrf.mxu0
    %v3094 = vadd.f32 0.0, %v3093
    %3095 = vmatmul.f32.gmra.mxu0 %v2713
    %v3096 = vpop.f32.mrf.mxu0
    %v3097 = vadd.f32 0.0, %v3096
    %3098 = vmatmul.f32.gmra.mxu0 %v2715
    %v3099 = vpop.f32.mrf.mxu0
    %v3100 = vadd.f32 0.0, %v3099
    %3101 = vmatmul.f32.gmra.mxu0 %v2717
    %v3102 = vpop.f32.mrf.mxu0
    %v3103 = vadd.f32 0.0, %v3102
    %3104 = vmatmul.f32.gmra.mxu0 %v2719
    %v3105 = vpop.f32.mrf.mxu0
    %v3106 = vadd.f32 0.0, %v3105
    %3107 = vmatmul.f32.gmra.mxu0 %v2721
    %v3108 = vpop.f32.mrf.mxu0
    %v3109 = vadd.f32 0.0, %v3108
    %3110 = vmatmul.f32.gmra.mxu0 %v2723
    %v3111 = vpop.f32.mrf.mxu0
    %v3112 = vadd.f32 0.0, %v3111
    %3113 = vmatmul.f32.gmra.mxu0 %v2725
    %v3114 = vpop.f32.mrf.mxu0
    %v3115 = vadd.f32 0.0, %v3114
    %3116 = vmatmul.f32.gmra.mxu0 %v2727
    %v3117 = vpop.f32.mrf.mxu0
    %v3118 = vadd.f32 0.0, %v3117
    %3119 = vmatmul.f32.gmra.mxu0 %v2729
    %v3120 = vpop.f32.mrf.mxu0
    %v3121 = vadd.f32 0.0, %v3120
    %3122 = vmatmul.f32.gmra.mxu0 %v2731
    %v3123 = vpop.f32.mrf.mxu0
    %v3124 = vadd.f32 0.0, %v3123
    %3125 = vmatmul.f32.gmra.mxu0 %v2733
    %v3126 = vpop.f32.mrf.mxu0
    %v3127 = vadd.f32 0.0, %v3126
    %3128 = vmatmul.f32.gmra.mxu0 %v2735
    %v3129 = vpop.f32.mrf.mxu0
    %v3130 = vadd.f32 0.0, %v3129
    %3131 = vmatmul.f32.gmra.mxu0 %v2737
    %v3132 = vpop.f32.mrf.mxu0
    %v3133 = vadd.f32 0.0, %v3132
    %3134 = vmatmul.f32.gmra.mxu0 %v2739
    %v3135 = vpop.f32.mrf.mxu0
    %v3136 = vadd.f32 0.0, %v3135
    %3137 = vmatmul.f32.gmra.mxu0 %v2741
    %v3138 = vpop.f32.mrf.mxu0
    %v3139 = vadd.f32 0.0, %v3138
    %3140 = vmatmul.f32.gmra.mxu0 %v2743
    %v3141 = vpop.f32.mrf.mxu0
    %v3142 = vadd.f32 0.0, %v3141
    %3143 = vmatmul.f32.gmra.mxu0 %v2745
    %v3144 = vpop.f32.mrf.mxu0
    %v3145 = vadd.f32 0.0, %v3144
    %3146 = vmatmul.f32.gmra.mxu0 %v2747
    %v3147 = vpop.f32.mrf.mxu0
    %v3148 = vadd.f32 0.0, %v3147
    %3149 = vmatmul.f32.gmra.mxu0 %v2749
    %v3150 = vpop.f32.mrf.mxu0
    %v3151 = vadd.f32 0.0, %v3150
    %3152 = vmatmul.f32.gmra.mxu0 %v2751
    %v3153 = vpop.f32.mrf.mxu0
    %v3154 = vadd.f32 0.0, %v3153
    %3155 = vmatmul.f32.gmra.mxu0 %v2753
    %v3156 = vpop.f32.mrf.mxu0
    %v3157 = vadd.f32 0.0, %v3156
    %3158 = vdwg.mxu0
    %3159 = vmatpush.msra.mxu0 %v2819
    %3160 = vmatpush.msra.mxu0 %v2817
    %3161 = vmatpush.msra.mxu0 %v2815
    %3162 = vmatpush.msra.mxu0 %v2813
    %3163 = vmatpush.msra.mxu0 %v2811
    %3164 = vmatpush.msra.mxu0 %v2809
    %3165 = vmatpush.msra.mxu0 %v2807
    %3166 = vmatpush.msra.mxu0 %v2805
    %3167 = vmatpush.msra.mxu0 %v2803
    %3168 = vmatpush.msra.mxu0 %v2801
    %3169 = vmatpush.msra.mxu0 %v2799
    %3170 = vmatpush.msra.mxu0 %v2797
    %3171 = vmatpush.msra.mxu0 %v2795
    %3172 = vmatpush.msra.mxu0 %v2793
    %3173 = vmatpush.msra.mxu0 %v2791
    %3174 = vmatpush.msra.mxu0 %v2789
    %3175 = vmatmul.f32.gmra.mxu0 %v2692
    %v3176 = vpop.f32.mrf.mxu0
    %v3177 = vadd.f32 %v3064, %v3176
    %3178 = vmatmul.f32.gmra.mxu0 %v2694
    %v3179 = vpop.f32.mrf.mxu0
    %v3180 = vadd.f32 %v3067, %v3179
    %3181 = vmatmul.f32.gmra.mxu0 %v2696
    %v3182 = vpop.f32.mrf.mxu0
    %v3183 = vadd.f32 %v3070, %v3182
    %3184 = vmatmul.f32.gmra.mxu0 %v2698
    %v3185 = vpop.f32.mrf.mxu0
    %v3186 = vadd.f32 %v3073, %v3185
    %3187 = vmatmul.f32.gmra.mxu0 %v2700
    %v3188 = vpop.f32.mrf.mxu0
    %v3189 = vadd.f32 %v3076, %v3188
    %3190 = vmatmul.f32.gmra.mxu0 %v2702
    %v3191 = vpop.f32.mrf.mxu0
    %v3192 = vadd.f32 %v3079, %v3191
    %3193 = vmatmul.f32.gmra.mxu0 %v2704
    %v3194 = vpop.f32.mrf.mxu0
    %v3195 = vadd.f32 %v3082, %v3194
    %3196 = vmatmul.f32.gmra.mxu0 %v2706
    %v3197 = vpop.f32.mrf.mxu0
    %v3198 = vadd.f32 %v3085, %v3197
    %3199 = vmatmul.f32.gmra.mxu0 %v2708
    %v3200 = vpop.f32.mrf.mxu0
    %v3201 = vadd.f32 %v3088, %v3200
    %3202 = vmatmul.f32.gmra.mxu0 %v2710
    %v3203 = vpop.f32.mrf.mxu0
    %v3204 = vadd.f32 %v3091, %v3203
    %3205 = vmatmul.f32.gmra.mxu0 %v2712
    %v3206 = vpop.f32.mrf.mxu0
    %v3207 = vadd.f32 %v3094, %v3206
    %3208 = vmatmul.f32.gmra.mxu0 %v2714
    %v3209 = vpop.f32.mrf.mxu0
    %v3210 = vadd.f32 %v3097, %v3209
    %3211 = vmatmul.f32.gmra.mxu0 %v2716
    %v3212 = vpop.f32.mrf.mxu0
    %v3213 = vadd.f32 %v3100, %v3212
    %3214 = vmatmul.f32.gmra.mxu0 %v2718
    %v3215 = vpop.f32.mrf.mxu0
    %v3216 = vadd.f32 %v3103, %v3215
    %3217 = vmatmul.f32.gmra.mxu0 %v2720
    %v3218 = vpop.f32.mrf.mxu0
    %v3219 = vadd.f32 %v3106, %v3218
    %3220 = vmatmul.f32.gmra.mxu0 %v2722
    %v3221 = vpop.f32.mrf.mxu0
    %v3222 = vadd.f32 %v3109, %v3221
    %3223 = vmatmul.f32.gmra.mxu0 %v2724
    %v3224 = vpop.f32.mrf.mxu0
    %v3225 = vadd.f32 %v3112, %v3224
    %3226 = vmatmul.f32.gmra.mxu0 %v2726
    %v3227 = vpop.f32.mrf.mxu0
    %v3228 = vadd.f32 %v3115, %v3227
    %3229 = vmatmul.f32.gmra.mxu0 %v2728
    %v3230 = vpop.f32.mrf.mxu0
    %v3231 = vadd.f32 %v3118, %v3230
    %3232 = vmatmul.f32.gmra.mxu0 %v2730
    %v3233 = vpop.f32.mrf.mxu0
    %v3234 = vadd.f32 %v3121, %v3233
    %3235 = vmatmul.f32.gmra.mxu0 %v2732
    %v3236 = vpop.f32.mrf.mxu0
    %v3237 = vadd.f32 %v3124, %v3236
    %3238 = vmatmul.f32.gmra.mxu0 %v2734
    %v3239 = vpop.f32.mrf.mxu0
    %v3240 = vadd.f32 %v3127, %v3239
    %3241 = vmatmul.f32.gmra.mxu0 %v2736
    %v3242 = vpop.f32.mrf.mxu0
    %v3243 = vadd.f32 %v3130, %v3242
    %3244 = vmatmul.f32.gmra.mxu0 %v2738
    %v3245 = vpop.f32.mrf.mxu0
    %v3246 = vadd.f32 %v3133, %v3245
    %3247 = vmatmul.f32.gmra.mxu0 %v2740
    %v3248 = vpop.f32.mrf.mxu0
    %v3249 = vadd.f32 %v3136, %v3248
    %3250 = vmatmul.f32.gmra.mxu0 %v2742
    %v3251 = vpop.f32.mrf.mxu0
    %v3252 = vadd.f32 %v3139, %v3251
    %3253 = vmatmul.f32.gmra.mxu0 %v2744
    %v3254 = vpop.f32.mrf.mxu0
    %v3255 = vadd.f32 %v3142, %v3254
    %3256 = vmatmul.f32.gmra.mxu0 %v2746
    %v3257 = vpop.f32.mrf.mxu0
    %v3258 = vadd.f32 %v3145, %v3257
    %3259 = vmatmul.f32.gmra.mxu0 %v2748
    %v3260 = vpop.f32.mrf.mxu0
    %v3261 = vadd.f32 %v3148, %v3260
    %3262 = vmatmul.f32.gmra.mxu0 %v2750
    %v3263 = vpop.f32.mrf.mxu0
    %v3264 = vadd.f32 %v3151, %v3263
    %3265 = vmatmul.f32.gmra.mxu0 %v2752
    %v3266 = vpop.f32.mrf.mxu0
    %v3267 = vadd.f32 %v3154, %v3266
    %3268 = vmatmul.f32.gmra.mxu0 %v2754
    %v3269 = vpop.f32.mrf.mxu0
    %v3270 = vadd.f32 %v3157, %v3269
    %3271 = vdwg.mxu0
    %v3272 = vadd.f32 %v2563, %v2951
    %v3273 = vadd.f32 %v2564, %v3177
    %v3274 = vadd.f32 %v2565, %v2954
    %v3275 = vadd.f32 %v2566, %v3180
    %v3276 = vadd.f32 %v2567, %v2957
    %v3277 = vadd.f32 %v2568, %v3183
    %v3278 = vadd.f32 %v2569, %v2960
    %v3279 = vadd.f32 %v2570, %v3186
    %v3280 = vadd.f32 %v2571, %v2963
    %v3281 = vadd.f32 %v2572, %v3189
    %v3282 = vadd.f32 %v2573, %v2966
    %v3283 = vadd.f32 %v2574, %v3192
    %v3284 = vadd.f32 %v2575, %v2969
    %v3285 = vadd.f32 %v2576, %v3195
    %v3286 = vadd.f32 %v2577, %v2972
    %v3287 = vadd.f32 %v2578, %v3198
    %v3288 = vadd.f32 %v2579, %v2975
    %v3289 = vadd.f32 %v2580, %v3201
    %v3290 = vadd.f32 %v2581, %v2978
    %v3291 = vadd.f32 %v2582, %v3204
    %v3292 = vadd.f32 %v2583, %v2981
    %v3293 = vadd.f32 %v2584, %v3207
    %v3294 = vadd.f32 %v2585, %v2984
    %v3295 = vadd.f32 %v2586, %v3210
    %v3296 = vadd.f32 %v2587, %v2987
    %v3297 = vadd.f32 %v2588, %v3213
    %v3298 = vadd.f32 %v2589, %v2990
    %v3299 = vadd.f32 %v2590, %v3216
    %v3300 = vadd.f32 %v2591, %v2993
    %v3301 = vadd.f32 %v2592, %v3219
    %v3302 = vadd.f32 %v2593, %v2996
    %v3303 = vadd.f32 %v2594, %v3222
    %v3304 = vadd.f32 %v2595, %v2999
    %v3305 = vadd.f32 %v2596, %v3225
    %v3306 = vadd.f32 %v2597, %v3002
    %v3307 = vadd.f32 %v2598, %v3228
    %v3308 = vadd.f32 %v2599, %v3005
    %v3309 = vadd.f32 %v2600, %v3231
    %v3310 = vadd.f32 %v2601, %v3008
    %v3311 = vadd.f32 %v2602, %v3234
    %v3312 = vadd.f32 %v2603, %v3011
    %v3313 = vadd.f32 %v2604, %v3237
    %v3314 = vadd.f32 %v2605, %v3014
    %v3315 = vadd.f32 %v2606, %v3240
    %v3316 = vadd.f32 %v2607, %v3017
    %v3317 = vadd.f32 %v2608, %v3243
    %v3318 = vadd.f32 %v2609, %v3020
    %v3319 = vadd.f32 %v2610, %v3246
    %v3320 = vadd.f32 %v2611, %v3023
    %v3321 = vadd.f32 %v2612, %v3249
    %v3322 = vadd.f32 %v2613, %v3026
    %v3323 = vadd.f32 %v2614, %v3252
    %v3324 = vadd.f32 %v2615, %v3029
    %v3325 = vadd.f32 %v2616, %v3255
    %v3326 = vadd.f32 %v2617, %v3032
    %v3327 = vadd.f32 %v2618, %v3258
    %v3328 = vadd.f32 %v2619, %v3035
    %v3329 = vadd.f32 %v2620, %v3261
    %v3330 = vadd.f32 %v2621, %v3038
    %v3331 = vadd.f32 %v2622, %v3264
    %v3332 = vadd.f32 %v2623, %v3041
    %v3333 = vadd.f32 %v2624, %v3267
    %v3334 = vadd.f32 %v2625, %v3044
    %v3335 = vadd.f32 %v2626, %v3270
    %s3336 = scalar_lea.vmem %s1, 2048
    %v3337 = vld [vmem:[%s3336] sm:$0xff]
    %v3338 = vld [vmem:[%s3336 + $0x8] sm:$0xff]
    %v3339 = vld [vmem:[%s3336 + $0x10] sm:$0xff]
    %v3340 = vld [vmem:[%s3336 + $0x18] sm:$0xff]
    %v3341 = vld [vmem:[%s3336 + $0x20] sm:$0xff]
    %v3342 = vld [vmem:[%s3336 + $0x28] sm:$0xff]
    %v3343 = vld [vmem:[%s3336 + $0x30] sm:$0xff]
    %v3344 = vld [vmem:[%s3336 + $0x38] sm:$0xff]
    %v3345 = vld [vmem:[%s3336 + $0x40] sm:$0xff]
    %v3346 = vld [vmem:[%s3336 + $0x48] sm:$0xff]
    %v3347 = vld [vmem:[%s3336 + $0x50] sm:$0xff]
    %v3348 = vld [vmem:[%s3336 + $0x58] sm:$0xff]
    %v3349 = vld [vmem:[%s3336 + $0x60] sm:$0xff]
    %v3350 = vld [vmem:[%s3336 + $0x68] sm:$0xff]
    %v3351 = vld [vmem:[%s3336 + $0x70] sm:$0xff]
    %v3352 = vld [vmem:[%s3336 + $0x78] sm:$0xff]
    %v3353 = vld [vmem:[%s3336 + $0x80] sm:$0xff]
    %v3354 = vld [vmem:[%s3336 + $0x88] sm:$0xff]
    %v3355 = vld [vmem:[%s3336 + $0x90] sm:$0xff]
    %v3356 = vld [vmem:[%s3336 + $0x98] sm:$0xff]
    %v3357 = vld [vmem:[%s3336 + $0xa0] sm:$0xff]
    %v3358 = vld [vmem:[%s3336 + $0xa8] sm:$0xff]
    %v3359 = vld [vmem:[%s3336 + $0xb0] sm:$0xff]
    %v3360 = vld [vmem:[%s3336 + $0xb8] sm:$0xff]
    %v3361 = vld [vmem:[%s3336 + $0xc0] sm:$0xff]
    %v3362 = vld [vmem:[%s3336 + $0xc8] sm:$0xff]
    %v3363 = vld [vmem:[%s3336 + $0xd0] sm:$0xff]
    %v3364 = vld [vmem:[%s3336 + $0xd8] sm:$0xff]
    %v3365 = vld [vmem:[%s3336 + $0xe0] sm:$0xff]
    %v3366 = vld [vmem:[%s3336 + $0xe8] sm:$0xff]
    %v3367 = vld [vmem:[%s3336 + $0xf0] sm:$0xff]
    %v3368 = vld [vmem:[%s3336 + $0xf8] sm:$0xff]
    %v3369 = vld [vmem:[%s3336 + $0x100] sm:$0xff]
    %v3370 = vld [vmem:[%s3336 + $0x108] sm:$0xff]
    %v3371 = vld [vmem:[%s3336 + $0x110] sm:$0xff]
    %v3372 = vld [vmem:[%s3336 + $0x118] sm:$0xff]
    %v3373 = vld [vmem:[%s3336 + $0x120] sm:$0xff]
    %v3374 = vld [vmem:[%s3336 + $0x128] sm:$0xff]
    %v3375 = vld [vmem:[%s3336 + $0x130] sm:$0xff]
    %v3376 = vld [vmem:[%s3336 + $0x138] sm:$0xff]
    %v3377 = vld [vmem:[%s3336 + $0x140] sm:$0xff]
    %v3378 = vld [vmem:[%s3336 + $0x148] sm:$0xff]
    %v3379 = vld [vmem:[%s3336 + $0x150] sm:$0xff]
    %v3380 = vld [vmem:[%s3336 + $0x158] sm:$0xff]
    %v3381 = vld [vmem:[%s3336 + $0x160] sm:$0xff]
    %v3382 = vld [vmem:[%s3336 + $0x168] sm:$0xff]
    %v3383 = vld [vmem:[%s3336 + $0x170] sm:$0xff]
    %v3384 = vld [vmem:[%s3336 + $0x178] sm:$0xff]
    %v3385 = vld [vmem:[%s3336 + $0x180] sm:$0xff]
    %v3386 = vld [vmem:[%s3336 + $0x188] sm:$0xff]
    %v3387 = vld [vmem:[%s3336 + $0x190] sm:$0xff]
    %v3388 = vld [vmem:[%s3336 + $0x198] sm:$0xff]
    %v3389 = vld [vmem:[%s3336 + $0x1a0] sm:$0xff]
    %v3390 = vld [vmem:[%s3336 + $0x1a8] sm:$0xff]
    %v3391 = vld [vmem:[%s3336 + $0x1b0] sm:$0xff]
    %v3392 = vld [vmem:[%s3336 + $0x1b8] sm:$0xff]
    %v3393 = vld [vmem:[%s3336 + $0x1c0] sm:$0xff]
    %v3394 = vld [vmem:[%s3336 + $0x1c8] sm:$0xff]
    %v3395 = vld [vmem:[%s3336 + $0x1d0] sm:$0xff]
    %v3396 = vld [vmem:[%s3336 + $0x1d8] sm:$0xff]
    %v3397 = vld [vmem:[%s3336 + $0x1e0] sm:$0xff]
    %v3398 = vld [vmem:[%s3336 + $0x1e8] sm:$0xff]
    %v3399 = vld [vmem:[%s3336 + $0x1f0] sm:$0xff]
    %v3400 = vld [vmem:[%s3336 + $0x1f8] sm:$0xff]
    %3401 = vmatpush.msra.mxu0 %v3367
    %3402 = vmatpush.msra.mxu0 %v3365
    %3403 = vmatpush.msra.mxu0 %v3363
    %3404 = vmatpush.msra.mxu0 %v3361
    %3405 = vmatpush.msra.mxu0 %v3359
    %3406 = vmatpush.msra.mxu0 %v3357
    %3407 = vmatpush.msra.mxu0 %v3355
    %3408 = vmatpush.msra.mxu0 %v3353
    %3409 = vmatpush.msra.mxu0 %v3351
    %3410 = vmatpush.msra.mxu0 %v3349
    %3411 = vmatpush.msra.mxu0 %v3347
    %3412 = vmatpush.msra.mxu0 %v3345
    %3413 = vmatpush.msra.mxu0 %v3343
    %3414 = vmatpush.msra.mxu0 %v3341
    %3415 = vmatpush.msra.mxu0 %v3339
    %3416 = vmatpush.msra.mxu0 %v3337
    %3417 = vmatmul.f32.gmra.mxu0 %v18
    %v3418 = vpop.f32.mrf.mxu0
    %v3419 = vadd.f32 0.0, %v3418
    %3420 = vmatmul.f32.gmra.mxu0 %v20
    %v3421 = vpop.f32.mrf.mxu0
    %v3422 = vadd.f32 0.0, %v3421
    %3423 = vmatmul.f32.gmra.mxu0 %v22
    %v3424 = vpop.f32.mrf.mxu0
    %v3425 = vadd.f32 0.0, %v3424
    %3426 = vmatmul.f32.gmra.mxu0 %v24
    %v3427 = vpop.f32.mrf.mxu0
    %v3428 = vadd.f32 0.0, %v3427
    %3429 = vmatmul.f32.gmra.mxu0 %v26
    %v3430 = vpop.f32.mrf.mxu0
    %v3431 = vadd.f32 0.0, %v3430
    %3432 = vmatmul.f32.gmra.mxu0 %v28
    %v3433 = vpop.f32.mrf.mxu0
    %v3434 = vadd.f32 0.0, %v3433
    %3435 = vmatmul.f32.gmra.mxu0 %v30
    %v3436 = vpop.f32.mrf.mxu0
    %v3437 = vadd.f32 0.0, %v3436
    %3438 = vmatmul.f32.gmra.mxu0 %v32
    %v3439 = vpop.f32.mrf.mxu0
    %v3440 = vadd.f32 0.0, %v3439
    %3441 = vmatmul.f32.gmra.mxu0 %v34
    %v3442 = vpop.f32.mrf.mxu0
    %v3443 = vadd.f32 0.0, %v3442
    %3444 = vmatmul.f32.gmra.mxu0 %v36
    %v3445 = vpop.f32.mrf.mxu0
    %v3446 = vadd.f32 0.0, %v3445
    %3447 = vmatmul.f32.gmra.mxu0 %v38
    %v3448 = vpop.f32.mrf.mxu0
    %v3449 = vadd.f32 0.0, %v3448
    %3450 = vmatmul.f32.gmra.mxu0 %v40
    %v3451 = vpop.f32.mrf.mxu0
    %v3452 = vadd.f32 0.0, %v3451
    %3453 = vmatmul.f32.gmra.mxu0 %v42
    %v3454 = vpop.f32.mrf.mxu0
    %v3455 = vadd.f32 0.0, %v3454
    %3456 = vmatmul.f32.gmra.mxu0 %v44
    %v3457 = vpop.f32.mrf.mxu0
    %v3458 = vadd.f32 0.0, %v3457
    %3459 = vmatmul.f32.gmra.mxu0 %v46
    %v3460 = vpop.f32.mrf.mxu0
    %v3461 = vadd.f32 0.0, %v3460
    %3462 = vmatmul.f32.gmra.mxu0 %v48
    %v3463 = vpop.f32.mrf.mxu0
    %v3464 = vadd.f32 0.0, %v3463
    %3465 = vmatmul.f32.gmra.mxu0 %v50
    %v3466 = vpop.f32.mrf.mxu0
    %v3467 = vadd.f32 0.0, %v3466
    %3468 = vmatmul.f32.gmra.mxu0 %v52
    %v3469 = vpop.f32.mrf.mxu0
    %v3470 = vadd.f32 0.0, %v3469
    %3471 = vmatmul.f32.gmra.mxu0 %v54
    %v3472 = vpop.f32.mrf.mxu0
    %v3473 = vadd.f32 0.0, %v3472
    %3474 = vmatmul.f32.gmra.mxu0 %v56
    %v3475 = vpop.f32.mrf.mxu0
    %v3476 = vadd.f32 0.0, %v3475
    %3477 = vmatmul.f32.gmra.mxu0 %v58
    %v3478 = vpop.f32.mrf.mxu0
    %v3479 = vadd.f32 0.0, %v3478
    %3480 = vmatmul.f32.gmra.mxu0 %v60
    %v3481 = vpop.f32.mrf.mxu0
    %v3482 = vadd.f32 0.0, %v3481
    %3483 = vmatmul.f32.gmra.mxu0 %v62
    %v3484 = vpop.f32.mrf.mxu0
    %v3485 = vadd.f32 0.0, %v3484
    %3486 = vmatmul.f32.gmra.mxu0 %v64
    %v3487 = vpop.f32.mrf.mxu0
    %v3488 = vadd.f32 0.0, %v3487
    %3489 = vmatmul.f32.gmra.mxu0 %v66
    %v3490 = vpop.f32.mrf.mxu0
    %v3491 = vadd.f32 0.0, %v3490
    %3492 = vmatmul.f32.gmra.mxu0 %v68
    %v3493 = vpop.f32.mrf.mxu0
    %v3494 = vadd.f32 0.0, %v3493
    %3495 = vmatmul.f32.gmra.mxu0 %v70
    %v3496 = vpop.f32.mrf.mxu0
    %v3497 = vadd.f32 0.0, %v3496
    %3498 = vmatmul.f32.gmra.mxu0 %v72
    %v3499 = vpop.f32.mrf.mxu0
    %v3500 = vadd.f32 0.0, %v3499
    %3501 = vmatmul.f32.gmra.mxu0 %v74
    %v3502 = vpop.f32.mrf.mxu0
    %v3503 = vadd.f32 0.0, %v3502
    %3504 = vmatmul.f32.gmra.mxu0 %v76
    %v3505 = vpop.f32.mrf.mxu0
    %v3506 = vadd.f32 0.0, %v3505
    %3507 = vmatmul.f32.gmra.mxu0 %v78
    %v3508 = vpop.f32.mrf.mxu0
    %v3509 = vadd.f32 0.0, %v3508
    %3510 = vmatmul.f32.gmra.mxu0 %v80
    %v3511 = vpop.f32.mrf.mxu0
    %v3512 = vadd.f32 0.0, %v3511
    %3513 = vdwg.mxu0
    %3514 = vmatpush.msra.mxu0 %v3399
    %3515 = vmatpush.msra.mxu0 %v3397
    %3516 = vmatpush.msra.mxu0 %v3395
    %3517 = vmatpush.msra.mxu0 %v3393
    %3518 = vmatpush.msra.mxu0 %v3391
    %3519 = vmatpush.msra.mxu0 %v3389
    %3520 = vmatpush.msra.mxu0 %v3387
    %3521 = vmatpush.msra.mxu0 %v3385
    %3522 = vmatpush.msra.mxu0 %v3383
    %3523 = vmatpush.msra.mxu0 %v3381
    %3524 = vmatpush.msra.mxu0 %v3379
    %3525 = vmatpush.msra.mxu0 %v3377
    %3526 = vmatpush.msra.mxu0 %v3375
    %3527 = vmatpush.msra.mxu0 %v3373
    %3528 = vmatpush.msra.mxu0 %v3371
    %3529 = vmatpush.msra.mxu0 %v3369
    %3530 = vmatmul.f32.gmra.mxu0 %v19
    %v3531 = vpop.f32.mrf.mxu0
    %v3532 = vadd.f32 %v3419, %v3531
    %3533 = vmatmul.f32.gmra.mxu0 %v21
    %v3534 = vpop.f32.mrf.mxu0
    %v3535 = vadd.f32 %v3422, %v3534
    %3536 = vmatmul.f32.gmra.mxu0 %v23
    %v3537 = vpop.f32.mrf.mxu0
    %v3538 = vadd.f32 %v3425, %v3537
    %3539 = vmatmul.f32.gmra.mxu0 %v25
    %v3540 = vpop.f32.mrf.mxu0
    %v3541 = vadd.f32 %v3428, %v3540
    %3542 = vmatmul.f32.gmra.mxu0 %v27
    %v3543 = vpop.f32.mrf.mxu0
    %v3544 = vadd.f32 %v3431, %v3543
    %3545 = vmatmul.f32.gmra.mxu0 %v29
    %v3546 = vpop.f32.mrf.mxu0
    %v3547 = vadd.f32 %v3434, %v3546
    %3548 = vmatmul.f32.gmra.mxu0 %v31
    %v3549 = vpop.f32.mrf.mxu0
    %v3550 = vadd.f32 %v3437, %v3549
    %3551 = vmatmul.f32.gmra.mxu0 %v33
    %v3552 = vpop.f32.mrf.mxu0
    %v3553 = vadd.f32 %v3440, %v3552
    %3554 = vmatmul.f32.gmra.mxu0 %v35
    %v3555 = vpop.f32.mrf.mxu0
    %v3556 = vadd.f32 %v3443, %v3555
    %3557 = vmatmul.f32.gmra.mxu0 %v37
    %v3558 = vpop.f32.mrf.mxu0
    %v3559 = vadd.f32 %v3446, %v3558
    %3560 = vmatmul.f32.gmra.mxu0 %v39
    %v3561 = vpop.f32.mrf.mxu0
    %v3562 = vadd.f32 %v3449, %v3561
    %3563 = vmatmul.f32.gmra.mxu0 %v41
    %v3564 = vpop.f32.mrf.mxu0
    %v3565 = vadd.f32 %v3452, %v3564
    %3566 = vmatmul.f32.gmra.mxu0 %v43
    %v3567 = vpop.f32.mrf.mxu0
    %v3568 = vadd.f32 %v3455, %v3567
    %3569 = vmatmul.f32.gmra.mxu0 %v45
    %v3570 = vpop.f32.mrf.mxu0
    %v3571 = vadd.f32 %v3458, %v3570
    %3572 = vmatmul.f32.gmra.mxu0 %v47
    %v3573 = vpop.f32.mrf.mxu0
    %v3574 = vadd.f32 %v3461, %v3573
    %3575 = vmatmul.f32.gmra.mxu0 %v49
    %v3576 = vpop.f32.mrf.mxu0
    %v3577 = vadd.f32 %v3464, %v3576
    %3578 = vmatmul.f32.gmra.mxu0 %v51
    %v3579 = vpop.f32.mrf.mxu0
    %v3580 = vadd.f32 %v3467, %v3579
    %3581 = vmatmul.f32.gmra.mxu0 %v53
    %v3582 = vpop.f32.mrf.mxu0
    %v3583 = vadd.f32 %v3470, %v3582
    %3584 = vmatmul.f32.gmra.mxu0 %v55
    %v3585 = vpop.f32.mrf.mxu0
    %v3586 = vadd.f32 %v3473, %v3585
    %3587 = vmatmul.f32.gmra.mxu0 %v57
    %v3588 = vpop.f32.mrf.mxu0
    %v3589 = vadd.f32 %v3476, %v3588
    %3590 = vmatmul.f32.gmra.mxu0 %v59
    %v3591 = vpop.f32.mrf.mxu0
    %v3592 = vadd.f32 %v3479, %v3591
    %3593 = vmatmul.f32.gmra.mxu0 %v61
    %v3594 = vpop.f32.mrf.mxu0
    %v3595 = vadd.f32 %v3482, %v3594
    %3596 = vmatmul.f32.gmra.mxu0 %v63
    %v3597 = vpop.f32.mrf.mxu0
    %v3598 = vadd.f32 %v3485, %v3597
    %3599 = vmatmul.f32.gmra.mxu0 %v65
    %v3600 = vpop.f32.mrf.mxu0
    %v3601 = vadd.f32 %v3488, %v3600
    %3602 = vmatmul.f32.gmra.mxu0 %v67
    %v3603 = vpop.f32.mrf.mxu0
    %v3604 = vadd.f32 %v3491, %v3603
    %3605 = vmatmul.f32.gmra.mxu0 %v69
    %v3606 = vpop.f32.mrf.mxu0
    %v3607 = vadd.f32 %v3494, %v3606
    %3608 = vmatmul.f32.gmra.mxu0 %v71
    %v3609 = vpop.f32.mrf.mxu0
    %v3610 = vadd.f32 %v3497, %v3609
    %3611 = vmatmul.f32.gmra.mxu0 %v73
    %v3612 = vpop.f32.mrf.mxu0
    %v3613 = vadd.f32 %v3500, %v3612
    %3614 = vmatmul.f32.gmra.mxu0 %v75
    %v3615 = vpop.f32.mrf.mxu0
    %v3616 = vadd.f32 %v3503, %v3615
    %3617 = vmatmul.f32.gmra.mxu0 %v77
    %v3618 = vpop.f32.mrf.mxu0
    %v3619 = vadd.f32 %v3506, %v3618
    %3620 = vmatmul.f32.gmra.mxu0 %v79
    %v3621 = vpop.f32.mrf.mxu0
    %v3622 = vadd.f32 %v3509, %v3621
    %3623 = vmatmul.f32.gmra.mxu0 %v81
    %v3624 = vpop.f32.mrf.mxu0
    %v3625 = vadd.f32 %v3512, %v3624
    %3626 = vdwg.mxu0
    %3627 = vmatpush.msra.mxu0 %v3368
    %3628 = vmatpush.msra.mxu0 %v3366
    %3629 = vmatpush.msra.mxu0 %v3364
    %3630 = vmatpush.msra.mxu0 %v3362
    %3631 = vmatpush.msra.mxu0 %v3360
    %3632 = vmatpush.msra.mxu0 %v3358
    %3633 = vmatpush.msra.mxu0 %v3356
    %3634 = vmatpush.msra.mxu0 %v3354
    %3635 = vmatpush.msra.mxu0 %v3352
    %3636 = vmatpush.msra.mxu0 %v3350
    %3637 = vmatpush.msra.mxu0 %v3348
    %3638 = vmatpush.msra.mxu0 %v3346
    %3639 = vmatpush.msra.mxu0 %v3344
    %3640 = vmatpush.msra.mxu0 %v3342
    %3641 = vmatpush.msra.mxu0 %v3340
    %3642 = vmatpush.msra.mxu0 %v3338
    %3643 = vmatmul.f32.gmra.mxu0 %v18
    %v3644 = vpop.f32.mrf.mxu0
    %v3645 = vadd.f32 0.0, %v3644
    %3646 = vmatmul.f32.gmra.mxu0 %v20
    %v3647 = vpop.f32.mrf.mxu0
    %v3648 = vadd.f32 0.0, %v3647
    %3649 = vmatmul.f32.gmra.mxu0 %v22
    %v3650 = vpop.f32.mrf.mxu0
    %v3651 = vadd.f32 0.0, %v3650
    %3652 = vmatmul.f32.gmra.mxu0 %v24
    %v3653 = vpop.f32.mrf.mxu0
    %v3654 = vadd.f32 0.0, %v3653
    %3655 = vmatmul.f32.gmra.mxu0 %v26
    %v3656 = vpop.f32.mrf.mxu0
    %v3657 = vadd.f32 0.0, %v3656
    %3658 = vmatmul.f32.gmra.mxu0 %v28
    %v3659 = vpop.f32.mrf.mxu0
    %v3660 = vadd.f32 0.0, %v3659
    %3661 = vmatmul.f32.gmra.mxu0 %v30
    %v3662 = vpop.f32.mrf.mxu0
    %v3663 = vadd.f32 0.0, %v3662
    %3664 = vmatmul.f32.gmra.mxu0 %v32
    %v3665 = vpop.f32.mrf.mxu0
    %v3666 = vadd.f32 0.0, %v3665
    %3667 = vmatmul.f32.gmra.mxu0 %v34
    %v3668 = vpop.f32.mrf.mxu0
    %v3669 = vadd.f32 0.0, %v3668
    %3670 = vmatmul.f32.gmra.mxu0 %v36
    %v3671 = vpop.f32.mrf.mxu0
    %v3672 = vadd.f32 0.0, %v3671
    %3673 = vmatmul.f32.gmra.mxu0 %v38
    %v3674 = vpop.f32.mrf.mxu0
    %v3675 = vadd.f32 0.0, %v3674
    %3676 = vmatmul.f32.gmra.mxu0 %v40
    %v3677 = vpop.f32.mrf.mxu0
    %v3678 = vadd.f32 0.0, %v3677
    %3679 = vmatmul.f32.gmra.mxu0 %v42
    %v3680 = vpop.f32.mrf.mxu0
    %v3681 = vadd.f32 0.0, %v3680
    %3682 = vmatmul.f32.gmra.mxu0 %v44
    %v3683 = vpop.f32.mrf.mxu0
    %v3684 = vadd.f32 0.0, %v3683
    %3685 = vmatmul.f32.gmra.mxu0 %v46
    %v3686 = vpop.f32.mrf.mxu0
    %v3687 = vadd.f32 0.0, %v3686
    %3688 = vmatmul.f32.gmra.mxu0 %v48
    %v3689 = vpop.f32.mrf.mxu0
    %v3690 = vadd.f32 0.0, %v3689
    %3691 = vmatmul.f32.gmra.mxu0 %v50
    %v3692 = vpop.f32.mrf.mxu0
    %v3693 = vadd.f32 0.0, %v3692
    %3694 = vmatmul.f32.gmra.mxu0 %v52
    %v3695 = vpop.f32.mrf.mxu0
    %v3696 = vadd.f32 0.0, %v3695
    %3697 = vmatmul.f32.gmra.mxu0 %v54
    %v3698 = vpop.f32.mrf.mxu0
    %v3699 = vadd.f32 0.0, %v3698
    %3700 = vmatmul.f32.gmra.mxu0 %v56
    %v3701 = vpop.f32.mrf.mxu0
    %v3702 = vadd.f32 0.0, %v3701
    %3703 = vmatmul.f32.gmra.mxu0 %v58
    %v3704 = vpop.f32.mrf.mxu0
    %v3705 = vadd.f32 0.0, %v3704
    %3706 = vmatmul.f32.gmra.mxu0 %v60
    %v3707 = vpop.f32.mrf.mxu0
    %v3708 = vadd.f32 0.0, %v3707
    %3709 = vmatmul.f32.gmra.mxu0 %v62
    %v3710 = vpop.f32.mrf.mxu0
    %v3711 = vadd.f32 0.0, %v3710
    %3712 = vmatmul.f32.gmra.mxu0 %v64
    %v3713 = vpop.f32.mrf.mxu0
    %v3714 = vadd.f32 0.0, %v3713
    %3715 = vmatmul.f32.gmra.mxu0 %v66
    %v3716 = vpop.f32.mrf.mxu0
    %v3717 = vadd.f32 0.0, %v3716
    %3718 = vmatmul.f32.gmra.mxu0 %v68
    %v3719 = vpop.f32.mrf.mxu0
    %v3720 = vadd.f32 0.0, %v3719
    %3721 = vmatmul.f32.gmra.mxu0 %v70
    %v3722 = vpop.f32.mrf.mxu0
    %v3723 = vadd.f32 0.0, %v3722
    %3724 = vmatmul.f32.gmra.mxu0 %v72
    %v3725 = vpop.f32.mrf.mxu0
    %v3726 = vadd.f32 0.0, %v3725
    %3727 = vmatmul.f32.gmra.mxu0 %v74
    %v3728 = vpop.f32.mrf.mxu0
    %v3729 = vadd.f32 0.0, %v3728
    %3730 = vmatmul.f32.gmra.mxu0 %v76
    %v3731 = vpop.f32.mrf.mxu0
    %v3732 = vadd.f32 0.0, %v3731
    %3733 = vmatmul.f32.gmra.mxu0 %v78
    %v3734 = vpop.f32.mrf.mxu0
    %v3735 = vadd.f32 0.0, %v3734
    %3736 = vmatmul.f32.gmra.mxu0 %v80
    %v3737 = vpop.f32.mrf.mxu0
    %v3738 = vadd.f32 0.0, %v3737
    %3739 = vdwg.mxu0
    %3740 = vmatpush.msra.mxu0 %v3400
    %3741 = vmatpush.msra.mxu0 %v3398
    %3742 = vmatpush.msra.mxu0 %v3396
    %3743 = vmatpush.msra.mxu0 %v3394
    %3744 = vmatpush.msra.mxu0 %v3392
    %3745 = vmatpush.msra.mxu0 %v3390
    %3746 = vmatpush.msra.mxu0 %v3388
    %3747 = vmatpush.msra.mxu0 %v3386
    %3748 = vmatpush.msra.mxu0 %v3384
    %3749 = vmatpush.msra.mxu0 %v3382
    %3750 = vmatpush.msra.mxu0 %v3380
    %3751 = vmatpush.msra.mxu0 %v3378
    %3752 = vmatpush.msra.mxu0 %v3376
    %3753 = vmatpush.msra.mxu0 %v3374
    %3754 = vmatpush.msra.mxu0 %v3372
    %3755 = vmatpush.msra.mxu0 %v3370
    %3756 = vmatmul.f32.gmra.mxu0 %v19
    %v3757 = vpop.f32.mrf.mxu0
    %v3758 = vadd.f32 %v3645, %v3757
    %3759 = vmatmul.f32.gmra.mxu0 %v21
    %v3760 = vpop.f32.mrf.mxu0
    %v3761 = vadd.f32 %v3648, %v3760
    %3762 = vmatmul.f32.gmra.mxu0 %v23
    %v3763 = vpop.f32.mrf.mxu0
    %v3764 = vadd.f32 %v3651, %v3763
    %3765 = vmatmul.f32.gmra.mxu0 %v25
    %v3766 = vpop.f32.mrf.mxu0
    %v3767 = vadd.f32 %v3654, %v3766
    %3768 = vmatmul.f32.gmra.mxu0 %v27
    %v3769 = vpop.f32.mrf.mxu0
    %v3770 = vadd.f32 %v3657, %v3769
    %3771 = vmatmul.f32.gmra.mxu0 %v29
    %v3772 = vpop.f32.mrf.mxu0
    %v3773 = vadd.f32 %v3660, %v3772
    %3774 = vmatmul.f32.gmra.mxu0 %v31
    %v3775 = vpop.f32.mrf.mxu0
    %v3776 = vadd.f32 %v3663, %v3775
    %3777 = vmatmul.f32.gmra.mxu0 %v33
    %v3778 = vpop.f32.mrf.mxu0
    %v3779 = vadd.f32 %v3666, %v3778
    %3780 = vmatmul.f32.gmra.mxu0 %v35
    %v3781 = vpop.f32.mrf.mxu0
    %v3782 = vadd.f32 %v3669, %v3781
    %3783 = vmatmul.f32.gmra.mxu0 %v37
    %v3784 = vpop.f32.mrf.mxu0
    %v3785 = vadd.f32 %v3672, %v3784
    %3786 = vmatmul.f32.gmra.mxu0 %v39
    %v3787 = vpop.f32.mrf.mxu0
    %v3788 = vadd.f32 %v3675, %v3787
    %3789 = vmatmul.f32.gmra.mxu0 %v41
    %v3790 = vpop.f32.mrf.mxu0
    %v3791 = vadd.f32 %v3678, %v3790
    %3792 = vmatmul.f32.gmra.mxu0 %v43
    %v3793 = vpop.f32.mrf.mxu0
    %v3794 = vadd.f32 %v3681, %v3793
    %3795 = vmatmul.f32.gmra.mxu0 %v45
    %v3796 = vpop.f32.mrf.mxu0
    %v3797 = vadd.f32 %v3684, %v3796
    %3798 = vmatmul.f32.gmra.mxu0 %v47
    %v3799 = vpop.f32.mrf.mxu0
    %v3800 = vadd.f32 %v3687, %v3799
    %3801 = vmatmul.f32.gmra.mxu0 %v49
    %v3802 = vpop.f32.mrf.mxu0
    %v3803 = vadd.f32 %v3690, %v3802
    %3804 = vmatmul.f32.gmra.mxu0 %v51
    %v3805 = vpop.f32.mrf.mxu0
    %v3806 = vadd.f32 %v3693, %v3805
    %3807 = vmatmul.f32.gmra.mxu0 %v53
    %v3808 = vpop.f32.mrf.mxu0
    %v3809 = vadd.f32 %v3696, %v3808
    %3810 = vmatmul.f32.gmra.mxu0 %v55
    %v3811 = vpop.f32.mrf.mxu0
    %v3812 = vadd.f32 %v3699, %v3811
    %3813 = vmatmul.f32.gmra.mxu0 %v57
    %v3814 = vpop.f32.mrf.mxu0
    %v3815 = vadd.f32 %v3702, %v3814
    %3816 = vmatmul.f32.gmra.mxu0 %v59
    %v3817 = vpop.f32.mrf.mxu0
    %v3818 = vadd.f32 %v3705, %v3817
    %3819 = vmatmul.f32.gmra.mxu0 %v61
    %v3820 = vpop.f32.mrf.mxu0
    %v3821 = vadd.f32 %v3708, %v3820
    %3822 = vmatmul.f32.gmra.mxu0 %v63
    %v3823 = vpop.f32.mrf.mxu0
    %v3824 = vadd.f32 %v3711, %v3823
    %3825 = vmatmul.f32.gmra.mxu0 %v65
    %v3826 = vpop.f32.mrf.mxu0
    %v3827 = vadd.f32 %v3714, %v3826
    %3828 = vmatmul.f32.gmra.mxu0 %v67
    %v3829 = vpop.f32.mrf.mxu0
    %v3830 = vadd.f32 %v3717, %v3829
    %3831 = vmatmul.f32.gmra.mxu0 %v69
    %v3832 = vpop.f32.mrf.mxu0
    %v3833 = vadd.f32 %v3720, %v3832
    %3834 = vmatmul.f32.gmra.mxu0 %v71
    %v3835 = vpop.f32.mrf.mxu0
    %v3836 = vadd.f32 %v3723, %v3835
    %3837 = vmatmul.f32.gmra.mxu0 %v73
    %v3838 = vpop.f32.mrf.mxu0
    %v3839 = vadd.f32 %v3726, %v3838
    %3840 = vmatmul.f32.gmra.mxu0 %v75
    %v3841 = vpop.f32.mrf.mxu0
    %v3842 = vadd.f32 %v3729, %v3841
    %3843 = vmatmul.f32.gmra.mxu0 %v77
    %v3844 = vpop.f32.mrf.mxu0
    %v3845 = vadd.f32 %v3732, %v3844
    %3846 = vmatmul.f32.gmra.mxu0 %v79
    %v3847 = vpop.f32.mrf.mxu0
    %v3848 = vadd.f32 %v3735, %v3847
    %3849 = vmatmul.f32.gmra.mxu0 %v81
    %v3850 = vpop.f32.mrf.mxu0
    %v3851 = vadd.f32 %v3738, %v3850
    %3852 = vdwg.mxu0
    %v3853 = vadd.f32 %v3272, %v3532
    %v3854 = vadd.f32 %v3273, %v3758
    %v3855 = vadd.f32 %v3274, %v3535
    %v3856 = vadd.f32 %v3275, %v3761
    %v3857 = vadd.f32 %v3276, %v3538
    %v3858 = vadd.f32 %v3277, %v3764
    %v3859 = vadd.f32 %v3278, %v3541
    %v3860 = vadd.f32 %v3279, %v3767
    %v3861 = vadd.f32 %v3280, %v3544
    %v3862 = vadd.f32 %v3281, %v3770
    %v3863 = vadd.f32 %v3282, %v3547
    %v3864 = vadd.f32 %v3283, %v3773
    %v3865 = vadd.f32 %v3284, %v3550
    %v3866 = vadd.f32 %v3285, %v3776
    %v3867 = vadd.f32 %v3286, %v3553
    %v3868 = vadd.f32 %v3287, %v3779
    %v3869 = vadd.f32 %v3288, %v3556
    %v3870 = vadd.f32 %v3289, %v3782
    %v3871 = vadd.f32 %v3290, %v3559
    %v3872 = vadd.f32 %v3291, %v3785
    %v3873 = vadd.f32 %v3292, %v3562
    %v3874 = vadd.f32 %v3293, %v3788
    %v3875 = vadd.f32 %v3294, %v3565
    %v3876 = vadd.f32 %v3295, %v3791
    %v3877 = vadd.f32 %v3296, %v3568
    %v3878 = vadd.f32 %v3297, %v3794
    %v3879 = vadd.f32 %v3298, %v3571
    %v3880 = vadd.f32 %v3299, %v3797
    %v3881 = vadd.f32 %v3300, %v3574
    %v3882 = vadd.f32 %v3301, %v3800
    %v3883 = vadd.f32 %v3302, %v3577
    %v3884 = vadd.f32 %v3303, %v3803
    %v3885 = vadd.f32 %v3304, %v3580
    %v3886 = vadd.f32 %v3305, %v3806
    %v3887 = vadd.f32 %v3306, %v3583
    %v3888 = vadd.f32 %v3307, %v3809
    %v3889 = vadd.f32 %v3308, %v3586
    %v3890 = vadd.f32 %v3309, %v3812
    %v3891 = vadd.f32 %v3310, %v3589
    %v3892 = vadd.f32 %v3311, %v3815
    %v3893 = vadd.f32 %v3312, %v3592
    %v3894 = vadd.f32 %v3313, %v3818
    %v3895 = vadd.f32 %v3314, %v3595
    %v3896 = vadd.f32 %v3315, %v3821
    %v3897 = vadd.f32 %v3316, %v3598
    %v3898 = vadd.f32 %v3317, %v3824
    %v3899 = vadd.f32 %v3318, %v3601
    %v3900 = vadd.f32 %v3319, %v3827
    %v3901 = vadd.f32 %v3320, %v3604
    %v3902 = vadd.f32 %v3321, %v3830
    %v3903 = vadd.f32 %v3322, %v3607
    %v3904 = vadd.f32 %v3323, %v3833
    %v3905 = vadd.f32 %v3324, %v3610
    %v3906 = vadd.f32 %v3325, %v3836
    %v3907 = vadd.f32 %v3326, %v3613
    %v3908 = vadd.f32 %v3327, %v3839
    %v3909 = vadd.f32 %v3328, %v3616
    %v3910 = vadd.f32 %v3329, %v3842
    %v3911 = vadd.f32 %v3330, %v3619
    %v3912 = vadd.f32 %v3331, %v3845
    %v3913 = vadd.f32 %v3332, %v3622
    %v3914 = vadd.f32 %v3333, %v3848
    %v3915 = vadd.f32 %v3334, %v3625
    %v3916 = vadd.f32 %v3335, %v3851
    %v3917 = vsel %vm275, 1, 0
    %v3918 = vsel %vm276, 1, 0
    %v3919 = vsel %vm277, 1, 0
    %v3920 = vsel %vm278, 1, 0
    %v3921 = vsel %vm279, 1, 0
    %v3922 = vsel %vm280, 1, 0
    %v3923 = vsel %vm281, 1, 0
    %v3924 = vsel %vm282, 1, 0
    %v3925 = vsel %vm283, 1, 0
    %v3926 = vsel %vm284, 1, 0
    %v3927 = vsel %vm285, 1, 0
    %v3928 = vsel %vm286, 1, 0
    %v3929 = vsel %vm287, 1, 0
    %v3930 = vsel %vm288, 1, 0
    %v3931 = vsel %vm289, 1, 0
    %v3932 = vsel %vm290, 1, 0
    %v3933 = vsel %vm291, 1, 0
    %v3934 = vsel %vm292, 1, 0
    %v3935 = vsel %vm293, 1, 0
    %v3936 = vsel %vm294, 1, 0
    %v3937 = vsel %vm295, 1, 0
    %v3938 = vsel %vm296, 1, 0
    %v3939 = vsel %vm297, 1, 0
    %v3940 = vsel %vm298, 1, 0
    %v3941 = vsel %vm299, 1, 0
    %v3942 = vsel %vm300, 1, 0
    %v3943 = vsel %vm301, 1, 0
    %v3944 = vsel %vm302, 1, 0
    %v3945 = vsel %vm303, 1, 0
    %v3946 = vsel %vm304, 1, 0
    %v3947 = vsel %vm305, 1, 0
    %v3948 = vsel %vm306, 1, 0
    %vm3949 = vcmp.eq.s32.totalorder %v3917, 1
    %vm3950 = vcmp.eq.s32.totalorder %v3918, 1
    %vm3951 = vcmp.eq.s32.totalorder %v3919, 1
    %vm3952 = vcmp.eq.s32.totalorder %v3920, 1
    %vm3953 = vcmp.eq.s32.totalorder %v3921, 1
    %vm3954 = vcmp.eq.s32.totalorder %v3922, 1
    %vm3955 = vcmp.eq.s32.totalorder %v3923, 1
    %vm3956 = vcmp.eq.s32.totalorder %v3924, 1
    %vm3957 = vcmp.eq.s32.totalorder %v3925, 1
    %vm3958 = vcmp.eq.s32.totalorder %v3926, 1
    %vm3959 = vcmp.eq.s32.totalorder %v3927, 1
    %vm3960 = vcmp.eq.s32.totalorder %v3928, 1
    %vm3961 = vcmp.eq.s32.totalorder %v3929, 1
    %vm3962 = vcmp.eq.s32.totalorder %v3930, 1
    %vm3963 = vcmp.eq.s32.totalorder %v3931, 1
    %vm3964 = vcmp.eq.s32.totalorder %v3932, 1
    %vm3965 = vcmp.eq.s32.totalorder %v3933, 1
    %vm3966 = vcmp.eq.s32.totalorder %v3934, 1
    %vm3967 = vcmp.eq.s32.totalorder %v3935, 1
    %vm3968 = vcmp.eq.s32.totalorder %v3936, 1
    %vm3969 = vcmp.eq.s32.totalorder %v3937, 1
    %vm3970 = vcmp.eq.s32.totalorder %v3938, 1
    %vm3971 = vcmp.eq.s32.totalorder %v3939, 1
    %vm3972 = vcmp.eq.s32.totalorder %v3940, 1
    %vm3973 = vcmp.eq.s32.totalorder %v3941, 1
    %vm3974 = vcmp.eq.s32.totalorder %v3942, 1
    %vm3975 = vcmp.eq.s32.totalorder %v3943, 1
    %vm3976 = vcmp.eq.s32.totalorder %v3944, 1
    %vm3977 = vcmp.eq.s32.totalorder %v3945, 1
    %vm3978 = vcmp.eq.s32.totalorder %v3946, 1
    %vm3979 = vcmp.eq.s32.totalorder %v3947, 1
    %vm3980 = vcmp.eq.s32.totalorder %v3948, 1
    %v3981 = vsel %vm3949, %v1882, 0.0
    %v3982 = vsel %vm3949, %v1883, 0.0
    %v3983 = vsel %vm3950, %v1880, 0.0
    %v3984 = vsel %vm3950, %v1881, 0.0
    %v3985 = vsel %vm3951, %v1878, 0.0
    %v3986 = vsel %vm3951, %v1879, 0.0
    %v3987 = vsel %vm3952, %v1876, 0.0
    %v3988 = vsel %vm3952, %v1877, 0.0
    %v3989 = vsel %vm3953, %v1874, 0.0
    %v3990 = vsel %vm3953, %v1875, 0.0
    %v3991 = vsel %vm3954, %v1872, 0.0
    %v3992 = vsel %vm3954, %v1873, 0.0
    %v3993 = vsel %vm3955, %v1870, 0.0
    %v3994 = vsel %vm3955, %v1871, 0.0
    %v3995 = vsel %vm3956, %v1868, 0.0
    %v3996 = vsel %vm3956, %v1869, 0.0
    %v3997 = vsel %vm3957, %v1866, 0.0
    %v3998 = vsel %vm3957, %v1867, 0.0
    %v3999 = vsel %vm3958, %v1864, 0.0
    %v4000 = vsel %vm3958, %v1865, 0.0
    %v4001 = vsel %vm3959, %v1862, 0.0
    %v4002 = vsel %vm3959, %v1863, 0.0
    %v4003 = vsel %vm3960, %v1860, 0.0
    %v4004 = vsel %vm3960, %v1861, 0.0
    %v4005 = vsel %vm3961, %v1858, 0.0
    %v4006 = vsel %vm3961, %v1859, 0.0
    %v4007 = vsel %vm3962, %v1856, 0.0
    %v4008 = vsel %vm3962, %v1857, 0.0
    %v4009 = vsel %vm3963, %v1854, 0.0
    %v4010 = vsel %vm3963, %v1855, 0.0
    %v4011 = vsel %vm3964, %v1852, 0.0
    %v4012 = vsel %vm3964, %v1853, 0.0
    %v4013 = vsel %vm3965, %v1850, 0.0
    %v4014 = vsel %vm3965, %v1851, 0.0
    %v4015 = vsel %vm3966, %v1848, 0.0
    %v4016 = vsel %vm3966, %v1849, 0.0
    %v4017 = vsel %vm3967, %v1846, 0.0
    %v4018 = vsel %vm3967, %v1847, 0.0
    %v4019 = vsel %vm3968, %v1844, 0.0
    %v4020 = vsel %vm3968, %v1845, 0.0
    %v4021 = vsel %vm3969, %v1842, 0.0
    %v4022 = vsel %vm3969, %v1843, 0.0
    %v4023 = vsel %vm3970, %v1840, 0.0
    %v4024 = vsel %vm3970, %v1841, 0.0
    %v4025 = vsel %vm3971, %v1838, 0.0
    %v4026 = vsel %vm3971, %v1839, 0.0
    %v4027 = vsel %vm3972, %v1836, 0.0
    %v4028 = vsel %vm3972, %v1837, 0.0
    %v4029 = vsel %vm3973, %v1834, 0.0
    %v4030 = vsel %vm3973, %v1835, 0.0
    %v4031 = vsel %vm3974, %v1832, 0.0
    %v4032 = vsel %vm3974, %v1833, 0.0
    %v4033 = vsel %vm3975, %v1830, 0.0
    %v4034 = vsel %vm3975, %v1831, 0.0
    %v4035 = vsel %vm3976, %v1828, 0.0
    %v4036 = vsel %vm3976, %v1829, 0.0
    %v4037 = vsel %vm3977, %v1826, 0.0
    %v4038 = vsel %vm3977, %v1827, 0.0
    %v4039 = vsel %vm3978, %v1824, 0.0
    %v4040 = vsel %vm3978, %v1825, 0.0
    %v4041 = vsel %vm3979, %v1822, 0.0
    %v4042 = vsel %vm3979, %v1823, 0.0
    %v4043 = vsel %vm3980, %v1884, 0.0
    %v4044 = vsel %vm3980, %v1885, 0.0
    %s4045 = scalar_lea.vmem %s1, 2560
    %v4046 = vld [vmem:[%s4045] sm:$0xff]
    %v4047 = vld [vmem:[%s4045 + $0x8] sm:$0xff]
    %v4048 = vld [vmem:[%s4045 + $0x10] sm:$0xff]
    %v4049 = vld [vmem:[%s4045 + $0x18] sm:$0xff]
    %v4050 = vld [vmem:[%s4045 + $0x20] sm:$0xff]
    %v4051 = vld [vmem:[%s4045 + $0x28] sm:$0xff]
    %v4052 = vld [vmem:[%s4045 + $0x30] sm:$0xff]
    %v4053 = vld [vmem:[%s4045 + $0x38] sm:$0xff]
    %v4054 = vld [vmem:[%s4045 + $0x40] sm:$0xff]
    %v4055 = vld [vmem:[%s4045 + $0x48] sm:$0xff]
    %v4056 = vld [vmem:[%s4045 + $0x50] sm:$0xff]
    %v4057 = vld [vmem:[%s4045 + $0x58] sm:$0xff]
    %v4058 = vld [vmem:[%s4045 + $0x60] sm:$0xff]
    %v4059 = vld [vmem:[%s4045 + $0x68] sm:$0xff]
    %v4060 = vld [vmem:[%s4045 + $0x70] sm:$0xff]
    %v4061 = vld [vmem:[%s4045 + $0x78] sm:$0xff]
    %v4062 = vld [vmem:[%s4045 + $0x80] sm:$0xff]
    %v4063 = vld [vmem:[%s4045 + $0x88] sm:$0xff]
    %v4064 = vld [vmem:[%s4045 + $0x90] sm:$0xff]
    %v4065 = vld [vmem:[%s4045 + $0x98] sm:$0xff]
    %v4066 = vld [vmem:[%s4045 + $0xa0] sm:$0xff]
    %v4067 = vld [vmem:[%s4045 + $0xa8] sm:$0xff]
    %v4068 = vld [vmem:[%s4045 + $0xb0] sm:$0xff]
    %v4069 = vld [vmem:[%s4045 + $0xb8] sm:$0xff]
    %v4070 = vld [vmem:[%s4045 + $0xc0] sm:$0xff]
    %v4071 = vld [vmem:[%s4045 + $0xc8] sm:$0xff]
    %v4072 = vld [vmem:[%s4045 + $0xd0] sm:$0xff]
    %v4073 = vld [vmem:[%s4045 + $0xd8] sm:$0xff]
    %v4074 = vld [vmem:[%s4045 + $0xe0] sm:$0xff]
    %v4075 = vld [vmem:[%s4045 + $0xe8] sm:$0xff]
    %v4076 = vld [vmem:[%s4045 + $0xf0] sm:$0xff]
    %v4077 = vld [vmem:[%s4045 + $0xf8] sm:$0xff]
    %v4078 = vld [vmem:[%s4045 + $0x100] sm:$0xff]
    %v4079 = vld [vmem:[%s4045 + $0x108] sm:$0xff]
    %v4080 = vld [vmem:[%s4045 + $0x110] sm:$0xff]
    %v4081 = vld [vmem:[%s4045 + $0x118] sm:$0xff]
    %v4082 = vld [vmem:[%s4045 + $0x120] sm:$0xff]
    %v4083 = vld [vmem:[%s4045 + $0x128] sm:$0xff]
    %v4084 = vld [vmem:[%s4045 + $0x130] sm:$0xff]
    %v4085 = vld [vmem:[%s4045 + $0x138] sm:$0xff]
    %v4086 = vld [vmem:[%s4045 + $0x140] sm:$0xff]
    %v4087 = vld [vmem:[%s4045 + $0x148] sm:$0xff]
    %v4088 = vld [vmem:[%s4045 + $0x150] sm:$0xff]
    %v4089 = vld [vmem:[%s4045 + $0x158] sm:$0xff]
    %v4090 = vld [vmem:[%s4045 + $0x160] sm:$0xff]
    %v4091 = vld [vmem:[%s4045 + $0x168] sm:$0xff]
    %v4092 = vld [vmem:[%s4045 + $0x170] sm:$0xff]
    %v4093 = vld [vmem:[%s4045 + $0x178] sm:$0xff]
    %v4094 = vld [vmem:[%s4045 + $0x180] sm:$0xff]
    %v4095 = vld [vmem:[%s4045 + $0x188] sm:$0xff]
    %v4096 = vld [vmem:[%s4045 + $0x190] sm:$0xff]
    %v4097 = vld [vmem:[%s4045 + $0x198] sm:$0xff]
    %v4098 = vld [vmem:[%s4045 + $0x1a0] sm:$0xff]
    %v4099 = vld [vmem:[%s4045 + $0x1a8] sm:$0xff]
    %v4100 = vld [vmem:[%s4045 + $0x1b0] sm:$0xff]
    %v4101 = vld [vmem:[%s4045 + $0x1b8] sm:$0xff]
    %v4102 = vld [vmem:[%s4045 + $0x1c0] sm:$0xff]
    %v4103 = vld [vmem:[%s4045 + $0x1c8] sm:$0xff]
    %v4104 = vld [vmem:[%s4045 + $0x1d0] sm:$0xff]
    %v4105 = vld [vmem:[%s4045 + $0x1d8] sm:$0xff]
    %v4106 = vld [vmem:[%s4045 + $0x1e0] sm:$0xff]
    %v4107 = vld [vmem:[%s4045 + $0x1e8] sm:$0xff]
    %v4108 = vld [vmem:[%s4045 + $0x1f0] sm:$0xff]
    %v4109 = vld [vmem:[%s4045 + $0x1f8] sm:$0xff]
    %4110 = vmatpush.msra.mxu0 %v4076
    %4111 = vmatpush.msra.mxu0 %v4074
    %4112 = vmatpush.msra.mxu0 %v4072
    %4113 = vmatpush.msra.mxu0 %v4070
    %4114 = vmatpush.msra.mxu0 %v4068
    %4115 = vmatpush.msra.mxu0 %v4066
    %4116 = vmatpush.msra.mxu0 %v4064
    %4117 = vmatpush.msra.mxu0 %v4062
    %4118 = vmatpush.msra.mxu0 %v4060
    %4119 = vmatpush.msra.mxu0 %v4058
    %4120 = vmatpush.msra.mxu0 %v4056
    %4121 = vmatpush.msra.mxu0 %v4054
    %4122 = vmatpush.msra.mxu0 %v4052
    %4123 = vmatpush.msra.mxu0 %v4050
    %4124 = vmatpush.msra.mxu0 %v4048
    %4125 = vmatpush.msra.mxu0 %v4046
    %4126 = vmatmul.f32.gmra.mxu0 %v3981
    %v4127 = vpop.f32.mrf.mxu0
    %v4128 = vadd.f32 0.0, %v4127
    %4129 = vmatmul.f32.gmra.mxu0 %v3983
    %v4130 = vpop.f32.mrf.mxu0
    %v4131 = vadd.f32 0.0, %v4130
    %4132 = vmatmul.f32.gmra.mxu0 %v3985
    %v4133 = vpop.f32.mrf.mxu0
    %v4134 = vadd.f32 0.0, %v4133
    %4135 = vmatmul.f32.gmra.mxu0 %v3987
    %v4136 = vpop.f32.mrf.mxu0
    %v4137 = vadd.f32 0.0, %v4136
    %4138 = vmatmul.f32.gmra.mxu0 %v3989
    %v4139 = vpop.f32.mrf.mxu0
    %v4140 = vadd.f32 0.0, %v4139
    %4141 = vmatmul.f32.gmra.mxu0 %v3991
    %v4142 = vpop.f32.mrf.mxu0
    %v4143 = vadd.f32 0.0, %v4142
    %4144 = vmatmul.f32.gmra.mxu0 %v3993
    %v4145 = vpop.f32.mrf.mxu0
    %v4146 = vadd.f32 0.0, %v4145
    %4147 = vmatmul.f32.gmra.mxu0 %v3995
    %v4148 = vpop.f32.mrf.mxu0
    %v4149 = vadd.f32 0.0, %v4148
    %4150 = vmatmul.f32.gmra.mxu0 %v3997
    %v4151 = vpop.f32.mrf.mxu0
    %v4152 = vadd.f32 0.0, %v4151
    %4153 = vmatmul.f32.gmra.mxu0 %v3999
    %v4154 = vpop.f32.mrf.mxu0
    %v4155 = vadd.f32 0.0, %v4154
    %4156 = vmatmul.f32.gmra.mxu0 %v4001
    %v4157 = vpop.f32.mrf.mxu0
    %v4158 = vadd.f32 0.0, %v4157
    %4159 = vmatmul.f32.gmra.mxu0 %v4003
    %v4160 = vpop.f32.mrf.mxu0
    %v4161 = vadd.f32 0.0, %v4160
    %4162 = vmatmul.f32.gmra.mxu0 %v4005
    %v4163 = vpop.f32.mrf.mxu0
    %v4164 = vadd.f32 0.0, %v4163
    %4165 = vmatmul.f32.gmra.mxu0 %v4007
    %v4166 = vpop.f32.mrf.mxu0
    %v4167 = vadd.f32 0.0, %v4166
    %4168 = vmatmul.f32.gmra.mxu0 %v4009
    %v4169 = vpop.f32.mrf.mxu0
    %v4170 = vadd.f32 0.0, %v4169
    %4171 = vmatmul.f32.gmra.mxu0 %v4011
    %v4172 = vpop.f32.mrf.mxu0
    %v4173 = vadd.f32 0.0, %v4172
    %4174 = vmatmul.f32.gmra.mxu0 %v4013
    %v4175 = vpop.f32.mrf.mxu0
    %v4176 = vadd.f32 0.0, %v4175
    %4177 = vmatmul.f32.gmra.mxu0 %v4015
    %v4178 = vpop.f32.mrf.mxu0
    %v4179 = vadd.f32 0.0, %v4178
    %4180 = vmatmul.f32.gmra.mxu0 %v4017
    %v4181 = vpop.f32.mrf.mxu0
    %v4182 = vadd.f32 0.0, %v4181
    %4183 = vmatmul.f32.gmra.mxu0 %v4019
    %v4184 = vpop.f32.mrf.mxu0
    %v4185 = vadd.f32 0.0, %v4184
    %4186 = vmatmul.f32.gmra.mxu0 %v4021
    %v4187 = vpop.f32.mrf.mxu0
    %v4188 = vadd.f32 0.0, %v4187
    %4189 = vmatmul.f32.gmra.mxu0 %v4023
    %v4190 = vpop.f32.mrf.mxu0
    %v4191 = vadd.f32 0.0, %v4190
    %4192 = vmatmul.f32.gmra.mxu0 %v4025
    %v4193 = vpop.f32.mrf.mxu0
    %v4194 = vadd.f32 0.0, %v4193
    %4195 = vmatmul.f32.gmra.mxu0 %v4027
    %v4196 = vpop.f32.mrf.mxu0
    %v4197 = vadd.f32 0.0, %v4196
    %4198 = vmatmul.f32.gmra.mxu0 %v4029
    %v4199 = vpop.f32.mrf.mxu0
    %v4200 = vadd.f32 0.0, %v4199
    %4201 = vmatmul.f32.gmra.mxu0 %v4031
    %v4202 = vpop.f32.mrf.mxu0
    %v4203 = vadd.f32 0.0, %v4202
    %4204 = vmatmul.f32.gmra.mxu0 %v4033
    %v4205 = vpop.f32.mrf.mxu0
    %v4206 = vadd.f32 0.0, %v4205
    %4207 = vmatmul.f32.gmra.mxu0 %v4035
    %v4208 = vpop.f32.mrf.mxu0
    %v4209 = vadd.f32 0.0, %v4208
    %4210 = vmatmul.f32.gmra.mxu0 %v4037
    %v4211 = vpop.f32.mrf.mxu0
    %v4212 = vadd.f32 0.0, %v4211
    %4213 = vmatmul.f32.gmra.mxu0 %v4039
    %v4214 = vpop.f32.mrf.mxu0
    %v4215 = vadd.f32 0.0, %v4214
    %4216 = vmatmul.f32.gmra.mxu0 %v4041
    %v4217 = vpop.f32.mrf.mxu0
    %v4218 = vadd.f32 0.0, %v4217
    %4219 = vmatmul.f32.gmra.mxu0 %v4043
    %v4220 = vpop.f32.mrf.mxu0
    %v4221 = vadd.f32 0.0, %v4220
    %4222 = vdwg.mxu0
    %4223 = vmatpush.msra.mxu0 %v4108
    %4224 = vmatpush.msra.mxu0 %v4106
    %4225 = vmatpush.msra.mxu0 %v4104
    %4226 = vmatpush.msra.mxu0 %v4102
    %4227 = vmatpush.msra.mxu0 %v4100
    %4228 = vmatpush.msra.mxu0 %v4098
    %4229 = vmatpush.msra.mxu0 %v4096
    %4230 = vmatpush.msra.mxu0 %v4094
    %4231 = vmatpush.msra.mxu0 %v4092
    %4232 = vmatpush.msra.mxu0 %v4090
    %4233 = vmatpush.msra.mxu0 %v4088
    %4234 = vmatpush.msra.mxu0 %v4086
    %4235 = vmatpush.msra.mxu0 %v4084
    %4236 = vmatpush.msra.mxu0 %v4082
    %4237 = vmatpush.msra.mxu0 %v4080
    %4238 = vmatpush.msra.mxu0 %v4078
    %4239 = vmatmul.f32.gmra.mxu0 %v3982
    %v4240 = vpop.f32.mrf.mxu0
    %v4241 = vadd.f32 %v4128, %v4240
    %4242 = vmatmul.f32.gmra.mxu0 %v3984
    %v4243 = vpop.f32.mrf.mxu0
    %v4244 = vadd.f32 %v4131, %v4243
    %4245 = vmatmul.f32.gmra.mxu0 %v3986
    %v4246 = vpop.f32.mrf.mxu0
    %v4247 = vadd.f32 %v4134, %v4246
    %4248 = vmatmul.f32.gmra.mxu0 %v3988
    %v4249 = vpop.f32.mrf.mxu0
    %v4250 = vadd.f32 %v4137, %v4249
    %4251 = vmatmul.f32.gmra.mxu0 %v3990
    %v4252 = vpop.f32.mrf.mxu0
    %v4253 = vadd.f32 %v4140, %v4252
    %4254 = vmatmul.f32.gmra.mxu0 %v3992
    %v4255 = vpop.f32.mrf.mxu0
    %v4256 = vadd.f32 %v4143, %v4255
    %4257 = vmatmul.f32.gmra.mxu0 %v3994
    %v4258 = vpop.f32.mrf.mxu0
    %v4259 = vadd.f32 %v4146, %v4258
    %4260 = vmatmul.f32.gmra.mxu0 %v3996
    %v4261 = vpop.f32.mrf.mxu0
    %v4262 = vadd.f32 %v4149, %v4261
    %4263 = vmatmul.f32.gmra.mxu0 %v3998
    %v4264 = vpop.f32.mrf.mxu0
    %v4265 = vadd.f32 %v4152, %v4264
    %4266 = vmatmul.f32.gmra.mxu0 %v4000
    %v4267 = vpop.f32.mrf.mxu0
    %v4268 = vadd.f32 %v4155, %v4267
    %4269 = vmatmul.f32.gmra.mxu0 %v4002
    %v4270 = vpop.f32.mrf.mxu0
    %v4271 = vadd.f32 %v4158, %v4270
    %4272 = vmatmul.f32.gmra.mxu0 %v4004
    %v4273 = vpop.f32.mrf.mxu0
    %v4274 = vadd.f32 %v4161, %v4273
    %4275 = vmatmul.f32.gmra.mxu0 %v4006
    %v4276 = vpop.f32.mrf.mxu0
    %v4277 = vadd.f32 %v4164, %v4276
    %4278 = vmatmul.f32.gmra.mxu0 %v4008
    %v4279 = vpop.f32.mrf.mxu0
    %v4280 = vadd.f32 %v4167, %v4279
    %4281 = vmatmul.f32.gmra.mxu0 %v4010
    %v4282 = vpop.f32.mrf.mxu0
    %v4283 = vadd.f32 %v4170, %v4282
    %4284 = vmatmul.f32.gmra.mxu0 %v4012
    %v4285 = vpop.f32.mrf.mxu0
    %v4286 = vadd.f32 %v4173, %v4285
    %4287 = vmatmul.f32.gmra.mxu0 %v4014
    %v4288 = vpop.f32.mrf.mxu0
    %v4289 = vadd.f32 %v4176, %v4288
    %4290 = vmatmul.f32.gmra.mxu0 %v4016
    %v4291 = vpop.f32.mrf.mxu0
    %v4292 = vadd.f32 %v4179, %v4291
    %4293 = vmatmul.f32.gmra.mxu0 %v4018
    %v4294 = vpop.f32.mrf.mxu0
    %v4295 = vadd.f32 %v4182, %v4294
    %4296 = vmatmul.f32.gmra.mxu0 %v4020
    %v4297 = vpop.f32.mrf.mxu0
    %v4298 = vadd.f32 %v4185, %v4297
    %4299 = vmatmul.f32.gmra.mxu0 %v4022
    %v4300 = vpop.f32.mrf.mxu0
    %v4301 = vadd.f32 %v4188, %v4300
    %4302 = vmatmul.f32.gmra.mxu0 %v4024
    %v4303 = vpop.f32.mrf.mxu0
    %v4304 = vadd.f32 %v4191, %v4303
    %4305 = vmatmul.f32.gmra.mxu0 %v4026
    %v4306 = vpop.f32.mrf.mxu0
    %v4307 = vadd.f32 %v4194, %v4306
    %4308 = vmatmul.f32.gmra.mxu0 %v4028
    %v4309 = vpop.f32.mrf.mxu0
    %v4310 = vadd.f32 %v4197, %v4309
    %4311 = vmatmul.f32.gmra.mxu0 %v4030
    %v4312 = vpop.f32.mrf.mxu0
    %v4313 = vadd.f32 %v4200, %v4312
    %4314 = vmatmul.f32.gmra.mxu0 %v4032
    %v4315 = vpop.f32.mrf.mxu0
    %v4316 = vadd.f32 %v4203, %v4315
    %4317 = vmatmul.f32.gmra.mxu0 %v4034
    %v4318 = vpop.f32.mrf.mxu0
    %v4319 = vadd.f32 %v4206, %v4318
    %4320 = vmatmul.f32.gmra.mxu0 %v4036
    %v4321 = vpop.f32.mrf.mxu0
    %v4322 = vadd.f32 %v4209, %v4321
    %4323 = vmatmul.f32.gmra.mxu0 %v4038
    %v4324 = vpop.f32.mrf.mxu0
    %v4325 = vadd.f32 %v4212, %v4324
    %4326 = vmatmul.f32.gmra.mxu0 %v4040
    %v4327 = vpop.f32.mrf.mxu0
    %v4328 = vadd.f32 %v4215, %v4327
    %4329 = vmatmul.f32.gmra.mxu0 %v4042
    %v4330 = vpop.f32.mrf.mxu0
    %v4331 = vadd.f32 %v4218, %v4330
    %4332 = vmatmul.f32.gmra.mxu0 %v4044
    %v4333 = vpop.f32.mrf.mxu0
    %v4334 = vadd.f32 %v4221, %v4333
    %4335 = vdwg.mxu0
    %4336 = vmatpush.msra.mxu0 %v4077
    %4337 = vmatpush.msra.mxu0 %v4075
    %4338 = vmatpush.msra.mxu0 %v4073
    %4339 = vmatpush.msra.mxu0 %v4071
    %4340 = vmatpush.msra.mxu0 %v4069
    %4341 = vmatpush.msra.mxu0 %v4067
    %4342 = vmatpush.msra.mxu0 %v4065
    %4343 = vmatpush.msra.mxu0 %v4063
    %4344 = vmatpush.msra.mxu0 %v4061
    %4345 = vmatpush.msra.mxu0 %v4059
    %4346 = vmatpush.msra.mxu0 %v4057
    %4347 = vmatpush.msra.mxu0 %v4055
    %4348 = vmatpush.msra.mxu0 %v4053
    %4349 = vmatpush.msra.mxu0 %v4051
    %4350 = vmatpush.msra.mxu0 %v4049
    %4351 = vmatpush.msra.mxu0 %v4047
    %4352 = vmatmul.f32.gmra.mxu0 %v3981
    %v4353 = vpop.f32.mrf.mxu0
    %v4354 = vadd.f32 0.0, %v4353
    %4355 = vmatmul.f32.gmra.mxu0 %v3983
    %v4356 = vpop.f32.mrf.mxu0
    %v4357 = vadd.f32 0.0, %v4356
    %4358 = vmatmul.f32.gmra.mxu0 %v3985
    %v4359 = vpop.f32.mrf.mxu0
    %v4360 = vadd.f32 0.0, %v4359
    %4361 = vmatmul.f32.gmra.mxu0 %v3987
    %v4362 = vpop.f32.mrf.mxu0
    %v4363 = vadd.f32 0.0, %v4362
    %4364 = vmatmul.f32.gmra.mxu0 %v3989
    %v4365 = vpop.f32.mrf.mxu0
    %v4366 = vadd.f32 0.0, %v4365
    %4367 = vmatmul.f32.gmra.mxu0 %v3991
    %v4368 = vpop.f32.mrf.mxu0
    %v4369 = vadd.f32 0.0, %v4368
    %4370 = vmatmul.f32.gmra.mxu0 %v3993
    %v4371 = vpop.f32.mrf.mxu0
    %v4372 = vadd.f32 0.0, %v4371
    %4373 = vmatmul.f32.gmra.mxu0 %v3995
    %v4374 = vpop.f32.mrf.mxu0
    %v4375 = vadd.f32 0.0, %v4374
    %4376 = vmatmul.f32.gmra.mxu0 %v3997
    %v4377 = vpop.f32.mrf.mxu0
    %v4378 = vadd.f32 0.0, %v4377
    %4379 = vmatmul.f32.gmra.mxu0 %v3999
    %v4380 = vpop.f32.mrf.mxu0
    %v4381 = vadd.f32 0.0, %v4380
    %4382 = vmatmul.f32.gmra.mxu0 %v4001
    %v4383 = vpop.f32.mrf.mxu0
    %v4384 = vadd.f32 0.0, %v4383
    %4385 = vmatmul.f32.gmra.mxu0 %v4003
    %v4386 = vpop.f32.mrf.mxu0
    %v4387 = vadd.f32 0.0, %v4386
    %4388 = vmatmul.f32.gmra.mxu0 %v4005
    %v4389 = vpop.f32.mrf.mxu0
    %v4390 = vadd.f32 0.0, %v4389
    %4391 = vmatmul.f32.gmra.mxu0 %v4007
    %v4392 = vpop.f32.mrf.mxu0
    %v4393 = vadd.f32 0.0, %v4392
    %4394 = vmatmul.f32.gmra.mxu0 %v4009
    %v4395 = vpop.f32.mrf.mxu0
    %v4396 = vadd.f32 0.0, %v4395
    %4397 = vmatmul.f32.gmra.mxu0 %v4011
    %v4398 = vpop.f32.mrf.mxu0
    %v4399 = vadd.f32 0.0, %v4398
    %4400 = vmatmul.f32.gmra.mxu0 %v4013
    %v4401 = vpop.f32.mrf.mxu0
    %v4402 = vadd.f32 0.0, %v4401
    %4403 = vmatmul.f32.gmra.mxu0 %v4015
    %v4404 = vpop.f32.mrf.mxu0
    %v4405 = vadd.f32 0.0, %v4404
    %4406 = vmatmul.f32.gmra.mxu0 %v4017
    %v4407 = vpop.f32.mrf.mxu0
    %v4408 = vadd.f32 0.0, %v4407
    %4409 = vmatmul.f32.gmra.mxu0 %v4019
    %v4410 = vpop.f32.mrf.mxu0
    %v4411 = vadd.f32 0.0, %v4410
    %4412 = vmatmul.f32.gmra.mxu0 %v4021
    %v4413 = vpop.f32.mrf.mxu0
    %v4414 = vadd.f32 0.0, %v4413
    %4415 = vmatmul.f32.gmra.mxu0 %v4023
    %v4416 = vpop.f32.mrf.mxu0
    %v4417 = vadd.f32 0.0, %v4416
    %4418 = vmatmul.f32.gmra.mxu0 %v4025
    %v4419 = vpop.f32.mrf.mxu0
    %v4420 = vadd.f32 0.0, %v4419
    %4421 = vmatmul.f32.gmra.mxu0 %v4027
    %v4422 = vpop.f32.mrf.mxu0
    %v4423 = vadd.f32 0.0, %v4422
    %4424 = vmatmul.f32.gmra.mxu0 %v4029
    %v4425 = vpop.f32.mrf.mxu0
    %v4426 = vadd.f32 0.0, %v4425
    %4427 = vmatmul.f32.gmra.mxu0 %v4031
    %v4428 = vpop.f32.mrf.mxu0
    %v4429 = vadd.f32 0.0, %v4428
    %4430 = vmatmul.f32.gmra.mxu0 %v4033
    %v4431 = vpop.f32.mrf.mxu0
    %v4432 = vadd.f32 0.0, %v4431
    %4433 = vmatmul.f32.gmra.mxu0 %v4035
    %v4434 = vpop.f32.mrf.mxu0
    %v4435 = vadd.f32 0.0, %v4434
    %4436 = vmatmul.f32.gmra.mxu0 %v4037
    %v4437 = vpop.f32.mrf.mxu0
    %v4438 = vadd.f32 0.0, %v4437
    %4439 = vmatmul.f32.gmra.mxu0 %v4039
    %v4440 = vpop.f32.mrf.mxu0
    %v4441 = vadd.f32 0.0, %v4440
    %4442 = vmatmul.f32.gmra.mxu0 %v4041
    %v4443 = vpop.f32.mrf.mxu0
    %v4444 = vadd.f32 0.0, %v4443
    %4445 = vmatmul.f32.gmra.mxu0 %v4043
    %v4446 = vpop.f32.mrf.mxu0
    %v4447 = vadd.f32 0.0, %v4446
    %4448 = vdwg.mxu0
    %4449 = vmatpush.msra.mxu0 %v4109
    %4450 = vmatpush.msra.mxu0 %v4107
    %4451 = vmatpush.msra.mxu0 %v4105
    %4452 = vmatpush.msra.mxu0 %v4103
    %4453 = vmatpush.msra.mxu0 %v4101
    %4454 = vmatpush.msra.mxu0 %v4099
    %4455 = vmatpush.msra.mxu0 %v4097
    %4456 = vmatpush.msra.mxu0 %v4095
    %4457 = vmatpush.msra.mxu0 %v4093
    %4458 = vmatpush.msra.mxu0 %v4091
    %4459 = vmatpush.msra.mxu0 %v4089
    %4460 = vmatpush.msra.mxu0 %v4087
    %4461 = vmatpush.msra.mxu0 %v4085
    %4462 = vmatpush.msra.mxu0 %v4083
    %4463 = vmatpush.msra.mxu0 %v4081
    %4464 = vmatpush.msra.mxu0 %v4079
    %4465 = vmatmul.f32.gmra.mxu0 %v3982
    %v4466 = vpop.f32.mrf.mxu0
    %v4467 = vadd.f32 %v4354, %v4466
    %4468 = vmatmul.f32.gmra.mxu0 %v3984
    %v4469 = vpop.f32.mrf.mxu0
    %v4470 = vadd.f32 %v4357, %v4469
    %4471 = vmatmul.f32.gmra.mxu0 %v3986
    %v4472 = vpop.f32.mrf.mxu0
    %v4473 = vadd.f32 %v4360, %v4472
    %4474 = vmatmul.f32.gmra.mxu0 %v3988
    %v4475 = vpop.f32.mrf.mxu0
    %v4476 = vadd.f32 %v4363, %v4475
    %4477 = vmatmul.f32.gmra.mxu0 %v3990
    %v4478 = vpop.f32.mrf.mxu0
    %v4479 = vadd.f32 %v4366, %v4478
    %4480 = vmatmul.f32.gmra.mxu0 %v3992
    %v4481 = vpop.f32.mrf.mxu0
    %v4482 = vadd.f32 %v4369, %v4481
    %4483 = vmatmul.f32.gmra.mxu0 %v3994
    %v4484 = vpop.f32.mrf.mxu0
    %v4485 = vadd.f32 %v4372, %v4484
    %4486 = vmatmul.f32.gmra.mxu0 %v3996
    %v4487 = vpop.f32.mrf.mxu0
    %v4488 = vadd.f32 %v4375, %v4487
    %4489 = vmatmul.f32.gmra.mxu0 %v3998
    %v4490 = vpop.f32.mrf.mxu0
    %v4491 = vadd.f32 %v4378, %v4490
    %4492 = vmatmul.f32.gmra.mxu0 %v4000
    %v4493 = vpop.f32.mrf.mxu0
    %v4494 = vadd.f32 %v4381, %v4493
    %4495 = vmatmul.f32.gmra.mxu0 %v4002
    %v4496 = vpop.f32.mrf.mxu0
    %v4497 = vadd.f32 %v4384, %v4496
    %4498 = vmatmul.f32.gmra.mxu0 %v4004
    %v4499 = vpop.f32.mrf.mxu0
    %v4500 = vadd.f32 %v4387, %v4499
    %4501 = vmatmul.f32.gmra.mxu0 %v4006
    %v4502 = vpop.f32.mrf.mxu0
    %v4503 = vadd.f32 %v4390, %v4502
    %4504 = vmatmul.f32.gmra.mxu0 %v4008
    %v4505 = vpop.f32.mrf.mxu0
    %v4506 = vadd.f32 %v4393, %v4505
    %4507 = vmatmul.f32.gmra.mxu0 %v4010
    %v4508 = vpop.f32.mrf.mxu0
    %v4509 = vadd.f32 %v4396, %v4508
    %4510 = vmatmul.f32.gmra.mxu0 %v4012
    %v4511 = vpop.f32.mrf.mxu0
    %v4512 = vadd.f32 %v4399, %v4511
    %4513 = vmatmul.f32.gmra.mxu0 %v4014
    %v4514 = vpop.f32.mrf.mxu0
    %v4515 = vadd.f32 %v4402, %v4514
    %4516 = vmatmul.f32.gmra.mxu0 %v4016
    %v4517 = vpop.f32.mrf.mxu0
    %v4518 = vadd.f32 %v4405, %v4517
    %4519 = vmatmul.f32.gmra.mxu0 %v4018
    %v4520 = vpop.f32.mrf.mxu0
    %v4521 = vadd.f32 %v4408, %v4520
    %4522 = vmatmul.f32.gmra.mxu0 %v4020
    %v4523 = vpop.f32.mrf.mxu0
    %v4524 = vadd.f32 %v4411, %v4523
    %4525 = vmatmul.f32.gmra.mxu0 %v4022
    %v4526 = vpop.f32.mrf.mxu0
    %v4527 = vadd.f32 %v4414, %v4526
    %4528 = vmatmul.f32.gmra.mxu0 %v4024
    %v4529 = vpop.f32.mrf.mxu0
    %v4530 = vadd.f32 %v4417, %v4529
    %4531 = vmatmul.f32.gmra.mxu0 %v4026
    %v4532 = vpop.f32.mrf.mxu0
    %v4533 = vadd.f32 %v4420, %v4532
    %4534 = vmatmul.f32.gmra.mxu0 %v4028
    %v4535 = vpop.f32.mrf.mxu0
    %v4536 = vadd.f32 %v4423, %v4535
    %4537 = vmatmul.f32.gmra.mxu0 %v4030
    %v4538 = vpop.f32.mrf.mxu0
    %v4539 = vadd.f32 %v4426, %v4538
    %4540 = vmatmul.f32.gmra.mxu0 %v4032
    %v4541 = vpop.f32.mrf.mxu0
    %v4542 = vadd.f32 %v4429, %v4541
    %4543 = vmatmul.f32.gmra.mxu0 %v4034
    %v4544 = vpop.f32.mrf.mxu0
    %v4545 = vadd.f32 %v4432, %v4544
    %4546 = vmatmul.f32.gmra.mxu0 %v4036
    %v4547 = vpop.f32.mrf.mxu0
    %v4548 = vadd.f32 %v4435, %v4547
    %4549 = vmatmul.f32.gmra.mxu0 %v4038
    %v4550 = vpop.f32.mrf.mxu0
    %v4551 = vadd.f32 %v4438, %v4550
    %4552 = vmatmul.f32.gmra.mxu0 %v4040
    %v4553 = vpop.f32.mrf.mxu0
    %v4554 = vadd.f32 %v4441, %v4553
    %4555 = vmatmul.f32.gmra.mxu0 %v4042
    %v4556 = vpop.f32.mrf.mxu0
    %v4557 = vadd.f32 %v4444, %v4556
    %4558 = vmatmul.f32.gmra.mxu0 %v4044
    %v4559 = vpop.f32.mrf.mxu0
    %v4560 = vadd.f32 %v4447, %v4559
    %4561 = vdwg.mxu0
    %v4562 = vadd.f32 %v3853, %v4241
    %v4563 = vadd.f32 %v3854, %v4467
    %v4564 = vadd.f32 %v3855, %v4244
    %v4565 = vadd.f32 %v3856, %v4470
    %v4566 = vadd.f32 %v3857, %v4247
    %v4567 = vadd.f32 %v3858, %v4473
    %v4568 = vadd.f32 %v3859, %v4250
    %v4569 = vadd.f32 %v3860, %v4476
    %v4570 = vadd.f32 %v3861, %v4253
    %v4571 = vadd.f32 %v3862, %v4479
    %v4572 = vadd.f32 %v3863, %v4256
    %v4573 = vadd.f32 %v3864, %v4482
    %v4574 = vadd.f32 %v3865, %v4259
    %v4575 = vadd.f32 %v3866, %v4485
    %v4576 = vadd.f32 %v3867, %v4262
    %v4577 = vadd.f32 %v3868, %v4488
    %v4578 = vadd.f32 %v3869, %v4265
    %v4579 = vadd.f32 %v3870, %v4491
    %v4580 = vadd.f32 %v3871, %v4268
    %v4581 = vadd.f32 %v3872, %v4494
    %v4582 = vadd.f32 %v3873, %v4271
    %v4583 = vadd.f32 %v3874, %v4497
    %v4584 = vadd.f32 %v3875, %v4274
    %v4585 = vadd.f32 %v3876, %v4500
    %v4586 = vadd.f32 %v3877, %v4277
    %v4587 = vadd.f32 %v3878, %v4503
    %v4588 = vadd.f32 %v3879, %v4280
    %v4589 = vadd.f32 %v3880, %v4506
    %v4590 = vadd.f32 %v3881, %v4283
    %v4591 = vadd.f32 %v3882, %v4509
    %v4592 = vadd.f32 %v3883, %v4286
    %v4593 = vadd.f32 %v3884, %v4512
    %v4594 = vadd.f32 %v3885, %v4289
    %v4595 = vadd.f32 %v3886, %v4515
    %v4596 = vadd.f32 %v3887, %v4292
    %v4597 = vadd.f32 %v3888, %v4518
    %v4598 = vadd.f32 %v3889, %v4295
    %v4599 = vadd.f32 %v3890, %v4521
    %v4600 = vadd.f32 %v3891, %v4298
    %v4601 = vadd.f32 %v3892, %v4524
    %v4602 = vadd.f32 %v3893, %v4301
    %v4603 = vadd.f32 %v3894, %v4527
    %v4604 = vadd.f32 %v3895, %v4304
    %v4605 = vadd.f32 %v3896, %v4530
    %v4606 = vadd.f32 %v3897, %v4307
    %v4607 = vadd.f32 %v3898, %v4533
    %v4608 = vadd.f32 %v3899, %v4310
    %v4609 = vadd.f32 %v3900, %v4536
    %v4610 = vadd.f32 %v3901, %v4313
    %v4611 = vadd.f32 %v3902, %v4539
    %v4612 = vadd.f32 %v3903, %v4316
    %v4613 = vadd.f32 %v3904, %v4542
    %v4614 = vadd.f32 %v3905, %v4319
    %v4615 = vadd.f32 %v3906, %v4545
    %v4616 = vadd.f32 %v3907, %v4322
    %v4617 = vadd.f32 %v3908, %v4548
    %v4618 = vadd.f32 %v3909, %v4325
    %v4619 = vadd.f32 %v3910, %v4551
    %v4620 = vadd.f32 %v3911, %v4328
    %v4621 = vadd.f32 %v3912, %v4554
    %v4622 = vadd.f32 %v3913, %v4331
    %v4623 = vadd.f32 %v3914, %v4557
    %v4624 = vadd.f32 %v3915, %v4334
    %v4625 = vadd.f32 %v3916, %v4560
    %vm4626 = vmand %vm211, %vm243
    %vm4627 = vmand %vm212, %vm244
    %vm4628 = vmand %vm213, %vm245
    %vm4629 = vmand %vm214, %vm246
    %vm4630 = vmand %vm215, %vm247
    %vm4631 = vmand %vm216, %vm248
    %vm4632 = vmand %vm217, %vm249
    %vm4633 = vmand %vm218, %vm250
    %vm4634 = vmand %vm219, %vm251
    %vm4635 = vmand %vm220, %vm252
    %vm4636 = vmand %vm221, %vm253
    %vm4637 = vmand %vm222, %vm254
    %vm4638 = vmand %vm223, %vm255
    %vm4639 = vmand %vm224, %vm256
    %vm4640 = vmand %vm225, %vm257
    %vm4641 = vmand %vm226, %vm258
    %vm4642 = vmand %vm227, %vm259
    %vm4643 = vmand %vm228, %vm260
    %vm4644 = vmand %vm229, %vm261
    %vm4645 = vmand %vm230, %vm262
    %vm4646 = vmand %vm231, %vm263
    %vm4647 = vmand %vm232, %vm264
    %vm4648 = vmand %vm233, %vm265
    %vm4649 = vmand %vm234, %vm266
    %vm4650 = vmand %vm235, %vm267
    %vm4651 = vmand %vm236, %vm268
    %vm4652 = vmand %vm237, %vm269
    %vm4653 = vmand %vm238, %vm270
    %vm4654 = vmand %vm239, %vm271
    %vm4655 = vmand %vm240, %vm272
    %vm4656 = vmand %vm241, %vm273
    %vm4657 = vmand %vm242, %vm274
    %v4658 = vsel %vm4626, 1, 0
    %v4659 = vsel %vm4627, 1, 0
    %v4660 = vsel %vm4628, 1, 0
    %v4661 = vsel %vm4629, 1, 0
    %v4662 = vsel %vm4630, 1, 0
    %v4663 = vsel %vm4631, 1, 0
    %v4664 = vsel %vm4632, 1, 0
    %v4665 = vsel %vm4633, 1, 0
    %v4666 = vsel %vm4634, 1, 0
    %v4667 = vsel %vm4635, 1, 0
    %v4668 = vsel %vm4636, 1, 0
    %v4669 = vsel %vm4637, 1, 0
    %v4670 = vsel %vm4638, 1, 0
    %v4671 = vsel %vm4639, 1, 0
    %v4672 = vsel %vm4640, 1, 0
    %v4673 = vsel %vm4641, 1, 0
    %v4674 = vsel %vm4642, 1, 0
    %v4675 = vsel %vm4643, 1, 0
    %v4676 = vsel %vm4644, 1, 0
    %v4677 = vsel %vm4645, 1, 0
    %v4678 = vsel %vm4646, 1, 0
    %v4679 = vsel %vm4647, 1, 0
    %v4680 = vsel %vm4648, 1, 0
    %v4681 = vsel %vm4649, 1, 0
    %v4682 = vsel %vm4650, 1, 0
    %v4683 = vsel %vm4651, 1, 0
    %v4684 = vsel %vm4652, 1, 0
    %v4685 = vsel %vm4653, 1, 0
    %v4686 = vsel %vm4654, 1, 0
    %v4687 = vsel %vm4655, 1, 0
    %v4688 = vsel %vm4656, 1, 0
    %v4689 = vsel %vm4657, 1, 0
    %vm4690 = vcmp.eq.s32.totalorder %v4658, 1
    %vm4691 = vcmp.eq.s32.totalorder %v4659, 1
    %vm4692 = vcmp.eq.s32.totalorder %v4660, 1
    %vm4693 = vcmp.eq.s32.totalorder %v4661, 1
    %vm4694 = vcmp.eq.s32.totalorder %v4662, 1
    %vm4695 = vcmp.eq.s32.totalorder %v4663, 1
    %vm4696 = vcmp.eq.s32.totalorder %v4664, 1
    %vm4697 = vcmp.eq.s32.totalorder %v4665, 1
    %vm4698 = vcmp.eq.s32.totalorder %v4666, 1
    %vm4699 = vcmp.eq.s32.totalorder %v4667, 1
    %vm4700 = vcmp.eq.s32.totalorder %v4668, 1
    %vm4701 = vcmp.eq.s32.totalorder %v4669, 1
    %vm4702 = vcmp.eq.s32.totalorder %v4670, 1
    %vm4703 = vcmp.eq.s32.totalorder %v4671, 1
    %vm4704 = vcmp.eq.s32.totalorder %v4672, 1
    %vm4705 = vcmp.eq.s32.totalorder %v4673, 1
    %vm4706 = vcmp.eq.s32.totalorder %v4674, 1
    %vm4707 = vcmp.eq.s32.totalorder %v4675, 1
    %vm4708 = vcmp.eq.s32.totalorder %v4676, 1
    %vm4709 = vcmp.eq.s32.totalorder %v4677, 1
    %vm4710 = vcmp.eq.s32.totalorder %v4678, 1
    %vm4711 = vcmp.eq.s32.totalorder %v4679, 1
    %vm4712 = vcmp.eq.s32.totalorder %v4680, 1
    %vm4713 = vcmp.eq.s32.totalorder %v4681, 1
    %vm4714 = vcmp.eq.s32.totalorder %v4682, 1
    %vm4715 = vcmp.eq.s32.totalorder %v4683, 1
    %vm4716 = vcmp.eq.s32.totalorder %v4684, 1
    %vm4717 = vcmp.eq.s32.totalorder %v4685, 1
    %vm4718 = vcmp.eq.s32.totalorder %v4686, 1
    %vm4719 = vcmp.eq.s32.totalorder %v4687, 1
    %vm4720 = vcmp.eq.s32.totalorder %v4688, 1
    %vm4721 = vcmp.eq.s32.totalorder %v4689, 1
    %v4722 = vsel %vm4690, %v432, 0.0
    %v4723 = vsel %vm4690, %v433, 0.0
    %v4724 = vsel %vm4691, %v430, 0.0
    %v4725 = vsel %vm4691, %v431, 0.0
    %v4726 = vsel %vm4692, %v428, 0.0
    %v4727 = vsel %vm4692, %v429, 0.0
    %v4728 = vsel %vm4693, %v426, 0.0
    %v4729 = vsel %vm4693, %v427, 0.0
    %v4730 = vsel %vm4694, %v424, 0.0
    %v4731 = vsel %vm4694, %v425, 0.0
    %v4732 = vsel %vm4695, %v422, 0.0
    %v4733 = vsel %vm4695, %v423, 0.0
    %v4734 = vsel %vm4696, %v420, 0.0
    %v4735 = vsel %vm4696, %v421, 0.0
    %v4736 = vsel %vm4697, %v418, 0.0
    %v4737 = vsel %vm4697, %v419, 0.0
    %v4738 = vsel %vm4698, %v416, 0.0
    %v4739 = vsel %vm4698, %v417, 0.0
    %v4740 = vsel %vm4699, %v414, 0.0
    %v4741 = vsel %vm4699, %v415, 0.0
    %v4742 = vsel %vm4700, %v412, 0.0
    %v4743 = vsel %vm4700, %v413, 0.0
    %v4744 = vsel %vm4701, %v410, 0.0
    %v4745 = vsel %vm4701, %v411, 0.0
    %v4746 = vsel %vm4702, %v408, 0.0
    %v4747 = vsel %vm4702, %v409, 0.0
    %v4748 = vsel %vm4703, %v406, 0.0
    %v4749 = vsel %vm4703, %v407, 0.0
    %v4750 = vsel %vm4704, %v404, 0.0
    %v4751 = vsel %vm4704, %v405, 0.0
    %v4752 = vsel %vm4705, %v402, 0.0
    %v4753 = vsel %vm4705, %v403, 0.0
    %v4754 = vsel %vm4706, %v400, 0.0
    %v4755 = vsel %vm4706, %v401, 0.0
    %v4756 = vsel %vm4707, %v398, 0.0
    %v4757 = vsel %vm4707, %v399, 0.0
    %v4758 = vsel %vm4708, %v396, 0.0
    %v4759 = vsel %vm4708, %v397, 0.0
    %v4760 = vsel %vm4709, %v394, 0.0
    %v4761 = vsel %vm4709, %v395, 0.0
    %v4762 = vsel %vm4710, %v392, 0.0
    %v4763 = vsel %vm4710, %v393, 0.0
    %v4764 = vsel %vm4711, %v390, 0.0
    %v4765 = vsel %vm4711, %v391, 0.0
    %v4766 = vsel %vm4712, %v388, 0.0
    %v4767 = vsel %vm4712, %v389, 0.0
    %v4768 = vsel %vm4713, %v386, 0.0
    %v4769 = vsel %vm4713, %v387, 0.0
    %v4770 = vsel %vm4714, %v384, 0.0
    %v4771 = vsel %vm4714, %v385, 0.0
    %v4772 = vsel %vm4715, %v382, 0.0
    %v4773 = vsel %vm4715, %v383, 0.0
    %v4774 = vsel %vm4716, %v380, 0.0
    %v4775 = vsel %vm4716, %v381, 0.0
    %v4776 = vsel %vm4717, %v378, 0.0
    %v4777 = vsel %vm4717, %v379, 0.0
    %v4778 = vsel %vm4718, %v376, 0.0
    %v4779 = vsel %vm4718, %v377, 0.0
    %v4780 = vsel %vm4719, %v374, 0.0
    %v4781 = vsel %vm4719, %v375, 0.0
    %v4782 = vsel %vm4720, %v372, 0.0
    %v4783 = vsel %vm4720, %v373, 0.0
    %v4784 = vsel %vm4721, %v434, 0.0
    %v4785 = vsel %vm4721, %v435, 0.0
    %s4786 = scalar_lea.vmem %s1, 3072
    %v4787 = vld [vmem:[%s4786] sm:$0xff]
    %v4788 = vld [vmem:[%s4786 + $0x8] sm:$0xff]
    %v4789 = vld [vmem:[%s4786 + $0x10] sm:$0xff]
    %v4790 = vld [vmem:[%s4786 + $0x18] sm:$0xff]
    %v4791 = vld [vmem:[%s4786 + $0x20] sm:$0xff]
    %v4792 = vld [vmem:[%s4786 + $0x28] sm:$0xff]
    %v4793 = vld [vmem:[%s4786 + $0x30] sm:$0xff]
    %v4794 = vld [vmem:[%s4786 + $0x38] sm:$0xff]
    %v4795 = vld [vmem:[%s4786 + $0x40] sm:$0xff]
    %v4796 = vld [vmem:[%s4786 + $0x48] sm:$0xff]
    %v4797 = vld [vmem:[%s4786 + $0x50] sm:$0xff]
    %v4798 = vld [vmem:[%s4786 + $0x58] sm:$0xff]
    %v4799 = vld [vmem:[%s4786 + $0x60] sm:$0xff]
    %v4800 = vld [vmem:[%s4786 + $0x68] sm:$0xff]
    %v4801 = vld [vmem:[%s4786 + $0x70] sm:$0xff]
    %v4802 = vld [vmem:[%s4786 + $0x78] sm:$0xff]
    %v4803 = vld [vmem:[%s4786 + $0x80] sm:$0xff]
    %v4804 = vld [vmem:[%s4786 + $0x88] sm:$0xff]
    %v4805 = vld [vmem:[%s4786 + $0x90] sm:$0xff]
    %v4806 = vld [vmem:[%s4786 + $0x98] sm:$0xff]
    %v4807 = vld [vmem:[%s4786 + $0xa0] sm:$0xff]
    %v4808 = vld [vmem:[%s4786 + $0xa8] sm:$0xff]
    %v4809 = vld [vmem:[%s4786 + $0xb0] sm:$0xff]
    %v4810 = vld [vmem:[%s4786 + $0xb8] sm:$0xff]
    %v4811 = vld [vmem:[%s4786 + $0xc0] sm:$0xff]
    %v4812 = vld [vmem:[%s4786 + $0xc8] sm:$0xff]
    %v4813 = vld [vmem:[%s4786 + $0xd0] sm:$0xff]
    %v4814 = vld [vmem:[%s4786 + $0xd8] sm:$0xff]
    %v4815 = vld [vmem:[%s4786 + $0xe0] sm:$0xff]
    %v4816 = vld [vmem:[%s4786 + $0xe8] sm:$0xff]
    %v4817 = vld [vmem:[%s4786 + $0xf0] sm:$0xff]
    %v4818 = vld [vmem:[%s4786 + $0xf8] sm:$0xff]
    %v4819 = vld [vmem:[%s4786 + $0x100] sm:$0xff]
    %v4820 = vld [vmem:[%s4786 + $0x108] sm:$0xff]
    %v4821 = vld [vmem:[%s4786 + $0x110] sm:$0xff]
    %v4822 = vld [vmem:[%s4786 + $0x118] sm:$0xff]
    %v4823 = vld [vmem:[%s4786 + $0x120] sm:$0xff]
    %v4824 = vld [vmem:[%s4786 + $0x128] sm:$0xff]
    %v4825 = vld [vmem:[%s4786 + $0x130] sm:$0xff]
    %v4826 = vld [vmem:[%s4786 + $0x138] sm:$0xff]
    %v4827 = vld [vmem:[%s4786 + $0x140] sm:$0xff]
    %v4828 = vld [vmem:[%s4786 + $0x148] sm:$0xff]
    %v4829 = vld [vmem:[%s4786 + $0x150] sm:$0xff]
    %v4830 = vld [vmem:[%s4786 + $0x158] sm:$0xff]
    %v4831 = vld [vmem:[%s4786 + $0x160] sm:$0xff]
    %v4832 = vld [vmem:[%s4786 + $0x168] sm:$0xff]
    %v4833 = vld [vmem:[%s4786 + $0x170] sm:$0xff]
    %v4834 = vld [vmem:[%s4786 + $0x178] sm:$0xff]
    %v4835 = vld [vmem:[%s4786 + $0x180] sm:$0xff]
    %v4836 = vld [vmem:[%s4786 + $0x188] sm:$0xff]
    %v4837 = vld [vmem:[%s4786 + $0x190] sm:$0xff]
    %v4838 = vld [vmem:[%s4786 + $0x198] sm:$0xff]
    %v4839 = vld [vmem:[%s4786 + $0x1a0] sm:$0xff]
    %v4840 = vld [vmem:[%s4786 + $0x1a8] sm:$0xff]
    %v4841 = vld [vmem:[%s4786 + $0x1b0] sm:$0xff]
    %v4842 = vld [vmem:[%s4786 + $0x1b8] sm:$0xff]
    %v4843 = vld [vmem:[%s4786 + $0x1c0] sm:$0xff]
    %v4844 = vld [vmem:[%s4786 + $0x1c8] sm:$0xff]
    %v4845 = vld [vmem:[%s4786 + $0x1d0] sm:$0xff]
    %v4846 = vld [vmem:[%s4786 + $0x1d8] sm:$0xff]
    %v4847 = vld [vmem:[%s4786 + $0x1e0] sm:$0xff]
    %v4848 = vld [vmem:[%s4786 + $0x1e8] sm:$0xff]
    %v4849 = vld [vmem:[%s4786 + $0x1f0] sm:$0xff]
    %v4850 = vld [vmem:[%s4786 + $0x1f8] sm:$0xff]
    %4851 = vmatpush.msra.mxu0 %v4817
    %4852 = vmatpush.msra.mxu0 %v4815
    %4853 = vmatpush.msra.mxu0 %v4813
    %4854 = vmatpush.msra.mxu0 %v4811
    %4855 = vmatpush.msra.mxu0 %v4809
    %4856 = vmatpush.msra.mxu0 %v4807
    %4857 = vmatpush.msra.mxu0 %v4805
    %4858 = vmatpush.msra.mxu0 %v4803
    %4859 = vmatpush.msra.mxu0 %v4801
    %4860 = vmatpush.msra.mxu0 %v4799
    %4861 = vmatpush.msra.mxu0 %v4797
    %4862 = vmatpush.msra.mxu0 %v4795
    %4863 = vmatpush.msra.mxu0 %v4793
    %4864 = vmatpush.msra.mxu0 %v4791
    %4865 = vmatpush.msra.mxu0 %v4789
    %4866 = vmatpush.msra.mxu0 %v4787
    %4867 = vmatmul.f32.gmra.mxu0 %v4722
    %v4868 = vpop.f32.mrf.mxu0
    %v4869 = vadd.f32 0.0, %v4868
    %4870 = vmatmul.f32.gmra.mxu0 %v4724
    %v4871 = vpop.f32.mrf.mxu0
    %v4872 = vadd.f32 0.0, %v4871
    %4873 = vmatmul.f32.gmra.mxu0 %v4726
    %v4874 = vpop.f32.mrf.mxu0
    %v4875 = vadd.f32 0.0, %v4874
    %4876 = vmatmul.f32.gmra.mxu0 %v4728
    %v4877 = vpop.f32.mrf.mxu0
    %v4878 = vadd.f32 0.0, %v4877
    %4879 = vmatmul.f32.gmra.mxu0 %v4730
    %v4880 = vpop.f32.mrf.mxu0
    %v4881 = vadd.f32 0.0, %v4880
    %4882 = vmatmul.f32.gmra.mxu0 %v4732
    %v4883 = vpop.f32.mrf.mxu0
    %v4884 = vadd.f32 0.0, %v4883
    %4885 = vmatmul.f32.gmra.mxu0 %v4734
    %v4886 = vpop.f32.mrf.mxu0
    %v4887 = vadd.f32 0.0, %v4886
    %4888 = vmatmul.f32.gmra.mxu0 %v4736
    %v4889 = vpop.f32.mrf.mxu0
    %v4890 = vadd.f32 0.0, %v4889
    %4891 = vmatmul.f32.gmra.mxu0 %v4738
    %v4892 = vpop.f32.mrf.mxu0
    %v4893 = vadd.f32 0.0, %v4892
    %4894 = vmatmul.f32.gmra.mxu0 %v4740
    %v4895 = vpop.f32.mrf.mxu0
    %v4896 = vadd.f32 0.0, %v4895
    %4897 = vmatmul.f32.gmra.mxu0 %v4742
    %v4898 = vpop.f32.mrf.mxu0
    %v4899 = vadd.f32 0.0, %v4898
    %4900 = vmatmul.f32.gmra.mxu0 %v4744
    %v4901 = vpop.f32.mrf.mxu0
    %v4902 = vadd.f32 0.0, %v4901
    %4903 = vmatmul.f32.gmra.mxu0 %v4746
    %v4904 = vpop.f32.mrf.mxu0
    %v4905 = vadd.f32 0.0, %v4904
    %4906 = vmatmul.f32.gmra.mxu0 %v4748
    %v4907 = vpop.f32.mrf.mxu0
    %v4908 = vadd.f32 0.0, %v4907
    %4909 = vmatmul.f32.gmra.mxu0 %v4750
    %v4910 = vpop.f32.mrf.mxu0
    %v4911 = vadd.f32 0.0, %v4910
    %4912 = vmatmul.f32.gmra.mxu0 %v4752
    %v4913 = vpop.f32.mrf.mxu0
    %v4914 = vadd.f32 0.0, %v4913
    %4915 = vmatmul.f32.gmra.mxu0 %v4754
    %v4916 = vpop.f32.mrf.mxu0
    %v4917 = vadd.f32 0.0, %v4916
    %4918 = vmatmul.f32.gmra.mxu0 %v4756
    %v4919 = vpop.f32.mrf.mxu0
    %v4920 = vadd.f32 0.0, %v4919
    %4921 = vmatmul.f32.gmra.mxu0 %v4758
    %v4922 = vpop.f32.mrf.mxu0
    %v4923 = vadd.f32 0.0, %v4922
    %4924 = vmatmul.f32.gmra.mxu0 %v4760
    %v4925 = vpop.f32.mrf.mxu0
    %v4926 = vadd.f32 0.0, %v4925
    %4927 = vmatmul.f32.gmra.mxu0 %v4762
    %v4928 = vpop.f32.mrf.mxu0
    %v4929 = vadd.f32 0.0, %v4928
    %4930 = vmatmul.f32.gmra.mxu0 %v4764
    %v4931 = vpop.f32.mrf.mxu0
    %v4932 = vadd.f32 0.0, %v4931
    %4933 = vmatmul.f32.gmra.mxu0 %v4766
    %v4934 = vpop.f32.mrf.mxu0
    %v4935 = vadd.f32 0.0, %v4934
    %4936 = vmatmul.f32.gmra.mxu0 %v4768
    %v4937 = vpop.f32.mrf.mxu0
    %v4938 = vadd.f32 0.0, %v4937
    %4939 = vmatmul.f32.gmra.mxu0 %v4770
    %v4940 = vpop.f32.mrf.mxu0
    %v4941 = vadd.f32 0.0, %v4940
    %4942 = vmatmul.f32.gmra.mxu0 %v4772
    %v4943 = vpop.f32.mrf.mxu0
    %v4944 = vadd.f32 0.0, %v4943
    %4945 = vmatmul.f32.gmra.mxu0 %v4774
    %v4946 = vpop.f32.mrf.mxu0
    %v4947 = vadd.f32 0.0, %v4946
    %4948 = vmatmul.f32.gmra.mxu0 %v4776
    %v4949 = vpop.f32.mrf.mxu0
    %v4950 = vadd.f32 0.0, %v4949
    %4951 = vmatmul.f32.gmra.mxu0 %v4778
    %v4952 = vpop.f32.mrf.mxu0
    %v4953 = vadd.f32 0.0, %v4952
    %4954 = vmatmul.f32.gmra.mxu0 %v4780
    %v4955 = vpop.f32.mrf.mxu0
    %v4956 = vadd.f32 0.0, %v4955
    %4957 = vmatmul.f32.gmra.mxu0 %v4782
    %v4958 = vpop.f32.mrf.mxu0
    %v4959 = vadd.f32 0.0, %v4958
    %4960 = vmatmul.f32.gmra.mxu0 %v4784
    %v4961 = vpop.f32.mrf.mxu0
    %v4962 = vadd.f32 0.0, %v4961
    %4963 = vdwg.mxu0
    %4964 = vmatpush.msra.mxu0 %v4849
    %4965 = vmatpush.msra.mxu0 %v4847
    %4966 = vmatpush.msra.mxu0 %v4845
    %4967 = vmatpush.msra.mxu0 %v4843
    %4968 = vmatpush.msra.mxu0 %v4841
    %4969 = vmatpush.msra.mxu0 %v4839
    %4970 = vmatpush.msra.mxu0 %v4837
    %4971 = vmatpush.msra.mxu0 %v4835
    %4972 = vmatpush.msra.mxu0 %v4833
    %4973 = vmatpush.msra.mxu0 %v4831
    %4974 = vmatpush.msra.mxu0 %v4829
    %4975 = vmatpush.msra.mxu0 %v4827
    %4976 = vmatpush.msra.mxu0 %v4825
    %4977 = vmatpush.msra.mxu0 %v4823
    %4978 = vmatpush.msra.mxu0 %v4821
    %4979 = vmatpush.msra.mxu0 %v4819
    %4980 = vmatmul.f32.gmra.mxu0 %v4723
    %v4981 = vpop.f32.mrf.mxu0
    %v4982 = vadd.f32 %v4869, %v4981
    %4983 = vmatmul.f32.gmra.mxu0 %v4725
    %v4984 = vpop.f32.mrf.mxu0
    %v4985 = vadd.f32 %v4872, %v4984
    %4986 = vmatmul.f32.gmra.mxu0 %v4727
    %v4987 = vpop.f32.mrf.mxu0
    %v4988 = vadd.f32 %v4875, %v4987
    %4989 = vmatmul.f32.gmra.mxu0 %v4729
    %v4990 = vpop.f32.mrf.mxu0
    %v4991 = vadd.f32 %v4878, %v4990
    %4992 = vmatmul.f32.gmra.mxu0 %v4731
    %v4993 = vpop.f32.mrf.mxu0
    %v4994 = vadd.f32 %v4881, %v4993
    %4995 = vmatmul.f32.gmra.mxu0 %v4733
    %v4996 = vpop.f32.mrf.mxu0
    %v4997 = vadd.f32 %v4884, %v4996
    %4998 = vmatmul.f32.gmra.mxu0 %v4735
    %v4999 = vpop.f32.mrf.mxu0
    %v5000 = vadd.f32 %v4887, %v4999
    %5001 = vmatmul.f32.gmra.mxu0 %v4737
    %v5002 = vpop.f32.mrf.mxu0
    %v5003 = vadd.f32 %v4890, %v5002
    %5004 = vmatmul.f32.gmra.mxu0 %v4739
    %v5005 = vpop.f32.mrf.mxu0
    %v5006 = vadd.f32 %v4893, %v5005
    %5007 = vmatmul.f32.gmra.mxu0 %v4741
    %v5008 = vpop.f32.mrf.mxu0
    %v5009 = vadd.f32 %v4896, %v5008
    %5010 = vmatmul.f32.gmra.mxu0 %v4743
    %v5011 = vpop.f32.mrf.mxu0
    %v5012 = vadd.f32 %v4899, %v5011
    %5013 = vmatmul.f32.gmra.mxu0 %v4745
    %v5014 = vpop.f32.mrf.mxu0
    %v5015 = vadd.f32 %v4902, %v5014
    %5016 = vmatmul.f32.gmra.mxu0 %v4747
    %v5017 = vpop.f32.mrf.mxu0
    %v5018 = vadd.f32 %v4905, %v5017
    %5019 = vmatmul.f32.gmra.mxu0 %v4749
    %v5020 = vpop.f32.mrf.mxu0
    %v5021 = vadd.f32 %v4908, %v5020
    %5022 = vmatmul.f32.gmra.mxu0 %v4751
    %v5023 = vpop.f32.mrf.mxu0
    %v5024 = vadd.f32 %v4911, %v5023
    %5025 = vmatmul.f32.gmra.mxu0 %v4753
    %v5026 = vpop.f32.mrf.mxu0
    %v5027 = vadd.f32 %v4914, %v5026
    %5028 = vmatmul.f32.gmra.mxu0 %v4755
    %v5029 = vpop.f32.mrf.mxu0
    %v5030 = vadd.f32 %v4917, %v5029
    %5031 = vmatmul.f32.gmra.mxu0 %v4757
    %v5032 = vpop.f32.mrf.mxu0
    %v5033 = vadd.f32 %v4920, %v5032
    %5034 = vmatmul.f32.gmra.mxu0 %v4759
    %v5035 = vpop.f32.mrf.mxu0
    %v5036 = vadd.f32 %v4923, %v5035
    %5037 = vmatmul.f32.gmra.mxu0 %v4761
    %v5038 = vpop.f32.mrf.mxu0
    %v5039 = vadd.f32 %v4926, %v5038
    %5040 = vmatmul.f32.gmra.mxu0 %v4763
    %v5041 = vpop.f32.mrf.mxu0
    %v5042 = vadd.f32 %v4929, %v5041
    %5043 = vmatmul.f32.gmra.mxu0 %v4765
    %v5044 = vpop.f32.mrf.mxu0
    %v5045 = vadd.f32 %v4932, %v5044
    %5046 = vmatmul.f32.gmra.mxu0 %v4767
    %v5047 = vpop.f32.mrf.mxu0
    %v5048 = vadd.f32 %v4935, %v5047
    %5049 = vmatmul.f32.gmra.mxu0 %v4769
    %v5050 = vpop.f32.mrf.mxu0
    %v5051 = vadd.f32 %v4938, %v5050
    %5052 = vmatmul.f32.gmra.mxu0 %v4771
    %v5053 = vpop.f32.mrf.mxu0
    %v5054 = vadd.f32 %v4941, %v5053
    %5055 = vmatmul.f32.gmra.mxu0 %v4773
    %v5056 = vpop.f32.mrf.mxu0
    %v5057 = vadd.f32 %v4944, %v5056
    %5058 = vmatmul.f32.gmra.mxu0 %v4775
    %v5059 = vpop.f32.mrf.mxu0
    %v5060 = vadd.f32 %v4947, %v5059
    %5061 = vmatmul.f32.gmra.mxu0 %v4777
    %v5062 = vpop.f32.mrf.mxu0
    %v5063 = vadd.f32 %v4950, %v5062
    %5064 = vmatmul.f32.gmra.mxu0 %v4779
    %v5065 = vpop.f32.mrf.mxu0
    %v5066 = vadd.f32 %v4953, %v5065
    %5067 = vmatmul.f32.gmra.mxu0 %v4781
    %v5068 = vpop.f32.mrf.mxu0
    %v5069 = vadd.f32 %v4956, %v5068
    %5070 = vmatmul.f32.gmra.mxu0 %v4783
    %v5071 = vpop.f32.mrf.mxu0
    %v5072 = vadd.f32 %v4959, %v5071
    %5073 = vmatmul.f32.gmra.mxu0 %v4785
    %v5074 = vpop.f32.mrf.mxu0
    %v5075 = vadd.f32 %v4962, %v5074
    %5076 = vdwg.mxu0
    %5077 = vmatpush.msra.mxu0 %v4818
    %5078 = vmatpush.msra.mxu0 %v4816
    %5079 = vmatpush.msra.mxu0 %v4814
    %5080 = vmatpush.msra.mxu0 %v4812
    %5081 = vmatpush.msra.mxu0 %v4810
    %5082 = vmatpush.msra.mxu0 %v4808
    %5083 = vmatpush.msra.mxu0 %v4806
    %5084 = vmatpush.msra.mxu0 %v4804
    %5085 = vmatpush.msra.mxu0 %v4802
    %5086 = vmatpush.msra.mxu0 %v4800
    %5087 = vmatpush.msra.mxu0 %v4798
    %5088 = vmatpush.msra.mxu0 %v4796
    %5089 = vmatpush.msra.mxu0 %v4794
    %5090 = vmatpush.msra.mxu0 %v4792
    %5091 = vmatpush.msra.mxu0 %v4790
    %5092 = vmatpush.msra.mxu0 %v4788
    %5093 = vmatmul.f32.gmra.mxu0 %v4722
    %v5094 = vpop.f32.mrf.mxu0
    %v5095 = vadd.f32 0.0, %v5094
    %5096 = vmatmul.f32.gmra.mxu0 %v4724
    %v5097 = vpop.f32.mrf.mxu0
    %v5098 = vadd.f32 0.0, %v5097
    %5099 = vmatmul.f32.gmra.mxu0 %v4726
    %v5100 = vpop.f32.mrf.mxu0
    %v5101 = vadd.f32 0.0, %v5100
    %5102 = vmatmul.f32.gmra.mxu0 %v4728
    %v5103 = vpop.f32.mrf.mxu0
    %v5104 = vadd.f32 0.0, %v5103
    %5105 = vmatmul.f32.gmra.mxu0 %v4730
    %v5106 = vpop.f32.mrf.mxu0
    %v5107 = vadd.f32 0.0, %v5106
    %5108 = vmatmul.f32.gmra.mxu0 %v4732
    %v5109 = vpop.f32.mrf.mxu0
    %v5110 = vadd.f32 0.0, %v5109
    %5111 = vmatmul.f32.gmra.mxu0 %v4734
    %v5112 = vpop.f32.mrf.mxu0
    %v5113 = vadd.f32 0.0, %v5112
    %5114 = vmatmul.f32.gmra.mxu0 %v4736
    %v5115 = vpop.f32.mrf.mxu0
    %v5116 = vadd.f32 0.0, %v5115
    %5117 = vmatmul.f32.gmra.mxu0 %v4738
    %v5118 = vpop.f32.mrf.mxu0
    %v5119 = vadd.f32 0.0, %v5118
    %5120 = vmatmul.f32.gmra.mxu0 %v4740
    %v5121 = vpop.f32.mrf.mxu0
    %v5122 = vadd.f32 0.0, %v5121
    %5123 = vmatmul.f32.gmra.mxu0 %v4742
    %v5124 = vpop.f32.mrf.mxu0
    %v5125 = vadd.f32 0.0, %v5124
    %5126 = vmatmul.f32.gmra.mxu0 %v4744
    %v5127 = vpop.f32.mrf.mxu0
    %v5128 = vadd.f32 0.0, %v5127
    %5129 = vmatmul.f32.gmra.mxu0 %v4746
    %v5130 = vpop.f32.mrf.mxu0
    %v5131 = vadd.f32 0.0, %v5130
    %5132 = vmatmul.f32.gmra.mxu0 %v4748
    %v5133 = vpop.f32.mrf.mxu0
    %v5134 = vadd.f32 0.0, %v5133
    %5135 = vmatmul.f32.gmra.mxu0 %v4750
    %v5136 = vpop.f32.mrf.mxu0
    %v5137 = vadd.f32 0.0, %v5136
    %5138 = vmatmul.f32.gmra.mxu0 %v4752
    %v5139 = vpop.f32.mrf.mxu0
    %v5140 = vadd.f32 0.0, %v5139
    %5141 = vmatmul.f32.gmra.mxu0 %v4754
    %v5142 = vpop.f32.mrf.mxu0
    %v5143 = vadd.f32 0.0, %v5142
    %5144 = vmatmul.f32.gmra.mxu0 %v4756
    %v5145 = vpop.f32.mrf.mxu0
    %v5146 = vadd.f32 0.0, %v5145
    %5147 = vmatmul.f32.gmra.mxu0 %v4758
    %v5148 = vpop.f32.mrf.mxu0
    %v5149 = vadd.f32 0.0, %v5148
    %5150 = vmatmul.f32.gmra.mxu0 %v4760
    %v5151 = vpop.f32.mrf.mxu0
    %v5152 = vadd.f32 0.0, %v5151
    %5153 = vmatmul.f32.gmra.mxu0 %v4762
    %v5154 = vpop.f32.mrf.mxu0
    %v5155 = vadd.f32 0.0, %v5154
    %5156 = vmatmul.f32.gmra.mxu0 %v4764
    %v5157 = vpop.f32.mrf.mxu0
    %v5158 = vadd.f32 0.0, %v5157
    %5159 = vmatmul.f32.gmra.mxu0 %v4766
    %v5160 = vpop.f32.mrf.mxu0
    %v5161 = vadd.f32 0.0, %v5160
    %5162 = vmatmul.f32.gmra.mxu0 %v4768
    %v5163 = vpop.f32.mrf.mxu0
    %v5164 = vadd.f32 0.0, %v5163
    %5165 = vmatmul.f32.gmra.mxu0 %v4770
    %v5166 = vpop.f32.mrf.mxu0
    %v5167 = vadd.f32 0.0, %v5166
    %5168 = vmatmul.f32.gmra.mxu0 %v4772
    %v5169 = vpop.f32.mrf.mxu0
    %v5170 = vadd.f32 0.0, %v5169
    %5171 = vmatmul.f32.gmra.mxu0 %v4774
    %v5172 = vpop.f32.mrf.mxu0
    %v5173 = vadd.f32 0.0, %v5172
    %5174 = vmatmul.f32.gmra.mxu0 %v4776
    %v5175 = vpop.f32.mrf.mxu0
    %v5176 = vadd.f32 0.0, %v5175
    %5177 = vmatmul.f32.gmra.mxu0 %v4778
    %v5178 = vpop.f32.mrf.mxu0
    %v5179 = vadd.f32 0.0, %v5178
    %5180 = vmatmul.f32.gmra.mxu0 %v4780
    %v5181 = vpop.f32.mrf.mxu0
    %v5182 = vadd.f32 0.0, %v5181
    %5183 = vmatmul.f32.gmra.mxu0 %v4782
    %v5184 = vpop.f32.mrf.mxu0
    %v5185 = vadd.f32 0.0, %v5184
    %5186 = vmatmul.f32.gmra.mxu0 %v4784
    %v5187 = vpop.f32.mrf.mxu0
    %v5188 = vadd.f32 0.0, %v5187
    %5189 = vdwg.mxu0
    %5190 = vmatpush.msra.mxu0 %v4850
    %5191 = vmatpush.msra.mxu0 %v4848
    %5192 = vmatpush.msra.mxu0 %v4846
    %5193 = vmatpush.msra.mxu0 %v4844
    %5194 = vmatpush.msra.mxu0 %v4842
    %5195 = vmatpush.msra.mxu0 %v4840
    %5196 = vmatpush.msra.mxu0 %v4838
    %5197 = vmatpush.msra.mxu0 %v4836
    %5198 = vmatpush.msra.mxu0 %v4834
    %5199 = vmatpush.msra.mxu0 %v4832
    %5200 = vmatpush.msra.mxu0 %v4830
    %5201 = vmatpush.msra.mxu0 %v4828
    %5202 = vmatpush.msra.mxu0 %v4826
    %5203 = vmatpush.msra.mxu0 %v4824
    %5204 = vmatpush.msra.mxu0 %v4822
    %5205 = vmatpush.msra.mxu0 %v4820
    %5206 = vmatmul.f32.gmra.mxu0 %v4723
    %v5207 = vpop.f32.mrf.mxu0
    %v5208 = vadd.f32 %v5095, %v5207
    %5209 = vmatmul.f32.gmra.mxu0 %v4725
    %v5210 = vpop.f32.mrf.mxu0
    %v5211 = vadd.f32 %v5098, %v5210
    %5212 = vmatmul.f32.gmra.mxu0 %v4727
    %v5213 = vpop.f32.mrf.mxu0
    %v5214 = vadd.f32 %v5101, %v5213
    %5215 = vmatmul.f32.gmra.mxu0 %v4729
    %v5216 = vpop.f32.mrf.mxu0
    %v5217 = vadd.f32 %v5104, %v5216
    %5218 = vmatmul.f32.gmra.mxu0 %v4731
    %v5219 = vpop.f32.mrf.mxu0
    %v5220 = vadd.f32 %v5107, %v5219
    %5221 = vmatmul.f32.gmra.mxu0 %v4733
    %v5222 = vpop.f32.mrf.mxu0
    %v5223 = vadd.f32 %v5110, %v5222
    %5224 = vmatmul.f32.gmra.mxu0 %v4735
    %v5225 = vpop.f32.mrf.mxu0
    %v5226 = vadd.f32 %v5113, %v5225
    %5227 = vmatmul.f32.gmra.mxu0 %v4737
    %v5228 = vpop.f32.mrf.mxu0
    %v5229 = vadd.f32 %v5116, %v5228
    %5230 = vmatmul.f32.gmra.mxu0 %v4739
    %v5231 = vpop.f32.mrf.mxu0
    %v5232 = vadd.f32 %v5119, %v5231
    %5233 = vmatmul.f32.gmra.mxu0 %v4741
    %v5234 = vpop.f32.mrf.mxu0
    %v5235 = vadd.f32 %v5122, %v5234
    %5236 = vmatmul.f32.gmra.mxu0 %v4743
    %v5237 = vpop.f32.mrf.mxu0
    %v5238 = vadd.f32 %v5125, %v5237
    %5239 = vmatmul.f32.gmra.mxu0 %v4745
    %v5240 = vpop.f32.mrf.mxu0
    %v5241 = vadd.f32 %v5128, %v5240
    %5242 = vmatmul.f32.gmra.mxu0 %v4747
    %v5243 = vpop.f32.mrf.mxu0
    %v5244 = vadd.f32 %v5131, %v5243
    %5245 = vmatmul.f32.gmra.mxu0 %v4749
    %v5246 = vpop.f32.mrf.mxu0
    %v5247 = vadd.f32 %v5134, %v5246
    %5248 = vmatmul.f32.gmra.mxu0 %v4751
    %v5249 = vpop.f32.mrf.mxu0
    %v5250 = vadd.f32 %v5137, %v5249
    %5251 = vmatmul.f32.gmra.mxu0 %v4753
    %v5252 = vpop.f32.mrf.mxu0
    %v5253 = vadd.f32 %v5140, %v5252
    %5254 = vmatmul.f32.gmra.mxu0 %v4755
    %v5255 = vpop.f32.mrf.mxu0
    %v5256 = vadd.f32 %v5143, %v5255
    %5257 = vmatmul.f32.gmra.mxu0 %v4757
    %v5258 = vpop.f32.mrf.mxu0
    %v5259 = vadd.f32 %v5146, %v5258
    %5260 = vmatmul.f32.gmra.mxu0 %v4759
    %v5261 = vpop.f32.mrf.mxu0
    %v5262 = vadd.f32 %v5149, %v5261
    %5263 = vmatmul.f32.gmra.mxu0 %v4761
    %v5264 = vpop.f32.mrf.mxu0
    %v5265 = vadd.f32 %v5152, %v5264
    %5266 = vmatmul.f32.gmra.mxu0 %v4763
    %v5267 = vpop.f32.mrf.mxu0
    %v5268 = vadd.f32 %v5155, %v5267
    %5269 = vmatmul.f32.gmra.mxu0 %v4765
    %v5270 = vpop.f32.mrf.mxu0
    %v5271 = vadd.f32 %v5158, %v5270
    %5272 = vmatmul.f32.gmra.mxu0 %v4767
    %v5273 = vpop.f32.mrf.mxu0
    %v5274 = vadd.f32 %v5161, %v5273
    %5275 = vmatmul.f32.gmra.mxu0 %v4769
    %v5276 = vpop.f32.mrf.mxu0
    %v5277 = vadd.f32 %v5164, %v5276
    %5278 = vmatmul.f32.gmra.mxu0 %v4771
    %v5279 = vpop.f32.mrf.mxu0
    %v5280 = vadd.f32 %v5167, %v5279
    %5281 = vmatmul.f32.gmra.mxu0 %v4773
    %v5282 = vpop.f32.mrf.mxu0
    %v5283 = vadd.f32 %v5170, %v5282
    %5284 = vmatmul.f32.gmra.mxu0 %v4775
    %v5285 = vpop.f32.mrf.mxu0
    %v5286 = vadd.f32 %v5173, %v5285
    %5287 = vmatmul.f32.gmra.mxu0 %v4777
    %v5288 = vpop.f32.mrf.mxu0
    %v5289 = vadd.f32 %v5176, %v5288
    %5290 = vmatmul.f32.gmra.mxu0 %v4779
    %v5291 = vpop.f32.mrf.mxu0
    %v5292 = vadd.f32 %v5179, %v5291
    %5293 = vmatmul.f32.gmra.mxu0 %v4781
    %v5294 = vpop.f32.mrf.mxu0
    %v5295 = vadd.f32 %v5182, %v5294
    %5296 = vmatmul.f32.gmra.mxu0 %v4783
    %v5297 = vpop.f32.mrf.mxu0
    %v5298 = vadd.f32 %v5185, %v5297
    %5299 = vmatmul.f32.gmra.mxu0 %v4785
    %v5300 = vpop.f32.mrf.mxu0
    %v5301 = vadd.f32 %v5188, %v5300
    %5302 = vdwg.mxu0
    %v5303 = vadd.f32 %v4562, %v4982
    %v5304 = vadd.f32 %v4563, %v5208
    %v5305 = vadd.f32 %v4564, %v4985
    %v5306 = vadd.f32 %v4565, %v5211
    %v5307 = vadd.f32 %v4566, %v4988
    %v5308 = vadd.f32 %v4567, %v5214
    %v5309 = vadd.f32 %v4568, %v4991
    %v5310 = vadd.f32 %v4569, %v5217
    %v5311 = vadd.f32 %v4570, %v4994
    %v5312 = vadd.f32 %v4571, %v5220
    %v5313 = vadd.f32 %v4572, %v4997
    %v5314 = vadd.f32 %v4573, %v5223
    %v5315 = vadd.f32 %v4574, %v5000
    %v5316 = vadd.f32 %v4575, %v5226
    %v5317 = vadd.f32 %v4576, %v5003
    %v5318 = vadd.f32 %v4577, %v5229
    %v5319 = vadd.f32 %v4578, %v5006
    %v5320 = vadd.f32 %v4579, %v5232
    %v5321 = vadd.f32 %v4580, %v5009
    %v5322 = vadd.f32 %v4581, %v5235
    %v5323 = vadd.f32 %v4582, %v5012
    %v5324 = vadd.f32 %v4583, %v5238
    %v5325 = vadd.f32 %v4584, %v5015
    %v5326 = vadd.f32 %v4585, %v5241
    %v5327 = vadd.f32 %v4586, %v5018
    %v5328 = vadd.f32 %v4587, %v5244
    %v5329 = vadd.f32 %v4588, %v5021
    %v5330 = vadd.f32 %v4589, %v5247
    %v5331 = vadd.f32 %v4590, %v5024
    %v5332 = vadd.f32 %v4591, %v5250
    %v5333 = vadd.f32 %v4592, %v5027
    %v5334 = vadd.f32 %v4593, %v5253
    %v5335 = vadd.f32 %v4594, %v5030
    %v5336 = vadd.f32 %v4595, %v5256
    %v5337 = vadd.f32 %v4596, %v5033
    %v5338 = vadd.f32 %v4597, %v5259
    %v5339 = vadd.f32 %v4598, %v5036
    %v5340 = vadd.f32 %v4599, %v5262
    %v5341 = vadd.f32 %v4600, %v5039
    %v5342 = vadd.f32 %v4601, %v5265
    %v5343 = vadd.f32 %v4602, %v5042
    %v5344 = vadd.f32 %v4603, %v5268
    %v5345 = vadd.f32 %v4604, %v5045
    %v5346 = vadd.f32 %v4605, %v5271
    %v5347 = vadd.f32 %v4606, %v5048
    %v5348 = vadd.f32 %v4607, %v5274
    %v5349 = vadd.f32 %v4608, %v5051
    %v5350 = vadd.f32 %v4609, %v5277
    %v5351 = vadd.f32 %v4610, %v5054
    %v5352 = vadd.f32 %v4611, %v5280
    %v5353 = vadd.f32 %v4612, %v5057
    %v5354 = vadd.f32 %v4613, %v5283
    %v5355 = vadd.f32 %v4614, %v5060
    %v5356 = vadd.f32 %v4615, %v5286
    %v5357 = vadd.f32 %v4616, %v5063
    %v5358 = vadd.f32 %v4617, %v5289
    %v5359 = vadd.f32 %v4618, %v5066
    %v5360 = vadd.f32 %v4619, %v5292
    %v5361 = vadd.f32 %v4620, %v5069
    %v5362 = vadd.f32 %v4621, %v5295
    %v5363 = vadd.f32 %v4622, %v5072
    %v5364 = vadd.f32 %v4623, %v5298
    %v5365 = vadd.f32 %v4624, %v5075
    %v5366 = vadd.f32 %v4625, %v5301
    %v5367 = vsel %vm211, 1, 0
    %v5368 = vsel %vm212, 1, 0
    %v5369 = vsel %vm213, 1, 0
    %v5370 = vsel %vm214, 1, 0
    %v5371 = vsel %vm215, 1, 0
    %v5372 = vsel %vm216, 1, 0
    %v5373 = vsel %vm217, 1, 0
    %v5374 = vsel %vm218, 1, 0
    %v5375 = vsel %vm219, 1, 0
    %v5376 = vsel %vm220, 1, 0
    %v5377 = vsel %vm221, 1, 0
    %v5378 = vsel %vm222, 1, 0
    %v5379 = vsel %vm223, 1, 0
    %v5380 = vsel %vm224, 1, 0
    %v5381 = vsel %vm225, 1, 0
    %v5382 = vsel %vm226, 1, 0
    %v5383 = vsel %vm227, 1, 0
    %v5384 = vsel %vm228, 1, 0
    %v5385 = vsel %vm229, 1, 0
    %v5386 = vsel %vm230, 1, 0
    %v5387 = vsel %vm231, 1, 0
    %v5388 = vsel %vm232, 1, 0
    %v5389 = vsel %vm233, 1, 0
    %v5390 = vsel %vm234, 1, 0
    %v5391 = vsel %vm235, 1, 0
    %v5392 = vsel %vm236, 1, 0
    %v5393 = vsel %vm237, 1, 0
    %v5394 = vsel %vm238, 1, 0
    %v5395 = vsel %vm239, 1, 0
    %v5396 = vsel %vm240, 1, 0
    %v5397 = vsel %vm241, 1, 0
    %v5398 = vsel %vm242, 1, 0
    %vm5399 = vcmp.eq.s32.totalorder %v5367, 1
    %vm5400 = vcmp.eq.s32.totalorder %v5368, 1
    %vm5401 = vcmp.eq.s32.totalorder %v5369, 1
    %vm5402 = vcmp.eq.s32.totalorder %v5370, 1
    %vm5403 = vcmp.eq.s32.totalorder %v5371, 1
    %vm5404 = vcmp.eq.s32.totalorder %v5372, 1
    %vm5405 = vcmp.eq.s32.totalorder %v5373, 1
    %vm5406 = vcmp.eq.s32.totalorder %v5374, 1
    %vm5407 = vcmp.eq.s32.totalorder %v5375, 1
    %vm5408 = vcmp.eq.s32.totalorder %v5376, 1
    %vm5409 = vcmp.eq.s32.totalorder %v5377, 1
    %vm5410 = vcmp.eq.s32.totalorder %v5378, 1
    %vm5411 = vcmp.eq.s32.totalorder %v5379, 1
    %vm5412 = vcmp.eq.s32.totalorder %v5380, 1
    %vm5413 = vcmp.eq.s32.totalorder %v5381, 1
    %vm5414 = vcmp.eq.s32.totalorder %v5382, 1
    %vm5415 = vcmp.eq.s32.totalorder %v5383, 1
    %vm5416 = vcmp.eq.s32.totalorder %v5384, 1
    %vm5417 = vcmp.eq.s32.totalorder %v5385, 1
    %vm5418 = vcmp.eq.s32.totalorder %v5386, 1
    %vm5419 = vcmp.eq.s32.totalorder %v5387, 1
    %vm5420 = vcmp.eq.s32.totalorder %v5388, 1
    %vm5421 = vcmp.eq.s32.totalorder %v5389, 1
    %vm5422 = vcmp.eq.s32.totalorder %v5390, 1
    %vm5423 = vcmp.eq.s32.totalorder %v5391, 1
    %vm5424 = vcmp.eq.s32.totalorder %v5392, 1
    %vm5425 = vcmp.eq.s32.totalorder %v5393, 1
    %vm5426 = vcmp.eq.s32.totalorder %v5394, 1
    %vm5427 = vcmp.eq.s32.totalorder %v5395, 1
    %vm5428 = vcmp.eq.s32.totalorder %v5396, 1
    %vm5429 = vcmp.eq.s32.totalorder %v5397, 1
    %vm5430 = vcmp.eq.s32.totalorder %v5398, 1
    %v5431 = vsel %vm5399, %v20, 0.0
    %v5432 = vsel %vm5399, %v21, 0.0
    %v5433 = vsel %vm5400, %v22, 0.0
    %v5434 = vsel %vm5400, %v23, 0.0
    %v5435 = vsel %vm5401, %v24, 0.0
    %v5436 = vsel %vm5401, %v25, 0.0
    %v5437 = vsel %vm5402, %v26, 0.0
    %v5438 = vsel %vm5402, %v27, 0.0
    %v5439 = vsel %vm5403, %v28, 0.0
    %v5440 = vsel %vm5403, %v29, 0.0
    %v5441 = vsel %vm5404, %v30, 0.0
    %v5442 = vsel %vm5404, %v31, 0.0
    %v5443 = vsel %vm5405, %v32, 0.0
    %v5444 = vsel %vm5405, %v33, 0.0
    %v5445 = vsel %vm5406, %v34, 0.0
    %v5446 = vsel %vm5406, %v35, 0.0
    %v5447 = vsel %vm5407, %v36, 0.0
    %v5448 = vsel %vm5407, %v37, 0.0
    %v5449 = vsel %vm5408, %v38, 0.0
    %v5450 = vsel %vm5408, %v39, 0.0
    %v5451 = vsel %vm5409, %v40, 0.0
    %v5452 = vsel %vm5409, %v41, 0.0
    %v5453 = vsel %vm5410, %v42, 0.0
    %v5454 = vsel %vm5410, %v43, 0.0
    %v5455 = vsel %vm5411, %v44, 0.0
    %v5456 = vsel %vm5411, %v45, 0.0
    %v5457 = vsel %vm5412, %v46, 0.0
    %v5458 = vsel %vm5412, %v47, 0.0
    %v5459 = vsel %vm5413, %v48, 0.0
    %v5460 = vsel %vm5413, %v49, 0.0
    %v5461 = vsel %vm5414, %v50, 0.0
    %v5462 = vsel %vm5414, %v51, 0.0
    %v5463 = vsel %vm5415, %v52, 0.0
    %v5464 = vsel %vm5415, %v53, 0.0
    %v5465 = vsel %vm5416, %v54, 0.0
    %v5466 = vsel %vm5416, %v55, 0.0
    %v5467 = vsel %vm5417, %v56, 0.0
    %v5468 = vsel %vm5417, %v57, 0.0
    %v5469 = vsel %vm5418, %v58, 0.0
    %v5470 = vsel %vm5418, %v59, 0.0
    %v5471 = vsel %vm5419, %v60, 0.0
    %v5472 = vsel %vm5419, %v61, 0.0
    %v5473 = vsel %vm5420, %v62, 0.0
    %v5474 = vsel %vm5420, %v63, 0.0
    %v5475 = vsel %vm5421, %v64, 0.0
    %v5476 = vsel %vm5421, %v65, 0.0
    %v5477 = vsel %vm5422, %v66, 0.0
    %v5478 = vsel %vm5422, %v67, 0.0
    %v5479 = vsel %vm5423, %v68, 0.0
    %v5480 = vsel %vm5423, %v69, 0.0
    %v5481 = vsel %vm5424, %v70, 0.0
    %v5482 = vsel %vm5424, %v71, 0.0
    %v5483 = vsel %vm5425, %v72, 0.0
    %v5484 = vsel %vm5425, %v73, 0.0
    %v5485 = vsel %vm5426, %v74, 0.0
    %v5486 = vsel %vm5426, %v75, 0.0
    %v5487 = vsel %vm5427, %v76, 0.0
    %v5488 = vsel %vm5427, %v77, 0.0
    %v5489 = vsel %vm5428, %v78, 0.0
    %v5490 = vsel %vm5428, %v79, 0.0
    %v5491 = vsel %vm5429, %v80, 0.0
    %v5492 = vsel %vm5429, %v81, 0.0
    %v5493 = vsel %vm5430, %v18, 0.0
    %v5494 = vsel %vm5430, %v19, 0.0
    %s5495 = scalar_lea.vmem %s1, 3584
    %v5496 = vld [vmem:[%s5495] sm:$0xff]
    %v5497 = vld [vmem:[%s5495 + $0x8] sm:$0xff]
    %v5498 = vld [vmem:[%s5495 + $0x10] sm:$0xff]
    %v5499 = vld [vmem:[%s5495 + $0x18] sm:$0xff]
    %v5500 = vld [vmem:[%s5495 + $0x20] sm:$0xff]
    %v5501 = vld [vmem:[%s5495 + $0x28] sm:$0xff]
    %v5502 = vld [vmem:[%s5495 + $0x30] sm:$0xff]
    %v5503 = vld [vmem:[%s5495 + $0x38] sm:$0xff]
    %v5504 = vld [vmem:[%s5495 + $0x40] sm:$0xff]
    %v5505 = vld [vmem:[%s5495 + $0x48] sm:$0xff]
    %v5506 = vld [vmem:[%s5495 + $0x50] sm:$0xff]
    %v5507 = vld [vmem:[%s5495 + $0x58] sm:$0xff]
    %v5508 = vld [vmem:[%s5495 + $0x60] sm:$0xff]
    %v5509 = vld [vmem:[%s5495 + $0x68] sm:$0xff]
    %v5510 = vld [vmem:[%s5495 + $0x70] sm:$0xff]
    %v5511 = vld [vmem:[%s5495 + $0x78] sm:$0xff]
    %v5512 = vld [vmem:[%s5495 + $0x80] sm:$0xff]
    %v5513 = vld [vmem:[%s5495 + $0x88] sm:$0xff]
    %v5514 = vld [vmem:[%s5495 + $0x90] sm:$0xff]
    %v5515 = vld [vmem:[%s5495 + $0x98] sm:$0xff]
    %v5516 = vld [vmem:[%s5495 + $0xa0] sm:$0xff]
    %v5517 = vld [vmem:[%s5495 + $0xa8] sm:$0xff]
    %v5518 = vld [vmem:[%s5495 + $0xb0] sm:$0xff]
    %v5519 = vld [vmem:[%s5495 + $0xb8] sm:$0xff]
    %v5520 = vld [vmem:[%s5495 + $0xc0] sm:$0xff]
    %v5521 = vld [vmem:[%s5495 + $0xc8] sm:$0xff]
    %v5522 = vld [vmem:[%s5495 + $0xd0] sm:$0xff]
    %v5523 = vld [vmem:[%s5495 + $0xd8] sm:$0xff]
    %v5524 = vld [vmem:[%s5495 + $0xe0] sm:$0xff]
    %v5525 = vld [vmem:[%s5495 + $0xe8] sm:$0xff]
    %v5526 = vld [vmem:[%s5495 + $0xf0] sm:$0xff]
    %v5527 = vld [vmem:[%s5495 + $0xf8] sm:$0xff]
    %v5528 = vld [vmem:[%s5495 + $0x100] sm:$0xff]
    %v5529 = vld [vmem:[%s5495 + $0x108] sm:$0xff]
    %v5530 = vld [vmem:[%s5495 + $0x110] sm:$0xff]
    %v5531 = vld [vmem:[%s5495 + $0x118] sm:$0xff]
    %v5532 = vld [vmem:[%s5495 + $0x120] sm:$0xff]
    %v5533 = vld [vmem:[%s5495 + $0x128] sm:$0xff]
    %v5534 = vld [vmem:[%s5495 + $0x130] sm:$0xff]
    %v5535 = vld [vmem:[%s5495 + $0x138] sm:$0xff]
    %v5536 = vld [vmem:[%s5495 + $0x140] sm:$0xff]
    %v5537 = vld [vmem:[%s5495 + $0x148] sm:$0xff]
    %v5538 = vld [vmem:[%s5495 + $0x150] sm:$0xff]
    %v5539 = vld [vmem:[%s5495 + $0x158] sm:$0xff]
    %v5540 = vld [vmem:[%s5495 + $0x160] sm:$0xff]
    %v5541 = vld [vmem:[%s5495 + $0x168] sm:$0xff]
    %v5542 = vld [vmem:[%s5495 + $0x170] sm:$0xff]
    %v5543 = vld [vmem:[%s5495 + $0x178] sm:$0xff]
    %v5544 = vld [vmem:[%s5495 + $0x180] sm:$0xff]
    %v5545 = vld [vmem:[%s5495 + $0x188] sm:$0xff]
    %v5546 = vld [vmem:[%s5495 + $0x190] sm:$0xff]
    %v5547 = vld [vmem:[%s5495 + $0x198] sm:$0xff]
    %v5548 = vld [vmem:[%s5495 + $0x1a0] sm:$0xff]
    %v5549 = vld [vmem:[%s5495 + $0x1a8] sm:$0xff]
    %v5550 = vld [vmem:[%s5495 + $0x1b0] sm:$0xff]
    %v5551 = vld [vmem:[%s5495 + $0x1b8] sm:$0xff]
    %v5552 = vld [vmem:[%s5495 + $0x1c0] sm:$0xff]
    %v5553 = vld [vmem:[%s5495 + $0x1c8] sm:$0xff]
    %v5554 = vld [vmem:[%s5495 + $0x1d0] sm:$0xff]
    %v5555 = vld [vmem:[%s5495 + $0x1d8] sm:$0xff]
    %v5556 = vld [vmem:[%s5495 + $0x1e0] sm:$0xff]
    %v5557 = vld [vmem:[%s5495 + $0x1e8] sm:$0xff]
    %v5558 = vld [vmem:[%s5495 + $0x1f0] sm:$0xff]
    %v5559 = vld [vmem:[%s5495 + $0x1f8] sm:$0xff]
    %5560 = vmatpush.msra.mxu0 %v5526
    %5561 = vmatpush.msra.mxu0 %v5524
    %5562 = vmatpush.msra.mxu0 %v5522
    %5563 = vmatpush.msra.mxu0 %v5520
    %5564 = vmatpush.msra.mxu0 %v5518
    %5565 = vmatpush.msra.mxu0 %v5516
    %5566 = vmatpush.msra.mxu0 %v5514
    %5567 = vmatpush.msra.mxu0 %v5512
    %5568 = vmatpush.msra.mxu0 %v5510
    %5569 = vmatpush.msra.mxu0 %v5508
    %5570 = vmatpush.msra.mxu0 %v5506
    %5571 = vmatpush.msra.mxu0 %v5504
    %5572 = vmatpush.msra.mxu0 %v5502
    %5573 = vmatpush.msra.mxu0 %v5500
    %5574 = vmatpush.msra.mxu0 %v5498
    %5575 = vmatpush.msra.mxu0 %v5496
    %5576 = vmatmul.f32.gmra.mxu0 %v5431
    %v5577 = vpop.f32.mrf.mxu0
    %v5578 = vadd.f32 0.0, %v5577
    %5579 = vmatmul.f32.gmra.mxu0 %v5433
    %v5580 = vpop.f32.mrf.mxu0
    %v5581 = vadd.f32 0.0, %v5580
    %5582 = vmatmul.f32.gmra.mxu0 %v5435
    %v5583 = vpop.f32.mrf.mxu0
    %v5584 = vadd.f32 0.0, %v5583
    %5585 = vmatmul.f32.gmra.mxu0 %v5437
    %v5586 = vpop.f32.mrf.mxu0
    %v5587 = vadd.f32 0.0, %v5586
    %5588 = vmatmul.f32.gmra.mxu0 %v5439
    %v5589 = vpop.f32.mrf.mxu0
    %v5590 = vadd.f32 0.0, %v5589
    %5591 = vmatmul.f32.gmra.mxu0 %v5441
    %v5592 = vpop.f32.mrf.mxu0
    %v5593 = vadd.f32 0.0, %v5592
    %5594 = vmatmul.f32.gmra.mxu0 %v5443
    %v5595 = vpop.f32.mrf.mxu0
    %v5596 = vadd.f32 0.0, %v5595
    %5597 = vmatmul.f32.gmra.mxu0 %v5445
    %v5598 = vpop.f32.mrf.mxu0
    %v5599 = vadd.f32 0.0, %v5598
    %5600 = vmatmul.f32.gmra.mxu0 %v5447
    %v5601 = vpop.f32.mrf.mxu0
    %v5602 = vadd.f32 0.0, %v5601
    %5603 = vmatmul.f32.gmra.mxu0 %v5449
    %v5604 = vpop.f32.mrf.mxu0
    %v5605 = vadd.f32 0.0, %v5604
    %5606 = vmatmul.f32.gmra.mxu0 %v5451
    %v5607 = vpop.f32.mrf.mxu0
    %v5608 = vadd.f32 0.0, %v5607
    %5609 = vmatmul.f32.gmra.mxu0 %v5453
    %v5610 = vpop.f32.mrf.mxu0
    %v5611 = vadd.f32 0.0, %v5610
    %5612 = vmatmul.f32.gmra.mxu0 %v5455
    %v5613 = vpop.f32.mrf.mxu0
    %v5614 = vadd.f32 0.0, %v5613
    %5615 = vmatmul.f32.gmra.mxu0 %v5457
    %v5616 = vpop.f32.mrf.mxu0
    %v5617 = vadd.f32 0.0, %v5616
    %5618 = vmatmul.f32.gmra.mxu0 %v5459
    %v5619 = vpop.f32.mrf.mxu0
    %v5620 = vadd.f32 0.0, %v5619
    %5621 = vmatmul.f32.gmra.mxu0 %v5461
    %v5622 = vpop.f32.mrf.mxu0
    %v5623 = vadd.f32 0.0, %v5622
    %5624 = vmatmul.f32.gmra.mxu0 %v5463
    %v5625 = vpop.f32.mrf.mxu0
    %v5626 = vadd.f32 0.0, %v5625
    %5627 = vmatmul.f32.gmra.mxu0 %v5465
    %v5628 = vpop.f32.mrf.mxu0
    %v5629 = vadd.f32 0.0, %v5628
    %5630 = vmatmul.f32.gmra.mxu0 %v5467
    %v5631 = vpop.f32.mrf.mxu0
    %v5632 = vadd.f32 0.0, %v5631
    %5633 = vmatmul.f32.gmra.mxu0 %v5469
    %v5634 = vpop.f32.mrf.mxu0
    %v5635 = vadd.f32 0.0, %v5634
    %5636 = vmatmul.f32.gmra.mxu0 %v5471
    %v5637 = vpop.f32.mrf.mxu0
    %v5638 = vadd.f32 0.0, %v5637
    %5639 = vmatmul.f32.gmra.mxu0 %v5473
    %v5640 = vpop.f32.mrf.mxu0
    %v5641 = vadd.f32 0.0, %v5640
    %5642 = vmatmul.f32.gmra.mxu0 %v5475
    %v5643 = vpop.f32.mrf.mxu0
    %v5644 = vadd.f32 0.0, %v5643
    %5645 = vmatmul.f32.gmra.mxu0 %v5477
    %v5646 = vpop.f32.mrf.mxu0
    %v5647 = vadd.f32 0.0, %v5646
    %5648 = vmatmul.f32.gmra.mxu0 %v5479
    %v5649 = vpop.f32.mrf.mxu0
    %v5650 = vadd.f32 0.0, %v5649
    %5651 = vmatmul.f32.gmra.mxu0 %v5481
    %v5652 = vpop.f32.mrf.mxu0
    %v5653 = vadd.f32 0.0, %v5652
    %5654 = vmatmul.f32.gmra.mxu0 %v5483
    %v5655 = vpop.f32.mrf.mxu0
    %v5656 = vadd.f32 0.0, %v5655
    %5657 = vmatmul.f32.gmra.mxu0 %v5485
    %v5658 = vpop.f32.mrf.mxu0
    %v5659 = vadd.f32 0.0, %v5658
    %5660 = vmatmul.f32.gmra.mxu0 %v5487
    %v5661 = vpop.f32.mrf.mxu0
    %v5662 = vadd.f32 0.0, %v5661
    %5663 = vmatmul.f32.gmra.mxu0 %v5489
    %v5664 = vpop.f32.mrf.mxu0
    %v5665 = vadd.f32 0.0, %v5664
    %5666 = vmatmul.f32.gmra.mxu0 %v5491
    %v5667 = vpop.f32.mrf.mxu0
    %v5668 = vadd.f32 0.0, %v5667
    %5669 = vmatmul.f32.gmra.mxu0 %v5493
    %v5670 = vpop.f32.mrf.mxu0
    %v5671 = vadd.f32 0.0, %v5670
    %5672 = vdwg.mxu0
    %5673 = vmatpush.msra.mxu0 %v5558
    %5674 = vmatpush.msra.mxu0 %v5556
    %5675 = vmatpush.msra.mxu0 %v5554
    %5676 = vmatpush.msra.mxu0 %v5552
    %5677 = vmatpush.msra.mxu0 %v5550
    %5678 = vmatpush.msra.mxu0 %v5548
    %5679 = vmatpush.msra.mxu0 %v5546
    %5680 = vmatpush.msra.mxu0 %v5544
    %5681 = vmatpush.msra.mxu0 %v5542
    %5682 = vmatpush.msra.mxu0 %v5540
    %5683 = vmatpush.msra.mxu0 %v5538
    %5684 = vmatpush.msra.mxu0 %v5536
    %5685 = vmatpush.msra.mxu0 %v5534
    %5686 = vmatpush.msra.mxu0 %v5532
    %5687 = vmatpush.msra.mxu0 %v5530
    %5688 = vmatpush.msra.mxu0 %v5528
    %5689 = vmatmul.f32.gmra.mxu0 %v5432
    %v5690 = vpop.f32.mrf.mxu0
    %v5691 = vadd.f32 %v5578, %v5690
    %5692 = vmatmul.f32.gmra.mxu0 %v5434
    %v5693 = vpop.f32.mrf.mxu0
    %v5694 = vadd.f32 %v5581, %v5693
    %5695 = vmatmul.f32.gmra.mxu0 %v5436
    %v5696 = vpop.f32.mrf.mxu0
    %v5697 = vadd.f32 %v5584, %v5696
    %5698 = vmatmul.f32.gmra.mxu0 %v5438
    %v5699 = vpop.f32.mrf.mxu0
    %v5700 = vadd.f32 %v5587, %v5699
    %5701 = vmatmul.f32.gmra.mxu0 %v5440
    %v5702 = vpop.f32.mrf.mxu0
    %v5703 = vadd.f32 %v5590, %v5702
    %5704 = vmatmul.f32.gmra.mxu0 %v5442
    %v5705 = vpop.f32.mrf.mxu0
    %v5706 = vadd.f32 %v5593, %v5705
    %5707 = vmatmul.f32.gmra.mxu0 %v5444
    %v5708 = vpop.f32.mrf.mxu0
    %v5709 = vadd.f32 %v5596, %v5708
    %5710 = vmatmul.f32.gmra.mxu0 %v5446
    %v5711 = vpop.f32.mrf.mxu0
    %v5712 = vadd.f32 %v5599, %v5711
    %5713 = vmatmul.f32.gmra.mxu0 %v5448
    %v5714 = vpop.f32.mrf.mxu0
    %v5715 = vadd.f32 %v5602, %v5714
    %5716 = vmatmul.f32.gmra.mxu0 %v5450
    %v5717 = vpop.f32.mrf.mxu0
    %v5718 = vadd.f32 %v5605, %v5717
    %5719 = vmatmul.f32.gmra.mxu0 %v5452
    %v5720 = vpop.f32.mrf.mxu0
    %v5721 = vadd.f32 %v5608, %v5720
    %5722 = vmatmul.f32.gmra.mxu0 %v5454
    %v5723 = vpop.f32.mrf.mxu0
    %v5724 = vadd.f32 %v5611, %v5723
    %5725 = vmatmul.f32.gmra.mxu0 %v5456
    %v5726 = vpop.f32.mrf.mxu0
    %v5727 = vadd.f32 %v5614, %v5726
    %5728 = vmatmul.f32.gmra.mxu0 %v5458
    %v5729 = vpop.f32.mrf.mxu0
    %v5730 = vadd.f32 %v5617, %v5729
    %5731 = vmatmul.f32.gmra.mxu0 %v5460
    %v5732 = vpop.f32.mrf.mxu0
    %v5733 = vadd.f32 %v5620, %v5732
    %5734 = vmatmul.f32.gmra.mxu0 %v5462
    %v5735 = vpop.f32.mrf.mxu0
    %v5736 = vadd.f32 %v5623, %v5735
    %5737 = vmatmul.f32.gmra.mxu0 %v5464
    %v5738 = vpop.f32.mrf.mxu0
    %v5739 = vadd.f32 %v5626, %v5738
    %5740 = vmatmul.f32.gmra.mxu0 %v5466
    %v5741 = vpop.f32.mrf.mxu0
    %v5742 = vadd.f32 %v5629, %v5741
    %5743 = vmatmul.f32.gmra.mxu0 %v5468
    %v5744 = vpop.f32.mrf.mxu0
    %v5745 = vadd.f32 %v5632, %v5744
    %5746 = vmatmul.f32.gmra.mxu0 %v5470
    %v5747 = vpop.f32.mrf.mxu0
    %v5748 = vadd.f32 %v5635, %v5747
    %5749 = vmatmul.f32.gmra.mxu0 %v5472
    %v5750 = vpop.f32.mrf.mxu0
    %v5751 = vadd.f32 %v5638, %v5750
    %5752 = vmatmul.f32.gmra.mxu0 %v5474
    %v5753 = vpop.f32.mrf.mxu0
    %v5754 = vadd.f32 %v5641, %v5753
    %5755 = vmatmul.f32.gmra.mxu0 %v5476
    %v5756 = vpop.f32.mrf.mxu0
    %v5757 = vadd.f32 %v5644, %v5756
    %5758 = vmatmul.f32.gmra.mxu0 %v5478
    %v5759 = vpop.f32.mrf.mxu0
    %v5760 = vadd.f32 %v5647, %v5759
    %5761 = vmatmul.f32.gmra.mxu0 %v5480
    %v5762 = vpop.f32.mrf.mxu0
    %v5763 = vadd.f32 %v5650, %v5762
    %5764 = vmatmul.f32.gmra.mxu0 %v5482
    %v5765 = vpop.f32.mrf.mxu0
    %v5766 = vadd.f32 %v5653, %v5765
    %5767 = vmatmul.f32.gmra.mxu0 %v5484
    %v5768 = vpop.f32.mrf.mxu0
    %v5769 = vadd.f32 %v5656, %v5768
    %5770 = vmatmul.f32.gmra.mxu0 %v5486
    %v5771 = vpop.f32.mrf.mxu0
    %v5772 = vadd.f32 %v5659, %v5771
    %5773 = vmatmul.f32.gmra.mxu0 %v5488
    %v5774 = vpop.f32.mrf.mxu0
    %v5775 = vadd.f32 %v5662, %v5774
    %5776 = vmatmul.f32.gmra.mxu0 %v5490
    %v5777 = vpop.f32.mrf.mxu0
    %v5778 = vadd.f32 %v5665, %v5777
    %5779 = vmatmul.f32.gmra.mxu0 %v5492
    %v5780 = vpop.f32.mrf.mxu0
    %v5781 = vadd.f32 %v5668, %v5780
    %5782 = vmatmul.f32.gmra.mxu0 %v5494
    %v5783 = vpop.f32.mrf.mxu0
    %v5784 = vadd.f32 %v5671, %v5783
    %5785 = vdwg.mxu0
    %5786 = vmatpush.msra.mxu0 %v5527
    %5787 = vmatpush.msra.mxu0 %v5525
    %5788 = vmatpush.msra.mxu0 %v5523
    %5789 = vmatpush.msra.mxu0 %v5521
    %5790 = vmatpush.msra.mxu0 %v5519
    %5791 = vmatpush.msra.mxu0 %v5517
    %5792 = vmatpush.msra.mxu0 %v5515
    %5793 = vmatpush.msra.mxu0 %v5513
    %5794 = vmatpush.msra.mxu0 %v5511
    %5795 = vmatpush.msra.mxu0 %v5509
    %5796 = vmatpush.msra.mxu0 %v5507
    %5797 = vmatpush.msra.mxu0 %v5505
    %5798 = vmatpush.msra.mxu0 %v5503
    %5799 = vmatpush.msra.mxu0 %v5501
    %5800 = vmatpush.msra.mxu0 %v5499
    %5801 = vmatpush.msra.mxu0 %v5497
    %5802 = vmatmul.f32.gmra.mxu0 %v5431
    %v5803 = vpop.f32.mrf.mxu0
    %v5804 = vadd.f32 0.0, %v5803
    %5805 = vmatmul.f32.gmra.mxu0 %v5433
    %v5806 = vpop.f32.mrf.mxu0
    %v5807 = vadd.f32 0.0, %v5806
    %5808 = vmatmul.f32.gmra.mxu0 %v5435
    %v5809 = vpop.f32.mrf.mxu0
    %v5810 = vadd.f32 0.0, %v5809
    %5811 = vmatmul.f32.gmra.mxu0 %v5437
    %v5812 = vpop.f32.mrf.mxu0
    %v5813 = vadd.f32 0.0, %v5812
    %5814 = vmatmul.f32.gmra.mxu0 %v5439
    %v5815 = vpop.f32.mrf.mxu0
    %v5816 = vadd.f32 0.0, %v5815
    %5817 = vmatmul.f32.gmra.mxu0 %v5441
    %v5818 = vpop.f32.mrf.mxu0
    %v5819 = vadd.f32 0.0, %v5818
    %5820 = vmatmul.f32.gmra.mxu0 %v5443
    %v5821 = vpop.f32.mrf.mxu0
    %v5822 = vadd.f32 0.0, %v5821
    %5823 = vmatmul.f32.gmra.mxu0 %v5445
    %v5824 = vpop.f32.mrf.mxu0
    %v5825 = vadd.f32 0.0, %v5824
    %5826 = vmatmul.f32.gmra.mxu0 %v5447
    %v5827 = vpop.f32.mrf.mxu0
    %v5828 = vadd.f32 0.0, %v5827
    %5829 = vmatmul.f32.gmra.mxu0 %v5449
    %v5830 = vpop.f32.mrf.mxu0
    %v5831 = vadd.f32 0.0, %v5830
    %5832 = vmatmul.f32.gmra.mxu0 %v5451
    %v5833 = vpop.f32.mrf.mxu0
    %v5834 = vadd.f32 0.0, %v5833
    %5835 = vmatmul.f32.gmra.mxu0 %v5453
    %v5836 = vpop.f32.mrf.mxu0
    %v5837 = vadd.f32 0.0, %v5836
    %5838 = vmatmul.f32.gmra.mxu0 %v5455
    %v5839 = vpop.f32.mrf.mxu0
    %v5840 = vadd.f32 0.0, %v5839
    %5841 = vmatmul.f32.gmra.mxu0 %v5457
    %v5842 = vpop.f32.mrf.mxu0
    %v5843 = vadd.f32 0.0, %v5842
    %5844 = vmatmul.f32.gmra.mxu0 %v5459
    %v5845 = vpop.f32.mrf.mxu0
    %v5846 = vadd.f32 0.0, %v5845
    %5847 = vmatmul.f32.gmra.mxu0 %v5461
    %v5848 = vpop.f32.mrf.mxu0
    %v5849 = vadd.f32 0.0, %v5848
    %5850 = vmatmul.f32.gmra.mxu0 %v5463
    %v5851 = vpop.f32.mrf.mxu0
    %v5852 = vadd.f32 0.0, %v5851
    %5853 = vmatmul.f32.gmra.mxu0 %v5465
    %v5854 = vpop.f32.mrf.mxu0
    %v5855 = vadd.f32 0.0, %v5854
    %5856 = vmatmul.f32.gmra.mxu0 %v5467
    %v5857 = vpop.f32.mrf.mxu0
    %v5858 = vadd.f32 0.0, %v5857
    %5859 = vmatmul.f32.gmra.mxu0 %v5469
    %v5860 = vpop.f32.mrf.mxu0
    %v5861 = vadd.f32 0.0, %v5860
    %5862 = vmatmul.f32.gmra.mxu0 %v5471
    %v5863 = vpop.f32.mrf.mxu0
    %v5864 = vadd.f32 0.0, %v5863
    %5865 = vmatmul.f32.gmra.mxu0 %v5473
    %v5866 = vpop.f32.mrf.mxu0
    %v5867 = vadd.f32 0.0, %v5866
    %5868 = vmatmul.f32.gmra.mxu0 %v5475
    %v5869 = vpop.f32.mrf.mxu0
    %v5870 = vadd.f32 0.0, %v5869
    %5871 = vmatmul.f32.gmra.mxu0 %v5477
    %v5872 = vpop.f32.mrf.mxu0
    %v5873 = vadd.f32 0.0, %v5872
    %5874 = vmatmul.f32.gmra.mxu0 %v5479
    %v5875 = vpop.f32.mrf.mxu0
    %v5876 = vadd.f32 0.0, %v5875
    %5877 = vmatmul.f32.gmra.mxu0 %v5481
    %v5878 = vpop.f32.mrf.mxu0
    %v5879 = vadd.f32 0.0, %v5878
    %5880 = vmatmul.f32.gmra.mxu0 %v5483
    %v5881 = vpop.f32.mrf.mxu0
    %v5882 = vadd.f32 0.0, %v5881
    %5883 = vmatmul.f32.gmra.mxu0 %v5485
    %v5884 = vpop.f32.mrf.mxu0
    %v5885 = vadd.f32 0.0, %v5884
    %5886 = vmatmul.f32.gmra.mxu0 %v5487
    %v5887 = vpop.f32.mrf.mxu0
    %v5888 = vadd.f32 0.0, %v5887
    %5889 = vmatmul.f32.gmra.mxu0 %v5489
    %v5890 = vpop.f32.mrf.mxu0
    %v5891 = vadd.f32 0.0, %v5890
    %5892 = vmatmul.f32.gmra.mxu0 %v5491
    %v5893 = vpop.f32.mrf.mxu0
    %v5894 = vadd.f32 0.0, %v5893
    %5895 = vmatmul.f32.gmra.mxu0 %v5493
    %v5896 = vpop.f32.mrf.mxu0
    %v5897 = vadd.f32 0.0, %v5896
    %5898 = vdwg.mxu0
    %5899 = vmatpush.msra.mxu0 %v5559
    %5900 = vmatpush.msra.mxu0 %v5557
    %5901 = vmatpush.msra.mxu0 %v5555
    %5902 = vmatpush.msra.mxu0 %v5553
    %5903 = vmatpush.msra.mxu0 %v5551
    %5904 = vmatpush.msra.mxu0 %v5549
    %5905 = vmatpush.msra.mxu0 %v5547
    %5906 = vmatpush.msra.mxu0 %v5545
    %5907 = vmatpush.msra.mxu0 %v5543
    %5908 = vmatpush.msra.mxu0 %v5541
    %5909 = vmatpush.msra.mxu0 %v5539
    %5910 = vmatpush.msra.mxu0 %v5537
    %5911 = vmatpush.msra.mxu0 %v5535
    %5912 = vmatpush.msra.mxu0 %v5533
    %5913 = vmatpush.msra.mxu0 %v5531
    %5914 = vmatpush.msra.mxu0 %v5529
    %5915 = vmatmul.f32.gmra.mxu0 %v5432
    %v5916 = vpop.f32.mrf.mxu0
    %v5917 = vadd.f32 %v5804, %v5916
    %5918 = vmatmul.f32.gmra.mxu0 %v5434
    %v5919 = vpop.f32.mrf.mxu0
    %v5920 = vadd.f32 %v5807, %v5919
    %5921 = vmatmul.f32.gmra.mxu0 %v5436
    %v5922 = vpop.f32.mrf.mxu0
    %v5923 = vadd.f32 %v5810, %v5922
    %5924 = vmatmul.f32.gmra.mxu0 %v5438
    %v5925 = vpop.f32.mrf.mxu0
    %v5926 = vadd.f32 %v5813, %v5925
    %5927 = vmatmul.f32.gmra.mxu0 %v5440
    %v5928 = vpop.f32.mrf.mxu0
    %v5929 = vadd.f32 %v5816, %v5928
    %5930 = vmatmul.f32.gmra.mxu0 %v5442
    %v5931 = vpop.f32.mrf.mxu0
    %v5932 = vadd.f32 %v5819, %v5931
    %5933 = vmatmul.f32.gmra.mxu0 %v5444
    %v5934 = vpop.f32.mrf.mxu0
    %v5935 = vadd.f32 %v5822, %v5934
    %5936 = vmatmul.f32.gmra.mxu0 %v5446
    %v5937 = vpop.f32.mrf.mxu0
    %v5938 = vadd.f32 %v5825, %v5937
    %5939 = vmatmul.f32.gmra.mxu0 %v5448
    %v5940 = vpop.f32.mrf.mxu0
    %v5941 = vadd.f32 %v5828, %v5940
    %5942 = vmatmul.f32.gmra.mxu0 %v5450
    %v5943 = vpop.f32.mrf.mxu0
    %v5944 = vadd.f32 %v5831, %v5943
    %5945 = vmatmul.f32.gmra.mxu0 %v5452
    %v5946 = vpop.f32.mrf.mxu0
    %v5947 = vadd.f32 %v5834, %v5946
    %5948 = vmatmul.f32.gmra.mxu0 %v5454
    %v5949 = vpop.f32.mrf.mxu0
    %v5950 = vadd.f32 %v5837, %v5949
    %5951 = vmatmul.f32.gmra.mxu0 %v5456
    %v5952 = vpop.f32.mrf.mxu0
    %v5953 = vadd.f32 %v5840, %v5952
    %5954 = vmatmul.f32.gmra.mxu0 %v5458
    %v5955 = vpop.f32.mrf.mxu0
    %v5956 = vadd.f32 %v5843, %v5955
    %5957 = vmatmul.f32.gmra.mxu0 %v5460
    %v5958 = vpop.f32.mrf.mxu0
    %v5959 = vadd.f32 %v5846, %v5958
    %5960 = vmatmul.f32.gmra.mxu0 %v5462
    %v5961 = vpop.f32.mrf.mxu0
    %v5962 = vadd.f32 %v5849, %v5961
    %5963 = vmatmul.f32.gmra.mxu0 %v5464
    %v5964 = vpop.f32.mrf.mxu0
    %v5965 = vadd.f32 %v5852, %v5964
    %5966 = vmatmul.f32.gmra.mxu0 %v5466
    %v5967 = vpop.f32.mrf.mxu0
    %v5968 = vadd.f32 %v5855, %v5967
    %5969 = vmatmul.f32.gmra.mxu0 %v5468
    %v5970 = vpop.f32.mrf.mxu0
    %v5971 = vadd.f32 %v5858, %v5970
    %5972 = vmatmul.f32.gmra.mxu0 %v5470
    %v5973 = vpop.f32.mrf.mxu0
    %v5974 = vadd.f32 %v5861, %v5973
    %5975 = vmatmul.f32.gmra.mxu0 %v5472
    %v5976 = vpop.f32.mrf.mxu0
    %v5977 = vadd.f32 %v5864, %v5976
    %5978 = vmatmul.f32.gmra.mxu0 %v5474
    %v5979 = vpop.f32.mrf.mxu0
    %v5980 = vadd.f32 %v5867, %v5979
    %5981 = vmatmul.f32.gmra.mxu0 %v5476
    %v5982 = vpop.f32.mrf.mxu0
    %v5983 = vadd.f32 %v5870, %v5982
    %5984 = vmatmul.f32.gmra.mxu0 %v5478
    %v5985 = vpop.f32.mrf.mxu0
    %v5986 = vadd.f32 %v5873, %v5985
    %5987 = vmatmul.f32.gmra.mxu0 %v5480
    %v5988 = vpop.f32.mrf.mxu0
    %v5989 = vadd.f32 %v5876, %v5988
    %5990 = vmatmul.f32.gmra.mxu0 %v5482
    %v5991 = vpop.f32.mrf.mxu0
    %v5992 = vadd.f32 %v5879, %v5991
    %5993 = vmatmul.f32.gmra.mxu0 %v5484
    %v5994 = vpop.f32.mrf.mxu0
    %v5995 = vadd.f32 %v5882, %v5994
    %5996 = vmatmul.f32.gmra.mxu0 %v5486
    %v5997 = vpop.f32.mrf.mxu0
    %v5998 = vadd.f32 %v5885, %v5997
    %5999 = vmatmul.f32.gmra.mxu0 %v5488
    %v6000 = vpop.f32.mrf.mxu0
    %v6001 = vadd.f32 %v5888, %v6000
    %6002 = vmatmul.f32.gmra.mxu0 %v5490
    %v6003 = vpop.f32.mrf.mxu0
    %v6004 = vadd.f32 %v5891, %v6003
    %6005 = vmatmul.f32.gmra.mxu0 %v5492
    %v6006 = vpop.f32.mrf.mxu0
    %v6007 = vadd.f32 %v5894, %v6006
    %6008 = vmatmul.f32.gmra.mxu0 %v5494
    %v6009 = vpop.f32.mrf.mxu0
    %v6010 = vadd.f32 %v5897, %v6009
    %6011 = vdwg.mxu0
    %v6012 = vadd.f32 %v5303, %v5691
    %v6013 = vadd.f32 %v5304, %v5917
    %v6014 = vadd.f32 %v5305, %v5694
    %v6015 = vadd.f32 %v5306, %v5920
    %v6016 = vadd.f32 %v5307, %v5697
    %v6017 = vadd.f32 %v5308, %v5923
    %v6018 = vadd.f32 %v5309, %v5700
    %v6019 = vadd.f32 %v5310, %v5926
    %v6020 = vadd.f32 %v5311, %v5703
    %v6021 = vadd.f32 %v5312, %v5929
    %v6022 = vadd.f32 %v5313, %v5706
    %v6023 = vadd.f32 %v5314, %v5932
    %v6024 = vadd.f32 %v5315, %v5709
    %v6025 = vadd.f32 %v5316, %v5935
    %v6026 = vadd.f32 %v5317, %v5712
    %v6027 = vadd.f32 %v5318, %v5938
    %v6028 = vadd.f32 %v5319, %v5715
    %v6029 = vadd.f32 %v5320, %v5941
    %v6030 = vadd.f32 %v5321, %v5718
    %v6031 = vadd.f32 %v5322, %v5944
    %v6032 = vadd.f32 %v5323, %v5721
    %v6033 = vadd.f32 %v5324, %v5947
    %v6034 = vadd.f32 %v5325, %v5724
    %v6035 = vadd.f32 %v5326, %v5950
    %v6036 = vadd.f32 %v5327, %v5727
    %v6037 = vadd.f32 %v5328, %v5953
    %v6038 = vadd.f32 %v5329, %v5730
    %v6039 = vadd.f32 %v5330, %v5956
    %v6040 = vadd.f32 %v5331, %v5733
    %v6041 = vadd.f32 %v5332, %v5959
    %v6042 = vadd.f32 %v5333, %v5736
    %v6043 = vadd.f32 %v5334, %v5962
    %v6044 = vadd.f32 %v5335, %v5739
    %v6045 = vadd.f32 %v5336, %v5965
    %v6046 = vadd.f32 %v5337, %v5742
    %v6047 = vadd.f32 %v5338, %v5968
    %v6048 = vadd.f32 %v5339, %v5745
    %v6049 = vadd.f32 %v5340, %v5971
    %v6050 = vadd.f32 %v5341, %v5748
    %v6051 = vadd.f32 %v5342, %v5974
    %v6052 = vadd.f32 %v5343, %v5751
    %v6053 = vadd.f32 %v5344, %v5977
    %v6054 = vadd.f32 %v5345, %v5754
    %v6055 = vadd.f32 %v5346, %v5980
    %v6056 = vadd.f32 %v5347, %v5757
    %v6057 = vadd.f32 %v5348, %v5983
    %v6058 = vadd.f32 %v5349, %v5760
    %v6059 = vadd.f32 %v5350, %v5986
    %v6060 = vadd.f32 %v5351, %v5763
    %v6061 = vadd.f32 %v5352, %v5989
    %v6062 = vadd.f32 %v5353, %v5766
    %v6063 = vadd.f32 %v5354, %v5992
    %v6064 = vadd.f32 %v5355, %v5769
    %v6065 = vadd.f32 %v5356, %v5995
    %v6066 = vadd.f32 %v5357, %v5772
    %v6067 = vadd.f32 %v5358, %v5998
    %v6068 = vadd.f32 %v5359, %v5775
    %v6069 = vadd.f32 %v5360, %v6001
    %v6070 = vadd.f32 %v5361, %v5778
    %v6071 = vadd.f32 %v5362, %v6004
    %v6072 = vadd.f32 %v5363, %v5781
    %v6073 = vadd.f32 %v5364, %v6007
    %v6074 = vadd.f32 %v5365, %v5784
    %v6075 = vadd.f32 %v5366, %v6010
    %vm6076 = vmand %vm211, %vm275
    %vm6077 = vmand %vm212, %vm276
    %vm6078 = vmand %vm213, %vm277
    %vm6079 = vmand %vm214, %vm278
    %vm6080 = vmand %vm215, %vm279
    %vm6081 = vmand %vm216, %vm280
    %vm6082 = vmand %vm217, %vm281
    %vm6083 = vmand %vm218, %vm282
    %vm6084 = vmand %vm219, %vm283
    %vm6085 = vmand %vm220, %vm284
    %vm6086 = vmand %vm221, %vm285
    %vm6087 = vmand %vm222, %vm286
    %vm6088 = vmand %vm223, %vm287
    %vm6089 = vmand %vm224, %vm288
    %vm6090 = vmand %vm225, %vm289
    %vm6091 = vmand %vm226, %vm290
    %vm6092 = vmand %vm227, %vm291
    %vm6093 = vmand %vm228, %vm292
    %vm6094 = vmand %vm229, %vm293
    %vm6095 = vmand %vm230, %vm294
    %vm6096 = vmand %vm231, %vm295
    %vm6097 = vmand %vm232, %vm296
    %vm6098 = vmand %vm233, %vm297
    %vm6099 = vmand %vm234, %vm298
    %vm6100 = vmand %vm235, %vm299
    %vm6101 = vmand %vm236, %vm300
    %vm6102 = vmand %vm237, %vm301
    %vm6103 = vmand %vm238, %vm302
    %vm6104 = vmand %vm239, %vm303
    %vm6105 = vmand %vm240, %vm304
    %vm6106 = vmand %vm241, %vm305
    %vm6107 = vmand %vm242, %vm306
    %v6108 = vsel %vm6076, 1, 0
    %v6109 = vsel %vm6077, 1, 0
    %v6110 = vsel %vm6078, 1, 0
    %v6111 = vsel %vm6079, 1, 0
    %v6112 = vsel %vm6080, 1, 0
    %v6113 = vsel %vm6081, 1, 0
    %v6114 = vsel %vm6082, 1, 0
    %v6115 = vsel %vm6083, 1, 0
    %v6116 = vsel %vm6084, 1, 0
    %v6117 = vsel %vm6085, 1, 0
    %v6118 = vsel %vm6086, 1, 0
    %v6119 = vsel %vm6087, 1, 0
    %v6120 = vsel %vm6088, 1, 0
    %v6121 = vsel %vm6089, 1, 0
    %v6122 = vsel %vm6090, 1, 0
    %v6123 = vsel %vm6091, 1, 0
    %v6124 = vsel %vm6092, 1, 0
    %v6125 = vsel %vm6093, 1, 0
    %v6126 = vsel %vm6094, 1, 0
    %v6127 = vsel %vm6095, 1, 0
    %v6128 = vsel %vm6096, 1, 0
    %v6129 = vsel %vm6097, 1, 0
    %v6130 = vsel %vm6098, 1, 0
    %v6131 = vsel %vm6099, 1, 0
    %v6132 = vsel %vm6100, 1, 0
    %v6133 = vsel %vm6101, 1, 0
    %v6134 = vsel %vm6102, 1, 0
    %v6135 = vsel %vm6103, 1, 0
    %v6136 = vsel %vm6104, 1, 0
    %v6137 = vsel %vm6105, 1, 0
    %v6138 = vsel %vm6106, 1, 0
    %v6139 = vsel %vm6107, 1, 0
    %vm6140 = vcmp.eq.s32.totalorder %v6108, 1
    %vm6141 = vcmp.eq.s32.totalorder %v6109, 1
    %vm6142 = vcmp.eq.s32.totalorder %v6110, 1
    %vm6143 = vcmp.eq.s32.totalorder %v6111, 1
    %vm6144 = vcmp.eq.s32.totalorder %v6112, 1
    %vm6145 = vcmp.eq.s32.totalorder %v6113, 1
    %vm6146 = vcmp.eq.s32.totalorder %v6114, 1
    %vm6147 = vcmp.eq.s32.totalorder %v6115, 1
    %vm6148 = vcmp.eq.s32.totalorder %v6116, 1
    %vm6149 = vcmp.eq.s32.totalorder %v6117, 1
    %vm6150 = vcmp.eq.s32.totalorder %v6118, 1
    %vm6151 = vcmp.eq.s32.totalorder %v6119, 1
    %vm6152 = vcmp.eq.s32.totalorder %v6120, 1
    %vm6153 = vcmp.eq.s32.totalorder %v6121, 1
    %vm6154 = vcmp.eq.s32.totalorder %v6122, 1
    %vm6155 = vcmp.eq.s32.totalorder %v6123, 1
    %vm6156 = vcmp.eq.s32.totalorder %v6124, 1
    %vm6157 = vcmp.eq.s32.totalorder %v6125, 1
    %vm6158 = vcmp.eq.s32.totalorder %v6126, 1
    %vm6159 = vcmp.eq.s32.totalorder %v6127, 1
    %vm6160 = vcmp.eq.s32.totalorder %v6128, 1
    %vm6161 = vcmp.eq.s32.totalorder %v6129, 1
    %vm6162 = vcmp.eq.s32.totalorder %v6130, 1
    %vm6163 = vcmp.eq.s32.totalorder %v6131, 1
    %vm6164 = vcmp.eq.s32.totalorder %v6132, 1
    %vm6165 = vcmp.eq.s32.totalorder %v6133, 1
    %vm6166 = vcmp.eq.s32.totalorder %v6134, 1
    %vm6167 = vcmp.eq.s32.totalorder %v6135, 1
    %vm6168 = vcmp.eq.s32.totalorder %v6136, 1
    %vm6169 = vcmp.eq.s32.totalorder %v6137, 1
    %vm6170 = vcmp.eq.s32.totalorder %v6138, 1
    %vm6171 = vcmp.eq.s32.totalorder %v6139, 1
    %v6172 = vsel %vm6140, %v1880, 0.0
    %v6173 = vsel %vm6140, %v1881, 0.0
    %v6174 = vsel %vm6141, %v1878, 0.0
    %v6175 = vsel %vm6141, %v1879, 0.0
    %v6176 = vsel %vm6142, %v1876, 0.0
    %v6177 = vsel %vm6142, %v1877, 0.0
    %v6178 = vsel %vm6143, %v1874, 0.0
    %v6179 = vsel %vm6143, %v1875, 0.0
    %v6180 = vsel %vm6144, %v1872, 0.0
    %v6181 = vsel %vm6144, %v1873, 0.0
    %v6182 = vsel %vm6145, %v1870, 0.0
    %v6183 = vsel %vm6145, %v1871, 0.0
    %v6184 = vsel %vm6146, %v1868, 0.0
    %v6185 = vsel %vm6146, %v1869, 0.0
    %v6186 = vsel %vm6147, %v1866, 0.0
    %v6187 = vsel %vm6147, %v1867, 0.0
    %v6188 = vsel %vm6148, %v1864, 0.0
    %v6189 = vsel %vm6148, %v1865, 0.0
    %v6190 = vsel %vm6149, %v1862, 0.0
    %v6191 = vsel %vm6149, %v1863, 0.0
    %v6192 = vsel %vm6150, %v1860, 0.0
    %v6193 = vsel %vm6150, %v1861, 0.0
    %v6194 = vsel %vm6151, %v1858, 0.0
    %v6195 = vsel %vm6151, %v1859, 0.0
    %v6196 = vsel %vm6152, %v1856, 0.0
    %v6197 = vsel %vm6152, %v1857, 0.0
    %v6198 = vsel %vm6153, %v1854, 0.0
    %v6199 = vsel %vm6153, %v1855, 0.0
    %v6200 = vsel %vm6154, %v1852, 0.0
    %v6201 = vsel %vm6154, %v1853, 0.0
    %v6202 = vsel %vm6155, %v1850, 0.0
    %v6203 = vsel %vm6155, %v1851, 0.0
    %v6204 = vsel %vm6156, %v1848, 0.0
    %v6205 = vsel %vm6156, %v1849, 0.0
    %v6206 = vsel %vm6157, %v1846, 0.0
    %v6207 = vsel %vm6157, %v1847, 0.0
    %v6208 = vsel %vm6158, %v1844, 0.0
    %v6209 = vsel %vm6158, %v1845, 0.0
    %v6210 = vsel %vm6159, %v1842, 0.0
    %v6211 = vsel %vm6159, %v1843, 0.0
    %v6212 = vsel %vm6160, %v1840, 0.0
    %v6213 = vsel %vm6160, %v1841, 0.0
    %v6214 = vsel %vm6161, %v1838, 0.0
    %v6215 = vsel %vm6161, %v1839, 0.0
    %v6216 = vsel %vm6162, %v1836, 0.0
    %v6217 = vsel %vm6162, %v1837, 0.0
    %v6218 = vsel %vm6163, %v1834, 0.0
    %v6219 = vsel %vm6163, %v1835, 0.0
    %v6220 = vsel %vm6164, %v1832, 0.0
    %v6221 = vsel %vm6164, %v1833, 0.0
    %v6222 = vsel %vm6165, %v1830, 0.0
    %v6223 = vsel %vm6165, %v1831, 0.0
    %v6224 = vsel %vm6166, %v1828, 0.0
    %v6225 = vsel %vm6166, %v1829, 0.0
    %v6226 = vsel %vm6167, %v1826, 0.0
    %v6227 = vsel %vm6167, %v1827, 0.0
    %v6228 = vsel %vm6168, %v1824, 0.0
    %v6229 = vsel %vm6168, %v1825, 0.0
    %v6230 = vsel %vm6169, %v1822, 0.0
    %v6231 = vsel %vm6169, %v1823, 0.0
    %v6232 = vsel %vm6170, %v1884, 0.0
    %v6233 = vsel %vm6170, %v1885, 0.0
    %v6234 = vsel %vm6171, %v1882, 0.0
    %v6235 = vsel %vm6171, %v1883, 0.0
    %s6236 = scalar_lea.vmem %s1, 4096
    %v6237 = vld [vmem:[%s6236] sm:$0xff]
    %v6238 = vld [vmem:[%s6236 + $0x8] sm:$0xff]
    %v6239 = vld [vmem:[%s6236 + $0x10] sm:$0xff]
    %v6240 = vld [vmem:[%s6236 + $0x18] sm:$0xff]
    %v6241 = vld [vmem:[%s6236 + $0x20] sm:$0xff]
    %v6242 = vld [vmem:[%s6236 + $0x28] sm:$0xff]
    %v6243 = vld [vmem:[%s6236 + $0x30] sm:$0xff]
    %v6244 = vld [vmem:[%s6236 + $0x38] sm:$0xff]
    %v6245 = vld [vmem:[%s6236 + $0x40] sm:$0xff]
    %v6246 = vld [vmem:[%s6236 + $0x48] sm:$0xff]
    %v6247 = vld [vmem:[%s6236 + $0x50] sm:$0xff]
    %v6248 = vld [vmem:[%s6236 + $0x58] sm:$0xff]
    %v6249 = vld [vmem:[%s6236 + $0x60] sm:$0xff]
    %v6250 = vld [vmem:[%s6236 + $0x68] sm:$0xff]
    %v6251 = vld [vmem:[%s6236 + $0x70] sm:$0xff]
    %v6252 = vld [vmem:[%s6236 + $0x78] sm:$0xff]
    %v6253 = vld [vmem:[%s6236 + $0x80] sm:$0xff]
    %v6254 = vld [vmem:[%s6236 + $0x88] sm:$0xff]
    %v6255 = vld [vmem:[%s6236 + $0x90] sm:$0xff]
    %v6256 = vld [vmem:[%s6236 + $0x98] sm:$0xff]
    %v6257 = vld [vmem:[%s6236 + $0xa0] sm:$0xff]
    %v6258 = vld [vmem:[%s6236 + $0xa8] sm:$0xff]
    %v6259 = vld [vmem:[%s6236 + $0xb0] sm:$0xff]
    %v6260 = vld [vmem:[%s6236 + $0xb8] sm:$0xff]
    %v6261 = vld [vmem:[%s6236 + $0xc0] sm:$0xff]
    %v6262 = vld [vmem:[%s6236 + $0xc8] sm:$0xff]
    %v6263 = vld [vmem:[%s6236 + $0xd0] sm:$0xff]
    %v6264 = vld [vmem:[%s6236 + $0xd8] sm:$0xff]
    %v6265 = vld [vmem:[%s6236 + $0xe0] sm:$0xff]
    %v6266 = vld [vmem:[%s6236 + $0xe8] sm:$0xff]
    %v6267 = vld [vmem:[%s6236 + $0xf0] sm:$0xff]
    %v6268 = vld [vmem:[%s6236 + $0xf8] sm:$0xff]
    %v6269 = vld [vmem:[%s6236 + $0x100] sm:$0xff]
    %v6270 = vld [vmem:[%s6236 + $0x108] sm:$0xff]
    %v6271 = vld [vmem:[%s6236 + $0x110] sm:$0xff]
    %v6272 = vld [vmem:[%s6236 + $0x118] sm:$0xff]
    %v6273 = vld [vmem:[%s6236 + $0x120] sm:$0xff]
    %v6274 = vld [vmem:[%s6236 + $0x128] sm:$0xff]
    %v6275 = vld [vmem:[%s6236 + $0x130] sm:$0xff]
    %v6276 = vld [vmem:[%s6236 + $0x138] sm:$0xff]
    %v6277 = vld [vmem:[%s6236 + $0x140] sm:$0xff]
    %v6278 = vld [vmem:[%s6236 + $0x148] sm:$0xff]
    %v6279 = vld [vmem:[%s6236 + $0x150] sm:$0xff]
    %v6280 = vld [vmem:[%s6236 + $0x158] sm:$0xff]
    %v6281 = vld [vmem:[%s6236 + $0x160] sm:$0xff]
    %v6282 = vld [vmem:[%s6236 + $0x168] sm:$0xff]
    %v6283 = vld [vmem:[%s6236 + $0x170] sm:$0xff]
    %v6284 = vld [vmem:[%s6236 + $0x178] sm:$0xff]
    %v6285 = vld [vmem:[%s6236 + $0x180] sm:$0xff]
    %v6286 = vld [vmem:[%s6236 + $0x188] sm:$0xff]
    %v6287 = vld [vmem:[%s6236 + $0x190] sm:$0xff]
    %v6288 = vld [vmem:[%s6236 + $0x198] sm:$0xff]
    %v6289 = vld [vmem:[%s6236 + $0x1a0] sm:$0xff]
    %v6290 = vld [vmem:[%s6236 + $0x1a8] sm:$0xff]
    %v6291 = vld [vmem:[%s6236 + $0x1b0] sm:$0xff]
    %v6292 = vld [vmem:[%s6236 + $0x1b8] sm:$0xff]
    %v6293 = vld [vmem:[%s6236 + $0x1c0] sm:$0xff]
    %v6294 = vld [vmem:[%s6236 + $0x1c8] sm:$0xff]
    %v6295 = vld [vmem:[%s6236 + $0x1d0] sm:$0xff]
    %v6296 = vld [vmem:[%s6236 + $0x1d8] sm:$0xff]
    %v6297 = vld [vmem:[%s6236 + $0x1e0] sm:$0xff]
    %v6298 = vld [vmem:[%s6236 + $0x1e8] sm:$0xff]
    %v6299 = vld [vmem:[%s6236 + $0x1f0] sm:$0xff]
    %v6300 = vld [vmem:[%s6236 + $0x1f8] sm:$0xff]
    %6301 = vmatpush.msra.mxu0 %v6267
    %6302 = vmatpush.msra.mxu0 %v6265
    %6303 = vmatpush.msra.mxu0 %v6263
    %6304 = vmatpush.msra.mxu0 %v6261
    %6305 = vmatpush.msra.mxu0 %v6259
    %6306 = vmatpush.msra.mxu0 %v6257
    %6307 = vmatpush.msra.mxu0 %v6255
    %6308 = vmatpush.msra.mxu0 %v6253
    %6309 = vmatpush.msra.mxu0 %v6251
    %6310 = vmatpush.msra.mxu0 %v6249
    %6311 = vmatpush.msra.mxu0 %v6247
    %6312 = vmatpush.msra.mxu0 %v6245
    %6313 = vmatpush.msra.mxu0 %v6243
    %6314 = vmatpush.msra.mxu0 %v6241
    %6315 = vmatpush.msra.mxu0 %v6239
    %6316 = vmatpush.msra.mxu0 %v6237
    %6317 = vmatmul.f32.gmra.mxu0 %v6172
    %v6318 = vpop.f32.mrf.mxu0
    %v6319 = vadd.f32 0.0, %v6318
    %6320 = vmatmul.f32.gmra.mxu0 %v6174
    %v6321 = vpop.f32.mrf.mxu0
    %v6322 = vadd.f32 0.0, %v6321
    %6323 = vmatmul.f32.gmra.mxu0 %v6176
    %v6324 = vpop.f32.mrf.mxu0
    %v6325 = vadd.f32 0.0, %v6324
    %6326 = vmatmul.f32.gmra.mxu0 %v6178
    %v6327 = vpop.f32.mrf.mxu0
    %v6328 = vadd.f32 0.0, %v6327
    %6329 = vmatmul.f32.gmra.mxu0 %v6180
    %v6330 = vpop.f32.mrf.mxu0
    %v6331 = vadd.f32 0.0, %v6330
    %6332 = vmatmul.f32.gmra.mxu0 %v6182
    %v6333 = vpop.f32.mrf.mxu0
    %v6334 = vadd.f32 0.0, %v6333
    %6335 = vmatmul.f32.gmra.mxu0 %v6184
    %v6336 = vpop.f32.mrf.mxu0
    %v6337 = vadd.f32 0.0, %v6336
    %6338 = vmatmul.f32.gmra.mxu0 %v6186
    %v6339 = vpop.f32.mrf.mxu0
    %v6340 = vadd.f32 0.0, %v6339
    %6341 = vmatmul.f32.gmra.mxu0 %v6188
    %v6342 = vpop.f32.mrf.mxu0
    %v6343 = vadd.f32 0.0, %v6342
    %6344 = vmatmul.f32.gmra.mxu0 %v6190
    %v6345 = vpop.f32.mrf.mxu0
    %v6346 = vadd.f32 0.0, %v6345
    %6347 = vmatmul.f32.gmra.mxu0 %v6192
    %v6348 = vpop.f32.mrf.mxu0
    %v6349 = vadd.f32 0.0, %v6348
    %6350 = vmatmul.f32.gmra.mxu0 %v6194
    %v6351 = vpop.f32.mrf.mxu0
    %v6352 = vadd.f32 0.0, %v6351
    %6353 = vmatmul.f32.gmra.mxu0 %v6196
    %v6354 = vpop.f32.mrf.mxu0
    %v6355 = vadd.f32 0.0, %v6354
    %6356 = vmatmul.f32.gmra.mxu0 %v6198
    %v6357 = vpop.f32.mrf.mxu0
    %v6358 = vadd.f32 0.0, %v6357
    %6359 = vmatmul.f32.gmra.mxu0 %v6200
    %v6360 = vpop.f32.mrf.mxu0
    %v6361 = vadd.f32 0.0, %v6360
    %6362 = vmatmul.f32.gmra.mxu0 %v6202
    %v6363 = vpop.f32.mrf.mxu0
    %v6364 = vadd.f32 0.0, %v6363
    %6365 = vmatmul.f32.gmra.mxu0 %v6204
    %v6366 = vpop.f32.mrf.mxu0
    %v6367 = vadd.f32 0.0, %v6366
    %6368 = vmatmul.f32.gmra.mxu0 %v6206
    %v6369 = vpop.f32.mrf.mxu0
    %v6370 = vadd.f32 0.0, %v6369
    %6371 = vmatmul.f32.gmra.mxu0 %v6208
    %v6372 = vpop.f32.mrf.mxu0
    %v6373 = vadd.f32 0.0, %v6372
    %6374 = vmatmul.f32.gmra.mxu0 %v6210
    %v6375 = vpop.f32.mrf.mxu0
    %v6376 = vadd.f32 0.0, %v6375
    %6377 = vmatmul.f32.gmra.mxu0 %v6212
    %v6378 = vpop.f32.mrf.mxu0
    %v6379 = vadd.f32 0.0, %v6378
    %6380 = vmatmul.f32.gmra.mxu0 %v6214
    %v6381 = vpop.f32.mrf.mxu0
    %v6382 = vadd.f32 0.0, %v6381
    %6383 = vmatmul.f32.gmra.mxu0 %v6216
    %v6384 = vpop.f32.mrf.mxu0
    %v6385 = vadd.f32 0.0, %v6384
    %6386 = vmatmul.f32.gmra.mxu0 %v6218
    %v6387 = vpop.f32.mrf.mxu0
    %v6388 = vadd.f32 0.0, %v6387
    %6389 = vmatmul.f32.gmra.mxu0 %v6220
    %v6390 = vpop.f32.mrf.mxu0
    %v6391 = vadd.f32 0.0, %v6390
    %6392 = vmatmul.f32.gmra.mxu0 %v6222
    %v6393 = vpop.f32.mrf.mxu0
    %v6394 = vadd.f32 0.0, %v6393
    %6395 = vmatmul.f32.gmra.mxu0 %v6224
    %v6396 = vpop.f32.mrf.mxu0
    %v6397 = vadd.f32 0.0, %v6396
    %6398 = vmatmul.f32.gmra.mxu0 %v6226
    %v6399 = vpop.f32.mrf.mxu0
    %v6400 = vadd.f32 0.0, %v6399
    %6401 = vmatmul.f32.gmra.mxu0 %v6228
    %v6402 = vpop.f32.mrf.mxu0
    %v6403 = vadd.f32 0.0, %v6402
    %6404 = vmatmul.f32.gmra.mxu0 %v6230
    %v6405 = vpop.f32.mrf.mxu0
    %v6406 = vadd.f32 0.0, %v6405
    %6407 = vmatmul.f32.gmra.mxu0 %v6232
    %v6408 = vpop.f32.mrf.mxu0
    %v6409 = vadd.f32 0.0, %v6408
    %6410 = vmatmul.f32.gmra.mxu0 %v6234
    %v6411 = vpop.f32.mrf.mxu0
    %v6412 = vadd.f32 0.0, %v6411
    %6413 = vdwg.mxu0
    %6414 = vmatpush.msra.mxu0 %v6299
    %6415 = vmatpush.msra.mxu0 %v6297
    %6416 = vmatpush.msra.mxu0 %v6295
    %6417 = vmatpush.msra.mxu0 %v6293
    %6418 = vmatpush.msra.mxu0 %v6291
    %6419 = vmatpush.msra.mxu0 %v6289
    %6420 = vmatpush.msra.mxu0 %v6287
    %6421 = vmatpush.msra.mxu0 %v6285
    %6422 = vmatpush.msra.mxu0 %v6283
    %6423 = vmatpush.msra.mxu0 %v6281
    %6424 = vmatpush.msra.mxu0 %v6279
    %6425 = vmatpush.msra.mxu0 %v6277
    %6426 = vmatpush.msra.mxu0 %v6275
    %6427 = vmatpush.msra.mxu0 %v6273
    %6428 = vmatpush.msra.mxu0 %v6271
    %6429 = vmatpush.msra.mxu0 %v6269
    %6430 = vmatmul.f32.gmra.mxu0 %v6173
    %v6431 = vpop.f32.mrf.mxu0
    %v6432 = vadd.f32 %v6319, %v6431
    %6433 = vmatmul.f32.gmra.mxu0 %v6175
    %v6434 = vpop.f32.mrf.mxu0
    %v6435 = vadd.f32 %v6322, %v6434
    %6436 = vmatmul.f32.gmra.mxu0 %v6177
    %v6437 = vpop.f32.mrf.mxu0
    %v6438 = vadd.f32 %v6325, %v6437
    %6439 = vmatmul.f32.gmra.mxu0 %v6179
    %v6440 = vpop.f32.mrf.mxu0
    %v6441 = vadd.f32 %v6328, %v6440
    %6442 = vmatmul.f32.gmra.mxu0 %v6181
    %v6443 = vpop.f32.mrf.mxu0
    %v6444 = vadd.f32 %v6331, %v6443
    %6445 = vmatmul.f32.gmra.mxu0 %v6183
    %v6446 = vpop.f32.mrf.mxu0
    %v6447 = vadd.f32 %v6334, %v6446
    %6448 = vmatmul.f32.gmra.mxu0 %v6185
    %v6449 = vpop.f32.mrf.mxu0
    %v6450 = vadd.f32 %v6337, %v6449
    %6451 = vmatmul.f32.gmra.mxu0 %v6187
    %v6452 = vpop.f32.mrf.mxu0
    %v6453 = vadd.f32 %v6340, %v6452
    %6454 = vmatmul.f32.gmra.mxu0 %v6189
    %v6455 = vpop.f32.mrf.mxu0
    %v6456 = vadd.f32 %v6343, %v6455
    %6457 = vmatmul.f32.gmra.mxu0 %v6191
    %v6458 = vpop.f32.mrf.mxu0
    %v6459 = vadd.f32 %v6346, %v6458
    %6460 = vmatmul.f32.gmra.mxu0 %v6193
    %v6461 = vpop.f32.mrf.mxu0
    %v6462 = vadd.f32 %v6349, %v6461
    %6463 = vmatmul.f32.gmra.mxu0 %v6195
    %v6464 = vpop.f32.mrf.mxu0
    %v6465 = vadd.f32 %v6352, %v6464
    %6466 = vmatmul.f32.gmra.mxu0 %v6197
    %v6467 = vpop.f32.mrf.mxu0
    %v6468 = vadd.f32 %v6355, %v6467
    %6469 = vmatmul.f32.gmra.mxu0 %v6199
    %v6470 = vpop.f32.mrf.mxu0
    %v6471 = vadd.f32 %v6358, %v6470
    %6472 = vmatmul.f32.gmra.mxu0 %v6201
    %v6473 = vpop.f32.mrf.mxu0
    %v6474 = vadd.f32 %v6361, %v6473
    %6475 = vmatmul.f32.gmra.mxu0 %v6203
    %v6476 = vpop.f32.mrf.mxu0
    %v6477 = vadd.f32 %v6364, %v6476
    %6478 = vmatmul.f32.gmra.mxu0 %v6205
    %v6479 = vpop.f32.mrf.mxu0
    %v6480 = vadd.f32 %v6367, %v6479
    %6481 = vmatmul.f32.gmra.mxu0 %v6207
    %v6482 = vpop.f32.mrf.mxu0
    %v6483 = vadd.f32 %v6370, %v6482
    %6484 = vmatmul.f32.gmra.mxu0 %v6209
    %v6485 = vpop.f32.mrf.mxu0
    %v6486 = vadd.f32 %v6373, %v6485
    %6487 = vmatmul.f32.gmra.mxu0 %v6211
    %v6488 = vpop.f32.mrf.mxu0
    %v6489 = vadd.f32 %v6376, %v6488
    %6490 = vmatmul.f32.gmra.mxu0 %v6213
    %v6491 = vpop.f32.mrf.mxu0
    %v6492 = vadd.f32 %v6379, %v6491
    %6493 = vmatmul.f32.gmra.mxu0 %v6215
    %v6494 = vpop.f32.mrf.mxu0
    %v6495 = vadd.f32 %v6382, %v6494
    %6496 = vmatmul.f32.gmra.mxu0 %v6217
    %v6497 = vpop.f32.mrf.mxu0
    %v6498 = vadd.f32 %v6385, %v6497
    %6499 = vmatmul.f32.gmra.mxu0 %v6219
    %v6500 = vpop.f32.mrf.mxu0
    %v6501 = vadd.f32 %v6388, %v6500
    %6502 = vmatmul.f32.gmra.mxu0 %v6221
    %v6503 = vpop.f32.mrf.mxu0
    %v6504 = vadd.f32 %v6391, %v6503
    %6505 = vmatmul.f32.gmra.mxu0 %v6223
    %v6506 = vpop.f32.mrf.mxu0
    %v6507 = vadd.f32 %v6394, %v6506
    %6508 = vmatmul.f32.gmra.mxu0 %v6225
    %v6509 = vpop.f32.mrf.mxu0
    %v6510 = vadd.f32 %v6397, %v6509
    %6511 = vmatmul.f32.gmra.mxu0 %v6227
    %v6512 = vpop.f32.mrf.mxu0
    %v6513 = vadd.f32 %v6400, %v6512
    %6514 = vmatmul.f32.gmra.mxu0 %v6229
    %v6515 = vpop.f32.mrf.mxu0
    %v6516 = vadd.f32 %v6403, %v6515
    %6517 = vmatmul.f32.gmra.mxu0 %v6231
    %v6518 = vpop.f32.mrf.mxu0
    %v6519 = vadd.f32 %v6406, %v6518
    %6520 = vmatmul.f32.gmra.mxu0 %v6233
    %v6521 = vpop.f32.mrf.mxu0
    %v6522 = vadd.f32 %v6409, %v6521
    %6523 = vmatmul.f32.gmra.mxu0 %v6235
    %v6524 = vpop.f32.mrf.mxu0
    %v6525 = vadd.f32 %v6412, %v6524
    %6526 = vdwg.mxu0
    %6527 = vmatpush.msra.mxu0 %v6268
    %6528 = vmatpush.msra.mxu0 %v6266
    %6529 = vmatpush.msra.mxu0 %v6264
    %6530 = vmatpush.msra.mxu0 %v6262
    %6531 = vmatpush.msra.mxu0 %v6260
    %6532 = vmatpush.msra.mxu0 %v6258
    %6533 = vmatpush.msra.mxu0 %v6256
    %6534 = vmatpush.msra.mxu0 %v6254
    %6535 = vmatpush.msra.mxu0 %v6252
    %6536 = vmatpush.msra.mxu0 %v6250
    %6537 = vmatpush.msra.mxu0 %v6248
    %6538 = vmatpush.msra.mxu0 %v6246
    %6539 = vmatpush.msra.mxu0 %v6244
    %6540 = vmatpush.msra.mxu0 %v6242
    %6541 = vmatpush.msra.mxu0 %v6240
    %6542 = vmatpush.msra.mxu0 %v6238
    %6543 = vmatmul.f32.gmra.mxu0 %v6172
    %v6544 = vpop.f32.mrf.mxu0
    %v6545 = vadd.f32 0.0, %v6544
    %6546 = vmatmul.f32.gmra.mxu0 %v6174
    %v6547 = vpop.f32.mrf.mxu0
    %v6548 = vadd.f32 0.0, %v6547
    %6549 = vmatmul.f32.gmra.mxu0 %v6176
    %v6550 = vpop.f32.mrf.mxu0
    %v6551 = vadd.f32 0.0, %v6550
    %6552 = vmatmul.f32.gmra.mxu0 %v6178
    %v6553 = vpop.f32.mrf.mxu0
    %v6554 = vadd.f32 0.0, %v6553
    %6555 = vmatmul.f32.gmra.mxu0 %v6180
    %v6556 = vpop.f32.mrf.mxu0
    %v6557 = vadd.f32 0.0, %v6556
    %6558 = vmatmul.f32.gmra.mxu0 %v6182
    %v6559 = vpop.f32.mrf.mxu0
    %v6560 = vadd.f32 0.0, %v6559
    %6561 = vmatmul.f32.gmra.mxu0 %v6184
    %v6562 = vpop.f32.mrf.mxu0
    %v6563 = vadd.f32 0.0, %v6562
    %6564 = vmatmul.f32.gmra.mxu0 %v6186
    %v6565 = vpop.f32.mrf.mxu0
    %v6566 = vadd.f32 0.0, %v6565
    %6567 = vmatmul.f32.gmra.mxu0 %v6188
    %v6568 = vpop.f32.mrf.mxu0
    %v6569 = vadd.f32 0.0, %v6568
    %6570 = vmatmul.f32.gmra.mxu0 %v6190
    %v6571 = vpop.f32.mrf.mxu0
    %v6572 = vadd.f32 0.0, %v6571
    %6573 = vmatmul.f32.gmra.mxu0 %v6192
    %v6574 = vpop.f32.mrf.mxu0
    %v6575 = vadd.f32 0.0, %v6574
    %6576 = vmatmul.f32.gmra.mxu0 %v6194
    %v6577 = vpop.f32.mrf.mxu0
    %v6578 = vadd.f32 0.0, %v6577
    %6579 = vmatmul.f32.gmra.mxu0 %v6196
    %v6580 = vpop.f32.mrf.mxu0
    %v6581 = vadd.f32 0.0, %v6580
    %6582 = vmatmul.f32.gmra.mxu0 %v6198
    %v6583 = vpop.f32.mrf.mxu0
    %v6584 = vadd.f32 0.0, %v6583
    %6585 = vmatmul.f32.gmra.mxu0 %v6200
    %v6586 = vpop.f32.mrf.mxu0
    %v6587 = vadd.f32 0.0, %v6586
    %6588 = vmatmul.f32.gmra.mxu0 %v6202
    %v6589 = vpop.f32.mrf.mxu0
    %v6590 = vadd.f32 0.0, %v6589
    %6591 = vmatmul.f32.gmra.mxu0 %v6204
    %v6592 = vpop.f32.mrf.mxu0
    %v6593 = vadd.f32 0.0, %v6592
    %6594 = vmatmul.f32.gmra.mxu0 %v6206
    %v6595 = vpop.f32.mrf.mxu0
    %v6596 = vadd.f32 0.0, %v6595
    %6597 = vmatmul.f32.gmra.mxu0 %v6208
    %v6598 = vpop.f32.mrf.mxu0
    %v6599 = vadd.f32 0.0, %v6598
    %6600 = vmatmul.f32.gmra.mxu0 %v6210
    %v6601 = vpop.f32.mrf.mxu0
    %v6602 = vadd.f32 0.0, %v6601
    %6603 = vmatmul.f32.gmra.mxu0 %v6212
    %v6604 = vpop.f32.mrf.mxu0
    %v6605 = vadd.f32 0.0, %v6604
    %6606 = vmatmul.f32.gmra.mxu0 %v6214
    %v6607 = vpop.f32.mrf.mxu0
    %v6608 = vadd.f32 0.0, %v6607
    %6609 = vmatmul.f32.gmra.mxu0 %v6216
    %v6610 = vpop.f32.mrf.mxu0
    %v6611 = vadd.f32 0.0, %v6610
    %6612 = vmatmul.f32.gmra.mxu0 %v6218
    %v6613 = vpop.f32.mrf.mxu0
    %v6614 = vadd.f32 0.0, %v6613
    %6615 = vmatmul.f32.gmra.mxu0 %v6220
    %v6616 = vpop.f32.mrf.mxu0
    %v6617 = vadd.f32 0.0, %v6616
    %6618 = vmatmul.f32.gmra.mxu0 %v6222
    %v6619 = vpop.f32.mrf.mxu0
    %v6620 = vadd.f32 0.0, %v6619
    %6621 = vmatmul.f32.gmra.mxu0 %v6224
    %v6622 = vpop.f32.mrf.mxu0
    %v6623 = vadd.f32 0.0, %v6622
    %6624 = vmatmul.f32.gmra.mxu0 %v6226
    %v6625 = vpop.f32.mrf.mxu0
    %v6626 = vadd.f32 0.0, %v6625
    %6627 = vmatmul.f32.gmra.mxu0 %v6228
    %v6628 = vpop.f32.mrf.mxu0
    %v6629 = vadd.f32 0.0, %v6628
    %6630 = vmatmul.f32.gmra.mxu0 %v6230
    %v6631 = vpop.f32.mrf.mxu0
    %v6632 = vadd.f32 0.0, %v6631
    %6633 = vmatmul.f32.gmra.mxu0 %v6232
    %v6634 = vpop.f32.mrf.mxu0
    %v6635 = vadd.f32 0.0, %v6634
    %6636 = vmatmul.f32.gmra.mxu0 %v6234
    %v6637 = vpop.f32.mrf.mxu0
    %v6638 = vadd.f32 0.0, %v6637
    %6639 = vdwg.mxu0
    %6640 = vmatpush.msra.mxu0 %v6300
    %6641 = vmatpush.msra.mxu0 %v6298
    %6642 = vmatpush.msra.mxu0 %v6296
    %6643 = vmatpush.msra.mxu0 %v6294
    %6644 = vmatpush.msra.mxu0 %v6292
    %6645 = vmatpush.msra.mxu0 %v6290
    %6646 = vmatpush.msra.mxu0 %v6288
    %6647 = vmatpush.msra.mxu0 %v6286
    %6648 = vmatpush.msra.mxu0 %v6284
    %6649 = vmatpush.msra.mxu0 %v6282
    %6650 = vmatpush.msra.mxu0 %v6280
    %6651 = vmatpush.msra.mxu0 %v6278
    %6652 = vmatpush.msra.mxu0 %v6276
    %6653 = vmatpush.msra.mxu0 %v6274
    %6654 = vmatpush.msra.mxu0 %v6272
    %6655 = vmatpush.msra.mxu0 %v6270
    %6656 = vmatmul.f32.gmra.mxu0 %v6173
    %v6657 = vpop.f32.mrf.mxu0
    %v6658 = vadd.f32 %v6545, %v6657
    %6659 = vmatmul.f32.gmra.mxu0 %v6175
    %v6660 = vpop.f32.mrf.mxu0
    %v6661 = vadd.f32 %v6548, %v6660
    %6662 = vmatmul.f32.gmra.mxu0 %v6177
    %v6663 = vpop.f32.mrf.mxu0
    %v6664 = vadd.f32 %v6551, %v6663
    %6665 = vmatmul.f32.gmra.mxu0 %v6179
    %v6666 = vpop.f32.mrf.mxu0
    %v6667 = vadd.f32 %v6554, %v6666
    %6668 = vmatmul.f32.gmra.mxu0 %v6181
    %v6669 = vpop.f32.mrf.mxu0
    %v6670 = vadd.f32 %v6557, %v6669
    %6671 = vmatmul.f32.gmra.mxu0 %v6183
    %v6672 = vpop.f32.mrf.mxu0
    %v6673 = vadd.f32 %v6560, %v6672
    %6674 = vmatmul.f32.gmra.mxu0 %v6185
    %v6675 = vpop.f32.mrf.mxu0
    %v6676 = vadd.f32 %v6563, %v6675
    %6677 = vmatmul.f32.gmra.mxu0 %v6187
    %v6678 = vpop.f32.mrf.mxu0
    %v6679 = vadd.f32 %v6566, %v6678
    %6680 = vmatmul.f32.gmra.mxu0 %v6189
    %v6681 = vpop.f32.mrf.mxu0
    %v6682 = vadd.f32 %v6569, %v6681
    %6683 = vmatmul.f32.gmra.mxu0 %v6191
    %v6684 = vpop.f32.mrf.mxu0
    %v6685 = vadd.f32 %v6572, %v6684
    %6686 = vmatmul.f32.gmra.mxu0 %v6193
    %v6687 = vpop.f32.mrf.mxu0
    %v6688 = vadd.f32 %v6575, %v6687
    %6689 = vmatmul.f32.gmra.mxu0 %v6195
    %v6690 = vpop.f32.mrf.mxu0
    %v6691 = vadd.f32 %v6578, %v6690
    %6692 = vmatmul.f32.gmra.mxu0 %v6197
    %v6693 = vpop.f32.mrf.mxu0
    %v6694 = vadd.f32 %v6581, %v6693
    %6695 = vmatmul.f32.gmra.mxu0 %v6199
    %v6696 = vpop.f32.mrf.mxu0
    %v6697 = vadd.f32 %v6584, %v6696
    %6698 = vmatmul.f32.gmra.mxu0 %v6201
    %v6699 = vpop.f32.mrf.mxu0
    %v6700 = vadd.f32 %v6587, %v6699
    %6701 = vmatmul.f32.gmra.mxu0 %v6203
    %v6702 = vpop.f32.mrf.mxu0
    %v6703 = vadd.f32 %v6590, %v6702
    %6704 = vmatmul.f32.gmra.mxu0 %v6205
    %v6705 = vpop.f32.mrf.mxu0
    %v6706 = vadd.f32 %v6593, %v6705
    %6707 = vmatmul.f32.gmra.mxu0 %v6207
    %v6708 = vpop.f32.mrf.mxu0
    %v6709 = vadd.f32 %v6596, %v6708
    %6710 = vmatmul.f32.gmra.mxu0 %v6209
    %v6711 = vpop.f32.mrf.mxu0
    %v6712 = vadd.f32 %v6599, %v6711
    %6713 = vmatmul.f32.gmra.mxu0 %v6211
    %v6714 = vpop.f32.mrf.mxu0
    %v6715 = vadd.f32 %v6602, %v6714
    %6716 = vmatmul.f32.gmra.mxu0 %v6213
    %v6717 = vpop.f32.mrf.mxu0
    %v6718 = vadd.f32 %v6605, %v6717
    %6719 = vmatmul.f32.gmra.mxu0 %v6215
    %v6720 = vpop.f32.mrf.mxu0
    %v6721 = vadd.f32 %v6608, %v6720
    %6722 = vmatmul.f32.gmra.mxu0 %v6217
    %v6723 = vpop.f32.mrf.mxu0
    %v6724 = vadd.f32 %v6611, %v6723
    %6725 = vmatmul.f32.gmra.mxu0 %v6219
    %v6726 = vpop.f32.mrf.mxu0
    %v6727 = vadd.f32 %v6614, %v6726
    %6728 = vmatmul.f32.gmra.mxu0 %v6221
    %v6729 = vpop.f32.mrf.mxu0
    %v6730 = vadd.f32 %v6617, %v6729
    %6731 = vmatmul.f32.gmra.mxu0 %v6223
    %v6732 = vpop.f32.mrf.mxu0
    %v6733 = vadd.f32 %v6620, %v6732
    %6734 = vmatmul.f32.gmra.mxu0 %v6225
    %v6735 = vpop.f32.mrf.mxu0
    %v6736 = vadd.f32 %v6623, %v6735
    %6737 = vmatmul.f32.gmra.mxu0 %v6227
    %v6738 = vpop.f32.mrf.mxu0
    %v6739 = vadd.f32 %v6626, %v6738
    %6740 = vmatmul.f32.gmra.mxu0 %v6229
    %v6741 = vpop.f32.mrf.mxu0
    %v6742 = vadd.f32 %v6629, %v6741
    %6743 = vmatmul.f32.gmra.mxu0 %v6231
    %v6744 = vpop.f32.mrf.mxu0
    %v6745 = vadd.f32 %v6632, %v6744
    %6746 = vmatmul.f32.gmra.mxu0 %v6233
    %v6747 = vpop.f32.mrf.mxu0
    %v6748 = vadd.f32 %v6635, %v6747
    %6749 = vmatmul.f32.gmra.mxu0 %v6235
    %v6750 = vpop.f32.mrf.mxu0
    %v6751 = vadd.f32 %v6638, %v6750
    %6752 = vdwg.mxu0
    %v6753 = vadd.f32 %v6012, %v6432
    %v6754 = vadd.f32 %v6013, %v6658
    %v6755 = vadd.f32 %v6014, %v6435
    %v6756 = vadd.f32 %v6015, %v6661
    %v6757 = vadd.f32 %v6016, %v6438
    %v6758 = vadd.f32 %v6017, %v6664
    %v6759 = vadd.f32 %v6018, %v6441
    %v6760 = vadd.f32 %v6019, %v6667
    %v6761 = vadd.f32 %v6020, %v6444
    %v6762 = vadd.f32 %v6021, %v6670
    %v6763 = vadd.f32 %v6022, %v6447
    %v6764 = vadd.f32 %v6023, %v6673
    %v6765 = vadd.f32 %v6024, %v6450
    %v6766 = vadd.f32 %v6025, %v6676
    %v6767 = vadd.f32 %v6026, %v6453
    %v6768 = vadd.f32 %v6027, %v6679
    %v6769 = vadd.f32 %v6028, %v6456
    %v6770 = vadd.f32 %v6029, %v6682
    %v6771 = vadd.f32 %v6030, %v6459
    %v6772 = vadd.f32 %v6031, %v6685
    %v6773 = vadd.f32 %v6032, %v6462
    %v6774 = vadd.f32 %v6033, %v6688
    %v6775 = vadd.f32 %v6034, %v6465
    %v6776 = vadd.f32 %v6035, %v6691
    %v6777 = vadd.f32 %v6036, %v6468
    %v6778 = vadd.f32 %v6037, %v6694
    %v6779 = vadd.f32 %v6038, %v6471
    %v6780 = vadd.f32 %v6039, %v6697
    %v6781 = vadd.f32 %v6040, %v6474
    %v6782 = vadd.f32 %v6041, %v6700
    %v6783 = vadd.f32 %v6042, %v6477
    %v6784 = vadd.f32 %v6043, %v6703
    %v6785 = vadd.f32 %v6044, %v6480
    %v6786 = vadd.f32 %v6045, %v6706
    %v6787 = vadd.f32 %v6046, %v6483
    %v6788 = vadd.f32 %v6047, %v6709
    %v6789 = vadd.f32 %v6048, %v6486
    %v6790 = vadd.f32 %v6049, %v6712
    %v6791 = vadd.f32 %v6050, %v6489
    %v6792 = vadd.f32 %v6051, %v6715
    %v6793 = vadd.f32 %v6052, %v6492
    %v6794 = vadd.f32 %v6053, %v6718
    %v6795 = vadd.f32 %v6054, %v6495
    %v6796 = vadd.f32 %v6055, %v6721
    %v6797 = vadd.f32 %v6056, %v6498
    %v6798 = vadd.f32 %v6057, %v6724
    %v6799 = vadd.f32 %v6058, %v6501
    %v6800 = vadd.f32 %v6059, %v6727
    %v6801 = vadd.f32 %v6060, %v6504
    %v6802 = vadd.f32 %v6061, %v6730
    %v6803 = vadd.f32 %v6062, %v6507
    %v6804 = vadd.f32 %v6063, %v6733
    %v6805 = vadd.f32 %v6064, %v6510
    %v6806 = vadd.f32 %v6065, %v6736
    %v6807 = vadd.f32 %v6066, %v6513
    %v6808 = vadd.f32 %v6067, %v6739
    %v6809 = vadd.f32 %v6068, %v6516
    %v6810 = vadd.f32 %v6069, %v6742
    %v6811 = vadd.f32 %v6070, %v6519
    %v6812 = vadd.f32 %v6071, %v6745
    %v6813 = vadd.f32 %v6072, %v6522
    %v6814 = vadd.f32 %v6073, %v6748
    %v6815 = vadd.f32 %v6074, %v6525
    %v6816 = vadd.f32 %v6075, %v6751
    %v6817 = vadd.f32 %v6753, %v6755
    %v6818 = vadd.f32 %v6817, %v6757
    %v6819 = vadd.f32 %v6818, %v6759
    %v6820 = vadd.f32 %v6819, %v6761
    %v6821 = vadd.f32 %v6820, %v6763
    %v6822 = vadd.f32 %v6821, %v6765
    %v6823 = vadd.f32 %v6822, %v6767
    %v6824 = vadd.f32 %v6823, %v6769
    %v6825 = vadd.f32 %v6824, %v6771
    %v6826 = vadd.f32 %v6825, %v6773
    %v6827 = vadd.f32 %v6826, %v6775
    %v6828 = vadd.f32 %v6827, %v6777
    %v6829 = vadd.f32 %v6828, %v6779
    %v6830 = vadd.f32 %v6829, %v6781
    %v6831 = vadd.f32 %v6830, %v6783
    %v6832 = vrot.slane %v6831, 4
    %v6833 = vadd.f32 %v6831, %v6832
    %v6834 = vrot.slane %v6833, 2
    %v6835 = vadd.f32 %v6833, %v6834
    %v6836 = vrot.slane %v6835, 1
    %v6837 = vadd.f32 %v6835, %v6836
    %v6838 = vadd.f32 %v6754, %v6756
    %v6839 = vadd.f32 %v6838, %v6758
    %v6840 = vadd.f32 %v6839, %v6760
    %v6841 = vadd.f32 %v6840, %v6762
    %v6842 = vadd.f32 %v6841, %v6764
    %v6843 = vadd.f32 %v6842, %v6766
    %v6844 = vadd.f32 %v6843, %v6768
    %v6845 = vadd.f32 %v6844, %v6770
    %v6846 = vadd.f32 %v6845, %v6772
    %v6847 = vadd.f32 %v6846, %v6774
    %v6848 = vadd.f32 %v6847, %v6776
    %v6849 = vadd.f32 %v6848, %v6778
    %v6850 = vadd.f32 %v6849, %v6780
    %v6851 = vadd.f32 %v6850, %v6782
    %v6852 = vadd.f32 %v6851, %v6784
    %v6853 = vrot.slane %v6852, 4
    %v6854 = vadd.f32 %v6852, %v6853
    %v6855 = vrot.slane %v6854, 2
    %v6856 = vadd.f32 %v6854, %v6855
    %v6857 = vrot.slane %v6856, 1
    %v6858 = vadd.f32 %v6856, %v6857
    %v6859 = vrcp.pop 128.0
    %v6860 = vmul.f32 128.0, %v6859
    %v6861 = vsub.f32 1.0, %v6860
    %v6862 = vmul.f32 %v6859, %v6861
    %v6863 = vadd.f32 %v6859, %v6862
    %vm6864 = vweird.f32 %v6859
    %v6865 = vsel %vm6864, %v6859, %v6863
    %v6866 = vmul.f32 %v6837, %v6865
    %v6867 = vmul.f32 %v6858, %v6865
    %v6868 = vsub.f32 %v6753, %v6866
    %v6869 = vsub.f32 %v6754, %v6867
    %v6870 = vsub.f32 %v6755, %v6866
    %v6871 = vsub.f32 %v6756, %v6867
    %v6872 = vsub.f32 %v6757, %v6866
    %v6873 = vsub.f32 %v6758, %v6867
    %v6874 = vsub.f32 %v6759, %v6866
    %v6875 = vsub.f32 %v6760, %v6867
    %v6876 = vsub.f32 %v6761, %v6866
    %v6877 = vsub.f32 %v6762, %v6867
    %v6878 = vsub.f32 %v6763, %v6866
    %v6879 = vsub.f32 %v6764, %v6867
    %v6880 = vsub.f32 %v6765, %v6866
    %v6881 = vsub.f32 %v6766, %v6867
    %v6882 = vsub.f32 %v6767, %v6866
    %v6883 = vsub.f32 %v6768, %v6867
    %v6884 = vsub.f32 %v6769, %v6866
    %v6885 = vsub.f32 %v6770, %v6867
    %v6886 = vsub.f32 %v6771, %v6866
    %v6887 = vsub.f32 %v6772, %v6867
    %v6888 = vsub.f32 %v6773, %v6866
    %v6889 = vsub.f32 %v6774, %v6867
    %v6890 = vsub.f32 %v6775, %v6866
    %v6891 = vsub.f32 %v6776, %v6867
    %v6892 = vsub.f32 %v6777, %v6866
    %v6893 = vsub.f32 %v6778, %v6867
    %v6894 = vsub.f32 %v6779, %v6866
    %v6895 = vsub.f32 %v6780, %v6867
    %v6896 = vsub.f32 %v6781, %v6866
    %v6897 = vsub.f32 %v6782, %v6867
    %v6898 = vsub.f32 %v6783, %v6866
    %v6899 = vsub.f32 %v6784, %v6867
    %v6900 = vmul.f32 %v6868, %v6868
    %v6901 = vmul.f32 %v6869, %v6869
    %v6902 = vmul.f32 %v6870, %v6870
    %v6903 = vmul.f32 %v6871, %v6871
    %v6904 = vmul.f32 %v6872, %v6872
    %v6905 = vmul.f32 %v6873, %v6873
    %v6906 = vmul.f32 %v6874, %v6874
    %v6907 = vmul.f32 %v6875, %v6875
    %v6908 = vmul.f32 %v6876, %v6876
    %v6909 = vmul.f32 %v6877, %v6877
    %v6910 = vmul.f32 %v6878, %v6878
    %v6911 = vmul.f32 %v6879, %v6879
    %v6912 = vmul.f32 %v6880, %v6880
    %v6913 = vmul.f32 %v6881, %v6881
    %v6914 = vmul.f32 %v6882, %v6882
    %v6915 = vmul.f32 %v6883, %v6883
    %v6916 = vmul.f32 %v6884, %v6884
    %v6917 = vmul.f32 %v6885, %v6885
    %v6918 = vmul.f32 %v6886, %v6886
    %v6919 = vmul.f32 %v6887, %v6887
    %v6920 = vmul.f32 %v6888, %v6888
    %v6921 = vmul.f32 %v6889, %v6889
    %v6922 = vmul.f32 %v6890, %v6890
    %v6923 = vmul.f32 %v6891, %v6891
    %v6924 = vmul.f32 %v6892, %v6892
    %v6925 = vmul.f32 %v6893, %v6893
    %v6926 = vmul.f32 %v6894, %v6894
    %v6927 = vmul.f32 %v6895, %v6895
    %v6928 = vmul.f32 %v6896, %v6896
    %v6929 = vmul.f32 %v6897, %v6897
    %v6930 = vmul.f32 %v6898, %v6898
    %v6931 = vmul.f32 %v6899, %v6899
    %v6932 = vadd.f32 %v6900, %v6902
    %v6933 = vadd.f32 %v6932, %v6904
    %v6934 = vadd.f32 %v6933, %v6906
    %v6935 = vadd.f32 %v6934, %v6908
    %v6936 = vadd.f32 %v6935, %v6910
    %v6937 = vadd.f32 %v6936, %v6912
    %v6938 = vadd.f32 %v6937, %v6914
    %v6939 = vadd.f32 %v6938, %v6916
    %v6940 = vadd.f32 %v6939, %v6918
    %v6941 = vadd.f32 %v6940, %v6920
    %v6942 = vadd.f32 %v6941, %v6922
    %v6943 = vadd.f32 %v6942, %v6924
    %v6944 = vadd.f32 %v6943, %v6926
    %v6945 = vadd.f32 %v6944, %v6928
    %v6946 = vadd.f32 %v6945, %v6930
    %v6947 = vrot.slane %v6946, 4
    %v6948 = vadd.f32 %v6946, %v6947
    %v6949 = vrot.slane %v6948, 2
    %v6950 = vadd.f32 %v6948, %v6949
    %v6951 = vrot.slane %v6950, 1
    %v6952 = vadd.f32 %v6950, %v6951
    %v6953 = vadd.f32 %v6901, %v6903
    %v6954 = vadd.f32 %v6953, %v6905
    %v6955 = vadd.f32 %v6954, %v6907
    %v6956 = vadd.f32 %v6955, %v6909
    %v6957 = vadd.f32 %v6956, %v6911
    %v6958 = vadd.f32 %v6957, %v6913
    %v6959 = vadd.f32 %v6958, %v6915
    %v6960 = vadd.f32 %v6959, %v6917
    %v6961 = vadd.f32 %v6960, %v6919
    %v6962 = vadd.f32 %v6961, %v6921
    %v6963 = vadd.f32 %v6962, %v6923
    %v6964 = vadd.f32 %v6963, %v6925
    %v6965 = vadd.f32 %v6964, %v6927
    %v6966 = vadd.f32 %v6965, %v6929
    %v6967 = vadd.f32 %v6966, %v6931
    %v6968 = vrot.slane %v6967, 4
    %v6969 = vadd.f32 %v6967, %v6968
    %v6970 = vrot.slane %v6969, 2
    %v6971 = vadd.f32 %v6969, %v6970
    %v6972 = vrot.slane %v6971, 1
    %v6973 = vadd.f32 %v6971, %v6972
    %v6974 = vmul.f32 %v6952, %v6865
    %v6975 = vmul.f32 %v6973, %v6865
    %v6976 = vadd.f32 %v6974, 1e-05
    %v6977 = vadd.f32 %v6975, 1e-05
    %v6978 = vrsqrt.pop %v6976
    %v6979 = vmul.f32 %v6978, %v6976
    %v6980 = vmul.f32 %v6979, %v6978
    %v6981 = vmul.f32 0.5, %v6980
    %v6982 = vsub.f32 1.5, %v6981
    %v6983 = vmul.f32 %v6978, %v6982
    %vm6984 = vweird.f32 %v6976
    %vm6985 = vweird.f32 %v6978
    %vm6986 = vmor %vm6984, %vm6985
    %v6987 = vsel %vm6986, %v6978, %v6983
    %v6988 = vrsqrt.pop %v6977
    %v6989 = vmul.f32 %v6988, %v6977
    %v6990 = vmul.f32 %v6989, %v6988
    %v6991 = vmul.f32 0.5, %v6990
    %v6992 = vsub.f32 1.5, %v6991
    %v6993 = vmul.f32 %v6988, %v6992
    %vm6994 = vweird.f32 %v6977
    %vm6995 = vweird.f32 %v6988
    %vm6996 = vmor %vm6994, %vm6995
    %v6997 = vsel %vm6996, %v6988, %v6993
    %v6998 = vmul.f32 %v6868, %v6987
    %v6999 = vmul.f32 %v6869, %v6997
    %v7000 = vmul.f32 %v6870, %v6987
    %v7001 = vmul.f32 %v6871, %v6997
    %v7002 = vmul.f32 %v6872, %v6987
    %v7003 = vmul.f32 %v6873, %v6997
    %v7004 = vmul.f32 %v6874, %v6987
    %v7005 = vmul.f32 %v6875, %v6997
    %v7006 = vmul.f32 %v6876, %v6987
    %v7007 = vmul.f32 %v6877, %v6997
    %v7008 = vmul.f32 %v6878, %v6987
    %v7009 = vmul.f32 %v6879, %v6997
    %v7010 = vmul.f32 %v6880, %v6987
    %v7011 = vmul.f32 %v6881, %v6997
    %v7012 = vmul.f32 %v6882, %v6987
    %v7013 = vmul.f32 %v6883, %v6997
    %v7014 = vmul.f32 %v6884, %v6987
    %v7015 = vmul.f32 %v6885, %v6997
    %v7016 = vmul.f32 %v6886, %v6987
    %v7017 = vmul.f32 %v6887, %v6997
    %v7018 = vmul.f32 %v6888, %v6987
    %v7019 = vmul.f32 %v6889, %v6997
    %v7020 = vmul.f32 %v6890, %v6987
    %v7021 = vmul.f32 %v6891, %v6997
    %v7022 = vmul.f32 %v6892, %v6987
    %v7023 = vmul.f32 %v6893, %v6997
    %v7024 = vmul.f32 %v6894, %v6987
    %v7025 = vmul.f32 %v6895, %v6997
    %v7026 = vmul.f32 %v6896, %v6987
    %v7027 = vmul.f32 %v6897, %v6997
    %v7028 = vmul.f32 %v6898, %v6987
    %v7029 = vmul.f32 %v6899, %v6997
    %v7030 = vadd.f32 %v6785, %v6787
    %v7031 = vadd.f32 %v7030, %v6789
    %v7032 = vadd.f32 %v7031, %v6791
    %v7033 = vadd.f32 %v7032, %v6793
    %v7034 = vadd.f32 %v7033, %v6795
    %v7035 = vadd.f32 %v7034, %v6797
    %v7036 = vadd.f32 %v7035, %v6799
    %v7037 = vadd.f32 %v7036, %v6801
    %v7038 = vadd.f32 %v7037, %v6803
    %v7039 = vadd.f32 %v7038, %v6805
    %v7040 = vadd.f32 %v7039, %v6807
    %v7041 = vadd.f32 %v7040, %v6809
    %v7042 = vadd.f32 %v7041, %v6811
    %v7043 = vadd.f32 %v7042, %v6813
    %v7044 = vadd.f32 %v7043, %v6815
    %v7045 = vrot.slane %v7044, 4
    %v7046 = vadd.f32 %v7044, %v7045
    %v7047 = vrot.slane %v7046, 2
    %v7048 = vadd.f32 %v7046, %v7047
    %v7049 = vrot.slane %v7048, 1
    %v7050 = vadd.f32 %v7048, %v7049
    %v7051 = vadd.f32 %v6786, %v6788
    %v7052 = vadd.f32 %v7051, %v6790
    %v7053 = vadd.f32 %v7052, %v6792
    %v7054 = vadd.f32 %v7053, %v6794
    %v7055 = vadd.f32 %v7054, %v6796
    %v7056 = vadd.f32 %v7055, %v6798
    %v7057 = vadd.f32 %v7056, %v6800
    %v7058 = vadd.f32 %v7057, %v6802
    %v7059 = vadd.f32 %v7058, %v6804
    %v7060 = vadd.f32 %v7059, %v6806
    %v7061 = vadd.f32 %v7060, %v6808
    %v7062 = vadd.f32 %v7061, %v6810
    %v7063 = vadd.f32 %v7062, %v6812
    %v7064 = vadd.f32 %v7063, %v6814
    %v7065 = vadd.f32 %v7064, %v6816
    %v7066 = vrot.slane %v7065, 4
    %v7067 = vadd.f32 %v7065, %v7066
    %v7068 = vrot.slane %v7067, 2
    %v7069 = vadd.f32 %v7067, %v7068
    %v7070 = vrot.slane %v7069, 1
    %v7071 = vadd.f32 %v7069, %v7070
    %v7072 = vmul.f32 %v7050, %v6865
    %v7073 = vmul.f32 %v7071, %v6865
    %v7074 = vsub.f32 %v6785, %v7072
    %v7075 = vsub.f32 %v6786, %v7073
    %v7076 = vsub.f32 %v6787, %v7072
    %v7077 = vsub.f32 %v6788, %v7073
    %v7078 = vsub.f32 %v6789, %v7072
    %v7079 = vsub.f32 %v6790, %v7073
    %v7080 = vsub.f32 %v6791, %v7072
    %v7081 = vsub.f32 %v6792, %v7073
    %v7082 = vsub.f32 %v6793, %v7072
    %v7083 = vsub.f32 %v6794, %v7073
    %v7084 = vsub.f32 %v6795, %v7072
    %v7085 = vsub.f32 %v6796, %v7073
    %v7086 = vsub.f32 %v6797, %v7072
    %v7087 = vsub.f32 %v6798, %v7073
    %v7088 = vsub.f32 %v6799, %v7072
    %v7089 = vsub.f32 %v6800, %v7073
    %v7090 = vsub.f32 %v6801, %v7072
    %v7091 = vsub.f32 %v6802, %v7073
    %v7092 = vsub.f32 %v6803, %v7072
    %v7093 = vsub.f32 %v6804, %v7073
    %v7094 = vsub.f32 %v6805, %v7072
    %v7095 = vsub.f32 %v6806, %v7073
    %v7096 = vsub.f32 %v6807, %v7072
    %v7097 = vsub.f32 %v6808, %v7073
    %v7098 = vsub.f32 %v6809, %v7072
    %v7099 = vsub.f32 %v6810, %v7073
    %v7100 = vsub.f32 %v6811, %v7072
    %v7101 = vsub.f32 %v6812, %v7073
    %v7102 = vsub.f32 %v6813, %v7072
    %v7103 = vsub.f32 %v6814, %v7073
    %v7104 = vsub.f32 %v6815, %v7072
    %v7105 = vsub.f32 %v6816, %v7073
    %v7106 = vmul.f32 %v7074, %v7074
    %v7107 = vmul.f32 %v7075, %v7075
    %v7108 = vmul.f32 %v7076, %v7076
    %v7109 = vmul.f32 %v7077, %v7077
    %v7110 = vmul.f32 %v7078, %v7078
    %v7111 = vmul.f32 %v7079, %v7079
    %v7112 = vmul.f32 %v7080, %v7080
    %v7113 = vmul.f32 %v7081, %v7081
    %v7114 = vmul.f32 %v7082, %v7082
    %v7115 = vmul.f32 %v7083, %v7083
    %v7116 = vmul.f32 %v7084, %v7084
    %v7117 = vmul.f32 %v7085, %v7085
    %v7118 = vmul.f32 %v7086, %v7086
    %v7119 = vmul.f32 %v7087, %v7087
    %v7120 = vmul.f32 %v7088, %v7088
    %v7121 = vmul.f32 %v7089, %v7089
    %v7122 = vmul.f32 %v7090, %v7090
    %v7123 = vmul.f32 %v7091, %v7091
    %v7124 = vmul.f32 %v7092, %v7092
    %v7125 = vmul.f32 %v7093, %v7093
    %v7126 = vmul.f32 %v7094, %v7094
    %v7127 = vmul.f32 %v7095, %v7095
    %v7128 = vmul.f32 %v7096, %v7096
    %v7129 = vmul.f32 %v7097, %v7097
    %v7130 = vmul.f32 %v7098, %v7098
    %v7131 = vmul.f32 %v7099, %v7099
    %v7132 = vmul.f32 %v7100, %v7100
    %v7133 = vmul.f32 %v7101, %v7101
    %v7134 = vmul.f32 %v7102, %v7102
    %v7135 = vmul.f32 %v7103, %v7103
    %v7136 = vmul.f32 %v7104, %v7104
    %v7137 = vmul.f32 %v7105, %v7105
    %v7138 = vadd.f32 %v7106, %v7108
    %v7139 = vadd.f32 %v7138, %v7110
    %v7140 = vadd.f32 %v7139, %v7112
    %v7141 = vadd.f32 %v7140, %v7114
    %v7142 = vadd.f32 %v7141, %v7116
    %v7143 = vadd.f32 %v7142, %v7118
    %v7144 = vadd.f32 %v7143, %v7120
    %v7145 = vadd.f32 %v7144, %v7122
    %v7146 = vadd.f32 %v7145, %v7124
    %v7147 = vadd.f32 %v7146, %v7126
    %v7148 = vadd.f32 %v7147, %v7128
    %v7149 = vadd.f32 %v7148, %v7130
    %v7150 = vadd.f32 %v7149, %v7132
    %v7151 = vadd.f32 %v7150, %v7134
    %v7152 = vadd.f32 %v7151, %v7136
    %v7153 = vrot.slane %v7152, 4
    %v7154 = vadd.f32 %v7152, %v7153
    %v7155 = vrot.slane %v7154, 2
    %v7156 = vadd.f32 %v7154, %v7155
    %v7157 = vrot.slane %v7156, 1
    %v7158 = vadd.f32 %v7156, %v7157
    %v7159 = vadd.f32 %v7107, %v7109
    %v7160 = vadd.f32 %v7159, %v7111
    %v7161 = vadd.f32 %v7160, %v7113
    %v7162 = vadd.f32 %v7161, %v7115
    %v7163 = vadd.f32 %v7162, %v7117
    %v7164 = vadd.f32 %v7163, %v7119
    %v7165 = vadd.f32 %v7164, %v7121
    %v7166 = vadd.f32 %v7165, %v7123
    %v7167 = vadd.f32 %v7166, %v7125
    %v7168 = vadd.f32 %v7167, %v7127
    %v7169 = vadd.f32 %v7168, %v7129
    %v7170 = vadd.f32 %v7169, %v7131
    %v7171 = vadd.f32 %v7170, %v7133
    %v7172 = vadd.f32 %v7171, %v7135
    %v7173 = vadd.f32 %v7172, %v7137
    %v7174 = vrot.slane %v7173, 4
    %v7175 = vadd.f32 %v7173, %v7174
    %v7176 = vrot.slane %v7175, 2
    %v7177 = vadd.f32 %v7175, %v7176
    %v7178 = vrot.slane %v7177, 1
    %v7179 = vadd.f32 %v7177, %v7178
    %v7180 = vmul.f32 %v7158, %v6865
    %v7181 = vmul.f32 %v7179, %v6865
    %v7182 = vadd.f32 %v7180, 1e-05
    %v7183 = vadd.f32 %v7181, 1e-05
    %v7184 = vrsqrt.pop %v7182
    %v7185 = vmul.f32 %v7184, %v7182
    %v7186 = vmul.f32 %v7185, %v7184
    %v7187 = vmul.f32 0.5, %v7186
    %v7188 = vsub.f32 1.5, %v7187
    %v7189 = vmul.f32 %v7184, %v7188
    %vm7190 = vweird.f32 %v7182
    %vm7191 = vweird.f32 %v7184
    %vm7192 = vmor %vm7190, %vm7191
    %v7193 = vsel %vm7192, %v7184, %v7189
    %v7194 = vrsqrt.pop %v7183
    %v7195 = vmul.f32 %v7194, %v7183
    %v7196 = vmul.f32 %v7195, %v7194
    %v7197 = vmul.f32 0.5, %v7196
    %v7198 = vsub.f32 1.5, %v7197
    %v7199 = vmul.f32 %v7194, %v7198
    %vm7200 = vweird.f32 %v7183
    %vm7201 = vweird.f32 %v7194
    %vm7202 = vmor %vm7200, %vm7201
    %v7203 = vsel %vm7202, %v7194, %v7199
    %v7204 = vmul.f32 %v7074, %v7193
    %v7205 = vmul.f32 %v7075, %v7203
    %v7206 = vmul.f32 %v7076, %v7193
    %v7207 = vmul.f32 %v7077, %v7203
    %v7208 = vmul.f32 %v7078, %v7193
    %v7209 = vmul.f32 %v7079, %v7203
    %v7210 = vmul.f32 %v7080, %v7193
    %v7211 = vmul.f32 %v7081, %v7203
    %v7212 = vmul.f32 %v7082, %v7193
    %v7213 = vmul.f32 %v7083, %v7203
    %v7214 = vmul.f32 %v7084, %v7193
    %v7215 = vmul.f32 %v7085, %v7203
    %v7216 = vmul.f32 %v7086, %v7193
    %v7217 = vmul.f32 %v7087, %v7203
    %v7218 = vmul.f32 %v7088, %v7193
    %v7219 = vmul.f32 %v7089, %v7203
    %v7220 = vmul.f32 %v7090, %v7193
    %v7221 = vmul.f32 %v7091, %v7203
    %v7222 = vmul.f32 %v7092, %v7193
    %v7223 = vmul.f32 %v7093, %v7203
    %v7224 = vmul.f32 %v7094, %v7193
    %v7225 = vmul.f32 %v7095, %v7203
    %v7226 = vmul.f32 %v7096, %v7193
    %v7227 = vmul.f32 %v7097, %v7203
    %v7228 = vmul.f32 %v7098, %v7193
    %v7229 = vmul.f32 %v7099, %v7203
    %v7230 = vmul.f32 %v7100, %v7193
    %v7231 = vmul.f32 %v7101, %v7203
    %v7232 = vmul.f32 %v7102, %v7193
    %v7233 = vmul.f32 %v7103, %v7203
    %v7234 = vmul.f32 %v7104, %v7193
    %v7235 = vmul.f32 %v7105, %v7203
    %v7236 = vadd.f32 %v6998, %v7204
    %v7237 = vadd.f32 %v6999, %v7205
    %v7238 = vadd.f32 %v7000, %v7206
    %v7239 = vadd.f32 %v7001, %v7207
    %v7240 = vadd.f32 %v7002, %v7208
    %v7241 = vadd.f32 %v7003, %v7209
    %v7242 = vadd.f32 %v7004, %v7210
    %v7243 = vadd.f32 %v7005, %v7211
    %v7244 = vadd.f32 %v7006, %v7212
    %v7245 = vadd.f32 %v7007, %v7213
    %v7246 = vadd.f32 %v7008, %v7214
    %v7247 = vadd.f32 %v7009, %v7215
    %v7248 = vadd.f32 %v7010, %v7216
    %v7249 = vadd.f32 %v7011, %v7217
    %v7250 = vadd.f32 %v7012, %v7218
    %v7251 = vadd.f32 %v7013, %v7219
    %v7252 = vadd.f32 %v7014, %v7220
    %v7253 = vadd.f32 %v7015, %v7221
    %v7254 = vadd.f32 %v7016, %v7222
    %v7255 = vadd.f32 %v7017, %v7223
    %v7256 = vadd.f32 %v7018, %v7224
    %v7257 = vadd.f32 %v7019, %v7225
    %v7258 = vadd.f32 %v7020, %v7226
    %v7259 = vadd.f32 %v7021, %v7227
    %v7260 = vadd.f32 %v7022, %v7228
    %v7261 = vadd.f32 %v7023, %v7229
    %v7262 = vadd.f32 %v7024, %v7230
    %v7263 = vadd.f32 %v7025, %v7231
    %v7264 = vadd.f32 %v7026, %v7232
    %v7265 = vadd.f32 %v7027, %v7233
    %v7266 = vadd.f32 %v7028, %v7234
    %v7267 = vadd.f32 %v7029, %v7235
    %v7268 = vld [vmem:[%s2] sm:$0xff]
    %v7269 = vld [vmem:[%s2 + $0x8] sm:$0xff]
    %v7270 = vld [vmem:[%s2 + $0x10] sm:$0xff]
    %v7271 = vld [vmem:[%s2 + $0x18] sm:$0xff]
    %v7272 = vld [vmem:[%s2 + $0x20] sm:$0xff]
    %v7273 = vld [vmem:[%s2 + $0x28] sm:$0xff]
    %v7274 = vld [vmem:[%s2 + $0x30] sm:$0xff]
    %v7275 = vld [vmem:[%s2 + $0x38] sm:$0xff]
    %v7276 = vld [vmem:[%s2 + $0x40] sm:$0xff]
    %v7277 = vld [vmem:[%s2 + $0x48] sm:$0xff]
    %v7278 = vld [vmem:[%s2 + $0x50] sm:$0xff]
    %v7279 = vld [vmem:[%s2 + $0x58] sm:$0xff]
    %v7280 = vld [vmem:[%s2 + $0x60] sm:$0xff]
    %v7281 = vld [vmem:[%s2 + $0x68] sm:$0xff]
    %v7282 = vld [vmem:[%s2 + $0x70] sm:$0xff]
    %v7283 = vld [vmem:[%s2 + $0x78] sm:$0xff]
    %v7284 = vld [vmem:[%s2 + $0x80] sm:$0xff]
    %v7285 = vld [vmem:[%s2 + $0x88] sm:$0xff]
    %v7286 = vld [vmem:[%s2 + $0x90] sm:$0xff]
    %v7287 = vld [vmem:[%s2 + $0x98] sm:$0xff]
    %v7288 = vld [vmem:[%s2 + $0xa0] sm:$0xff]
    %v7289 = vld [vmem:[%s2 + $0xa8] sm:$0xff]
    %v7290 = vld [vmem:[%s2 + $0xb0] sm:$0xff]
    %v7291 = vld [vmem:[%s2 + $0xb8] sm:$0xff]
    %v7292 = vld [vmem:[%s2 + $0xc0] sm:$0xff]
    %v7293 = vld [vmem:[%s2 + $0xc8] sm:$0xff]
    %v7294 = vld [vmem:[%s2 + $0xd0] sm:$0xff]
    %v7295 = vld [vmem:[%s2 + $0xd8] sm:$0xff]
    %v7296 = vld [vmem:[%s2 + $0xe0] sm:$0xff]
    %v7297 = vld [vmem:[%s2 + $0xe8] sm:$0xff]
    %v7298 = vld [vmem:[%s2 + $0xf0] sm:$0xff]
    %v7299 = vld [vmem:[%s2 + $0xf8] sm:$0xff]
    %v7300 = vld [vmem:[%s2 + $0x100] sm:$0xff]
    %v7301 = vld [vmem:[%s2 + $0x108] sm:$0xff]
    %v7302 = vld [vmem:[%s2 + $0x110] sm:$0xff]
    %v7303 = vld [vmem:[%s2 + $0x118] sm:$0xff]
    %v7304 = vld [vmem:[%s2 + $0x120] sm:$0xff]
    %v7305 = vld [vmem:[%s2 + $0x128] sm:$0xff]
    %v7306 = vld [vmem:[%s2 + $0x130] sm:$0xff]
    %v7307 = vld [vmem:[%s2 + $0x138] sm:$0xff]
    %v7308 = vld [vmem:[%s2 + $0x140] sm:$0xff]
    %v7309 = vld [vmem:[%s2 + $0x148] sm:$0xff]
    %v7310 = vld [vmem:[%s2 + $0x150] sm:$0xff]
    %v7311 = vld [vmem:[%s2 + $0x158] sm:$0xff]
    %v7312 = vld [vmem:[%s2 + $0x160] sm:$0xff]
    %v7313 = vld [vmem:[%s2 + $0x168] sm:$0xff]
    %v7314 = vld [vmem:[%s2 + $0x170] sm:$0xff]
    %v7315 = vld [vmem:[%s2 + $0x178] sm:$0xff]
    %v7316 = vld [vmem:[%s2 + $0x180] sm:$0xff]
    %v7317 = vld [vmem:[%s2 + $0x188] sm:$0xff]
    %v7318 = vld [vmem:[%s2 + $0x190] sm:$0xff]
    %v7319 = vld [vmem:[%s2 + $0x198] sm:$0xff]
    %v7320 = vld [vmem:[%s2 + $0x1a0] sm:$0xff]
    %v7321 = vld [vmem:[%s2 + $0x1a8] sm:$0xff]
    %v7322 = vld [vmem:[%s2 + $0x1b0] sm:$0xff]
    %v7323 = vld [vmem:[%s2 + $0x1b8] sm:$0xff]
    %v7324 = vld [vmem:[%s2 + $0x1c0] sm:$0xff]
    %v7325 = vld [vmem:[%s2 + $0x1c8] sm:$0xff]
    %v7326 = vld [vmem:[%s2 + $0x1d0] sm:$0xff]
    %v7327 = vld [vmem:[%s2 + $0x1d8] sm:$0xff]
    %v7328 = vld [vmem:[%s2 + $0x1e0] sm:$0xff]
    %v7329 = vld [vmem:[%s2 + $0x1e8] sm:$0xff]
    %v7330 = vld [vmem:[%s2 + $0x1f0] sm:$0xff]
    %v7331 = vld [vmem:[%s2 + $0x1f8] sm:$0xff]
    %v7332 = vld [vmem:[%s3] sm:$0x3]
    %v7334 = vperm.slane %v7332, 0
    %v7335 = vperm.slane %v7332, 1
    %7338 = vmatpush.msra.mxu0 %v7298
    %7339 = vmatpush.msra.mxu0 %v7296
    %7340 = vmatpush.msra.mxu0 %v7294
    %7341 = vmatpush.msra.mxu0 %v7292
    %7342 = vmatpush.msra.mxu0 %v7290
    %7343 = vmatpush.msra.mxu0 %v7288
    %7344 = vmatpush.msra.mxu0 %v7286
    %7345 = vmatpush.msra.mxu0 %v7284
    %7346 = vmatpush.msra.mxu0 %v7282
    %7347 = vmatpush.msra.mxu0 %v7280
    %7348 = vmatpush.msra.mxu0 %v7278
    %7349 = vmatpush.msra.mxu0 %v7276
    %7350 = vmatpush.msra.mxu0 %v7274
    %7351 = vmatpush.msra.mxu0 %v7272
    %7352 = vmatpush.msra.mxu0 %v7270
    %7353 = vmatpush.msra.mxu0 %v7268
    %7354 = vmatmul.f32.gmra.mxu0 %v7236
    %v7355 = vpop.f32.mrf.mxu0
    %v7356 = vadd.f32 %v7334, %v7355
    %7357 = vmatmul.f32.gmra.mxu0 %v7238
    %v7358 = vpop.f32.mrf.mxu0
    %v7359 = vadd.f32 %v7334, %v7358
    %7360 = vmatmul.f32.gmra.mxu0 %v7240
    %v7361 = vpop.f32.mrf.mxu0
    %v7362 = vadd.f32 %v7334, %v7361
    %7363 = vmatmul.f32.gmra.mxu0 %v7242
    %v7364 = vpop.f32.mrf.mxu0
    %v7365 = vadd.f32 %v7334, %v7364
    %7366 = vmatmul.f32.gmra.mxu0 %v7244
    %v7367 = vpop.f32.mrf.mxu0
    %v7368 = vadd.f32 %v7334, %v7367
    %7369 = vmatmul.f32.gmra.mxu0 %v7246
    %v7370 = vpop.f32.mrf.mxu0
    %v7371 = vadd.f32 %v7334, %v7370
    %7372 = vmatmul.f32.gmra.mxu0 %v7248
    %v7373 = vpop.f32.mrf.mxu0
    %v7374 = vadd.f32 %v7334, %v7373
    %7375 = vmatmul.f32.gmra.mxu0 %v7250
    %v7376 = vpop.f32.mrf.mxu0
    %v7377 = vadd.f32 %v7334, %v7376
    %7378 = vmatmul.f32.gmra.mxu0 %v7252
    %v7379 = vpop.f32.mrf.mxu0
    %v7380 = vadd.f32 %v7334, %v7379
    %7381 = vmatmul.f32.gmra.mxu0 %v7254
    %v7382 = vpop.f32.mrf.mxu0
    %v7383 = vadd.f32 %v7334, %v7382
    %7384 = vmatmul.f32.gmra.mxu0 %v7256
    %v7385 = vpop.f32.mrf.mxu0
    %v7386 = vadd.f32 %v7334, %v7385
    %7387 = vmatmul.f32.gmra.mxu0 %v7258
    %v7388 = vpop.f32.mrf.mxu0
    %v7389 = vadd.f32 %v7334, %v7388
    %7390 = vmatmul.f32.gmra.mxu0 %v7260
    %v7391 = vpop.f32.mrf.mxu0
    %v7392 = vadd.f32 %v7334, %v7391
    %7393 = vmatmul.f32.gmra.mxu0 %v7262
    %v7394 = vpop.f32.mrf.mxu0
    %v7395 = vadd.f32 %v7334, %v7394
    %7396 = vmatmul.f32.gmra.mxu0 %v7264
    %v7397 = vpop.f32.mrf.mxu0
    %v7398 = vadd.f32 %v7334, %v7397
    %7399 = vmatmul.f32.gmra.mxu0 %v7266
    %v7400 = vpop.f32.mrf.mxu0
    %v7401 = vadd.f32 %v7334, %v7400
    %7402 = vdwg.mxu0
    %7403 = vmatpush.msra.mxu0 %v7330
    %7404 = vmatpush.msra.mxu0 %v7328
    %7405 = vmatpush.msra.mxu0 %v7326
    %7406 = vmatpush.msra.mxu0 %v7324
    %7407 = vmatpush.msra.mxu0 %v7322
    %7408 = vmatpush.msra.mxu0 %v7320
    %7409 = vmatpush.msra.mxu0 %v7318
    %7410 = vmatpush.msra.mxu0 %v7316
    %7411 = vmatpush.msra.mxu0 %v7314
    %7412 = vmatpush.msra.mxu0 %v7312
    %7413 = vmatpush.msra.mxu0 %v7310
    %7414 = vmatpush.msra.mxu0 %v7308
    %7415 = vmatpush.msra.mxu0 %v7306
    %7416 = vmatpush.msra.mxu0 %v7304
    %7417 = vmatpush.msra.mxu0 %v7302
    %7418 = vmatpush.msra.mxu0 %v7300
    %7419 = vmatmul.f32.gmra.mxu0 %v7237
    %v7420 = vpop.f32.mrf.mxu0
    %v7421 = vadd.f32 %v7356, %v7420
    %7422 = vmatmul.f32.gmra.mxu0 %v7239
    %v7423 = vpop.f32.mrf.mxu0
    %v7424 = vadd.f32 %v7359, %v7423
    %7425 = vmatmul.f32.gmra.mxu0 %v7241
    %v7426 = vpop.f32.mrf.mxu0
    %v7427 = vadd.f32 %v7362, %v7426
    %7428 = vmatmul.f32.gmra.mxu0 %v7243
    %v7429 = vpop.f32.mrf.mxu0
    %v7430 = vadd.f32 %v7365, %v7429
    %7431 = vmatmul.f32.gmra.mxu0 %v7245
    %v7432 = vpop.f32.mrf.mxu0
    %v7433 = vadd.f32 %v7368, %v7432
    %7434 = vmatmul.f32.gmra.mxu0 %v7247
    %v7435 = vpop.f32.mrf.mxu0
    %v7436 = vadd.f32 %v7371, %v7435
    %7437 = vmatmul.f32.gmra.mxu0 %v7249
    %v7438 = vpop.f32.mrf.mxu0
    %v7439 = vadd.f32 %v7374, %v7438
    %7440 = vmatmul.f32.gmra.mxu0 %v7251
    %v7441 = vpop.f32.mrf.mxu0
    %v7442 = vadd.f32 %v7377, %v7441
    %7443 = vmatmul.f32.gmra.mxu0 %v7253
    %v7444 = vpop.f32.mrf.mxu0
    %v7445 = vadd.f32 %v7380, %v7444
    %7446 = vmatmul.f32.gmra.mxu0 %v7255
    %v7447 = vpop.f32.mrf.mxu0
    %v7448 = vadd.f32 %v7383, %v7447
    %7449 = vmatmul.f32.gmra.mxu0 %v7257
    %v7450 = vpop.f32.mrf.mxu0
    %v7451 = vadd.f32 %v7386, %v7450
    %7452 = vmatmul.f32.gmra.mxu0 %v7259
    %v7453 = vpop.f32.mrf.mxu0
    %v7454 = vadd.f32 %v7389, %v7453
    %7455 = vmatmul.f32.gmra.mxu0 %v7261
    %v7456 = vpop.f32.mrf.mxu0
    %v7457 = vadd.f32 %v7392, %v7456
    %7458 = vmatmul.f32.gmra.mxu0 %v7263
    %v7459 = vpop.f32.mrf.mxu0
    %v7460 = vadd.f32 %v7395, %v7459
    %7461 = vmatmul.f32.gmra.mxu0 %v7265
    %v7462 = vpop.f32.mrf.mxu0
    %v7463 = vadd.f32 %v7398, %v7462
    %7464 = vmatmul.f32.gmra.mxu0 %v7267
    %v7465 = vpop.f32.mrf.mxu0
    %v7466 = vadd.f32 %v7401, %v7465
    %7467 = vdwg.mxu0
    %7468 = vmatpush.msra.mxu0 %v7299
    %7469 = vmatpush.msra.mxu0 %v7297
    %7470 = vmatpush.msra.mxu0 %v7295
    %7471 = vmatpush.msra.mxu0 %v7293
    %7472 = vmatpush.msra.mxu0 %v7291
    %7473 = vmatpush.msra.mxu0 %v7289
    %7474 = vmatpush.msra.mxu0 %v7287
    %7475 = vmatpush.msra.mxu0 %v7285
    %7476 = vmatpush.msra.mxu0 %v7283
    %7477 = vmatpush.msra.mxu0 %v7281
    %7478 = vmatpush.msra.mxu0 %v7279
    %7479 = vmatpush.msra.mxu0 %v7277
    %7480 = vmatpush.msra.mxu0 %v7275
    %7481 = vmatpush.msra.mxu0 %v7273
    %7482 = vmatpush.msra.mxu0 %v7271
    %7483 = vmatpush.msra.mxu0 %v7269
    %7484 = vmatmul.f32.gmra.mxu0 %v7236
    %v7485 = vpop.f32.mrf.mxu0
    %v7486 = vadd.f32 %v7335, %v7485
    %7487 = vmatmul.f32.gmra.mxu0 %v7238
    %v7488 = vpop.f32.mrf.mxu0
    %v7489 = vadd.f32 %v7335, %v7488
    %7490 = vmatmul.f32.gmra.mxu0 %v7240
    %v7491 = vpop.f32.mrf.mxu0
    %v7492 = vadd.f32 %v7335, %v7491
    %7493 = vmatmul.f32.gmra.mxu0 %v7242
    %v7494 = vpop.f32.mrf.mxu0
    %v7495 = vadd.f32 %v7335, %v7494
    %7496 = vmatmul.f32.gmra.mxu0 %v7244
    %v7497 = vpop.f32.mrf.mxu0
    %v7498 = vadd.f32 %v7335, %v7497
    %7499 = vmatmul.f32.gmra.mxu0 %v7246
    %v7500 = vpop.f32.mrf.mxu0
    %v7501 = vadd.f32 %v7335, %v7500
    %7502 = vmatmul.f32.gmra.mxu0 %v7248
    %v7503 = vpop.f32.mrf.mxu0
    %v7504 = vadd.f32 %v7335, %v7503
    %7505 = vmatmul.f32.gmra.mxu0 %v7250
    %v7506 = vpop.f32.mrf.mxu0
    %v7507 = vadd.f32 %v7335, %v7506
    %7508 = vmatmul.f32.gmra.mxu0 %v7252
    %v7509 = vpop.f32.mrf.mxu0
    %v7510 = vadd.f32 %v7335, %v7509
    %7511 = vmatmul.f32.gmra.mxu0 %v7254
    %v7512 = vpop.f32.mrf.mxu0
    %v7513 = vadd.f32 %v7335, %v7512
    %7514 = vmatmul.f32.gmra.mxu0 %v7256
    %v7515 = vpop.f32.mrf.mxu0
    %v7516 = vadd.f32 %v7335, %v7515
    %7517 = vmatmul.f32.gmra.mxu0 %v7258
    %v7518 = vpop.f32.mrf.mxu0
    %v7519 = vadd.f32 %v7335, %v7518
    %7520 = vmatmul.f32.gmra.mxu0 %v7260
    %v7521 = vpop.f32.mrf.mxu0
    %v7522 = vadd.f32 %v7335, %v7521
    %7523 = vmatmul.f32.gmra.mxu0 %v7262
    %v7524 = vpop.f32.mrf.mxu0
    %v7525 = vadd.f32 %v7335, %v7524
    %7526 = vmatmul.f32.gmra.mxu0 %v7264
    %v7527 = vpop.f32.mrf.mxu0
    %v7528 = vadd.f32 %v7335, %v7527
    %7529 = vmatmul.f32.gmra.mxu0 %v7266
    %v7530 = vpop.f32.mrf.mxu0
    %v7531 = vadd.f32 %v7335, %v7530
    %7532 = vdwg.mxu0
    %7533 = vmatpush.msra.mxu0 %v7331
    %7534 = vmatpush.msra.mxu0 %v7329
    %7535 = vmatpush.msra.mxu0 %v7327
    %7536 = vmatpush.msra.mxu0 %v7325
    %7537 = vmatpush.msra.mxu0 %v7323
    %7538 = vmatpush.msra.mxu0 %v7321
    %7539 = vmatpush.msra.mxu0 %v7319
    %7540 = vmatpush.msra.mxu0 %v7317
    %7541 = vmatpush.msra.mxu0 %v7315
    %7542 = vmatpush.msra.mxu0 %v7313
    %7543 = vmatpush.msra.mxu0 %v7311
    %7544 = vmatpush.msra.mxu0 %v7309
    %7545 = vmatpush.msra.mxu0 %v7307
    %7546 = vmatpush.msra.mxu0 %v7305
    %7547 = vmatpush.msra.mxu0 %v7303
    %7548 = vmatpush.msra.mxu0 %v7301
    %7549 = vmatmul.f32.gmra.mxu0 %v7237
    %v7550 = vpop.f32.mrf.mxu0
    %v7551 = vadd.f32 %v7486, %v7550
    %7552 = vmatmul.f32.gmra.mxu0 %v7239
    %v7553 = vpop.f32.mrf.mxu0
    %v7554 = vadd.f32 %v7489, %v7553
    %7555 = vmatmul.f32.gmra.mxu0 %v7241
    %v7556 = vpop.f32.mrf.mxu0
    %v7557 = vadd.f32 %v7492, %v7556
    %7558 = vmatmul.f32.gmra.mxu0 %v7243
    %v7559 = vpop.f32.mrf.mxu0
    %v7560 = vadd.f32 %v7495, %v7559
    %7561 = vmatmul.f32.gmra.mxu0 %v7245
    %v7562 = vpop.f32.mrf.mxu0
    %v7563 = vadd.f32 %v7498, %v7562
    %7564 = vmatmul.f32.gmra.mxu0 %v7247
    %v7565 = vpop.f32.mrf.mxu0
    %v7566 = vadd.f32 %v7501, %v7565
    %7567 = vmatmul.f32.gmra.mxu0 %v7249
    %v7568 = vpop.f32.mrf.mxu0
    %v7569 = vadd.f32 %v7504, %v7568
    %7570 = vmatmul.f32.gmra.mxu0 %v7251
    %v7571 = vpop.f32.mrf.mxu0
    %v7572 = vadd.f32 %v7507, %v7571
    %7573 = vmatmul.f32.gmra.mxu0 %v7253
    %v7574 = vpop.f32.mrf.mxu0
    %v7575 = vadd.f32 %v7510, %v7574
    %7576 = vmatmul.f32.gmra.mxu0 %v7255
    %v7577 = vpop.f32.mrf.mxu0
    %v7578 = vadd.f32 %v7513, %v7577
    %7579 = vmatmul.f32.gmra.mxu0 %v7257
    %v7580 = vpop.f32.mrf.mxu0
    %v7581 = vadd.f32 %v7516, %v7580
    %7582 = vmatmul.f32.gmra.mxu0 %v7259
    %v7583 = vpop.f32.mrf.mxu0
    %v7584 = vadd.f32 %v7519, %v7583
    %7585 = vmatmul.f32.gmra.mxu0 %v7261
    %v7586 = vpop.f32.mrf.mxu0
    %v7587 = vadd.f32 %v7522, %v7586
    %7588 = vmatmul.f32.gmra.mxu0 %v7263
    %v7589 = vpop.f32.mrf.mxu0
    %v7590 = vadd.f32 %v7525, %v7589
    %7591 = vmatmul.f32.gmra.mxu0 %v7265
    %v7592 = vpop.f32.mrf.mxu0
    %v7593 = vadd.f32 %v7528, %v7592
    %7594 = vmatmul.f32.gmra.mxu0 %v7267
    %v7595 = vpop.f32.mrf.mxu0
    %v7596 = vadd.f32 %v7531, %v7595
    %7597 = vdwg.mxu0
    %v7598 = vmax.f32 %v7421, 0.0
    %v7599 = vmax.f32 %v7551, 0.0
    %v7600 = vmax.f32 %v7424, 0.0
    %v7601 = vmax.f32 %v7554, 0.0
    %v7602 = vmax.f32 %v7427, 0.0
    %v7603 = vmax.f32 %v7557, 0.0
    %v7604 = vmax.f32 %v7430, 0.0
    %v7605 = vmax.f32 %v7560, 0.0
    %v7606 = vmax.f32 %v7433, 0.0
    %v7607 = vmax.f32 %v7563, 0.0
    %v7608 = vmax.f32 %v7436, 0.0
    %v7609 = vmax.f32 %v7566, 0.0
    %v7610 = vmax.f32 %v7439, 0.0
    %v7611 = vmax.f32 %v7569, 0.0
    %v7612 = vmax.f32 %v7442, 0.0
    %v7613 = vmax.f32 %v7572, 0.0
    %v7614 = vmax.f32 %v7445, 0.0
    %v7615 = vmax.f32 %v7575, 0.0
    %v7616 = vmax.f32 %v7448, 0.0
    %v7617 = vmax.f32 %v7578, 0.0
    %v7618 = vmax.f32 %v7451, 0.0
    %v7619 = vmax.f32 %v7581, 0.0
    %v7620 = vmax.f32 %v7454, 0.0
    %v7621 = vmax.f32 %v7584, 0.0
    %v7622 = vmax.f32 %v7457, 0.0
    %v7623 = vmax.f32 %v7587, 0.0
    %v7624 = vmax.f32 %v7460, 0.0
    %v7625 = vmax.f32 %v7590, 0.0
    %v7626 = vmax.f32 %v7463, 0.0
    %v7627 = vmax.f32 %v7593, 0.0
    %v7628 = vmax.f32 %v7466, 0.0
    %v7629 = vmax.f32 %v7596, 0.0
    %7630 = vst [vmem:[#allocation2] sm:$0xff] %v7598
    %7631 = vst [vmem:[#allocation2 + $0x8] sm:$0xff] %v7599
    %7632 = vst [vmem:[#allocation2 + $0x10] sm:$0xff] %v7600
    %7633 = vst [vmem:[#allocation2 + $0x18] sm:$0xff] %v7601
    %7634 = vst [vmem:[#allocation2 + $0x20] sm:$0xff] %v7602
    %7635 = vst [vmem:[#allocation2 + $0x28] sm:$0xff] %v7603
    %7636 = vst [vmem:[#allocation2 + $0x30] sm:$0xff] %v7604
    %7637 = vst [vmem:[#allocation2 + $0x38] sm:$0xff] %v7605
    %7638 = vst [vmem:[#allocation2 + $0x40] sm:$0xff] %v7606
    %7639 = vst [vmem:[#allocation2 + $0x48] sm:$0xff] %v7607
    %7640 = vst [vmem:[#allocation2 + $0x50] sm:$0xff] %v7608
    %7641 = vst [vmem:[#allocation2 + $0x58] sm:$0xff] %v7609
    %7642 = vst [vmem:[#allocation2 + $0x60] sm:$0xff] %v7610
    %7643 = vst [vmem:[#allocation2 + $0x68] sm:$0xff] %v7611
    %7644 = vst [vmem:[#allocation2 + $0x70] sm:$0xff] %v7612
    %7645 = vst [vmem:[#allocation2 + $0x78] sm:$0xff] %v7613
    %7646 = vst [vmem:[#allocation2 + $0x80] sm:$0xff] %v7614
    %7647 = vst [vmem:[#allocation2 + $0x88] sm:$0xff] %v7615
    %7648 = vst [vmem:[#allocation2 + $0x90] sm:$0xff] %v7616
    %7649 = vst [vmem:[#allocation2 + $0x98] sm:$0xff] %v7617
    %7650 = vst [vmem:[#allocation2 + $0xa0] sm:$0xff] %v7618
    %7651 = vst [vmem:[#allocation2 + $0xa8] sm:$0xff] %v7619
    %7652 = vst [vmem:[#allocation2 + $0xb0] sm:$0xff] %v7620
    %7653 = vst [vmem:[#allocation2 + $0xb8] sm:$0xff] %v7621
    %7654 = vst [vmem:[#allocation2 + $0xc0] sm:$0xff] %v7622
    %7655 = vst [vmem:[#allocation2 + $0xc8] sm:$0xff] %v7623
    %7656 = vst [vmem:[#allocation2 + $0xd0] sm:$0xff] %v7624
    %7657 = vst [vmem:[#allocation2 + $0xd8] sm:$0xff] %v7625
    %7658 = vst [vmem:[#allocation2 + $0xe0] sm:$0xff] %v7626
    %7659 = vst [vmem:[#allocation2 + $0xe8] sm:$0xff] %v7627
    %7660 = vst [vmem:[#allocation2 + $0xf0] sm:$0xff] %v7628
    %7661 = vst [vmem:[#allocation2 + $0xf8] sm:$0xff] %v7629
    // Predicated region
    $region18: #{fuse_add_1.1} parent=1 // pred_check
      _
    $region19: #{fuse_add_1.1} parent=1 // pred_check_branch
      %7663 = sbr.rel (0) target = $region21
    $region20: #{fuse_add_1.1} parent=1 // pred_region
      %7665 = vsyncadd [#allocation3], 0
      %s7666 = sshll.u32 [#allocation2], 4
      %s7667 = int_to_ptr.vmem [resolvable:$true] %s7666
      %s7668 = sshll.u32 %s4, 4
      %s7669 = int_to_ptr.hbm [resolvable:$true] %s7668
      %7674 = dma.vmem_to_hbm [thread:$0]  %s7667, 4096, %s7669, [#allocation3], 256, 256, 16
    $region21: #{fuse_add_1.1} parent=1 // pred_fallthru
      _
    // Predicated region
    $region22: #{fuse_add_1.1} parent=1 // pred_check
      _
    $region23: #{fuse_add_1.1} parent=1 // pred_check_branch
      %7676 = sbr.rel (0) target = $region25
    $region24: #{fuse_add_1.1} parent=1 // pred_region
      %7678 = dma.done [#allocation3], 4096
    $region25: #{fuse_add_1.1} parent=1 // pred_fallthru
      _
    %7679 = vsyncpa [#allocation3], 1

</llo_original>
